<compile_context>
chip_gen: v7x
topology: tpu7x:2x2x1
jax: 0.10.0
libtpu: 0.0.40
codegen_flags: <defaults>
</compile_context>

<pallas_src>
import functools

import jax
import jax.numpy as jnp
import numpy as np
from jax import lax
from jax.experimental import pallas as pl
from jax.experimental.pallas import tpu as pltpu


# ----------------------------------------------------------------------------
# Shared GRU cell (gate blocks padded to G lanes each; slices are 128-aligned)
# ----------------------------------------------------------------------------
def _gru_cell(x, h, wih, whh, bih, bhh, G):
    gi = jnp.dot(x, wih, preferred_element_type=jnp.float32) + bih   # (B, 3G)
    gh = jnp.dot(h, whh, preferred_element_type=jnp.float32) + bhh   # (B, 3G)
    r = jax.nn.sigmoid(gi[:, 0:G] + gh[:, 0:G])
    z = jax.nn.sigmoid(gi[:, G:2 * G] + gh[:, G:2 * G])
    n = jnp.tanh(gi[:, 2 * G:3 * G] + r * gh[:, 2 * G:3 * G])
    return (1.0 - z) * n + z * h


# ----------------------------------------------------------------------------
# Fused kernel: grid step 0 = Encoder recurrence, grid step 1 = Decoder
# ----------------------------------------------------------------------------
def _fused_kernel(pose_ref, lang_ref,
                  e_wih_ref, e_whh_ref, e_bih_ref, e_bhh_ref,
                  d_wih_ref, d_whh_ref, d_bih_ref, d_bhh_ref,
                  d_wtp_ref, d_btp_ref,
                  enc_out_ref, dec_out_ref,
                  *, B, T, H, F, G):
    branch = pl.program_id(0)

    # ----- grid step 0: Encoder (nn.GRU, batch_first, h0 = 0) ---------------
    @pl.when(branch == 0)
    def _encoder_branch():
        wih = e_wih_ref[...]
        whh = e_whh_ref[...]
        bih = jnp.broadcast_to(e_bih_ref[...], (B, 3 * G))   # hoisted
        bhh = jnp.broadcast_to(e_bhh_ref[...], (B, 3 * G))
        h = jnp.zeros((B, G), jnp.float32)
        for t in range(T):                                   # static unroll
            x_t = pose_ref[:, t, :].astype(jnp.float32)      # (B, F) in-kernel
            h = _gru_cell(x_t, h, wih, whh, bih, bhh, G)
            # VMEM-resident output block; single HBM flush after the branch.
            enc_out_ref[:, t, :] = h[:, :H].astype(enc_out_ref.dtype)

    # ----- grid step 1: Decoder (GRUCell + TrajectoryPredictor + residual) --
    @pl.when(branch == 1)
    def _decoder_branch():
        wih = d_wih_ref[...]
        whh = d_whh_ref[...]
        wtp = d_wtp_ref[...]
        bih = jnp.broadcast_to(d_bih_ref[...], (B, 3 * G))
        bhh = jnp.broadcast_to(d_bhh_ref[...], (B, 3 * G))
        btp = jnp.broadcast_to(d_btp_ref[...], (B, F))
        lang = lang_ref[...].astype(jnp.float32)             # (B, H)
        if G > H:                                            # pad h0 to G lanes
            h = jnp.concatenate(
                [lang, jnp.zeros((B, G - H), jnp.float32)], axis=-1)
        else:
            h = lang
        x = pose_ref[:, 0, :].astype(jnp.float32)            # gt[:, 0, :]
        for t in range(T):                                   # static unroll
            h = _gru_cell(x, h, wih, whh, bih, bhh, G)
            # Fused TrajectoryPredictor + residual: y = x + [lp(h), fc(.)]
            x = x + jnp.dot(h, wtp, preferred_element_type=jnp.float32) + btp
            # teacher-forcing mask == 0 for epoch == inf  =>  next input is y
            dec_out_ref[:, t, :] = x.astype(dec_out_ref.dtype)


def _replicated_spec(arr):
    nd = arr.ndim
    return pl.BlockSpec(arr.shape, lambda i, _nd=nd: (0,) * _nd)


# ----------------------------------------------------------------------------
# Full module forward (train=False path).  The original module returns
# (pose_dec, internal_losses); pose_enc is computed-but-unused there and is
# returned here as a third value so it is not dead-code-eliminated and can be
# verified.
# ----------------------------------------------------------------------------
@jax.jit
def seq2seq_conditioned9_forward(pose, s2v, params):
    B, T, F = pose.shape
    H = s2v.shape[-1]
    G = params["enc_whh"].shape[0]          # padded hidden width (static)

    operands = (pose, s2v,
                params["enc_wih"], params["enc_whh"],
                params["enc_bih"], params["enc_bhh"],
                params["dec_wih"], params["dec_whh"],
                params["dec_bih"], params["dec_bhh"],
                params["dec_wtp"], params["dec_btp"])

    kernel = functools.partial(_fused_kernel, B=B, T=T, H=H, F=F, G=G)
    enc_out, dec_out = pl.pallas_call(
        kernel,
        grid=(2,),
        in_specs=[_replicated_spec(x) for x in operands],
        out_specs=[pl.BlockSpec((None, B, T, H), lambda i: (i, 0, 0, 0)),
                   pl.BlockSpec((None, B, T, F), lambda i: (i, 0, 0, 0))],
        out_shape=(jax.ShapeDtypeStruct((2, B, T, H), jnp.float32),
                   jax.ShapeDtypeStruct((2, B, T, F), jnp.float32)),
        compiler_params=pltpu.CompilerParams(
            dimension_semantics=("parallel",)),
    )(*operands)

    pose_enc = enc_out[0]        # written by grid step 0 (block 1 is unused)
    pose_dec = dec_out[1]        # written by grid step 1 (block 0 is unused)
    internal_losses = []
    return pose_dec, internal_losses, pose_enc


# ----------------------------------------------------------------------------
# One-time parameter preparation (fusion + lane padding), outside the jitted
# forward path.
# ----------------------------------------------------------------------------
def _pad_gate_blocks(w, H, G):
    """(K, 3H) -> (K, 3G): zero-pad each of the 3 gate blocks to G lanes."""
    if G == H:
        return w
    K = w.shape[0]
    w3 = w.reshape(K, 3, H)
    w3 = jnp.pad(w3, ((0, 0), (0, 0), (0, G - H)))
    return w3.reshape(K, 3 * G)


def _pad_rows(w, H, G):
    """(H, N) -> (G, N): zero-pad the contraction rows to G."""
    if G == H:
        return w
    return jnp.pad(w, ((0, G - H), (0, 0)))


def prepare_params(raw):
    enc, dec = raw["enc"], raw["dec"]
    H = enc["whh_t"].shape[0]
    G = -(-H // 128) * 128                     # each gate block -> 128-aligned
    hi = jax.lax.Precision.HIGHEST

    # Fused TrajectoryPredictor (exact linear composition):
    #   pose_vec = h @ wlp_t + blp
    #   traj     = pose_vec @ wfcp_t + h @ wfch_t + bfc
    w_tp = jnp.concatenate(
        [dec["wlp_t"],
         jnp.dot(dec["wlp_t"], dec["wfcp_t"], precision=hi) + dec["wfch_t"]],
        axis=1)                                               # (H, F)
    b_tp = jnp.concatenate(
        [dec["blp"],
         jnp.dot(dec["blp"], dec["wfcp_t"], precision=hi) + dec["bfc"]],
        axis=1)                                               # (1, F)

    return {
        "enc_wih": _pad_gate_blocks(enc["wih_t"], H, G),          # (F, 3G)
        "enc_whh": _pad_rows(_pad_gate_blocks(enc["whh_t"], H, G), H, G),
        "enc_bih": _pad_gate_blocks(enc["bih"], H, G),            # (1, 3G)
        "enc_bhh": _pad_gate_blocks(enc["bhh"], H, G),
        "dec_wih": _pad_gate_blocks(dec["wih_t"], H, G),          # (F, 3G)
        "dec_whh": _pad_rows(_pad_gate_blocks(dec["whh_t"], H, G), H, G),
        "dec_bih": _pad_gate_blocks(dec["bih"], H, G),
        "dec_bhh": _pad_gate_blocks(dec["bhh"], H, G),
        "dec_wtp": _pad_rows(w_tp, H, G),                         # (G, F)
        "dec_btp": b_tp,                                          # (1, F)
    }


# ----------------------------------------------------------------------------
# Deterministic parameter init (matches nn.GRU / nn.GRUCell / nn.Linear shapes)
# ----------------------------------------------------------------------------
def init_params(key, H, P, Tr):
    F = P + Tr
    ks = jax.random.split(key, 12)

    def mat(k, shape, fan_in):
        return (jax.random.normal(k, shape, jnp.float32)
                / np.sqrt(float(fan_in))).astype(jnp.float32)

    enc = {
        "wih_t": mat(ks[0], (F, 3 * H), F),       # GRU weight_ih_l0^T
        "whh_t": mat(ks[1], (H, 3 * H), H),       # GRU weight_hh_l0^T
        "bih": mat(ks[2], (1, 3 * H), H),
        "bhh": mat(ks[3], (1, 3 * H), H),
    }
    dec = {
        "wih_t": mat(ks[4], (F, 3 * H), F),       # GRUCell weight_ih^T
        "whh_t": mat(ks[5], (H, 3 * H), H),       # GRUCell weight_hh^T
        "bih": mat(ks[6], (1, 3 * H), H),
        "bhh": mat(ks[7], (1, 3 * H), H),
        "wlp_t": mat(ks[8], (H, P), H),           # TrajectoryPredictor.lp^T
        "blp": mat(ks[9], (1, P), H),
        "wfcp_t": mat(ks[10], (P, Tr), P + H),    # fc weight[:, :P]^T
        "wfch_t": mat(ks[11], (H, Tr), P + H),    # fc weight[:, P:]^T
        "bfc": jnp.zeros((1, Tr), jnp.float32),
    }
    return {"enc": enc, "dec": dec}


# ----------------------------------------------------------------------------
# Pure-JAX references for correctness checks (raw, unfused parameters)
# ----------------------------------------------------------------------------
def _gru_step_ref(x, h, wih_t, whh_t, b_ih, b_hh, H):
    hi = jax.lax.Precision.HIGHEST
    gi = jnp.dot(x, wih_t, precision=hi) + b_ih
    gh = jnp.dot(h, whh_t, precision=hi) + b_hh
    r = jax.nn.sigmoid(gi[:, 0:H] + gh[:, 0:H])
    z = jax.nn.sigmoid(gi[:, H:2 * H] + gh[:, H:2 * H])
    n = jnp.tanh(gi[:, 2 * H:3 * H] + r * gh[:, 2 * H:3 * H])
    return (1.0 - z) * n + z * h


def reference_encoder(pose, enc):
    B, T, F = pose.shape
    H = enc["whh_t"].shape[0]

    def step(h, x_t):
        h_n = _gru_step_ref(x_t, h, enc["wih_t"], enc["whh_t"],
                            enc["bih"], enc["bhh"], H)
        return h_n, h_n

    _, outs = lax.scan(step, jnp.zeros((B, H), jnp.float32),
                       jnp.transpose(pose, (1, 0, 2)))
    return jnp.transpose(outs, (1, 0, 2))


def reference_decoder(pose, lang_z, dec):
    B, T, F = pose.shape
    H = dec["whh_t"].shape[0]
    hi = jax.lax.Precision.HIGHEST

    def step(carry, _):
        x, h = carry
        h_n = _gru_step_ref(x, h, dec["wih_t"], dec["whh_t"],
                            dec["bih"], dec["bhh"], H)
        pose_vec = jnp.dot(h_n, dec["wlp_t"], precision=hi) + dec["blp"]
        traj = (jnp.dot(pose_vec, dec["wfcp_t"], precision=hi)
                + jnp.dot(h_n, dec["wfch_t"], precision=hi) + dec["bfc"])
        y = x + jnp.concatenate([pose_vec, traj], axis=-1)
        return (y, h_n), y

    _, Y = lax.scan(step, (pose[:, 0, :], lang_z), None, length=T)
    return jnp.transpose(Y, (1, 0, 2))


# ----------------------------------------------------------------------------
if __name__ == "__main__":
    B, T = 2, 8
    hidden_size, pose_size, trajectory_size = 32, 12, 4
    feats = pose_size + trajectory_size

    key = jax.random.PRNGKey(0)
    k_pose, k_s2v, k_params = jax.random.split(key, 3)
    pose = jax.random.normal(k_pose, (B, T, feats), jnp.float32)
    # s2v stands in for the pooled BERT sentence embedding (language_z)
    s2v = jax.random.normal(k_s2v, (B, hidden_size), jnp.float32)
    raw_params = init_params(k_params, hidden_size, pose_size, trajectory_size)
    params = prepare_params(raw_params)       # one-time weight fusion/padding

    pose_dec, internal_losses, pose_enc = seq2seq_conditioned9_forward(
        pose, s2v, params)
    jax.block_until_ready(pose_dec)
    jax.block_until_ready(pose_enc)

    ref_dec = reference_decoder(pose, s2v, raw_params["dec"])
    ref_enc = reference_encoder(pose, raw_params["enc"])
    np.testing.assert_allclose(np.asarray(pose_dec), np.asarray(ref_dec),
                               rtol=2e-3, atol=2e-3)
    np.testing.assert_allclose(np.asarray(pose_enc), np.asarray(ref_enc),
                               rtol=2e-3, atol=2e-3)
    assert pose_dec.shape == (B, T, feats)
    assert pose_enc.shape == (B, T, hidden_size)
    print("KERNEL_OK")
</pallas_src>

<mosaic_0001>
module attributes {stable_mosaic.version = 11 : i64} {
  func.func @_fused_kernel(%arg0: i32, %arg1: memref<2x8x16xf32, #tpu.memory_space<vmem>>, %arg2: memref<2x32xf32, #tpu.memory_space<vmem>>, %arg3: memref<16x384xf32, #tpu.memory_space<vmem>>, %arg4: memref<128x384xf32, #tpu.memory_space<vmem>>, %arg5: memref<1x384xf32, #tpu.memory_space<vmem>>, %arg6: memref<1x384xf32, #tpu.memory_space<vmem>>, %arg7: memref<16x384xf32, #tpu.memory_space<vmem>>, %arg8: memref<128x384xf32, #tpu.memory_space<vmem>>, %arg9: memref<1x384xf32, #tpu.memory_space<vmem>>, %arg10: memref<1x384xf32, #tpu.memory_space<vmem>>, %arg11: memref<128x16xf32, #tpu.memory_space<vmem>>, %arg12: memref<1x16xf32, #tpu.memory_space<vmem>>, %arg13: memref<1x2x8x32xf32, #tpu.memory_space<vmem>>, %arg14: memref<1x2x8x16xf32, #tpu.memory_space<vmem>>) attributes {dimension_semantics = [#tpu.dimension_semantics<parallel>], iteration_bounds = array<i64: 2>, scalar_prefetch = 0 : i64, scratch_operands = 0 : i64, tpu.core_type = #tpu.core_type<tc>, window_params = [{pipeline_mode = #tpu.pipeline_mode<synchronous>, transform_indices = @transform_0, window_bounds = array<i64: 2, 8, 16>}, {pipeline_mode = #tpu.pipeline_mode<synchronous>, transform_indices = @transform_1, window_bounds = array<i64: 2, 32>}, {pipeline_mode = #tpu.pipeline_mode<synchronous>, transform_indices = @transform_2, window_bounds = array<i64: 16, 384>}, {pipeline_mode = #tpu.pipeline_mode<synchronous>, transform_indices = @transform_3, window_bounds = array<i64: 128, 384>}, {pipeline_mode = #tpu.pipeline_mode<synchronous>, transform_indices = @transform_4, window_bounds = array<i64: 1, 384>}, {pipeline_mode = #tpu.pipeline_mode<synchronous>, transform_indices = @transform_5, window_bounds = array<i64: 1, 384>}, {pipeline_mode = #tpu.pipeline_mode<synchronous>, transform_indices = @transform_6, window_bounds = array<i64: 16, 384>}, {pipeline_mode = #tpu.pipeline_mode<synchronous>, transform_indices = @transform_7, window_bounds = array<i64: 128, 384>}, {pipeline_mode = #tpu.pipeline_mode<synchronous>, transform_indices = @transform_8, window_bounds = array<i64: 1, 384>}, {pipeline_mode = #tpu.pipeline_mode<synchronous>, transform_indices = @transform_9, window_bounds = array<i64: 1, 384>}, {pipeline_mode = #tpu.pipeline_mode<synchronous>, transform_indices = @transform_10, window_bounds = array<i64: 128, 16>}, {pipeline_mode = #tpu.pipeline_mode<synchronous>, transform_indices = @transform_11, window_bounds = array<i64: 1, 16>}, {transform_indices = @transform_12, window_bounds = array<i64: 1, 2, 8, 32>}, {transform_indices = @transform_13, window_bounds = array<i64: 1, 2, 8, 16>}]} {
    %c0_i32 = arith.constant 0 : i32
    %0 = arith.cmpi eq, %arg0, %c0_i32 : i32
    %1 = arith.extui %0 : i1 to i32
    %c0_i32_0 = arith.constant 0 : i32
    %2 = arith.cmpi ne, %1, %c0_i32_0 : i32
    scf.if %2 {
      %c0 = arith.constant 0 : index
      %c0_2 = arith.constant 0 : index
      %6 = vector.load %arg3[%c0, %c0_2] : memref<16x384xf32, #tpu.memory_space<vmem>>, vector<16x384xf32>
      %c0_3 = arith.constant 0 : index
      %c0_4 = arith.constant 0 : index
      %7 = vector.load %arg4[%c0_3, %c0_4] : memref<128x384xf32, #tpu.memory_space<vmem>>, vector<128x384xf32>
      %c0_5 = arith.constant 0 : index
      %c0_6 = arith.constant 0 : index
      %8 = vector.load %arg5[%c0_5, %c0_6] : memref<1x384xf32, #tpu.memory_space<vmem>>, vector<1x384xf32>
      %9 = vector.shape_cast %8 : vector<1x384xf32> to vector<1x384xf32>
      %10 = vector.broadcast %9 : vector<1x384xf32> to vector<2x384xf32>
      %c0_7 = arith.constant 0 : index
      %c0_8 = arith.constant 0 : index
      %11 = vector.load %arg6[%c0_7, %c0_8] : memref<1x384xf32, #tpu.memory_space<vmem>>, vector<1x384xf32>
      %12 = vector.shape_cast %11 : vector<1x384xf32> to vector<1x384xf32>
      %13 = vector.broadcast %12 : vector<1x384xf32> to vector<2x384xf32>
      %cst = arith.constant 0.000000e+00 : f32
      %14 = vector.broadcast %cst : f32 to vector<2x128xf32>
      %c0_9 = arith.constant 0 : index
      %c0_10 = arith.constant 0 : index
      %c0_11 = arith.constant 0 : index
      %15 = vector.load %arg1[%c0_9, %c0_10, %c0_11] : memref<2x8x16xf32, #tpu.memory_space<vmem>>, vector<2x1x16xf32>
      %16 = vector.shape_cast %15 : vector<2x1x16xf32> to vector<2x16xf32>
      %cst_12 = arith.constant dense<0.000000e+00> : vector<2x384xf32>
      %17 = tpu.matmul %16, %6, %cst_12 {dimension_numbers = #tpu.dot_dimension_numbers<[1], [0], [0], [1], [0, 0, 1, 1], [], []>} : vector<2x16xf32>, vector<16x384xf32>, vector<2x384xf32> -> vector<2x384xf32>
      %18 = arith.addf %17, %10 : vector<2x384xf32>
      %cst_13 = arith.constant dense<0.000000e+00> : vector<2x384xf32>
      %19 = tpu.matmul %14, %7, %cst_13 {dimension_numbers = #tpu.dot_dimension_numbers<[1], [0], [0], [1], [0, 0, 1, 1], [], []>} : vector<2x128xf32>, vector<128x384xf32>, vector<2x384xf32> -> vector<2x384xf32>
      %20 = arith.addf %19, %13 : vector<2x384xf32>
      %21 = vector.extract_strided_slice %18 {offsets = [0, 0], sizes = [2, 128], strides = [1, 1]} : vector<2x384xf32> to vector<2x128xf32>
      %22 = vector.extract_strided_slice %20 {offsets = [0, 0], sizes = [2, 128], strides = [1, 1]} : vector<2x384xf32> to vector<2x128xf32>
      %23 = arith.addf %21, %22 : vector<2x128xf32>
      %24 = arith.negf %23 : vector<2x128xf32>
      %25 = math.exp %24 : vector<2x128xf32>
      %cst_14 = arith.constant 1.000000e+00 : f32
      %26 = vector.broadcast %cst_14 : f32 to vector<2x128xf32>
      %27 = arith.addf %26, %25 : vector<2x128xf32>
      %28 = arith.divf %26, %27 : vector<2x128xf32>
      %29 = vector.extract_strided_slice %18 {offsets = [0, 128], sizes = [2, 128], strides = [1, 1]} : vector<2x384xf32> to vector<2x128xf32>
      %30 = vector.extract_strided_slice %20 {offsets = [0, 128], sizes = [2, 128], strides = [1, 1]} : vector<2x384xf32> to vector<2x128xf32>
      %31 = arith.addf %29, %30 : vector<2x128xf32>
      %32 = arith.negf %31 : vector<2x128xf32>
      %33 = math.exp %32 : vector<2x128xf32>
      %cst_15 = arith.constant 1.000000e+00 : f32
      %34 = vector.broadcast %cst_15 : f32 to vector<2x128xf32>
      %35 = arith.addf %34, %33 : vector<2x128xf32>
      %36 = arith.divf %34, %35 : vector<2x128xf32>
      %37 = vector.extract_strided_slice %18 {offsets = [0, 256], sizes = [2, 128], strides = [1, 1]} : vector<2x384xf32> to vector<2x128xf32>
      %38 = vector.extract_strided_slice %20 {offsets = [0, 256], sizes = [2, 128], strides = [1, 1]} : vector<2x384xf32> to vector<2x128xf32>
      %39 = arith.mulf %28, %38 : vector<2x128xf32>
      %40 = arith.addf %37, %39 : vector<2x128xf32>
      %41 = math.tanh %40 : vector<2x128xf32>
      %cst_16 = arith.constant 1.000000e+00 : f32
      %42 = vector.broadcast %cst_16 : f32 to vector<2x128xf32>
      %43 = arith.subf %42, %36 : vector<2x128xf32>
      %44 = arith.mulf %43, %41 : vector<2x128xf32>
      %45 = arith.mulf %36, %14 : vector<2x128xf32>
      %46 = arith.addf %44, %45 : vector<2x128xf32>
      %47 = vector.extract_strided_slice %46 {offsets = [0, 0], sizes = [2, 32], strides = [1, 1]} : vector<2x128xf32> to vector<2x32xf32>
      %c0_17 = arith.constant 0 : index
      %c0_18 = arith.constant 0 : index
      %c0_19 = arith.constant 0 : index
      %c0_20 = arith.constant 0 : index
      %48 = vector.load %arg13[%c0_17, %c0_18, %c0_19, %c0_20] : memref<1x2x8x32xf32, #tpu.memory_space<vmem>>, vector<1x2x1x32xf32>
      %49 = vector.shape_cast %48 : vector<1x2x1x32xf32> to vector<2x32xf32>
      %50 = vector.shape_cast %47 : vector<2x32xf32> to vector<1x2x1x32xf32>
      tpu.vector_store %arg13[%c0_17, %c0_18, %c0_19, %c0_20], %50 {strides = array<i32>} : memref<1x2x8x32xf32, #tpu.memory_space<vmem>>, vector<1x2x1x32xf32>,
      %c0_21 = arith.constant 0 : index
      %c1 = arith.constant 1 : index
      %c0_22 = arith.constant 0 : index
      %51 = vector.load %arg1[%c0_21, %c1, %c0_22] : memref<2x8x16xf32, #tpu.memory_space<vmem>>, vector<2x1x16xf32>
      %52 = vector.shape_cast %51 : vector<2x1x16xf32> to vector<2x16xf32>
      %cst_23 = arith.constant dense<0.000000e+00> : vector<2x384xf32>
      %53 = tpu.matmul %52, %6, %cst_23 {dimension_numbers = #tpu.dot_dimension_numbers<[1], [0], [0], [1], [0, 0, 1, 1], [], []>} : vector<2x16xf32>, vector<16x384xf32>, vector<2x384xf32> -> vector<2x384xf32>
      %54 = arith.addf %53, %10 : vector<2x384xf32>
      %cst_24 = arith.constant dense<0.000000e+00> : vector<2x384xf32>
      %55 = tpu.matmul %46, %7, %cst_24 {dimension_numbers = #tpu.dot_dimension_numbers<[1], [0], [0], [1], [0, 0, 1, 1], [], []>} : vector<2x128xf32>, vector<128x384xf32>, vector<2x384xf32> -> vector<2x384xf32>
      %56 = arith.addf %55, %13 : vector<2x384xf32>
      %57 = vector.extract_strided_slice %54 {offsets = [0, 0], sizes = [2, 128], strides = [1, 1]} : vector<2x384xf32> to vector<2x128xf32>
      %58 = vector.extract_strided_slice %56 {offsets = [0, 0], sizes = [2, 128], strides = [1, 1]} : vector<2x384xf32> to vector<2x128xf32>
      %59 = arith.addf %57, %58 : vector<2x128xf32>
      %60 = arith.negf %59 : vector<2x128xf32>
      %61 = math.exp %60 : vector<2x128xf32>
      %cst_25 = arith.constant 1.000000e+00 : f32
      %62 = vector.broadcast %cst_25 : f32 to vector<2x128xf32>
      %63 = arith.addf %62, %61 : vector<2x128xf32>
      %64 = arith.divf %62, %63 : vector<2x128xf32>
      %65 = vector.extract_strided_slice %54 {offsets = [0, 128], sizes = [2, 128], strides = [1, 1]} : vector<2x384xf32> to vector<2x128xf32>
      %66 = vector.extract_strided_slice %56 {offsets = [0, 128], sizes = [2, 128], strides = [1, 1]} : vector<2x384xf32> to vector<2x128xf32>
      %67 = arith.addf %65, %66 : vector<2x128xf32>
      %68 = arith.negf %67 : vector<2x128xf32>
      %69 = math.exp %68 : vector<2x128xf32>
      %cst_26 = arith.constant 1.000000e+00 : f32
      %70 = vector.broadcast %cst_26 : f32 to vector<2x128xf32>
      %71 = arith.addf %70, %69 : vector<2x128xf32>
      %72 = arith.divf %70, %71 : vector<2x128xf32>
      %73 = vector.extract_strided_slice %54 {offsets = [0, 256], sizes = [2, 128], strides = [1, 1]} : vector<2x384xf32> to vector<2x128xf32>
      %74 = vector.extract_strided_slice %56 {offsets = [0, 256], sizes = [2, 128], strides = [1, 1]} : vector<2x384xf32> to vector<2x128xf32>
      %75 = arith.mulf %64, %74 : vector<2x128xf32>
      %76 = arith.addf %73, %75 : vector<2x128xf32>
      %77 = math.tanh %76 : vector<2x128xf32>
      %cst_27 = arith.constant 1.000000e+00 : f32
      %78 = vector.broadcast %cst_27 : f32 to vector<2x128xf32>
      %79 = arith.subf %78, %72 : vector<2x128xf32>
      %80 = arith.mulf %79, %77 : vector<2x128xf32>
      %81 = arith.mulf %72, %46 : vector<2x128xf32>
      %82 = arith.addf %80, %81 : vector<2x128xf32>
      %83 = vector.extract_strided_slice %82 {offsets = [0, 0], sizes = [2, 32], strides = [1, 1]} : vector<2x128xf32> to vector<2x32xf32>
      %c0_28 = arith.constant 0 : index
      %c0_29 = arith.constant 0 : index
      %c1_30 = arith.constant 1 : index
      %c0_31 = arith.constant 0 : index
      %84 = vector.load %arg13[%c0_28, %c0_29, %c1_30, %c0_31] : memref<1x2x8x32xf32, #tpu.memory_space<vmem>>, vector<1x2x1x32xf32>
      %85 = vector.shape_cast %84 : vector<1x2x1x32xf32> to vector<2x32xf32>
      %86 = vector.shape_cast %83 : vector<2x32xf32> to vector<1x2x1x32xf32>
      tpu.vector_store %arg13[%c0_28, %c0_29, %c1_30, %c0_31], %86 {strides = array<i32>} : memref<1x2x8x32xf32, #tpu.memory_space<vmem>>, vector<1x2x1x32xf32>,
      %c0_32 = arith.constant 0 : index
      %c2 = arith.constant 2 : index
      %c0_33 = arith.constant 0 : index
      %87 = vector.load %arg1[%c0_32, %c2, %c0_33] : memref<2x8x16xf32, #tpu.memory_space<vmem>>, vector<2x1x16xf32>
      %88 = vector.shape_cast %87 : vector<2x1x16xf32> to vector<2x16xf32>
      %cst_34 = arith.constant dense<0.000000e+00> : vector<2x384xf32>
      %89 = tpu.matmul %88, %6, %cst_34 {dimension_numbers = #tpu.dot_dimension_numbers<[1], [0], [0], [1], [0, 0, 1, 1], [], []>} : vector<2x16xf32>, vector<16x384xf32>, vector<2x384xf32> -> vector<2x384xf32>
      %90 = arith.addf %89, %10 : vector<2x384xf32>
      %cst_35 = arith.constant dense<0.000000e+00> : vector<2x384xf32>
      %91 = tpu.matmul %82, %7, %cst_35 {dimension_numbers = #tpu.dot_dimension_numbers<[1], [0], [0], [1], [0, 0, 1, 1], [], []>} : vector<2x128xf32>, vector<128x384xf32>, vector<2x384xf32> -> vector<2x384xf32>
      %92 = arith.addf %91, %13 : vector<2x384xf32>
      %93 = vector.extract_strided_slice %90 {offsets = [0, 0], sizes = [2, 128], strides = [1, 1]} : vector<2x384xf32> to vector<2x128xf32>
      %94 = vector.extract_strided_slice %92 {offsets = [0, 0], sizes = [2, 128], strides = [1, 1]} : vector<2x384xf32> to vector<2x128xf32>
      %95 = arith.addf %93, %94 : vector<2x128xf32>
      %96 = arith.negf %95 : vector<2x128xf32>
      %97 = math.exp %96 : vector<2x128xf32>
      %cst_36 = arith.constant 1.000000e+00 : f32
      %98 = vector.broadcast %cst_36 : f32 to vector<2x128xf32>
      %99 = arith.addf %98, %97 : vector<2x128xf32>
      %100 = arith.divf %98, %99 : vector<2x128xf32>
      %101 = vector.extract_strided_slice %90 {offsets = [0, 128], sizes = [2, 128], strides = [1, 1]} : vector<2x384xf32> to vector<2x128xf32>
      %102 = vector.extract_strided_slice %92 {offsets = [0, 128], sizes = [2, 128], strides = [1, 1]} : vector<2x384xf32> to vector<2x128xf32>
      %103 = arith.addf %101, %102 : vector<2x128xf32>
      %104 = arith.negf %103 : vector<2x128xf32>
      %105 = math.exp %104 : vector<2x128xf32>
      %cst_37 = arith.constant 1.000000e+00 : f32
      %106 = vector.broadcast %cst_37 : f32 to vector<2x128xf32>
      %107 = arith.addf %106, %105 : vector<2x128xf32>
      %108 = arith.divf %106, %107 : vector<2x128xf32>
      %109 = vector.extract_strided_slice %90 {offsets = [0, 256], sizes = [2, 128], strides = [1, 1]} : vector<2x384xf32> to vector<2x128xf32>
      %110 = vector.extract_strided_slice %92 {offsets = [0, 256], sizes = [2, 128], strides = [1, 1]} : vector<2x384xf32> to vector<2x128xf32>
      %111 = arith.mulf %100, %110 : vector<2x128xf32>
      %112 = arith.addf %109, %111 : vector<2x128xf32>
      %113 = math.tanh %112 : vector<2x128xf32>
      %cst_38 = arith.constant 1.000000e+00 : f32
      %114 = vector.broadcast %cst_38 : f32 to vector<2x128xf32>
      %115 = arith.subf %114, %108 : vector<2x128xf32>
      %116 = arith.mulf %115, %113 : vector<2x128xf32>
      %117 = arith.mulf %108, %82 : vector<2x128xf32>
      %118 = arith.addf %116, %117 : vector<2x128xf32>
      %119 = vector.extract_strided_slice %118 {offsets = [0, 0], sizes = [2, 32], strides = [1, 1]} : vector<2x128xf32> to vector<2x32xf32>
      %c0_39 = arith.constant 0 : index
      %c0_40 = arith.constant 0 : index
      %c2_41 = arith.constant 2 : index
      %c0_42 = arith.constant 0 : index
      %120 = vector.load %arg13[%c0_39, %c0_40, %c2_41, %c0_42] : memref<1x2x8x32xf32, #tpu.memory_space<vmem>>, vector<1x2x1x32xf32>
      %121 = vector.shape_cast %120 : vector<1x2x1x32xf32> to vector<2x32xf32>
      %122 = vector.shape_cast %119 : vector<2x32xf32> to vector<1x2x1x32xf32>
      tpu.vector_store %arg13[%c0_39, %c0_40, %c2_41, %c0_42], %122 {strides = array<i32>} : memref<1x2x8x32xf32, #tpu.memory_space<vmem>>, vector<1x2x1x32xf32>,
      %c0_43 = arith.constant 0 : index
      %c3 = arith.constant 3 : index
      %c0_44 = arith.constant 0 : index
      %123 = vector.load %arg1[%c0_43, %c3, %c0_44] : memref<2x8x16xf32, #tpu.memory_space<vmem>>, vector<2x1x16xf32>
      %124 = vector.shape_cast %123 : vector<2x1x16xf32> to vector<2x16xf32>
      %cst_45 = arith.constant dense<0.000000e+00> : vector<2x384xf32>
      %125 = tpu.matmul %124, %6, %cst_45 {dimension_numbers = #tpu.dot_dimension_numbers<[1], [0], [0], [1], [0, 0, 1, 1], [], []>} : vector<2x16xf32>, vector<16x384xf32>, vector<2x384xf32> -> vector<2x384xf32>
      %126 = arith.addf %125, %10 : vector<2x384xf32>
      %cst_46 = arith.constant dense<0.000000e+00> : vector<2x384xf32>
      %127 = tpu.matmul %118, %7, %cst_46 {dimension_numbers = #tpu.dot_dimension_numbers<[1], [0], [0], [1], [0, 0, 1, 1], [], []>} : vector<2x128xf32>, vector<128x384xf32>, vector<2x384xf32> -> vector<2x384xf32>
      %128 = arith.addf %127, %13 : vector<2x384xf32>
      %129 = vector.extract_strided_slice %126 {offsets = [0, 0], sizes = [2, 128], strides = [1, 1]} : vector<2x384xf32> to vector<2x128xf32>
      %130 = vector.extract_strided_slice %128 {offsets = [0, 0], sizes = [2, 128], strides = [1, 1]} : vector<2x384xf32> to vector<2x128xf32>
      %131 = arith.addf %129, %130 : vector<2x128xf32>
      %132 = arith.negf %131 : vector<2x128xf32>
      %133 = math.exp %132 : vector<2x128xf32>
      %cst_47 = arith.constant 1.000000e+00 : f32
      %134 = vector.broadcast %cst_47 : f32 to vector<2x128xf32>
      %135 = arith.addf %134, %133 : vector<2x128xf32>
      %136 = arith.divf %134, %135 : vector<2x128xf32>
      %137 = vector.extract_strided_slice %126 {offsets = [0, 128], sizes = [2, 128], strides = [1, 1]} : vector<2x384xf32> to vector<2x128xf32>
      %138 = vector.extract_strided_slice %128 {offsets = [0, 128], sizes = [2, 128], strides = [1, 1]} : vector<2x384xf32> to vector<2x128xf32>
      %139 = arith.addf %137, %138 : vector<2x128xf32>
      %140 = arith.negf %139 : vector<2x128xf32>
      %141 = math.exp %140 : vector<2x128xf32>
      %cst_48 = arith.constant 1.000000e+00 : f32
      %142 = vector.broadcast %cst_48 : f32 to vector<2x128xf32>
      %143 = arith.addf %142, %141 : vector<2x128xf32>
      %144 = arith.divf %142, %143 : vector<2x128xf32>
      %145 = vector.extract_strided_slice %126 {offsets = [0, 256], sizes = [2, 128], strides = [1, 1]} : vector<2x384xf32> to vector<2x128xf32>
      %146 = vector.extract_strided_slice %128 {offsets = [0, 256], sizes = [2, 128], strides = [1, 1]} : vector<2x384xf32> to vector<2x128xf32>
      %147 = arith.mulf %136, %146 : vector<2x128xf32>
      %148 = arith.addf %145, %147 : vector<2x128xf32>
      %149 = math.tanh %148 : vector<2x128xf32>
      %cst_49 = arith.constant 1.000000e+00 : f32
      %150 = vector.broadcast %cst_49 : f32 to vector<2x128xf32>
      %151 = arith.subf %150, %144 : vector<2x128xf32>
      %152 = arith.mulf %151, %149 : vector<2x128xf32>
      %153 = arith.mulf %144, %118 : vector<2x128xf32>
      %154 = arith.addf %152, %153 : vector<2x128xf32>
      %155 = vector.extract_strided_slice %154 {offsets = [0, 0], sizes = [2, 32], strides = [1, 1]} : vector<2x128xf32> to vector<2x32xf32>
      %c0_50 = arith.constant 0 : index
      %c0_51 = arith.constant 0 : index
      %c3_52 = arith.constant 3 : index
      %c0_53 = arith.constant 0 : index
      %156 = vector.load %arg13[%c0_50, %c0_51, %c3_52, %c0_53] : memref<1x2x8x32xf32, #tpu.memory_space<vmem>>, vector<1x2x1x32xf32>
      %157 = vector.shape_cast %156 : vector<1x2x1x32xf32> to vector<2x32xf32>
      %158 = vector.shape_cast %155 : vector<2x32xf32> to vector<1x2x1x32xf32>
      tpu.vector_store %arg13[%c0_50, %c0_51, %c3_52, %c0_53], %158 {strides = array<i32>} : memref<1x2x8x32xf32, #tpu.memory_space<vmem>>, vector<1x2x1x32xf32>,
      %c0_54 = arith.constant 0 : index
      %c4 = arith.constant 4 : index
      %c0_55 = arith.constant 0 : index
      %159 = vector.load %arg1[%c0_54, %c4, %c0_55] : memref<2x8x16xf32, #tpu.memory_space<vmem>>, vector<2x1x16xf32>
      %160 = vector.shape_cast %159 : vector<2x1x16xf32> to vector<2x16xf32>
      %cst_56 = arith.constant dense<0.000000e+00> : vector<2x384xf32>
      %161 = tpu.matmul %160, %6, %cst_56 {dimension_numbers = #tpu.dot_dimension_numbers<[1], [0], [0], [1], [0, 0, 1, 1], [], []>} : vector<2x16xf32>, vector<16x384xf32>, vector<2x384xf32> -> vector<2x384xf32>
      %162 = arith.addf %161, %10 : vector<2x384xf32>
      %cst_57 = arith.constant dense<0.000000e+00> : vector<2x384xf32>
      %163 = tpu.matmul %154, %7, %cst_57 {dimension_numbers = #tpu.dot_dimension_numbers<[1], [0], [0], [1], [0, 0, 1, 1], [], []>} : vector<2x128xf32>, vector<128x384xf32>, vector<2x384xf32> -> vector<2x384xf32>
      %164 = arith.addf %163, %13 : vector<2x384xf32>
      %165 = vector.extract_strided_slice %162 {offsets = [0, 0], sizes = [2, 128], strides = [1, 1]} : vector<2x384xf32> to vector<2x128xf32>
      %166 = vector.extract_strided_slice %164 {offsets = [0, 0], sizes = [2, 128], strides = [1, 1]} : vector<2x384xf32> to vector<2x128xf32>
      %167 = arith.addf %165, %166 : vector<2x128xf32>
      %168 = arith.negf %167 : vector<2x128xf32>
      %169 = math.exp %168 : vector<2x128xf32>
      %cst_58 = arith.constant 1.000000e+00 : f32
      %170 = vector.broadcast %cst_58 : f32 to vector<2x128xf32>
      %171 = arith.addf %170, %169 : vector<2x128xf32>
      %172 = arith.divf %170, %171 : vector<2x128xf32>
      %173 = vector.extract_strided_slice %162 {offsets = [0, 128], sizes = [2, 128], strides = [1, 1]} : vector<2x384xf32> to vector<2x128xf32>
      %174 = vector.extract_strided_slice %164 {offsets = [0, 128], sizes = [2, 128], strides = [1, 1]} : vector<2x384xf32> to vector<2x128xf32>
      %175 = arith.addf %173, %174 : vector<2x128xf32>
      %176 = arith.negf %175 : vector<2x128xf32>
      %177 = math.exp %176 : vector<2x128xf32>
      %cst_59 = arith.constant 1.000000e+00 : f32
      %178 = vector.broadcast %cst_59 : f32 to vector<2x128xf32>
      %179 = arith.addf %178, %177 : vector<2x128xf32>
      %180 = arith.divf %178, %179 : vector<2x128xf32>
      %181 = vector.extract_strided_slice %162 {offsets = [0, 256], sizes = [2, 128], strides = [1, 1]} : vector<2x384xf32> to vector<2x128xf32>
      %182 = vector.extract_strided_slice %164 {offsets = [0, 256], sizes = [2, 128], strides = [1, 1]} : vector<2x384xf32> to vector<2x128xf32>
      %183 = arith.mulf %172, %182 : vector<2x128xf32>
      %184 = arith.addf %181, %183 : vector<2x128xf32>
      %185 = math.tanh %184 : vector<2x128xf32>
      %cst_60 = arith.constant 1.000000e+00 : f32
      %186 = vector.broadcast %cst_60 : f32 to vector<2x128xf32>
      %187 = arith.subf %186, %180 : vector<2x128xf32>
      %188 = arith.mulf %187, %185 : vector<2x128xf32>
      %189 = arith.mulf %180, %154 : vector<2x128xf32>
      %190 = arith.addf %188, %189 : vector<2x128xf32>
      %191 = vector.extract_strided_slice %190 {offsets = [0, 0], sizes = [2, 32], strides = [1, 1]} : vector<2x128xf32> to vector<2x32xf32>
      %c0_61 = arith.constant 0 : index
      %c0_62 = arith.constant 0 : index
      %c4_63 = arith.constant 4 : index
      %c0_64 = arith.constant 0 : index
      %192 = vector.load %arg13[%c0_61, %c0_62, %c4_63, %c0_64] : memref<1x2x8x32xf32, #tpu.memory_space<vmem>>, vector<1x2x1x32xf32>
      %193 = vector.shape_cast %192 : vector<1x2x1x32xf32> to vector<2x32xf32>
      %194 = vector.shape_cast %191 : vector<2x32xf32> to vector<1x2x1x32xf32>
      tpu.vector_store %arg13[%c0_61, %c0_62, %c4_63, %c0_64], %194 {strides = array<i32>} : memref<1x2x8x32xf32, #tpu.memory_space<vmem>>, vector<1x2x1x32xf32>,
      %c0_65 = arith.constant 0 : index
      %c5 = arith.constant 5 : index
      %c0_66 = arith.constant 0 : index
      %195 = vector.load %arg1[%c0_65, %c5, %c0_66] : memref<2x8x16xf32, #tpu.memory_space<vmem>>, vector<2x1x16xf32>
      %196 = vector.shape_cast %195 : vector<2x1x16xf32> to vector<2x16xf32>
      %cst_67 = arith.constant dense<0.000000e+00> : vector<2x384xf32>
      %197 = tpu.matmul %196, %6, %cst_67 {dimension_numbers = #tpu.dot_dimension_numbers<[1], [0], [0], [1], [0, 0, 1, 1], [], []>} : vector<2x16xf32>, vector<16x384xf32>, vector<2x384xf32> -> vector<2x384xf32>
      %198 = arith.addf %197, %10 : vector<2x384xf32>
      %cst_68 = arith.constant dense<0.000000e+00> : vector<2x384xf32>
      %199 = tpu.matmul %190, %7, %cst_68 {dimension_numbers = #tpu.dot_dimension_numbers<[1], [0], [0], [1], [0, 0, 1, 1], [], []>} : vector<2x128xf32>, vector<128x384xf32>, vector<2x384xf32> -> vector<2x384xf32>
      %200 = arith.addf %199, %13 : vector<2x384xf32>
      %201 = vector.extract_strided_slice %198 {offsets = [0, 0], sizes = [2, 128], strides = [1, 1]} : vector<2x384xf32> to vector<2x128xf32>
      %202 = vector.extract_strided_slice %200 {offsets = [0, 0], sizes = [2, 128], strides = [1, 1]} : vector<2x384xf32> to vector<2x128xf32>
      %203 = arith.addf %201, %202 : vector<2x128xf32>
      %204 = arith.negf %203 : vector<2x128xf32>
      %205 = math.exp %204 : vector<2x128xf32>
      %cst_69 = arith.constant 1.000000e+00 : f32
      %206 = vector.broadcast %cst_69 : f32 to vector<2x128xf32>
      %207 = arith.addf %206, %205 : vector<2x128xf32>
      %208 = arith.divf %206, %207 : vector<2x128xf32>
      %209 = vector.extract_strided_slice %198 {offsets = [0, 128], sizes = [2, 128], strides = [1, 1]} : vector<2x384xf32> to vector<2x128xf32>
      %210 = vector.extract_strided_slice %200 {offsets = [0, 128], sizes = [2, 128], strides = [1, 1]} : vector<2x384xf32> to vector<2x128xf32>
      %211 = arith.addf %209, %210 : vector<2x128xf32>
      %212 = arith.negf %211 : vector<2x128xf32>
      %213 = math.exp %212 : vector<2x128xf32>
      %cst_70 = arith.constant 1.000000e+00 : f32
      %214 = vector.broadcast %cst_70 : f32 to vector<2x128xf32>
      %215 = arith.addf %214, %213 : vector<2x128xf32>
      %216 = arith.divf %214, %215 : vector<2x128xf32>
      %217 = vector.extract_strided_slice %198 {offsets = [0, 256], sizes = [2, 128], strides = [1, 1]} : vector<2x384xf32> to vector<2x128xf32>
      %218 = vector.extract_strided_slice %200 {offsets = [0, 256], sizes = [2, 128], strides = [1, 1]} : vector<2x384xf32> to vector<2x128xf32>
      %219 = arith.mulf %208, %218 : vector<2x128xf32>
      %220 = arith.addf %217, %219 : vector<2x128xf32>
      %221 = math.tanh %220 : vector<2x128xf32>
      %cst_71 = arith.constant 1.000000e+00 : f32
      %222 = vector.broadcast %cst_71 : f32 to vector<2x128xf32>
      %223 = arith.subf %222, %216 : vector<2x128xf32>
      %224 = arith.mulf %223, %221 : vector<2x128xf32>
      %225 = arith.mulf %216, %190 : vector<2x128xf32>
      %226 = arith.addf %224, %225 : vector<2x128xf32>
      %227 = vector.extract_strided_slice %226 {offsets = [0, 0], sizes = [2, 32], strides = [1, 1]} : vector<2x128xf32> to vector<2x32xf32>
      %c0_72 = arith.constant 0 : index
      %c0_73 = arith.constant 0 : index
      %c5_74 = arith.constant 5 : index
      %c0_75 = arith.constant 0 : index
      %228 = vector.load %arg13[%c0_72, %c0_73, %c5_74, %c0_75] : memref<1x2x8x32xf32, #tpu.memory_space<vmem>>, vector<1x2x1x32xf32>
      %229 = vector.shape_cast %228 : vector<1x2x1x32xf32> to vector<2x32xf32>
      %230 = vector.shape_cast %227 : vector<2x32xf32> to vector<1x2x1x32xf32>
      tpu.vector_store %arg13[%c0_72, %c0_73, %c5_74, %c0_75], %230 {strides = array<i32>} : memref<1x2x8x32xf32, #tpu.memory_space<vmem>>, vector<1x2x1x32xf32>,
      %c0_76 = arith.constant 0 : index
      %c6 = arith.constant 6 : index
      %c0_77 = arith.constant 0 : index
      %231 = vector.load %arg1[%c0_76, %c6, %c0_77] : memref<2x8x16xf32, #tpu.memory_space<vmem>>, vector<2x1x16xf32>
      %232 = vector.shape_cast %231 : vector<2x1x16xf32> to vector<2x16xf32>
      %cst_78 = arith.constant dense<0.000000e+00> : vector<2x384xf32>
      %233 = tpu.matmul %232, %6, %cst_78 {dimension_numbers = #tpu.dot_dimension_numbers<[1], [0], [0], [1], [0, 0, 1, 1], [], []>} : vector<2x16xf32>, vector<16x384xf32>, vector<2x384xf32> -> vector<2x384xf32>
      %234 = arith.addf %233, %10 : vector<2x384xf32>
      %cst_79 = arith.constant dense<0.000000e+00> : vector<2x384xf32>
      %235 = tpu.matmul %226, %7, %cst_79 {dimension_numbers = #tpu.dot_dimension_numbers<[1], [0], [0], [1], [0, 0, 1, 1], [], []>} : vector<2x128xf32>, vector<128x384xf32>, vector<2x384xf32> -> vector<2x384xf32>
      %236 = arith.addf %235, %13 : vector<2x384xf32>
      %237 = vector.extract_strided_slice %234 {offsets = [0, 0], sizes = [2, 128], strides = [1, 1]} : vector<2x384xf32> to vector<2x128xf32>
      %238 = vector.extract_strided_slice %236 {offsets = [0, 0], sizes = [2, 128], strides = [1, 1]} : vector<2x384xf32> to vector<2x128xf32>
      %239 = arith.addf %237, %238 : vector<2x128xf32>
      %240 = arith.negf %239 : vector<2x128xf32>
      %241 = math.exp %240 : vector<2x128xf32>
      %cst_80 = arith.constant 1.000000e+00 : f32
      %242 = vector.broadcast %cst_80 : f32 to vector<2x128xf32>
      %243 = arith.addf %242, %241 : vector<2x128xf32>
      %244 = arith.divf %242, %243 : vector<2x128xf32>
      %245 = vector.extract_strided_slice %234 {offsets = [0, 128], sizes = [2, 128], strides = [1, 1]} : vector<2x384xf32> to vector<2x128xf32>
      %246 = vector.extract_strided_slice %236 {offsets = [0, 128], sizes = [2, 128], strides = [1, 1]} : vector<2x384xf32> to vector<2x128xf32>
      %247 = arith.addf %245, %246 : vector<2x128xf32>
      %248 = arith.negf %247 : vector<2x128xf32>
      %249 = math.exp %248 : vector<2x128xf32>
      %cst_81 = arith.constant 1.000000e+00 : f32
      %250 = vector.broadcast %cst_81 : f32 to vector<2x128xf32>
      %251 = arith.addf %250, %249 : vector<2x128xf32>
      %252 = arith.divf %250, %251 : vector<2x128xf32>
      %253 = vector.extract_strided_slice %234 {offsets = [0, 256], sizes = [2, 128], strides = [1, 1]} : vector<2x384xf32> to vector<2x128xf32>
      %254 = vector.extract_strided_slice %236 {offsets = [0, 256], sizes = [2, 128], strides = [1, 1]} : vector<2x384xf32> to vector<2x128xf32>
      %255 = arith.mulf %244, %254 : vector<2x128xf32>
      %256 = arith.addf %253, %255 : vector<2x128xf32>
      %257 = math.tanh %256 : vector<2x128xf32>
      %cst_82 = arith.constant 1.000000e+00 : f32
      %258 = vector.broadcast %cst_82 : f32 to vector<2x128xf32>
      %259 = arith.subf %258, %252 : vector<2x128xf32>
      %260 = arith.mulf %259, %257 : vector<2x128xf32>
      %261 = arith.mulf %252, %226 : vector<2x128xf32>
      %262 = arith.addf %260, %261 : vector<2x128xf32>
      %263 = vector.extract_strided_slice %262 {offsets = [0, 0], sizes = [2, 32], strides = [1, 1]} : vector<2x128xf32> to vector<2x32xf32>
      %c0_83 = arith.constant 0 : index
      %c0_84 = arith.constant 0 : index
      %c6_85 = arith.constant 6 : index
      %c0_86 = arith.constant 0 : index
      %264 = vector.load %arg13[%c0_83, %c0_84, %c6_85, %c0_86] : memref<1x2x8x32xf32, #tpu.memory_space<vmem>>, vector<1x2x1x32xf32>
      %265 = vector.shape_cast %264 : vector<1x2x1x32xf32> to vector<2x32xf32>
      %266 = vector.shape_cast %263 : vector<2x32xf32> to vector<1x2x1x32xf32>
      tpu.vector_store %arg13[%c0_83, %c0_84, %c6_85, %c0_86], %266 {strides = array<i32>} : memref<1x2x8x32xf32, #tpu.memory_space<vmem>>, vector<1x2x1x32xf32>,
      %c0_87 = arith.constant 0 : index
      %c7 = arith.constant 7 : index
      %c0_88 = arith.constant 0 : index
      %267 = vector.load %arg1[%c0_87, %c7, %c0_88] : memref<2x8x16xf32, #tpu.memory_space<vmem>>, vector<2x1x16xf32>
      %268 = vector.shape_cast %267 : vector<2x1x16xf32> to vector<2x16xf32>
      %cst_89 = arith.constant dense<0.000000e+00> : vector<2x384xf32>
      %269 = tpu.matmul %268, %6, %cst_89 {dimension_numbers = #tpu.dot_dimension_numbers<[1], [0], [0], [1], [0, 0, 1, 1], [], []>} : vector<2x16xf32>, vector<16x384xf32>, vector<2x384xf32> -> vector<2x384xf32>
      %270 = arith.addf %269, %10 : vector<2x384xf32>
      %cst_90 = arith.constant dense<0.000000e+00> : vector<2x384xf32>
      %271 = tpu.matmul %262, %7, %cst_90 {dimension_numbers = #tpu.dot_dimension_numbers<[1], [0], [0], [1], [0, 0, 1, 1], [], []>} : vector<2x128xf32>, vector<128x384xf32>, vector<2x384xf32> -> vector<2x384xf32>
      %272 = arith.addf %271, %13 : vector<2x384xf32>
      %273 = vector.extract_strided_slice %270 {offsets = [0, 0], sizes = [2, 128], strides = [1, 1]} : vector<2x384xf32> to vector<2x128xf32>
      %274 = vector.extract_strided_slice %272 {offsets = [0, 0], sizes = [2, 128], strides = [1, 1]} : vector<2x384xf32> to vector<2x128xf32>
      %275 = arith.addf %273, %274 : vector<2x128xf32>
      %276 = arith.negf %275 : vector<2x128xf32>
      %277 = math.exp %276 : vector<2x128xf32>
      %cst_91 = arith.constant 1.000000e+00 : f32
      %278 = vector.broadcast %cst_91 : f32 to vector<2x128xf32>
      %279 = arith.addf %278, %277 : vector<2x128xf32>
      %280 = arith.divf %278, %279 : vector<2x128xf32>
      %281 = vector.extract_strided_slice %270 {offsets = [0, 128], sizes = [2, 128], strides = [1, 1]} : vector<2x384xf32> to vector<2x128xf32>
      %282 = vector.extract_strided_slice %272 {offsets = [0, 128], sizes = [2, 128], strides = [1, 1]} : vector<2x384xf32> to vector<2x128xf32>
      %283 = arith.addf %281, %282 : vector<2x128xf32>
      %284 = arith.negf %283 : vector<2x128xf32>
      %285 = math.exp %284 : vector<2x128xf32>
      %cst_92 = arith.constant 1.000000e+00 : f32
      %286 = vector.broadcast %cst_92 : f32 to vector<2x128xf32>
      %287 = arith.addf %286, %285 : vector<2x128xf32>
      %288 = arith.divf %286, %287 : vector<2x128xf32>
      %289 = vector.extract_strided_slice %270 {offsets = [0, 256], sizes = [2, 128], strides = [1, 1]} : vector<2x384xf32> to vector<2x128xf32>
      %290 = vector.extract_strided_slice %272 {offsets = [0, 256], sizes = [2, 128], strides = [1, 1]} : vector<2x384xf32> to vector<2x128xf32>
      %291 = arith.mulf %280, %290 : vector<2x128xf32>
      %292 = arith.addf %289, %291 : vector<2x128xf32>
      %293 = math.tanh %292 : vector<2x128xf32>
      %cst_93 = arith.constant 1.000000e+00 : f32
      %294 = vector.broadcast %cst_93 : f32 to vector<2x128xf32>
      %295 = arith.subf %294, %288 : vector<2x128xf32>
      %296 = arith.mulf %295, %293 : vector<2x128xf32>
      %297 = arith.mulf %288, %262 : vector<2x128xf32>
      %298 = arith.addf %296, %297 : vector<2x128xf32>
      %299 = vector.extract_strided_slice %298 {offsets = [0, 0], sizes = [2, 32], strides = [1, 1]} : vector<2x128xf32> to vector<2x32xf32>
      %c0_94 = arith.constant 0 : index
      %c0_95 = arith.constant 0 : index
      %c7_96 = arith.constant 7 : index
      %c0_97 = arith.constant 0 : index
      %300 = vector.load %arg13[%c0_94, %c0_95, %c7_96, %c0_97] : memref<1x2x8x32xf32, #tpu.memory_space<vmem>>, vector<1x2x1x32xf32>
      %301 = vector.shape_cast %300 : vector<1x2x1x32xf32> to vector<2x32xf32>
      %302 = vector.shape_cast %299 : vector<2x32xf32> to vector<1x2x1x32xf32>
      tpu.vector_store %arg13[%c0_94, %c0_95, %c7_96, %c0_97], %302 {strides = array<i32>} : memref<1x2x8x32xf32, #tpu.memory_space<vmem>>, vector<1x2x1x32xf32>,
    } else {
    }
    %c1_i32 = arith.constant 1 : i32
    %3 = arith.cmpi eq, %arg0, %c1_i32 : i32
    %4 = arith.extui %3 : i1 to i32
    %c0_i32_1 = arith.constant 0 : i32
    %5 = arith.cmpi ne, %4, %c0_i32_1 : i32
    scf.if %5 {
      %c0 = arith.constant 0 : index
      %c0_2 = arith.constant 0 : index
      %6 = vector.load %arg7[%c0, %c0_2] : memref<16x384xf32, #tpu.memory_space<vmem>>, vector<16x384xf32>
      %c0_3 = arith.constant 0 : index
      %c0_4 = arith.constant 0 : index
      %7 = vector.load %arg8[%c0_3, %c0_4] : memref<128x384xf32, #tpu.memory_space<vmem>>, vector<128x384xf32>
      %c0_5 = arith.constant 0 : index
      %c0_6 = arith.constant 0 : index
      %8 = vector.load %arg11[%c0_5, %c0_6] : memref<128x16xf32, #tpu.memory_space<vmem>>, vector<128x16xf32>
      %c0_7 = arith.constant 0 : index
      %c0_8 = arith.constant 0 : index
      %9 = vector.load %arg9[%c0_7, %c0_8] : memref<1x384xf32, #tpu.memory_space<vmem>>, vector<1x384xf32>
      %10 = vector.shape_cast %9 : vector<1x384xf32> to vector<1x384xf32>
      %11 = vector.broadcast %10 : vector<1x384xf32> to vector<2x384xf32>
      %c0_9 = arith.constant 0 : index
      %c0_10 = arith.constant 0 : index
      %12 = vector.load %arg10[%c0_9, %c0_10] : memref<1x384xf32, #tpu.memory_space<vmem>>, vector<1x384xf32>
      %13 = vector.shape_cast %12 : vector<1x384xf32> to vector<1x384xf32>
      %14 = vector.broadcast %13 : vector<1x384xf32> to vector<2x384xf32>
      %c0_11 = arith.constant 0 : index
      %c0_12 = arith.constant 0 : index
      %15 = vector.load %arg12[%c0_11, %c0_12] : memref<1x16xf32, #tpu.memory_space<vmem>>, vector<1x16xf32>
      %16 = vector.shape_cast %15 : vector<1x16xf32> to vector<1x16xf32>
      %17 = vector.broadcast %16 : vector<1x16xf32> to vector<2x16xf32>
      %c0_13 = arith.constant 0 : index
      %c0_14 = arith.constant 0 : index
      %18 = vector.load %arg2[%c0_13, %c0_14] : memref<2x32xf32, #tpu.memory_space<vmem>>, vector<2x32xf32>
      %cst = arith.constant 0.000000e+00 : f32
      %19 = vector.broadcast %cst : f32 to vector<2x96xf32>
      %20 = tpu.concatenate %18, %19 in 1 : vector<2x32xf32>, vector<2x96xf32> -> vector<2x128xf32>
      %c0_15 = arith.constant 0 : index
      %c0_16 = arith.constant 0 : index
      %c0_17 = arith.constant 0 : index
      %21 = vector.load %arg1[%c0_15, %c0_16, %c0_17] : memref<2x8x16xf32, #tpu.memory_space<vmem>>, vector<2x1x16xf32>
      %22 = vector.shape_cast %21 : vector<2x1x16xf32> to vector<2x16xf32>
      %cst_18 = arith.constant dense<0.000000e+00> : vector<2x384xf32>
      %23 = tpu.matmul %22, %6, %cst_18 {dimension_numbers = #tpu.dot_dimension_numbers<[1], [0], [0], [1], [0, 0, 1, 1], [], []>} : vector<2x16xf32>, vector<16x384xf32>, vector<2x384xf32> -> vector<2x384xf32>
      %24 = arith.addf %23, %11 : vector<2x384xf32>
      %cst_19 = arith.constant dense<0.000000e+00> : vector<2x384xf32>
      %25 = tpu.matmul %20, %7, %cst_19 {dimension_numbers = #tpu.dot_dimension_numbers<[1], [0], [0], [1], [0, 0, 1, 1], [], []>} : vector<2x128xf32>, vector<128x384xf32>, vector<2x384xf32> -> vector<2x384xf32>
      %26 = arith.addf %25, %14 : vector<2x384xf32>
      %27 = vector.extract_strided_slice %24 {offsets = [0, 0], sizes = [2, 128], strides = [1, 1]} : vector<2x384xf32> to vector<2x128xf32>
      %28 = vector.extract_strided_slice %26 {offsets = [0, 0], sizes = [2, 128], strides = [1, 1]} : vector<2x384xf32> to vector<2x128xf32>
      %29 = arith.addf %27, %28 : vector<2x128xf32>
      %30 = arith.negf %29 : vector<2x128xf32>
      %31 = math.exp %30 : vector<2x128xf32>
      %cst_20 = arith.constant 1.000000e+00 : f32
      %32 = vector.broadcast %cst_20 : f32 to vector<2x128xf32>
      %33 = arith.addf %32, %31 : vector<2x128xf32>
      %34 = arith.divf %32, %33 : vector<2x128xf32>
      %35 = vector.extract_strided_slice %24 {offsets = [0, 128], sizes = [2, 128], strides = [1, 1]} : vector<2x384xf32> to vector<2x128xf32>
      %36 = vector.extract_strided_slice %26 {offsets = [0, 128], sizes = [2, 128], strides = [1, 1]} : vector<2x384xf32> to vector<2x128xf32>
      %37 = arith.addf %35, %36 : vector<2x128xf32>
      %38 = arith.negf %37 : vector<2x128xf32>
      %39 = math.exp %38 : vector<2x128xf32>
      %cst_21 = arith.constant 1.000000e+00 : f32
      %40 = vector.broadcast %cst_21 : f32 to vector<2x128xf32>
      %41 = arith.addf %40, %39 : vector<2x128xf32>
      %42 = arith.divf %40, %41 : vector<2x128xf32>
      %43 = vector.extract_strided_slice %24 {offsets = [0, 256], sizes = [2, 128], strides = [1, 1]} : vector<2x384xf32> to vector<2x128xf32>
      %44 = vector.extract_strided_slice %26 {offsets = [0, 256], sizes = [2, 128], strides = [1, 1]} : vector<2x384xf32> to vector<2x128xf32>
      %45 = arith.mulf %34, %44 : vector<2x128xf32>
      %46 = arith.addf %43, %45 : vector<2x128xf32>
      %47 = math.tanh %46 : vector<2x128xf32>
      %cst_22 = arith.constant 1.000000e+00 : f32
      %48 = vector.broadcast %cst_22 : f32 to vector<2x128xf32>
      %49 = arith.subf %48, %42 : vector<2x128xf32>
      %50 = arith.mulf %49, %47 : vector<2x128xf32>
      %51 = arith.mulf %42, %20 : vector<2x128xf32>
      %52 = arith.addf %50, %51 : vector<2x128xf32>
      %cst_23 = arith.constant dense<0.000000e+00> : vector<2x16xf32>
      %53 = tpu.matmul %52, %8, %cst_23 {dimension_numbers = #tpu.dot_dimension_numbers<[1], [0], [0], [1], [0, 0, 1, 1], [], []>} : vector<2x128xf32>, vector<128x16xf32>, vector<2x16xf32> -> vector<2x16xf32>
      %54 = arith.addf %22, %53 : vector<2x16xf32>
      %55 = arith.addf %54, %17 : vector<2x16xf32>
      %c0_24 = arith.constant 0 : index
      %c0_25 = arith.constant 0 : index
      %c0_26 = arith.constant 0 : index
      %c0_27 = arith.constant 0 : index
      %56 = vector.load %arg14[%c0_24, %c0_25, %c0_26, %c0_27] : memref<1x2x8x16xf32, #tpu.memory_space<vmem>>, vector<1x2x1x16xf32>
      %57 = vector.shape_cast %56 : vector<1x2x1x16xf32> to vector<2x16xf32>
      %58 = vector.shape_cast %55 : vector<2x16xf32> to vector<1x2x1x16xf32>
      tpu.vector_store %arg14[%c0_24, %c0_25, %c0_26, %c0_27], %58 {strides = array<i32>} : memref<1x2x8x16xf32, #tpu.memory_space<vmem>>, vector<1x2x1x16xf32>,
      %cst_28 = arith.constant dense<0.000000e+00> : vector<2x384xf32>
      %59 = tpu.matmul %55, %6, %cst_28 {dimension_numbers = #tpu.dot_dimension_numbers<[1], [0], [0], [1], [0, 0, 1, 1], [], []>} : vector<2x16xf32>, vector<16x384xf32>, vector<2x384xf32> -> vector<2x384xf32>
      %60 = arith.addf %59, %11 : vector<2x384xf32>
      %cst_29 = arith.constant dense<0.000000e+00> : vector<2x384xf32>
      %61 = tpu.matmul %52, %7, %cst_29 {dimension_numbers = #tpu.dot_dimension_numbers<[1], [0], [0], [1], [0, 0, 1, 1], [], []>} : vector<2x128xf32>, vector<128x384xf32>, vector<2x384xf32> -> vector<2x384xf32>
      %62 = arith.addf %61, %14 : vector<2x384xf32>
      %63 = vector.extract_strided_slice %60 {offsets = [0, 0], sizes = [2, 128], strides = [1, 1]} : vector<2x384xf32> to vector<2x128xf32>
      %64 = vector.extract_strided_slice %62 {offsets = [0, 0], sizes = [2, 128], strides = [1, 1]} : vector<2x384xf32> to vector<2x128xf32>
      %65 = arith.addf %63, %64 : vector<2x128xf32>
      %66 = arith.negf %65 : vector<2x128xf32>
      %67 = math.exp %66 : vector<2x128xf32>
      %cst_30 = arith.constant 1.000000e+00 : f32
      %68 = vector.broadcast %cst_30 : f32 to vector<2x128xf32>
      %69 = arith.addf %68, %67 : vector<2x128xf32>
      %70 = arith.divf %68, %69 : vector<2x128xf32>
      %71 = vector.extract_strided_slice %60 {offsets = [0, 128], sizes = [2, 128], strides = [1, 1]} : vector<2x384xf32> to vector<2x128xf32>
      %72 = vector.extract_strided_slice %62 {offsets = [0, 128], sizes = [2, 128], strides = [1, 1]} : vector<2x384xf32> to vector<2x128xf32>
      %73 = arith.addf %71, %72 : vector<2x128xf32>
      %74 = arith.negf %73 : vector<2x128xf32>
      %75 = math.exp %74 : vector<2x128xf32>
      %cst_31 = arith.constant 1.000000e+00 : f32
      %76 = vector.broadcast %cst_31 : f32 to vector<2x128xf32>
      %77 = arith.addf %76, %75 : vector<2x128xf32>
      %78 = arith.divf %76, %77 : vector<2x128xf32>
      %79 = vector.extract_strided_slice %60 {offsets = [0, 256], sizes = [2, 128], strides = [1, 1]} : vector<2x384xf32> to vector<2x128xf32>
      %80 = vector.extract_strided_slice %62 {offsets = [0, 256], sizes = [2, 128], strides = [1, 1]} : vector<2x384xf32> to vector<2x128xf32>
      %81 = arith.mulf %70, %80 : vector<2x128xf32>
      %82 = arith.addf %79, %81 : vector<2x128xf32>
      %83 = math.tanh %82 : vector<2x128xf32>
      %cst_32 = arith.constant 1.000000e+00 : f32
      %84 = vector.broadcast %cst_32 : f32 to vector<2x128xf32>
      %85 = arith.subf %84, %78 : vector<2x128xf32>
      %86 = arith.mulf %85, %83 : vector<2x128xf32>
      %87 = arith.mulf %78, %52 : vector<2x128xf32>
      %88 = arith.addf %86, %87 : vector<2x128xf32>
      %cst_33 = arith.constant dense<0.000000e+00> : vector<2x16xf32>
      %89 = tpu.matmul %88, %8, %cst_33 {dimension_numbers = #tpu.dot_dimension_numbers<[1], [0], [0], [1], [0, 0, 1, 1], [], []>} : vector<2x128xf32>, vector<128x16xf32>, vector<2x16xf32> -> vector<2x16xf32>
      %90 = arith.addf %55, %89 : vector<2x16xf32>
      %91 = arith.addf %90, %17 : vector<2x16xf32>
      %c0_34 = arith.constant 0 : index
      %c0_35 = arith.constant 0 : index
      %c1 = arith.constant 1 : index
      %c0_36 = arith.constant 0 : index
      %92 = vector.load %arg14[%c0_34, %c0_35, %c1, %c0_36] : memref<1x2x8x16xf32, #tpu.memory_space<vmem>>, vector<1x2x1x16xf32>
      %93 = vector.shape_cast %92 : vector<1x2x1x16xf32> to vector<2x16xf32>
      %94 = vector.shape_cast %91 : vector<2x16xf32> to vector<1x2x1x16xf32>
      tpu.vector_store %arg14[%c0_34, %c0_35, %c1, %c0_36], %94 {strides = array<i32>} : memref<1x2x8x16xf32, #tpu.memory_space<vmem>>, vector<1x2x1x16xf32>,
      %cst_37 = arith.constant dense<0.000000e+00> : vector<2x384xf32>
      %95 = tpu.matmul %91, %6, %cst_37 {dimension_numbers = #tpu.dot_dimension_numbers<[1], [0], [0], [1], [0, 0, 1, 1], [], []>} : vector<2x16xf32>, vector<16x384xf32>, vector<2x384xf32> -> vector<2x384xf32>
      %96 = arith.addf %95, %11 : vector<2x384xf32>
      %cst_38 = arith.constant dense<0.000000e+00> : vector<2x384xf32>
      %97 = tpu.matmul %88, %7, %cst_38 {dimension_numbers = #tpu.dot_dimension_numbers<[1], [0], [0], [1], [0, 0, 1, 1], [], []>} : vector<2x128xf32>, vector<128x384xf32>, vector<2x384xf32> -> vector<2x384xf32>
      %98 = arith.addf %97, %14 : vector<2x384xf32>
      %99 = vector.extract_strided_slice %96 {offsets = [0, 0], sizes = [2, 128], strides = [1, 1]} : vector<2x384xf32> to vector<2x128xf32>
      %100 = vector.extract_strided_slice %98 {offsets = [0, 0], sizes = [2, 128], strides = [1, 1]} : vector<2x384xf32> to vector<2x128xf32>
      %101 = arith.addf %99, %100 : vector<2x128xf32>
      %102 = arith.negf %101 : vector<2x128xf32>
      %103 = math.exp %102 : vector<2x128xf32>
      %cst_39 = arith.constant 1.000000e+00 : f32
      %104 = vector.broadcast %cst_39 : f32 to vector<2x128xf32>
      %105 = arith.addf %104, %103 : vector<2x128xf32>
      %106 = arith.divf %104, %105 : vector<2x128xf32>
      %107 = vector.extract_strided_slice %96 {offsets = [0, 128], sizes = [2, 128], strides = [1, 1]} : vector<2x384xf32> to vector<2x128xf32>
      %108 = vector.extract_strided_slice %98 {offsets = [0, 128], sizes = [2, 128], strides = [1, 1]} : vector<2x384xf32> to vector<2x128xf32>
      %109 = arith.addf %107, %108 : vector<2x128xf32>
      %110 = arith.negf %109 : vector<2x128xf32>
      %111 = math.exp %110 : vector<2x128xf32>
      %cst_40 = arith.constant 1.000000e+00 : f32
      %112 = vector.broadcast %cst_40 : f32 to vector<2x128xf32>
      %113 = arith.addf %112, %111 : vector<2x128xf32>
      %114 = arith.divf %112, %113 : vector<2x128xf32>
      %115 = vector.extract_strided_slice %96 {offsets = [0, 256], sizes = [2, 128], strides = [1, 1]} : vector<2x384xf32> to vector<2x128xf32>
      %116 = vector.extract_strided_slice %98 {offsets = [0, 256], sizes = [2, 128], strides = [1, 1]} : vector<2x384xf32> to vector<2x128xf32>
      %117 = arith.mulf %106, %116 : vector<2x128xf32>
      %118 = arith.addf %115, %117 : vector<2x128xf32>
      %119 = math.tanh %118 : vector<2x128xf32>
      %cst_41 = arith.constant 1.000000e+00 : f32
      %120 = vector.broadcast %cst_41 : f32 to vector<2x128xf32>
      %121 = arith.subf %120, %114 : vector<2x128xf32>
      %122 = arith.mulf %121, %119 : vector<2x128xf32>
      %123 = arith.mulf %114, %88 : vector<2x128xf32>
      %124 = arith.addf %122, %123 : vector<2x128xf32>
      %cst_42 = arith.constant dense<0.000000e+00> : vector<2x16xf32>
      %125 = tpu.matmul %124, %8, %cst_42 {dimension_numbers = #tpu.dot_dimension_numbers<[1], [0], [0], [1], [0, 0, 1, 1], [], []>} : vector<2x128xf32>, vector<128x16xf32>, vector<2x16xf32> -> vector<2x16xf32>
      %126 = arith.addf %91, %125 : vector<2x16xf32>
      %127 = arith.addf %126, %17 : vector<2x16xf32>
      %c0_43 = arith.constant 0 : index
      %c0_44 = arith.constant 0 : index
      %c2 = arith.constant 2 : index
      %c0_45 = arith.constant 0 : index
      %128 = vector.load %arg14[%c0_43, %c0_44, %c2, %c0_45] : memref<1x2x8x16xf32, #tpu.memory_space<vmem>>, vector<1x2x1x16xf32>
      %129 = vector.shape_cast %128 : vector<1x2x1x16xf32> to vector<2x16xf32>
      %130 = vector.shape_cast %127 : vector<2x16xf32> to vector<1x2x1x16xf32>
      tpu.vector_store %arg14[%c0_43, %c0_44, %c2, %c0_45], %130 {strides = array<i32>} : memref<1x2x8x16xf32, #tpu.memory_space<vmem>>, vector<1x2x1x16xf32>,
      %cst_46 = arith.constant dense<0.000000e+00> : vector<2x384xf32>
      %131 = tpu.matmul %127, %6, %cst_46 {dimension_numbers = #tpu.dot_dimension_numbers<[1], [0], [0], [1], [0, 0, 1, 1], [], []>} : vector<2x16xf32>, vector<16x384xf32>, vector<2x384xf32> -> vector<2x384xf32>
      %132 = arith.addf %131, %11 : vector<2x384xf32>
      %cst_47 = arith.constant dense<0.000000e+00> : vector<2x384xf32>
      %133 = tpu.matmul %124, %7, %cst_47 {dimension_numbers = #tpu.dot_dimension_numbers<[1], [0], [0], [1], [0, 0, 1, 1], [], []>} : vector<2x128xf32>, vector<128x384xf32>, vector<2x384xf32> -> vector<2x384xf32>
      %134 = arith.addf %133, %14 : vector<2x384xf32>
      %135 = vector.extract_strided_slice %132 {offsets = [0, 0], sizes = [2, 128], strides = [1, 1]} : vector<2x384xf32> to vector<2x128xf32>
      %136 = vector.extract_strided_slice %134 {offsets = [0, 0], sizes = [2, 128], strides = [1, 1]} : vector<2x384xf32> to vector<2x128xf32>
      %137 = arith.addf %135, %136 : vector<2x128xf32>
      %138 = arith.negf %137 : vector<2x128xf32>
      %139 = math.exp %138 : vector<2x128xf32>
      %cst_48 = arith.constant 1.000000e+00 : f32
      %140 = vector.broadcast %cst_48 : f32 to vector<2x128xf32>
      %141 = arith.addf %140, %139 : vector<2x128xf32>
      %142 = arith.divf %140, %141 : vector<2x128xf32>
      %143 = vector.extract_strided_slice %132 {offsets = [0, 128], sizes = [2, 128], strides = [1, 1]} : vector<2x384xf32> to vector<2x128xf32>
      %144 = vector.extract_strided_slice %134 {offsets = [0, 128], sizes = [2, 128], strides = [1, 1]} : vector<2x384xf32> to vector<2x128xf32>
      %145 = arith.addf %143, %144 : vector<2x128xf32>
      %146 = arith.negf %145 : vector<2x128xf32>
      %147 = math.exp %146 : vector<2x128xf32>
      %cst_49 = arith.constant 1.000000e+00 : f32
      %148 = vector.broadcast %cst_49 : f32 to vector<2x128xf32>
      %149 = arith.addf %148, %147 : vector<2x128xf32>
      %150 = arith.divf %148, %149 : vector<2x128xf32>
      %151 = vector.extract_strided_slice %132 {offsets = [0, 256], sizes = [2, 128], strides = [1, 1]} : vector<2x384xf32> to vector<2x128xf32>
      %152 = vector.extract_strided_slice %134 {offsets = [0, 256], sizes = [2, 128], strides = [1, 1]} : vector<2x384xf32> to vector<2x128xf32>
      %153 = arith.mulf %142, %152 : vector<2x128xf32>
      %154 = arith.addf %151, %153 : vector<2x128xf32>
      %155 = math.tanh %154 : vector<2x128xf32>
      %cst_50 = arith.constant 1.000000e+00 : f32
      %156 = vector.broadcast %cst_50 : f32 to vector<2x128xf32>
      %157 = arith.subf %156, %150 : vector<2x128xf32>
      %158 = arith.mulf %157, %155 : vector<2x128xf32>
      %159 = arith.mulf %150, %124 : vector<2x128xf32>
      %160 = arith.addf %158, %159 : vector<2x128xf32>
      %cst_51 = arith.constant dense<0.000000e+00> : vector<2x16xf32>
      %161 = tpu.matmul %160, %8, %cst_51 {dimension_numbers = #tpu.dot_dimension_numbers<[1], [0], [0], [1], [0, 0, 1, 1], [], []>} : vector<2x128xf32>, vector<128x16xf32>, vector<2x16xf32> -> vector<2x16xf32>
      %162 = arith.addf %127, %161 : vector<2x16xf32>
      %163 = arith.addf %162, %17 : vector<2x16xf32>
      %c0_52 = arith.constant 0 : index
      %c0_53 = arith.constant 0 : index
      %c3 = arith.constant 3 : index
      %c0_54 = arith.constant 0 : index
      %164 = vector.load %arg14[%c0_52, %c0_53, %c3, %c0_54] : memref<1x2x8x16xf32, #tpu.memory_space<vmem>>, vector<1x2x1x16xf32>
      %165 = vector.shape_cast %164 : vector<1x2x1x16xf32> to vector<2x16xf32>
      %166 = vector.shape_cast %163 : vector<2x16xf32> to vector<1x2x1x16xf32>
      tpu.vector_store %arg14[%c0_52, %c0_53, %c3, %c0_54], %166 {strides = array<i32>} : memref<1x2x8x16xf32, #tpu.memory_space<vmem>>, vector<1x2x1x16xf32>,
      %cst_55 = arith.constant dense<0.000000e+00> : vector<2x384xf32>
      %167 = tpu.matmul %163, %6, %cst_55 {dimension_numbers = #tpu.dot_dimension_numbers<[1], [0], [0], [1], [0, 0, 1, 1], [], []>} : vector<2x16xf32>, vector<16x384xf32>, vector<2x384xf32> -> vector<2x384xf32>
      %168 = arith.addf %167, %11 : vector<2x384xf32>
      %cst_56 = arith.constant dense<0.000000e+00> : vector<2x384xf32>
      %169 = tpu.matmul %160, %7, %cst_56 {dimension_numbers = #tpu.dot_dimension_numbers<[1], [0], [0], [1], [0, 0, 1, 1], [], []>} : vector<2x128xf32>, vector<128x384xf32>, vector<2x384xf32> -> vector<2x384xf32>
      %170 = arith.addf %169, %14 : vector<2x384xf32>
      %171 = vector.extract_strided_slice %168 {offsets = [0, 0], sizes = [2, 128], strides = [1, 1]} : vector<2x384xf32> to vector<2x128xf32>
      %172 = vector.extract_strided_slice %170 {offsets = [0, 0], sizes = [2, 128], strides = [1, 1]} : vector<2x384xf32> to vector<2x128xf32>
      %173 = arith.addf %171, %172 : vector<2x128xf32>
      %174 = arith.negf %173 : vector<2x128xf32>
      %175 = math.exp %174 : vector<2x128xf32>
      %cst_57 = arith.constant 1.000000e+00 : f32
      %176 = vector.broadcast %cst_57 : f32 to vector<2x128xf32>
      %177 = arith.addf %176, %175 : vector<2x128xf32>
      %178 = arith.divf %176, %177 : vector<2x128xf32>
      %179 = vector.extract_strided_slice %168 {offsets = [0, 128], sizes = [2, 128], strides = [1, 1]} : vector<2x384xf32> to vector<2x128xf32>
      %180 = vector.extract_strided_slice %170 {offsets = [0, 128], sizes = [2, 128], strides = [1, 1]} : vector<2x384xf32> to vector<2x128xf32>
      %181 = arith.addf %179, %180 : vector<2x128xf32>
      %182 = arith.negf %181 : vector<2x128xf32>
      %183 = math.exp %182 : vector<2x128xf32>
      %cst_58 = arith.constant 1.000000e+00 : f32
      %184 = vector.broadcast %cst_58 : f32 to vector<2x128xf32>
      %185 = arith.addf %184, %183 : vector<2x128xf32>
      %186 = arith.divf %184, %185 : vector<2x128xf32>
      %187 = vector.extract_strided_slice %168 {offsets = [0, 256], sizes = [2, 128], strides = [1, 1]} : vector<2x384xf32> to vector<2x128xf32>
      %188 = vector.extract_strided_slice %170 {offsets = [0, 256], sizes = [2, 128], strides = [1, 1]} : vector<2x384xf32> to vector<2x128xf32>
      %189 = arith.mulf %178, %188 : vector<2x128xf32>
      %190 = arith.addf %187, %189 : vector<2x128xf32>
      %191 = math.tanh %190 : vector<2x128xf32>
      %cst_59 = arith.constant 1.000000e+00 : f32
      %192 = vector.broadcast %cst_59 : f32 to vector<2x128xf32>
      %193 = arith.subf %192, %186 : vector<2x128xf32>
      %194 = arith.mulf %193, %191 : vector<2x128xf32>
      %195 = arith.mulf %186, %160 : vector<2x128xf32>
      %196 = arith.addf %194, %195 : vector<2x128xf32>
      %cst_60 = arith.constant dense<0.000000e+00> : vector<2x16xf32>
      %197 = tpu.matmul %196, %8, %cst_60 {dimension_numbers = #tpu.dot_dimension_numbers<[1], [0], [0], [1], [0, 0, 1, 1], [], []>} : vector<2x128xf32>, vector<128x16xf32>, vector<2x16xf32> -> vector<2x16xf32>
      %198 = arith.addf %163, %197 : vector<2x16xf32>
      %199 = arith.addf %198, %17 : vector<2x16xf32>
      %c0_61 = arith.constant 0 : index
      %c0_62 = arith.constant 0 : index
      %c4 = arith.constant 4 : index
      %c0_63 = arith.constant 0 : index
      %200 = vector.load %arg14[%c0_61, %c0_62, %c4, %c0_63] : memref<1x2x8x16xf32, #tpu.memory_space<vmem>>, vector<1x2x1x16xf32>
      %201 = vector.shape_cast %200 : vector<1x2x1x16xf32> to vector<2x16xf32>
      %202 = vector.shape_cast %199 : vector<2x16xf32> to vector<1x2x1x16xf32>
      tpu.vector_store %arg14[%c0_61, %c0_62, %c4, %c0_63], %202 {strides = array<i32>} : memref<1x2x8x16xf32, #tpu.memory_space<vmem>>, vector<1x2x1x16xf32>,
      %cst_64 = arith.constant dense<0.000000e+00> : vector<2x384xf32>
      %203 = tpu.matmul %199, %6, %cst_64 {dimension_numbers = #tpu.dot_dimension_numbers<[1], [0], [0], [1], [0, 0, 1, 1], [], []>} : vector<2x16xf32>, vector<16x384xf32>, vector<2x384xf32> -> vector<2x384xf32>
      %204 = arith.addf %203, %11 : vector<2x384xf32>
      %cst_65 = arith.constant dense<0.000000e+00> : vector<2x384xf32>
      %205 = tpu.matmul %196, %7, %cst_65 {dimension_numbers = #tpu.dot_dimension_numbers<[1], [0], [0], [1], [0, 0, 1, 1], [], []>} : vector<2x128xf32>, vector<128x384xf32>, vector<2x384xf32> -> vector<2x384xf32>
      %206 = arith.addf %205, %14 : vector<2x384xf32>
      %207 = vector.extract_strided_slice %204 {offsets = [0, 0], sizes = [2, 128], strides = [1, 1]} : vector<2x384xf32> to vector<2x128xf32>
      %208 = vector.extract_strided_slice %206 {offsets = [0, 0], sizes = [2, 128], strides = [1, 1]} : vector<2x384xf32> to vector<2x128xf32>
      %209 = arith.addf %207, %208 : vector<2x128xf32>
      %210 = arith.negf %209 : vector<2x128xf32>
      %211 = math.exp %210 : vector<2x128xf32>
      %cst_66 = arith.constant 1.000000e+00 : f32
      %212 = vector.broadcast %cst_66 : f32 to vector<2x128xf32>
      %213 = arith.addf %212, %211 : vector<2x128xf32>
      %214 = arith.divf %212, %213 : vector<2x128xf32>
      %215 = vector.extract_strided_slice %204 {offsets = [0, 128], sizes = [2, 128], strides = [1, 1]} : vector<2x384xf32> to vector<2x128xf32>
      %216 = vector.extract_strided_slice %206 {offsets = [0, 128], sizes = [2, 128], strides = [1, 1]} : vector<2x384xf32> to vector<2x128xf32>
      %217 = arith.addf %215, %216 : vector<2x128xf32>
      %218 = arith.negf %217 : vector<2x128xf32>
      %219 = math.exp %218 : vector<2x128xf32>
      %cst_67 = arith.constant 1.000000e+00 : f32
      %220 = vector.broadcast %cst_67 : f32 to vector<2x128xf32>
      %221 = arith.addf %220, %219 : vector<2x128xf32>
      %222 = arith.divf %220, %221 : vector<2x128xf32>
      %223 = vector.extract_strided_slice %204 {offsets = [0, 256], sizes = [2, 128], strides = [1, 1]} : vector<2x384xf32> to vector<2x128xf32>
      %224 = vector.extract_strided_slice %206 {offsets = [0, 256], sizes = [2, 128], strides = [1, 1]} : vector<2x384xf32> to vector<2x128xf32>
      %225 = arith.mulf %214, %224 : vector<2x128xf32>
      %226 = arith.addf %223, %225 : vector<2x128xf32>
      %227 = math.tanh %226 : vector<2x128xf32>
      %cst_68 = arith.constant 1.000000e+00 : f32
      %228 = vector.broadcast %cst_68 : f32 to vector<2x128xf32>
      %229 = arith.subf %228, %222 : vector<2x128xf32>
      %230 = arith.mulf %229, %227 : vector<2x128xf32>
      %231 = arith.mulf %222, %196 : vector<2x128xf32>
      %232 = arith.addf %230, %231 : vector<2x128xf32>
      %cst_69 = arith.constant dense<0.000000e+00> : vector<2x16xf32>
      %233 = tpu.matmul %232, %8, %cst_69 {dimension_numbers = #tpu.dot_dimension_numbers<[1], [0], [0], [1], [0, 0, 1, 1], [], []>} : vector<2x128xf32>, vector<128x16xf32>, vector<2x16xf32> -> vector<2x16xf32>
      %234 = arith.addf %199, %233 : vector<2x16xf32>
      %235 = arith.addf %234, %17 : vector<2x16xf32>
      %c0_70 = arith.constant 0 : index
      %c0_71 = arith.constant 0 : index
      %c5 = arith.constant 5 : index
      %c0_72 = arith.constant 0 : index
      %236 = vector.load %arg14[%c0_70, %c0_71, %c5, %c0_72] : memref<1x2x8x16xf32, #tpu.memory_space<vmem>>, vector<1x2x1x16xf32>
      %237 = vector.shape_cast %236 : vector<1x2x1x16xf32> to vector<2x16xf32>
      %238 = vector.shape_cast %235 : vector<2x16xf32> to vector<1x2x1x16xf32>
      tpu.vector_store %arg14[%c0_70, %c0_71, %c5, %c0_72], %238 {strides = array<i32>} : memref<1x2x8x16xf32, #tpu.memory_space<vmem>>, vector<1x2x1x16xf32>,
      %cst_73 = arith.constant dense<0.000000e+00> : vector<2x384xf32>
      %239 = tpu.matmul %235, %6, %cst_73 {dimension_numbers = #tpu.dot_dimension_numbers<[1], [0], [0], [1], [0, 0, 1, 1], [], []>} : vector<2x16xf32>, vector<16x384xf32>, vector<2x384xf32> -> vector<2x384xf32>
      %240 = arith.addf %239, %11 : vector<2x384xf32>
      %cst_74 = arith.constant dense<0.000000e+00> : vector<2x384xf32>
      %241 = tpu.matmul %232, %7, %cst_74 {dimension_numbers = #tpu.dot_dimension_numbers<[1], [0], [0], [1], [0, 0, 1, 1], [], []>} : vector<2x128xf32>, vector<128x384xf32>, vector<2x384xf32> -> vector<2x384xf32>
      %242 = arith.addf %241, %14 : vector<2x384xf32>
      %243 = vector.extract_strided_slice %240 {offsets = [0, 0], sizes = [2, 128], strides = [1, 1]} : vector<2x384xf32> to vector<2x128xf32>
      %244 = vector.extract_strided_slice %242 {offsets = [0, 0], sizes = [2, 128], strides = [1, 1]} : vector<2x384xf32> to vector<2x128xf32>
      %245 = arith.addf %243, %244 : vector<2x128xf32>
      %246 = arith.negf %245 : vector<2x128xf32>
      %247 = math.exp %246 : vector<2x128xf32>
      %cst_75 = arith.constant 1.000000e+00 : f32
      %248 = vector.broadcast %cst_75 : f32 to vector<2x128xf32>
      %249 = arith.addf %248, %247 : vector<2x128xf32>
      %250 = arith.divf %248, %249 : vector<2x128xf32>
      %251 = vector.extract_strided_slice %240 {offsets = [0, 128], sizes = [2, 128], strides = [1, 1]} : vector<2x384xf32> to vector<2x128xf32>
      %252 = vector.extract_strided_slice %242 {offsets = [0, 128], sizes = [2, 128], strides = [1, 1]} : vector<2x384xf32> to vector<2x128xf32>
      %253 = arith.addf %251, %252 : vector<2x128xf32>
      %254 = arith.negf %253 : vector<2x128xf32>
      %255 = math.exp %254 : vector<2x128xf32>
      %cst_76 = arith.constant 1.000000e+00 : f32
      %256 = vector.broadcast %cst_76 : f32 to vector<2x128xf32>
      %257 = arith.addf %256, %255 : vector<2x128xf32>
      %258 = arith.divf %256, %257 : vector<2x128xf32>
      %259 = vector.extract_strided_slice %240 {offsets = [0, 256], sizes = [2, 128], strides = [1, 1]} : vector<2x384xf32> to vector<2x128xf32>
      %260 = vector.extract_strided_slice %242 {offsets = [0, 256], sizes = [2, 128], strides = [1, 1]} : vector<2x384xf32> to vector<2x128xf32>
      %261 = arith.mulf %250, %260 : vector<2x128xf32>
      %262 = arith.addf %259, %261 : vector<2x128xf32>
      %263 = math.tanh %262 : vector<2x128xf32>
      %cst_77 = arith.constant 1.000000e+00 : f32
      %264 = vector.broadcast %cst_77 : f32 to vector<2x128xf32>
      %265 = arith.subf %264, %258 : vector<2x128xf32>
      %266 = arith.mulf %265, %263 : vector<2x128xf32>
      %267 = arith.mulf %258, %232 : vector<2x128xf32>
      %268 = arith.addf %266, %267 : vector<2x128xf32>
      %cst_78 = arith.constant dense<0.000000e+00> : vector<2x16xf32>
      %269 = tpu.matmul %268, %8, %cst_78 {dimension_numbers = #tpu.dot_dimension_numbers<[1], [0], [0], [1], [0, 0, 1, 1], [], []>} : vector<2x128xf32>, vector<128x16xf32>, vector<2x16xf32> -> vector<2x16xf32>
      %270 = arith.addf %235, %269 : vector<2x16xf32>
      %271 = arith.addf %270, %17 : vector<2x16xf32>
      %c0_79 = arith.constant 0 : index
      %c0_80 = arith.constant 0 : index
      %c6 = arith.constant 6 : index
      %c0_81 = arith.constant 0 : index
      %272 = vector.load %arg14[%c0_79, %c0_80, %c6, %c0_81] : memref<1x2x8x16xf32, #tpu.memory_space<vmem>>, vector<1x2x1x16xf32>
      %273 = vector.shape_cast %272 : vector<1x2x1x16xf32> to vector<2x16xf32>
      %274 = vector.shape_cast %271 : vector<2x16xf32> to vector<1x2x1x16xf32>
      tpu.vector_store %arg14[%c0_79, %c0_80, %c6, %c0_81], %274 {strides = array<i32>} : memref<1x2x8x16xf32, #tpu.memory_space<vmem>>, vector<1x2x1x16xf32>,
      %cst_82 = arith.constant dense<0.000000e+00> : vector<2x384xf32>
      %275 = tpu.matmul %271, %6, %cst_82 {dimension_numbers = #tpu.dot_dimension_numbers<[1], [0], [0], [1], [0, 0, 1, 1], [], []>} : vector<2x16xf32>, vector<16x384xf32>, vector<2x384xf32> -> vector<2x384xf32>
      %276 = arith.addf %275, %11 : vector<2x384xf32>
      %cst_83 = arith.constant dense<0.000000e+00> : vector<2x384xf32>
      %277 = tpu.matmul %268, %7, %cst_83 {dimension_numbers = #tpu.dot_dimension_numbers<[1], [0], [0], [1], [0, 0, 1, 1], [], []>} : vector<2x128xf32>, vector<128x384xf32>, vector<2x384xf32> -> vector<2x384xf32>
      %278 = arith.addf %277, %14 : vector<2x384xf32>
      %279 = vector.extract_strided_slice %276 {offsets = [0, 0], sizes = [2, 128], strides = [1, 1]} : vector<2x384xf32> to vector<2x128xf32>
      %280 = vector.extract_strided_slice %278 {offsets = [0, 0], sizes = [2, 128], strides = [1, 1]} : vector<2x384xf32> to vector<2x128xf32>
      %281 = arith.addf %279, %280 : vector<2x128xf32>
      %282 = arith.negf %281 : vector<2x128xf32>
      %283 = math.exp %282 : vector<2x128xf32>
      %cst_84 = arith.constant 1.000000e+00 : f32
      %284 = vector.broadcast %cst_84 : f32 to vector<2x128xf32>
      %285 = arith.addf %284, %283 : vector<2x128xf32>
      %286 = arith.divf %284, %285 : vector<2x128xf32>
      %287 = vector.extract_strided_slice %276 {offsets = [0, 128], sizes = [2, 128], strides = [1, 1]} : vector<2x384xf32> to vector<2x128xf32>
      %288 = vector.extract_strided_slice %278 {offsets = [0, 128], sizes = [2, 128], strides = [1, 1]} : vector<2x384xf32> to vector<2x128xf32>
      %289 = arith.addf %287, %288 : vector<2x128xf32>
      %290 = arith.negf %289 : vector<2x128xf32>
      %291 = math.exp %290 : vector<2x128xf32>
      %cst_85 = arith.constant 1.000000e+00 : f32
      %292 = vector.broadcast %cst_85 : f32 to vector<2x128xf32>
      %293 = arith.addf %292, %291 : vector<2x128xf32>
      %294 = arith.divf %292, %293 : vector<2x128xf32>
      %295 = vector.extract_strided_slice %276 {offsets = [0, 256], sizes = [2, 128], strides = [1, 1]} : vector<2x384xf32> to vector<2x128xf32>
      %296 = vector.extract_strided_slice %278 {offsets = [0, 256], sizes = [2, 128], strides = [1, 1]} : vector<2x384xf32> to vector<2x128xf32>
      %297 = arith.mulf %286, %296 : vector<2x128xf32>
      %298 = arith.addf %295, %297 : vector<2x128xf32>
      %299 = math.tanh %298 : vector<2x128xf32>
      %cst_86 = arith.constant 1.000000e+00 : f32
      %300 = vector.broadcast %cst_86 : f32 to vector<2x128xf32>
      %301 = arith.subf %300, %294 : vector<2x128xf32>
      %302 = arith.mulf %301, %299 : vector<2x128xf32>
      %303 = arith.mulf %294, %268 : vector<2x128xf32>
      %304 = arith.addf %302, %303 : vector<2x128xf32>
      %cst_87 = arith.constant dense<0.000000e+00> : vector<2x16xf32>
      %305 = tpu.matmul %304, %8, %cst_87 {dimension_numbers = #tpu.dot_dimension_numbers<[1], [0], [0], [1], [0, 0, 1, 1], [], []>} : vector<2x128xf32>, vector<128x16xf32>, vector<2x16xf32> -> vector<2x16xf32>
      %306 = arith.addf %271, %305 : vector<2x16xf32>
      %307 = arith.addf %306, %17 : vector<2x16xf32>
      %c0_88 = arith.constant 0 : index
      %c0_89 = arith.constant 0 : index
      %c7 = arith.constant 7 : index
      %c0_90 = arith.constant 0 : index
      %308 = vector.load %arg14[%c0_88, %c0_89, %c7, %c0_90] : memref<1x2x8x16xf32, #tpu.memory_space<vmem>>, vector<1x2x1x16xf32>
      %309 = vector.shape_cast %308 : vector<1x2x1x16xf32> to vector<2x16xf32>
      %310 = vector.shape_cast %307 : vector<2x16xf32> to vector<1x2x1x16xf32>
      tpu.vector_store %arg14[%c0_88, %c0_89, %c7, %c0_90], %310 {strides = array<i32>} : memref<1x2x8x16xf32, #tpu.memory_space<vmem>>, vector<1x2x1x16xf32>,
    } else {
    }
    return
  }
  func.func @transform_0(%arg0: i32) -> (i32, i32, i32) {
    %c0_i32 = arith.constant 0 : i32
    %c0_i32_0 = arith.constant 0 : i32
    %c0_i32_1 = arith.constant 0 : i32
    %c0_i32_2 = arith.constant 0 : i32
    return %c0_i32, %c0_i32_0, %c0_i32_1 : i32, i32, i32
  }
  func.func @transform_1(%arg0: i32) -> (i32, i32) {
    %c0_i32 = arith.constant 0 : i32
    %c0_i32_0 = arith.constant 0 : i32
    %c0_i32_1 = arith.constant 0 : i32
    return %c0_i32, %c0_i32_0 : i32, i32
  }
  func.func @transform_2(%arg0: i32) -> (i32, i32) {
    %c0_i32 = arith.constant 0 : i32
    %c0_i32_0 = arith.constant 0 : i32
    %c0_i32_1 = arith.constant 0 : i32
    return %c0_i32, %c0_i32_0 : i32, i32
  }
  func.func @transform_3(%arg0: i32) -> (i32, i32) {
    %c0_i32 = arith.constant 0 : i32
    %c0_i32_0 = arith.constant 0 : i32
    %c0_i32_1 = arith.constant 0 : i32
    return %c0_i32, %c0_i32_0 : i32, i32
  }
  func.func @transform_4(%arg0: i32) -> (i32, i32) {
    %c0_i32 = arith.constant 0 : i32
    %c0_i32_0 = arith.constant 0 : i32
    %c0_i32_1 = arith.constant 0 : i32
    return %c0_i32, %c0_i32_0 : i32, i32
  }
  func.func @transform_5(%arg0: i32) -> (i32, i32) {
    %c0_i32 = arith.constant 0 : i32
    %c0_i32_0 = arith.constant 0 : i32
    %c0_i32_1 = arith.constant 0 : i32
    return %c0_i32, %c0_i32_0 : i32, i32
  }
  func.func @transform_6(%arg0: i32) -> (i32, i32) {
    %c0_i32 = arith.constant 0 : i32
    %c0_i32_0 = arith.constant 0 : i32
    %c0_i32_1 = arith.constant 0 : i32
    return %c0_i32, %c0_i32_0 : i32, i32
  }
  func.func @transform_7(%arg0: i32) -> (i32, i32) {
    %c0_i32 = arith.constant 0 : i32
    %c0_i32_0 = arith.constant 0 : i32
    %c0_i32_1 = arith.constant 0 : i32
    return %c0_i32, %c0_i32_0 : i32, i32
  }
  func.func @transform_8(%arg0: i32) -> (i32, i32) {
    %c0_i32 = arith.constant 0 : i32
    %c0_i32_0 = arith.constant 0 : i32
    %c0_i32_1 = arith.constant 0 : i32
    return %c0_i32, %c0_i32_0 : i32, i32
  }
  func.func @transform_9(%arg0: i32) -> (i32, i32) {
    %c0_i32 = arith.constant 0 : i32
    %c0_i32_0 = arith.constant 0 : i32
    %c0_i32_1 = arith.constant 0 : i32
    return %c0_i32, %c0_i32_0 : i32, i32
  }
  func.func @transform_10(%arg0: i32) -> (i32, i32) {
    %c0_i32 = arith.constant 0 : i32
    %c0_i32_0 = arith.constant 0 : i32
    %c0_i32_1 = arith.constant 0 : i32
    return %c0_i32, %c0_i32_0 : i32, i32
  }
  func.func @transform_11(%arg0: i32) -> (i32, i32) {
    %c0_i32 = arith.constant 0 : i32
    %c0_i32_0 = arith.constant 0 : i32
    %c0_i32_1 = arith.constant 0 : i32
    return %c0_i32, %c0_i32_0 : i32, i32
  }
  func.func @transform_12(%arg0: i32) -> (i32, i32, i32, i32) {
    %c0_i32 = arith.constant 0 : i32
    %c0_i32_0 = arith.constant 0 : i32
    %c0_i32_1 = arith.constant 0 : i32
    %c0_i32_2 = arith.constant 0 : i32
    return %arg0, %c0_i32, %c0_i32_0, %c0_i32_1 : i32, i32, i32, i32
  }
  func.func @transform_13(%arg0: i32) -> (i32, i32, i32, i32) {
    %c0_i32 = arith.constant 0 : i32
    %c0_i32_0 = arith.constant 0 : i32
    %c0_i32_1 = arith.constant 0 : i32
    %c0_i32_2 = arith.constant 0 : i32
    return %arg0, %c0_i32, %c0_i32_0, %c0_i32_1 : i32, i32, i32, i32
  }
}

</mosaic_0001>

<llo_original>
// kernel: seq2seq_conditioned9_forward.1
$region0: #{seq2seq_conditioned9_forward.1}
  #allocation0 [shape = 'u32[]', space=smem, size = 0x4, offset = 0x4, fixed_abs, tag = 'smem constant byte address 0x4 - core index']
  #allocation1 [shape = 'u32[144,128]{1,0:T(1,128)}', space=vmem, size = 0x12000, scoped, tag = 'internal scratch']
  %s0 = inlined_call_operand.vmem [shape: f32[2,8,16], index: 0, kind: input, shape index: {}]
  %s1 = inlined_call_operand.vmem [shape: f32[2,32], index: 1, kind: input, shape index: {}]
  %s2 = inlined_call_operand.vmem [shape: f32[16,384], index: 2, kind: input, shape index: {}]
  %s3 = inlined_call_operand.hbm [shape: f32[128,384], index: 3, kind: input, shape index: {}]
  %s4 = inlined_call_operand.vmem [shape: f32[1,384], index: 4, kind: input, shape index: {}]
  %s5 = inlined_call_operand.vmem [shape: f32[1,384], index: 5, kind: input, shape index: {}]
  %s6 = inlined_call_operand.vmem [shape: f32[16,384], index: 6, kind: input, shape index: {}]
  %s7 = inlined_call_operand.hbm [shape: f32[128,384], index: 7, kind: input, shape index: {}]
  %s8 = inlined_call_operand.vmem [shape: f32[1,384], index: 8, kind: input, shape index: {}]
  %s9 = inlined_call_operand.vmem [shape: f32[1,384], index: 9, kind: input, shape index: {}]
  %s10 = inlined_call_operand.vmem [shape: f32[128,16], index: 10, kind: input, shape index: {}]
  %s11 = inlined_call_operand.vmem [shape: f32[1,16], index: 11, kind: input, shape index: {}]
  %s12 = inlined_call_operand.vmem [shape: f32[2,2,8,32], index: 12, kind: output, shape index: {0}]
  %s13 = inlined_call_operand.vmem [shape: f32[2,2,8,16], index: 13, kind: output, shape index: {1}]
  %14 = xla_tuple %s12, %s13
  %s15 = sld [smem:[#allocation0]]
  $region105: #{seq2seq_conditioned9_forward.1} parent=0
    _
  %s17 = ssub.s32 1, %s15
  %s18 = scalar_select 0, %s17, %s15
  $region1: #{seq2seq_conditioned9_forward.1} parent=0
    #allocation2 [shape = 'u8[196608]{0}', space=vmem, size = 0x30000, scoped, tag = 'input window, operand 3, single buffered']
    #allocation3 [shape = 's32[2]{0}', space=sflag, size = 0x8, scoped, tag = 'scoped memory for seq2seq_conditioned9_forward.1']
    #allocation4 [shape = 'u8[196608]{0}', space=vmem, size = 0x30000, scoped, tag = 'input window, operand 7, single buffered']
    #allocation5 [shape = 's32[1]{0}', space=sflag, size = 0x4, scoped, tag = 'scoped memory for seq2seq_conditioned9_forward.1']
    %19 = vsyncpa [#allocation3], 0
    %20 = vsyncpa [#allocation5], 0
    loop: start=0, step=1, limit=4
    $region2: #{seq2seq_conditioned9_forward.1} parent=1 // loop_pre_header
      _
    $region3: #{seq2seq_conditioned9_forward.1} parent=1 // loop_header
      %s22 = sphi 0, %s26
      %p23 = scmp.ge.s32.totalorder %s22, 4
      %s30 = sphi 0, %s30
      %s32 = sphi 0, %s30
      %s33 = sphi 0, %s32
      %s47 = sphi 0, %s33
      %s51 = sphi 0, %s51
      %s53 = sphi 0, %s51
      %s54 = sphi 0, %s53
      %s68 = sphi 0, %s54
      %s72 = sphi 0, %s72
      %s74 = sphi 0, %s72
      %s75 = sphi 0, %s74
      %s89 = sphi 0, %s75
      %s93 = sphi 0, %s93
      %s95 = sphi 0, %s93
      %s96 = sphi 0, %s95
      %s110 = sphi 0, %s96
      %s114 = sphi 0, %s114
      %s116 = sphi 0, %s114
      %s117 = sphi 0, %s116
      %s131 = sphi 0, %s117
      %s135 = sphi 0, %s135
      %s137 = sphi 0, %s135
      %s138 = sphi 0, %s137
      %s152 = sphi 0, %s138
      %s156 = sphi 0, %s156
      %s158 = sphi 0, %s156
      %s159 = sphi 0, %s158
      %s173 = sphi 0, %s159
      %s177 = sphi 0, %s177
      %s179 = sphi 0, %s177
      %s180 = sphi 0, %s179
      %s194 = sphi 0, %s180
      %s198 = sphi 0, %s198
      %s200 = sphi 0, %s198
      %s201 = sphi 0, %s200
      %s215 = sphi 0, %s201
      %s219 = sphi 0, %s219
      %s221 = sphi 0, %s219
      %s222 = sphi 0, %s221
      %s236 = sphi 0, %s222
      %s240 = sphi 0, %s240
      %s242 = sphi 0, %s240
      %s243 = sphi 0, %s242
      %s257 = sphi 0, %s243
      %s261 = sphi 0, %s261
      %s263 = sphi 0, %s261
      %s264 = sphi 0, %s263
      %s278 = sphi 0, %s264
      %s284 = sphi 0, %s286
      %s287 = sphi 0, %s284
      %s288 = sphi 0, %s287
      %s304 = sphi 0, %s288
      %s310 = sphi 0, %s312
      %s313 = sphi 0, %s310
      %s314 = sphi 0, %s313
      %s330 = sphi 0, %s314
    $region4: #{seq2seq_conditioned9_forward.1} parent=1 // loop_header_branch
      %25 = sbr.rel (%p23) target = $region8
    $region5: #{seq2seq_conditioned9_forward.1} parent=1 // loop_body
      %s27 = ssub.s32 %s22, 1
      %s28 = ssub.s32 %s22, 2
      %s29 = sadd.s32 %s22, 1
      %s31 = sadd.s32 %s30, 1
      %p34 = scmp.eq.s32.totalorder %s22, 1
      %p35 = scmp.ne.s32.totalorder %s30, %s32
      %p36 = scmp.eq.s32.totalorder %s22, 0
      %p37 = por %p35, %p36
      %p38 = scmp.ne.s32.totalorder %s30, %s32
      %p39 = scmp.eq.s32.totalorder %s27, 1
      %p40 = por %p38, %p39
      %p41 = scmp.ne.s32.totalorder %s32, %s33
      %p42 = scmp.eq.s32.totalorder %s27, 0
      %p43 = por %p41, %p42
      %p44 = scmp.ne.s32.totalorder %s32, %s33
      %p45 = scmp.eq.s32.totalorder %s28, 1
      %p46 = por %p44, %p45
      %p48 = scmp.ne.s32.totalorder %s33, %s47
      %p49 = scmp.eq.s32.totalorder %s28, 0
      %p50 = por %p48, %p49
      %s52 = sadd.s32 %s51, 1
      %p55 = scmp.eq.s32.totalorder %s22, 1
      %p56 = scmp.ne.s32.totalorder %s51, %s53
      %p57 = scmp.eq.s32.totalorder %s22, 0
      %p58 = por %p56, %p57
      %p59 = scmp.ne.s32.totalorder %s51, %s53
      %p60 = scmp.eq.s32.totalorder %s27, 1
      %p61 = por %p59, %p60
      %p62 = scmp.ne.s32.totalorder %s53, %s54
      %p63 = scmp.eq.s32.totalorder %s27, 0
      %p64 = por %p62, %p63
      %p65 = scmp.ne.s32.totalorder %s53, %s54
      %p66 = scmp.eq.s32.totalorder %s28, 1
      %p67 = por %p65, %p66
      %p69 = scmp.ne.s32.totalorder %s54, %s68
      %p70 = scmp.eq.s32.totalorder %s28, 0
      %p71 = por %p69, %p70
      %s73 = sadd.s32 %s72, 1
      %p76 = scmp.eq.s32.totalorder %s22, 1
      %p77 = scmp.ne.s32.totalorder %s72, %s74
      %p78 = scmp.eq.s32.totalorder %s22, 0
      %p79 = por %p77, %p78
      %p80 = scmp.ne.s32.totalorder %s72, %s74
      %p81 = scmp.eq.s32.totalorder %s27, 1
      %p82 = por %p80, %p81
      %p83 = scmp.ne.s32.totalorder %s74, %s75
      %p84 = scmp.eq.s32.totalorder %s27, 0
      %p85 = por %p83, %p84
      %p86 = scmp.ne.s32.totalorder %s74, %s75
      %p87 = scmp.eq.s32.totalorder %s28, 1
      %p88 = por %p86, %p87
      %p90 = scmp.ne.s32.totalorder %s75, %s89
      %p91 = scmp.eq.s32.totalorder %s28, 0
      %p92 = por %p90, %p91
      %s94 = sadd.s32 %s93, 1
      %p97 = scmp.eq.s32.totalorder %s22, 1
      %p98 = scmp.ne.s32.totalorder %s93, %s95
      %p99 = scmp.eq.s32.totalorder %s22, 0
      %p100 = por %p98, %p99
      %p101 = scmp.ne.s32.totalorder %s93, %s95
      %p102 = scmp.eq.s32.totalorder %s27, 1
      %p103 = por %p101, %p102
      %p104 = scmp.ne.s32.totalorder %s95, %s96
      %p105 = scmp.eq.s32.totalorder %s27, 0
      %p106 = por %p104, %p105
      %p107 = scmp.ne.s32.totalorder %s95, %s96
      %p108 = scmp.eq.s32.totalorder %s28, 1
      %p109 = por %p107, %p108
      %p111 = scmp.ne.s32.totalorder %s96, %s110
      %p112 = scmp.eq.s32.totalorder %s28, 0
      %p113 = por %p111, %p112
      %s115 = sadd.s32 %s114, 1
      %p118 = scmp.eq.s32.totalorder %s22, 1
      %p119 = scmp.ne.s32.totalorder %s114, %s116
      %p120 = scmp.eq.s32.totalorder %s22, 0
      %p121 = por %p119, %p120
      %p122 = scmp.ne.s32.totalorder %s114, %s116
      %p123 = scmp.eq.s32.totalorder %s27, 1
      %p124 = por %p122, %p123
      %p125 = scmp.ne.s32.totalorder %s116, %s117
      %p126 = scmp.eq.s32.totalorder %s27, 0
      %p127 = por %p125, %p126
      %p128 = scmp.ne.s32.totalorder %s116, %s117
      %p129 = scmp.eq.s32.totalorder %s28, 1
      %p130 = por %p128, %p129
      %p132 = scmp.ne.s32.totalorder %s117, %s131
      %p133 = scmp.eq.s32.totalorder %s28, 0
      %p134 = por %p132, %p133
      %s136 = sadd.s32 %s135, 1
      %p139 = scmp.eq.s32.totalorder %s22, 1
      %p140 = scmp.ne.s32.totalorder %s135, %s137
      %p141 = scmp.eq.s32.totalorder %s22, 0
      %p142 = por %p140, %p141
      %p143 = scmp.ne.s32.totalorder %s135, %s137
      %p144 = scmp.eq.s32.totalorder %s27, 1
      %p145 = por %p143, %p144
      %p146 = scmp.ne.s32.totalorder %s137, %s138
      %p147 = scmp.eq.s32.totalorder %s27, 0
      %p148 = por %p146, %p147
      %p149 = scmp.ne.s32.totalorder %s137, %s138
      %p150 = scmp.eq.s32.totalorder %s28, 1
      %p151 = por %p149, %p150
      %p153 = scmp.ne.s32.totalorder %s138, %s152
      %p154 = scmp.eq.s32.totalorder %s28, 0
      %p155 = por %p153, %p154
      %s157 = sadd.s32 %s156, 1
      %p160 = scmp.eq.s32.totalorder %s22, 1
      %p161 = scmp.ne.s32.totalorder %s156, %s158
      %p162 = scmp.eq.s32.totalorder %s22, 0
      %p163 = por %p161, %p162
      %p164 = scmp.ne.s32.totalorder %s156, %s158
      %p165 = scmp.eq.s32.totalorder %s27, 1
      %p166 = por %p164, %p165
      %p167 = scmp.ne.s32.totalorder %s158, %s159
      %p168 = scmp.eq.s32.totalorder %s27, 0
      %p169 = por %p167, %p168
      %p170 = scmp.ne.s32.totalorder %s158, %s159
      %p171 = scmp.eq.s32.totalorder %s28, 1
      %p172 = por %p170, %p171
      %p174 = scmp.ne.s32.totalorder %s159, %s173
      %p175 = scmp.eq.s32.totalorder %s28, 0
      %p176 = por %p174, %p175
      %s178 = sadd.s32 %s177, 1
      %p181 = scmp.eq.s32.totalorder %s22, 1
      %p182 = scmp.ne.s32.totalorder %s177, %s179
      %p183 = scmp.eq.s32.totalorder %s22, 0
      %p184 = por %p182, %p183
      %p185 = scmp.ne.s32.totalorder %s177, %s179
      %p186 = scmp.eq.s32.totalorder %s27, 1
      %p187 = por %p185, %p186
      %p188 = scmp.ne.s32.totalorder %s179, %s180
      %p189 = scmp.eq.s32.totalorder %s27, 0
      %p190 = por %p188, %p189
      %p191 = scmp.ne.s32.totalorder %s179, %s180
      %p192 = scmp.eq.s32.totalorder %s28, 1
      %p193 = por %p191, %p192
      %p195 = scmp.ne.s32.totalorder %s180, %s194
      %p196 = scmp.eq.s32.totalorder %s28, 0
      %p197 = por %p195, %p196
      %s199 = sadd.s32 %s198, 1
      %p202 = scmp.eq.s32.totalorder %s22, 1
      %p203 = scmp.ne.s32.totalorder %s198, %s200
      %p204 = scmp.eq.s32.totalorder %s22, 0
      %p205 = por %p203, %p204
      %p206 = scmp.ne.s32.totalorder %s198, %s200
      %p207 = scmp.eq.s32.totalorder %s27, 1
      %p208 = por %p206, %p207
      %p209 = scmp.ne.s32.totalorder %s200, %s201
      %p210 = scmp.eq.s32.totalorder %s27, 0
      %p211 = por %p209, %p210
      %p212 = scmp.ne.s32.totalorder %s200, %s201
      %p213 = scmp.eq.s32.totalorder %s28, 1
      %p214 = por %p212, %p213
      %p216 = scmp.ne.s32.totalorder %s201, %s215
      %p217 = scmp.eq.s32.totalorder %s28, 0
      %p218 = por %p216, %p217
      %s220 = sadd.s32 %s219, 1
      %p223 = scmp.eq.s32.totalorder %s22, 1
      %p224 = scmp.ne.s32.totalorder %s219, %s221
      %p225 = scmp.eq.s32.totalorder %s22, 0
      %p226 = por %p224, %p225
      %p227 = scmp.ne.s32.totalorder %s219, %s221
      %p228 = scmp.eq.s32.totalorder %s27, 1
      %p229 = por %p227, %p228
      %p230 = scmp.ne.s32.totalorder %s221, %s222
      %p231 = scmp.eq.s32.totalorder %s27, 0
      %p232 = por %p230, %p231
      %p233 = scmp.ne.s32.totalorder %s221, %s222
      %p234 = scmp.eq.s32.totalorder %s28, 1
      %p235 = por %p233, %p234
      %p237 = scmp.ne.s32.totalorder %s222, %s236
      %p238 = scmp.eq.s32.totalorder %s28, 0
      %p239 = por %p237, %p238
      %s241 = sadd.s32 %s240, 1
      %p244 = scmp.eq.s32.totalorder %s22, 1
      %p245 = scmp.ne.s32.totalorder %s240, %s242
      %p246 = scmp.eq.s32.totalorder %s22, 0
      %p247 = por %p245, %p246
      %p248 = scmp.ne.s32.totalorder %s240, %s242
      %p249 = scmp.eq.s32.totalorder %s27, 1
      %p250 = por %p248, %p249
      %p251 = scmp.ne.s32.totalorder %s242, %s243
      %p252 = scmp.eq.s32.totalorder %s27, 0
      %p253 = por %p251, %p252
      %p254 = scmp.ne.s32.totalorder %s242, %s243
      %p255 = scmp.eq.s32.totalorder %s28, 1
      %p256 = por %p254, %p255
      %p258 = scmp.ne.s32.totalorder %s243, %s257
      %p259 = scmp.eq.s32.totalorder %s28, 0
      %p260 = por %p258, %p259
      %s262 = sadd.s32 %s261, 1
      %p265 = scmp.eq.s32.totalorder %s22, 1
      %p266 = scmp.ne.s32.totalorder %s261, %s263
      %p267 = scmp.eq.s32.totalorder %s22, 0
      %p268 = por %p266, %p267
      %p269 = scmp.ne.s32.totalorder %s261, %s263
      %p270 = scmp.eq.s32.totalorder %s27, 1
      %p271 = por %p269, %p270
      %p272 = scmp.ne.s32.totalorder %s263, %s264
      %p273 = scmp.eq.s32.totalorder %s27, 0
      %p274 = por %p272, %p273
      %p275 = scmp.ne.s32.totalorder %s263, %s264
      %p276 = scmp.eq.s32.totalorder %s28, 1
      %p277 = por %p275, %p276
      %p279 = scmp.ne.s32.totalorder %s264, %s278
      %p280 = scmp.eq.s32.totalorder %s28, 0
      %p281 = por %p279, %p280
      %s282 = ssub.s32 %s22, %s29
      %p283 = scmp.eq.s32.totalorder %s282, 0
      %s285 = sadd.s32 %s284, 1
      %s286 = scalar_select %p283, %s284, %s285
      %p289 = pneg %p283
      %p290 = scmp.eq.s32.totalorder %s22, 1
      %p291 = por %p289, %p290
      %p292 = scmp.ne.s32.totalorder %s284, %s287
      %p293 = scmp.eq.s32.totalorder %s22, 0
      %p294 = por %p292, %p293
      %p295 = scmp.ne.s32.totalorder %s284, %s287
      %p296 = scmp.eq.s32.totalorder %s27, 1
      %p297 = por %p295, %p296
      %p298 = scmp.ne.s32.totalorder %s287, %s288
      %p299 = scmp.eq.s32.totalorder %s27, 0
      %p300 = por %p298, %p299
      %p301 = scmp.ne.s32.totalorder %s287, %s288
      %p302 = scmp.eq.s32.totalorder %s28, 1
      %p303 = por %p301, %p302
      %p305 = scmp.ne.s32.totalorder %s288, %s304
      %p306 = scmp.eq.s32.totalorder %s28, 0
      %p307 = por %p305, %p306
      %s308 = ssub.s32 %s22, %s29
      %p309 = scmp.eq.s32.totalorder %s308, 0
      %s311 = sadd.s32 %s310, 1
      %s312 = scalar_select %p309, %s310, %s311
      %p315 = pneg %p309
      %p316 = scmp.eq.s32.totalorder %s22, 1
      %p317 = por %p315, %p316
      %p318 = scmp.ne.s32.totalorder %s310, %s313
      %p319 = scmp.eq.s32.totalorder %s22, 0
      %p320 = por %p318, %p319
      %p321 = scmp.ne.s32.totalorder %s310, %s313
      %p322 = scmp.eq.s32.totalorder %s27, 1
      %p323 = por %p321, %p322
      %p324 = scmp.ne.s32.totalorder %s313, %s314
      %p325 = scmp.eq.s32.totalorder %s27, 0
      %p326 = por %p324, %p325
      %p327 = scmp.ne.s32.totalorder %s313, %s314
      %p328 = scmp.eq.s32.totalorder %s28, 1
      %p329 = por %p327, %p328
      %p331 = scmp.ne.s32.totalorder %s314, %s330
      %p332 = scmp.eq.s32.totalorder %s28, 0
      %p333 = por %p331, %p332
      %p334 = scmp.le.s32.totalorder 1, %s22
      %p335 = scmp.lt.s32.totalorder %s22, 3
      %p336 = pnand %p334, %p335
      %p337 = pneg %p336
      // Predicated region
      $region9: #{seq2seq_conditioned9_forward.1} parent=5 // pred_check
        _
      $region10: #{seq2seq_conditioned9_forward.1} parent=5 // pred_check_branch
        %339 = sbr.rel (%p336) target = $region12
      $region11: #{seq2seq_conditioned9_forward.1} parent=5 // pred_region
        %s340 = ssub.s32 %s22, 1
        // Predicated region
        $region13: #{seq2seq_conditioned9_forward.1} parent=11 // pred_check
          %p341 = pneg %p43
        $region14: #{seq2seq_conditioned9_forward.1} parent=11 // pred_check_branch
          %343 = sbr.rel (%p341) target = $region16
        $region15: #{seq2seq_conditioned9_forward.1} parent=11 // pred_region
          _
        $region16: #{seq2seq_conditioned9_forward.1} parent=11 // pred_fallthru
          _
        // Predicated region
        $region17: #{seq2seq_conditioned9_forward.1} parent=11 // pred_check
          %p344 = pneg %p64
        $region18: #{seq2seq_conditioned9_forward.1} parent=11 // pred_check_branch
          %346 = sbr.rel (%p344) target = $region20
        $region19: #{seq2seq_conditioned9_forward.1} parent=11 // pred_region
          _
        $region20: #{seq2seq_conditioned9_forward.1} parent=11 // pred_fallthru
          _
        // Predicated region
        $region21: #{seq2seq_conditioned9_forward.1} parent=11 // pred_check
          %p347 = pneg %p85
        $region22: #{seq2seq_conditioned9_forward.1} parent=11 // pred_check_branch
          %349 = sbr.rel (%p347) target = $region24
        $region23: #{seq2seq_conditioned9_forward.1} parent=11 // pred_region
          _
        $region24: #{seq2seq_conditioned9_forward.1} parent=11 // pred_fallthru
          _
        // Predicated region
        $region25: #{seq2seq_conditioned9_forward.1} parent=11 // pred_check
          %p350 = pneg %p106
        $region26: #{seq2seq_conditioned9_forward.1} parent=11 // pred_check_branch
          %352 = sbr.rel (%p350) target = $region28
        $region27: #{seq2seq_conditioned9_forward.1} parent=11 // pred_region
          %s354 = ssub.s32 6144, 6144
          %355 = vsyncadd [#allocation3], %s354
          %s356 = sshll.u32 [#allocation2], 4
          %s357 = int_to_ptr.vmem [resolvable:$true] %s356
          %362 = dma.hbm_to_vmem [thread:$0]  %s3, 6144, %s357, [#allocation3], 384, 384, 24
        $region28: #{seq2seq_conditioned9_forward.1} parent=11 // pred_fallthru
          _
        // Predicated region
        $region29: #{seq2seq_conditioned9_forward.1} parent=11 // pred_check
          %p363 = pneg %p127
        $region30: #{seq2seq_conditioned9_forward.1} parent=11 // pred_check_branch
          %365 = sbr.rel (%p363) target = $region32
        $region31: #{seq2seq_conditioned9_forward.1} parent=11 // pred_region
          _
        $region32: #{seq2seq_conditioned9_forward.1} parent=11 // pred_fallthru
          _
        // Predicated region
        $region33: #{seq2seq_conditioned9_forward.1} parent=11 // pred_check
          %p366 = pneg %p148
        $region34: #{seq2seq_conditioned9_forward.1} parent=11 // pred_check_branch
          %368 = sbr.rel (%p366) target = $region36
        $region35: #{seq2seq_conditioned9_forward.1} parent=11 // pred_region
          _
        $region36: #{seq2seq_conditioned9_forward.1} parent=11 // pred_fallthru
          _
        // Predicated region
        $region37: #{seq2seq_conditioned9_forward.1} parent=11 // pred_check
          %p369 = pneg %p169
        $region38: #{seq2seq_conditioned9_forward.1} parent=11 // pred_check_branch
          %371 = sbr.rel (%p369) target = $region40
        $region39: #{seq2seq_conditioned9_forward.1} parent=11 // pred_region
          _
        $region40: #{seq2seq_conditioned9_forward.1} parent=11 // pred_fallthru
          _
        // Predicated region
        $region41: #{seq2seq_conditioned9_forward.1} parent=11 // pred_check
          %p372 = pneg %p190
        $region42: #{seq2seq_conditioned9_forward.1} parent=11 // pred_check_branch
          %374 = sbr.rel (%p372) target = $region44
        $region43: #{seq2seq_conditioned9_forward.1} parent=11 // pred_region
          %s376 = ssub.s32 6144, 6144
          %377 = vsyncadd [#allocation5], %s376
          %s378 = sshll.u32 [#allocation4], 4
          %s379 = int_to_ptr.vmem [resolvable:$true] %s378
          %384 = dma.hbm_to_vmem [thread:$0]  %s7, 6144, %s379, [#allocation5], 384, 384, 24
        $region44: #{seq2seq_conditioned9_forward.1} parent=11 // pred_fallthru
          _
        // Predicated region
        $region45: #{seq2seq_conditioned9_forward.1} parent=11 // pred_check
          %p385 = pneg %p211
        $region46: #{seq2seq_conditioned9_forward.1} parent=11 // pred_check_branch
          %387 = sbr.rel (%p385) target = $region48
        $region47: #{seq2seq_conditioned9_forward.1} parent=11 // pred_region
          _
        $region48: #{seq2seq_conditioned9_forward.1} parent=11 // pred_fallthru
          _
        // Predicated region
        $region49: #{seq2seq_conditioned9_forward.1} parent=11 // pred_check
          %p388 = pneg %p232
        $region50: #{seq2seq_conditioned9_forward.1} parent=11 // pred_check_branch
          %390 = sbr.rel (%p388) target = $region52
        $region51: #{seq2seq_conditioned9_forward.1} parent=11 // pred_region
          _
        $region52: #{seq2seq_conditioned9_forward.1} parent=11 // pred_fallthru
          _
        // Predicated region
        $region53: #{seq2seq_conditioned9_forward.1} parent=11 // pred_check
          %p391 = pneg %p253
        $region54: #{seq2seq_conditioned9_forward.1} parent=11 // pred_check_branch
          %393 = sbr.rel (%p391) target = $region56
        $region55: #{seq2seq_conditioned9_forward.1} parent=11 // pred_region
          _
        $region56: #{seq2seq_conditioned9_forward.1} parent=11 // pred_fallthru
          _
        // Predicated region
        $region57: #{seq2seq_conditioned9_forward.1} parent=11 // pred_check
          %p394 = pneg %p274
        $region58: #{seq2seq_conditioned9_forward.1} parent=11 // pred_check_branch
          %396 = sbr.rel (%p394) target = $region60
        $region59: #{seq2seq_conditioned9_forward.1} parent=11 // pred_region
          _
        $region60: #{seq2seq_conditioned9_forward.1} parent=11 // pred_fallthru
          _
      $region12: #{seq2seq_conditioned9_forward.1} parent=5 // pred_fallthru
        _
      %p397 = scmp.lt.s32.totalorder %s22, 2
      // Predicated region
      $region61: #{seq2seq_conditioned9_forward.1} parent=5 // pred_check
        %p398 = pneg %p397
      $region62: #{seq2seq_conditioned9_forward.1} parent=5 // pred_check_branch
        %400 = sbr.rel (%p398) target = $region64
      $region63: #{seq2seq_conditioned9_forward.1} parent=5 // pred_region
        _
      $region64: #{seq2seq_conditioned9_forward.1} parent=5 // pred_fallthru
        _
      %p401 = scmp.le.s32.totalorder 1, %s22
      %p402 = scmp.lt.s32.totalorder %s22, 3
      %p403 = pnand %p401, %p402
      %p404 = pneg %p403
      // Predicated region
      $region65: #{seq2seq_conditioned9_forward.1} parent=5 // pred_check
        _
      $region66: #{seq2seq_conditioned9_forward.1} parent=5 // pred_check_branch
        %406 = sbr.rel (%p403) target = $region68
      $region67: #{seq2seq_conditioned9_forward.1} parent=5 // pred_region
        %s407 = ssub.s32 %s22, 1
        // Predicated region
        $region69: #{seq2seq_conditioned9_forward.1} parent=67 // pred_check
          %p408 = pneg %p106
        $region70: #{seq2seq_conditioned9_forward.1} parent=67 // pred_check_branch
          %410 = sbr.rel (%p408) target = $region72
        $region71: #{seq2seq_conditioned9_forward.1} parent=67 // pred_region
          %411 = dma.done [#allocation3], 6144
        $region72: #{seq2seq_conditioned9_forward.1} parent=67 // pred_fallthru
          _
        // Predicated region
        $region73: #{seq2seq_conditioned9_forward.1} parent=67 // pred_check
          %p412 = pneg %p190
        $region74: #{seq2seq_conditioned9_forward.1} parent=67 // pred_check_branch
          %414 = sbr.rel (%p412) target = $region76
        $region75: #{seq2seq_conditioned9_forward.1} parent=67 // pred_region
          %415 = dma.done [#allocation5], 6144
        $region76: #{seq2seq_conditioned9_forward.1} parent=67 // pred_fallthru
          _
        %p416 = pneg %p43
        %p417 = pneg %p40
        %p418 = pneg %p64
        %p419 = pneg %p61
        %p420 = pneg %p85
        %p421 = pneg %p82
        %p422 = pneg %p106
        %p423 = pneg %p103
        %p424 = pneg %p127
        %p425 = pneg %p124
        %p426 = pneg %p148
        %p427 = pneg %p145
        %p428 = pneg %p169
        %p429 = pneg %p166
        %p430 = pneg %p190
        %p431 = pneg %p187
        %p432 = pneg %p211
        %p433 = pneg %p208
        %p434 = pneg %p232
        %p435 = pneg %p229
        %p436 = pneg %p253
        %p437 = pneg %p250
        %p438 = pneg %p274
        %p439 = pneg %p271
        %p440 = pneg %p300
        %p441 = pneg %p297
        %p442 = scmp.lt.s32.totalorder %s27, 1
        %s443 = scalar_select %p442, %s27, 1
        %s444 = smul.addr %s443, 2
        %s445 = smul.addr %s444, 8
        %s446 = scalar_lea.vmem %s12, %s445
        %p447 = pneg %p326
        %p448 = pneg %p323
        %p449 = scmp.lt.s32.totalorder %s27, 1
        %s450 = scalar_select %p449, %s27, 1
        %s451 = smul.addr %s450, 2
        %s452 = smul.addr %s451, 8
        %s453 = scalar_lea.vmem %s13, %s452
        %p454 = scmp.lt.s32.totalorder %s27, 1
        %s455 = scalar_select %p454, %s27, 1
        %s456 = smul.addr %s455, 2
        %s457 = smul.addr %s456, 8
        %s458 = scalar_lea.vmem %s12, %s457
        %p459 = scmp.lt.s32.totalorder %s27, 1
        %s460 = scalar_select %p459, %s27, 1
        %s461 = smul.addr %s460, 2
        %s462 = smul.addr %s461, 8
        %s463 = scalar_lea.vmem %s13, %s462
        %p464 = scmp.eq.s32.totalorder %s27, 0
        // Predicated region
        $region77: #{seq2seq_conditioned9_forward.1} parent=67 // pred_check
          %p465 = pneg %p464
        $region78: #{seq2seq_conditioned9_forward.1} parent=67 // pred_check_branch
          %467 = sbr.rel (%p465) target = $region80
        $region79: #{seq2seq_conditioned9_forward.1} parent=67 // pred_region
          %v468 = vld [vmem:[%s2] sm:$0xff]
          %v469 = vld [vmem:[%s2 + $0x8] sm:$0xff]
          %v470 = vld [vmem:[%s2 + $0x10] sm:$0xff]
          %v471 = vld [vmem:[%s2 + $0x18] sm:$0xff]
          %v472 = vld [vmem:[%s2 + $0x20] sm:$0xff]
          %v473 = vld [vmem:[%s2 + $0x28] sm:$0xff]
          %v474 = vld [vmem:[#allocation2] sm:$0xff]
          %v475 = vld [vmem:[#allocation2 + $0x8] sm:$0xff]
          %v476 = vld [vmem:[#allocation2 + $0x10] sm:$0xff]
          %v477 = vld [vmem:[#allocation2 + $0x18] sm:$0xff]
          %v478 = vld [vmem:[#allocation2 + $0x20] sm:$0xff]
          %v479 = vld [vmem:[#allocation2 + $0x28] sm:$0xff]
          %v480 = vld [vmem:[#allocation2 + $0x30] sm:$0xff]
          %v481 = vld [vmem:[#allocation2 + $0x38] sm:$0xff]
          %v482 = vld [vmem:[#allocation2 + $0x40] sm:$0xff]
          %v483 = vld [vmem:[#allocation2 + $0x48] sm:$0xff]
          %v484 = vld [vmem:[#allocation2 + $0x50] sm:$0xff]
          %v485 = vld [vmem:[#allocation2 + $0x58] sm:$0xff]
          %v486 = vld [vmem:[#allocation2 + $0x60] sm:$0xff]
          %v487 = vld [vmem:[#allocation2 + $0x68] sm:$0xff]
          %v488 = vld [vmem:[#allocation2 + $0x70] sm:$0xff]
          %v489 = vld [vmem:[#allocation2 + $0x78] sm:$0xff]
          %v490 = vld [vmem:[#allocation2 + $0x80] sm:$0xff]
          %v491 = vld [vmem:[#allocation2 + $0x88] sm:$0xff]
          %v492 = vld [vmem:[#allocation2 + $0x90] sm:$0xff]
          %v493 = vld [vmem:[#allocation2 + $0x98] sm:$0xff]
          %v494 = vld [vmem:[#allocation2 + $0xa0] sm:$0xff]
          %v495 = vld [vmem:[#allocation2 + $0xa8] sm:$0xff]
          %v496 = vld [vmem:[#allocation2 + $0xb0] sm:$0xff]
          %v497 = vld [vmem:[#allocation2 + $0xb8] sm:$0xff]
          %v498 = vld [vmem:[#allocation2 + $0xc0] sm:$0xff]
          %v499 = vld [vmem:[#allocation2 + $0xc8] sm:$0xff]
          %v500 = vld [vmem:[#allocation2 + $0xd0] sm:$0xff]
          %v501 = vld [vmem:[#allocation2 + $0xd8] sm:$0xff]
          %v502 = vld [vmem:[#allocation2 + $0xe0] sm:$0xff]
          %v503 = vld [vmem:[#allocation2 + $0xe8] sm:$0xff]
          %v504 = vld [vmem:[#allocation2 + $0xf0] sm:$0xff]
          %v505 = vld [vmem:[#allocation2 + $0xf8] sm:$0xff]
          %v506 = vld [vmem:[#allocation2 + $0x100] sm:$0xff]
          %v507 = vld [vmem:[#allocation2 + $0x108] sm:$0xff]
          %v508 = vld [vmem:[#allocation2 + $0x110] sm:$0xff]
          %v509 = vld [vmem:[#allocation2 + $0x118] sm:$0xff]
          %v510 = vld [vmem:[#allocation2 + $0x120] sm:$0xff]
          %v511 = vld [vmem:[#allocation2 + $0x128] sm:$0xff]
          %v512 = vld [vmem:[#allocation2 + $0x130] sm:$0xff]
          %v513 = vld [vmem:[#allocation2 + $0x138] sm:$0xff]
          %v514 = vld [vmem:[#allocation2 + $0x140] sm:$0xff]
          %v515 = vld [vmem:[#allocation2 + $0x148] sm:$0xff]
          %v516 = vld [vmem:[#allocation2 + $0x150] sm:$0xff]
          %v517 = vld [vmem:[#allocation2 + $0x158] sm:$0xff]
          %v518 = vld [vmem:[#allocation2 + $0x160] sm:$0xff]
          %v519 = vld [vmem:[#allocation2 + $0x168] sm:$0xff]
          %v520 = vld [vmem:[#allocation2 + $0x170] sm:$0xff]
          %v521 = vld [vmem:[#allocation2 + $0x178] sm:$0xff]
          %v522 = vld [vmem:[%s4] sm:$0x7]
          %v524 = vlaneseq
          %v525 = vshrl.u32 %v524, 7
          %v526 = vsub.s32 0, %v525
          %v527 = vrot.slane %v522, %v526
          %v528 = vlaneseq
          %v529 = vshrl.u32 %v528, 7
          %v530 = vsub.s32 1, %v529
          %v531 = vrot.slane %v522, %v530
          %v532 = vlaneseq
          %v533 = vshrl.u32 %v532, 7
          %v534 = vsub.s32 2, %v533
          %v535 = vrot.slane %v522, %v534
          %v539 = vld [vmem:[%s5] sm:$0x7]
          %v541 = vlaneseq
          %v542 = vshrl.u32 %v541, 7
          %v543 = vsub.s32 0, %v542
          %v544 = vrot.slane %v539, %v543
          %v545 = vlaneseq
          %v546 = vshrl.u32 %v545, 7
          %v547 = vsub.s32 1, %v546
          %v548 = vrot.slane %v539, %v547
          %v549 = vlaneseq
          %v550 = vshrl.u32 %v549, 7
          %v551 = vsub.s32 2, %v550
          %v552 = vrot.slane %v539, %v551
          %v556 = vld [vmem:[%s0] sm:$0x1]
          %v557 = vld [vmem:[%s0 + $0x8] sm:$0x1]
          %v560 = vrot.slane %v557, 7
          %vm561 = vcmask 1041409
          %v562 = vsel %vm561, %v560, %v556
          %vm563 = vcmask 130048
          %v564 = vsel %vm563, %v562, 0
          %566 = vmatprep.subr.mxu0 %v469
          %567 = vmatpush1.msra.mxu0 %v468
          %568 = vmatprep.subr.mxu0 %v472
          %569 = vmatpush1.msra.mxu0 %v471
          %570 = vmatprep.subr.mxu0 0.0
          %571 = vmatpush1.msra.mxu0 0.0
          %572 = vmatprep.subr.mxu0 0.0
          %573 = vmatpush1.msra.mxu0 0.0
          %574 = vmatprep.subr.mxu0 0.0
          %575 = vmatpush1.msra.mxu0 0.0
          %576 = vmatprep.subr.mxu0 0.0
          %577 = vmatpush1.msra.mxu0 0.0
          %578 = vmatprep.subr.mxu0 0.0
          %579 = vmatpush1.msra.mxu0 0.0
          %580 = vmatprep.subr.mxu0 0.0
          %581 = vmatpush1.msra.mxu0 0.0
          %582 = vmatprep.subr.mxu0 0.0
          %583 = vmatpush1.msra.mxu0 0.0
          %584 = vmatprep.subr.mxu0 0.0
          %585 = vmatpush1.msra.mxu0 0.0
          %586 = vmatprep.subr.mxu0 0.0
          %587 = vmatpush1.msra.mxu0 0.0
          %588 = vmatprep.subr.mxu0 0.0
          %589 = vmatpush1.msra.mxu0 0.0
          %590 = vmatprep.subr.mxu0 0.0
          %591 = vmatpush1.msra.mxu0 0.0
          %592 = vmatprep.subr.mxu0 0.0
          %593 = vmatpush1.msra.mxu0 0.0
          %594 = vmatprep.subr.mxu0 0.0
          %595 = vmatpush1.msra.mxu0 0.0
          %596 = vmatprep.subr.mxu0 0.0
          %597 = vmatpush1.msra.mxu0 0.0
          %598 = vmatprep.subr.mxu0 0.0
          %599 = vmatpush1.msra.mxu0 0.0
          %600 = vmatprep.subr.mxu0 0.0
          %601 = vmatpush1.msra.mxu0 0.0
          %602 = vmatprep.subr.mxu0 0.0
          %603 = vmatpush1.msra.mxu0 0.0
          %604 = vmatprep.subr.mxu0 0.0
          %605 = vmatpush1.msra.mxu0 0.0
          %606 = vmatprep.subr.mxu0 0.0
          %607 = vmatpush1.msra.mxu0 0.0
          %608 = vmatprep.subr.mxu0 0.0
          %609 = vmatpush1.msra.mxu0 0.0
          %610 = vmatprep.subr.mxu0 0.0
          %611 = vmatpush1.msra.mxu0 0.0
          %612 = vmatprep.subr.mxu0 0.0
          %613 = vmatpush1.msra.mxu0 0.0
          %614 = vmatprep.subr.mxu0 0.0
          %615 = vmatpush1.msra.mxu0 0.0
          %616 = vmatprep.subr.mxu0 0.0
          %617 = vmatpush1.msra.mxu0 0.0
          %618 = vmatprep.subr.mxu0 0.0
          %619 = vmatpush1.msra.mxu0 0.0
          %620 = vmatprep.subr.mxu0 0.0
          %621 = vmatpush1.msra.mxu0 0.0
          %622 = vmatprep.subr.mxu0 0.0
          %623 = vmatpush1.msra.mxu0 0.0
          %624 = vmatprep.subr.mxu0 0.0
          %625 = vmatpush1.msra.mxu0 0.0
          %626 = vmatprep.subr.mxu0 0.0
          %627 = vmatpush1.msra.mxu0 0.0
          %628 = vmatprep.subr.mxu0 0.0
          %629 = vmatpush1.msra.mxu0 0.0
          %630 = vmatprep.mubr.f32.mxu0 0.0
          %631 = vmatmul.mubr.f32.gmra.mrb[0].mxu0 %v564
          %v632 = vpop.f32.mrb[0].mxu0
          %v633 = vadd.f32 %v527, %v632
          %v634 = vpop.f32.mrb[0].mxu0
          %v635 = vadd.f32 %v531, %v634
          %636 = vdwg.mxu0
          %637 = vmatprep.subr.mxu0 0.0
          %638 = vmatpush1.msra.mxu0 %v470
          %639 = vmatprep.subr.mxu0 0.0
          %640 = vmatpush1.msra.mxu0 %v473
          %641 = vmatprep.subr.mxu0 0.0
          %642 = vmatpush1.msra.mxu0 0.0
          %643 = vmatprep.subr.mxu0 0.0
          %644 = vmatpush1.msra.mxu0 0.0
          %645 = vmatprep.subr.mxu0 0.0
          %646 = vmatpush1.msra.mxu0 0.0
          %647 = vmatprep.subr.mxu0 0.0
          %648 = vmatpush1.msra.mxu0 0.0
          %649 = vmatprep.subr.mxu0 0.0
          %650 = vmatpush1.msra.mxu0 0.0
          %651 = vmatprep.subr.mxu0 0.0
          %652 = vmatpush1.msra.mxu0 0.0
          %653 = vmatprep.subr.mxu0 0.0
          %654 = vmatpush1.msra.mxu0 0.0
          %655 = vmatprep.subr.mxu0 0.0
          %656 = vmatpush1.msra.mxu0 0.0
          %657 = vmatprep.subr.mxu0 0.0
          %658 = vmatpush1.msra.mxu0 0.0
          %659 = vmatprep.subr.mxu0 0.0
          %660 = vmatpush1.msra.mxu0 0.0
          %661 = vmatprep.subr.mxu0 0.0
          %662 = vmatpush1.msra.mxu0 0.0
          %663 = vmatprep.subr.mxu0 0.0
          %664 = vmatpush1.msra.mxu0 0.0
          %665 = vmatprep.subr.mxu0 0.0
          %666 = vmatpush1.msra.mxu0 0.0
          %667 = vmatprep.subr.mxu0 0.0
          %668 = vmatpush1.msra.mxu0 0.0
          %669 = vmatprep.subr.mxu0 0.0
          %670 = vmatpush1.msra.mxu0 0.0
          %671 = vmatprep.subr.mxu0 0.0
          %672 = vmatpush1.msra.mxu0 0.0
          %673 = vmatprep.subr.mxu0 0.0
          %674 = vmatpush1.msra.mxu0 0.0
          %675 = vmatprep.subr.mxu0 0.0
          %676 = vmatpush1.msra.mxu0 0.0
          %677 = vmatprep.subr.mxu0 0.0
          %678 = vmatpush1.msra.mxu0 0.0
          %679 = vmatprep.subr.mxu0 0.0
          %680 = vmatpush1.msra.mxu0 0.0
          %681 = vmatprep.subr.mxu0 0.0
          %682 = vmatpush1.msra.mxu0 0.0
          %683 = vmatprep.subr.mxu0 0.0
          %684 = vmatpush1.msra.mxu0 0.0
          %685 = vmatprep.subr.mxu0 0.0
          %686 = vmatpush1.msra.mxu0 0.0
          %687 = vmatprep.subr.mxu0 0.0
          %688 = vmatpush1.msra.mxu0 0.0
          %689 = vmatprep.subr.mxu0 0.0
          %690 = vmatpush1.msra.mxu0 0.0
          %691 = vmatprep.subr.mxu0 0.0
          %692 = vmatpush1.msra.mxu0 0.0
          %693 = vmatprep.subr.mxu0 0.0
          %694 = vmatpush1.msra.mxu0 0.0
          %695 = vmatprep.subr.mxu0 0.0
          %696 = vmatpush1.msra.mxu0 0.0
          %697 = vmatprep.subr.mxu0 0.0
          %698 = vmatpush1.msra.mxu0 0.0
          %699 = vmatprep.subr.mxu0 0.0
          %700 = vmatpush1.msra.mxu0 0.0
          %701 = vmatprep.mubr.f32.mxu0 0.0
          %702 = vmatmul.mubr.f32.gmra.mrb[0].mxu0 %v564
          %v703 = vpop.f32.mrb[0].mxu0
          %v704 = vadd.f32 %v535, %v703
          %v705 = vpop.f32.mrb[0].mxu0
          %706 = vdwg.mxu0
          %707 = vmatprep.subr.mxu0 %v475
          %708 = vmatpush1.msra.mxu0 %v474
          %709 = vmatprep.subr.mxu0 %v478
          %710 = vmatpush1.msra.mxu0 %v477
          %711 = vmatprep.subr.mxu0 %v481
          %712 = vmatpush1.msra.mxu0 %v480
          %713 = vmatprep.subr.mxu0 %v484
          %714 = vmatpush1.msra.mxu0 %v483
          %715 = vmatprep.subr.mxu0 %v487
          %716 = vmatpush1.msra.mxu0 %v486
          %717 = vmatprep.subr.mxu0 %v490
          %718 = vmatpush1.msra.mxu0 %v489
          %719 = vmatprep.subr.mxu0 %v493
          %720 = vmatpush1.msra.mxu0 %v492
          %721 = vmatprep.subr.mxu0 %v496
          %722 = vmatpush1.msra.mxu0 %v495
          %723 = vmatprep.subr.mxu0 %v499
          %724 = vmatpush1.msra.mxu0 %v498
          %725 = vmatprep.subr.mxu0 %v502
          %726 = vmatpush1.msra.mxu0 %v501
          %727 = vmatprep.subr.mxu0 %v505
          %728 = vmatpush1.msra.mxu0 %v504
          %729 = vmatprep.subr.mxu0 %v508
          %730 = vmatpush1.msra.mxu0 %v507
          %731 = vmatprep.subr.mxu0 %v511
          %732 = vmatpush1.msra.mxu0 %v510
          %733 = vmatprep.subr.mxu0 %v514
          %734 = vmatpush1.msra.mxu0 %v513
          %735 = vmatprep.subr.mxu0 %v517
          %736 = vmatpush1.msra.mxu0 %v516
          %737 = vmatprep.subr.mxu0 %v520
          %738 = vmatpush1.msra.mxu0 %v519
          %739 = vmatprep.subr.mxu0 0.0
          %740 = vmatpush1.msra.mxu0 0.0
          %741 = vmatprep.subr.mxu0 0.0
          %742 = vmatpush1.msra.mxu0 0.0
          %743 = vmatprep.subr.mxu0 0.0
          %744 = vmatpush1.msra.mxu0 0.0
          %745 = vmatprep.subr.mxu0 0.0
          %746 = vmatpush1.msra.mxu0 0.0
          %747 = vmatprep.subr.mxu0 0.0
          %748 = vmatpush1.msra.mxu0 0.0
          %749 = vmatprep.subr.mxu0 0.0
          %750 = vmatpush1.msra.mxu0 0.0
          %751 = vmatprep.subr.mxu0 0.0
          %752 = vmatpush1.msra.mxu0 0.0
          %753 = vmatprep.subr.mxu0 0.0
          %754 = vmatpush1.msra.mxu0 0.0
          %755 = vmatprep.subr.mxu0 0.0
          %756 = vmatpush1.msra.mxu0 0.0
          %757 = vmatprep.subr.mxu0 0.0
          %758 = vmatpush1.msra.mxu0 0.0
          %759 = vmatprep.subr.mxu0 0.0
          %760 = vmatpush1.msra.mxu0 0.0
          %761 = vmatprep.subr.mxu0 0.0
          %762 = vmatpush1.msra.mxu0 0.0
          %763 = vmatprep.subr.mxu0 0.0
          %764 = vmatpush1.msra.mxu0 0.0
          %765 = vmatprep.subr.mxu0 0.0
          %766 = vmatpush1.msra.mxu0 0.0
          %767 = vmatprep.subr.mxu0 0.0
          %768 = vmatpush1.msra.mxu0 0.0
          %769 = vmatprep.subr.mxu0 0.0
          %770 = vmatpush1.msra.mxu0 0.0
          %771 = vmatprep.mubr.f32.mxu0 0.0
          %772 = vmatmul.mubr.f32.gmra.mrb[0].mxu0 0.0
          %v773 = vpop.f32.mrb[0].mxu0
          %v774 = vadd.f32 %v544, %v773
          %v775 = vpop.f32.mrb[0].mxu0
          %v776 = vadd.f32 %v548, %v775
          %777 = vdwg.mxu0
          %778 = vmatprep.subr.mxu0 0.0
          %779 = vmatpush1.msra.mxu0 %v476
          %780 = vmatprep.subr.mxu0 0.0
          %781 = vmatpush1.msra.mxu0 %v479
          %782 = vmatprep.subr.mxu0 0.0
          %783 = vmatpush1.msra.mxu0 %v482
          %784 = vmatprep.subr.mxu0 0.0
          %785 = vmatpush1.msra.mxu0 %v485
          %786 = vmatprep.subr.mxu0 0.0
          %787 = vmatpush1.msra.mxu0 %v488
          %788 = vmatprep.subr.mxu0 0.0
          %789 = vmatpush1.msra.mxu0 %v491
          %790 = vmatprep.subr.mxu0 0.0
          %791 = vmatpush1.msra.mxu0 %v494
          %792 = vmatprep.subr.mxu0 0.0
          %793 = vmatpush1.msra.mxu0 %v497
          %794 = vmatprep.subr.mxu0 0.0
          %795 = vmatpush1.msra.mxu0 %v500
          %796 = vmatprep.subr.mxu0 0.0
          %797 = vmatpush1.msra.mxu0 %v503
          %798 = vmatprep.subr.mxu0 0.0
          %799 = vmatpush1.msra.mxu0 %v506
          %800 = vmatprep.subr.mxu0 0.0
          %801 = vmatpush1.msra.mxu0 %v509
          %802 = vmatprep.subr.mxu0 0.0
          %803 = vmatpush1.msra.mxu0 %v512
          %804 = vmatprep.subr.mxu0 0.0
          %805 = vmatpush1.msra.mxu0 %v515
          %806 = vmatprep.subr.mxu0 0.0
          %807 = vmatpush1.msra.mxu0 %v518
          %808 = vmatprep.subr.mxu0 0.0
          %809 = vmatpush1.msra.mxu0 %v521
          %810 = vmatprep.subr.mxu0 0.0
          %811 = vmatpush1.msra.mxu0 0.0
          %812 = vmatprep.subr.mxu0 0.0
          %813 = vmatpush1.msra.mxu0 0.0
          %814 = vmatprep.subr.mxu0 0.0
          %815 = vmatpush1.msra.mxu0 0.0
          %816 = vmatprep.subr.mxu0 0.0
          %817 = vmatpush1.msra.mxu0 0.0
          %818 = vmatprep.subr.mxu0 0.0
          %819 = vmatpush1.msra.mxu0 0.0
          %820 = vmatprep.subr.mxu0 0.0
          %821 = vmatpush1.msra.mxu0 0.0
          %822 = vmatprep.subr.mxu0 0.0
          %823 = vmatpush1.msra.mxu0 0.0
          %824 = vmatprep.subr.mxu0 0.0
          %825 = vmatpush1.msra.mxu0 0.0
          %826 = vmatprep.subr.mxu0 0.0
          %827 = vmatpush1.msra.mxu0 0.0
          %828 = vmatprep.subr.mxu0 0.0
          %829 = vmatpush1.msra.mxu0 0.0
          %830 = vmatprep.subr.mxu0 0.0
          %831 = vmatpush1.msra.mxu0 0.0
          %832 = vmatprep.subr.mxu0 0.0
          %833 = vmatpush1.msra.mxu0 0.0
          %834 = vmatprep.subr.mxu0 0.0
          %835 = vmatpush1.msra.mxu0 0.0
          %836 = vmatprep.subr.mxu0 0.0
          %837 = vmatpush1.msra.mxu0 0.0
          %838 = vmatprep.subr.mxu0 0.0
          %839 = vmatpush1.msra.mxu0 0.0
          %840 = vmatprep.subr.mxu0 0.0
          %841 = vmatpush1.msra.mxu0 0.0
          %842 = vmatprep.mubr.f32.mxu0 0.0
          %843 = vmatmul.mubr.f32.gmra.mrb[0].mxu0 0.0
          %v844 = vpop.f32.mrb[0].mxu0
          %v845 = vadd.f32 %v552, %v844
          %v846 = vpop.f32.mrb[0].mxu0
          %847 = vdwg.mxu0
          %v848 = vadd.f32 %v633, %v774
          %v849 = vxor.u32 %v848, 2147483648
          %v850 = vmul.f32 %v849, 1.442695
          %v851 = vpow.pop %v850
          %v852 = vadd.f32 %v851, 1.0
          %v853 = vrcp.pop %v852
          %v854 = vmul.f32 1.0, %v853
          %v855 = vadd.f32 %v635, %v776
          %v856 = vxor.u32 %v855, 2147483648
          %v857 = vmul.f32 %v856, 1.442695
          %v858 = vpow.pop %v857
          %v859 = vadd.f32 %v858, 1.0
          %v860 = vrcp.pop %v859
          %v861 = vmul.f32 1.0, %v860
          %v862 = vmul.f32 %v854, %v845
          %v863 = vadd.f32 %v704, %v862
          %v864 = vtanh.pop %v863
          %v865 = vsub.f32 1.0, %v861
          %v866 = vmul.f32 %v865, %v864
          %v867 = vmul.f32 %v861, 0.0
          %v868 = vadd.f32 %v866, %v867
          %v871 = vunpack.c.l.s4 1966171168
          %v872 = vunpack.c.0.s8 %v871
          %v873 = vlaneseq
          %v874 = vshrl.u32 %v873, 7
          %v875 = vsub.s32 %v872, %v874
          %v876 = vrot.slane %v868, %v875
          %v877 = vcombine.high %v876, %v876
          %v879 = vunpack.c.l.s4 1966171168
          %v880 = vunpack.c.0.s8 %v879
          %v881 = vlaneseq
          %v882 = vshrl.u32 %v881, 7
          %v883 = vsub.s32 %v880, %v882
          %v884 = vrot.slane %v876, %v883
          %v886 = vunpack.c.l.s4 1966171168
          %v887 = vunpack.c.0.s8 %v886
          %v888 = vlaneseq
          %v889 = vshrl.u32 %v888, 7
          %v890 = vsub.s32 %v887, %v889
          %v891 = vrot.slane %v877, %v890
          %vm894 = vcmask 253952
          %895 = vst.msk [vmem:[%s458] sm:$0x1] %vm894, %v884
          %896 = vst.msk [vmem:[%s458 + $0x8] sm:$0x1] %vm894, %v891
          %v897 = vld [vmem:[%s0 + $0x1] sm:$0x1]
          %v898 = vld [vmem:[%s0 + $0x9] sm:$0x1]
          %v901 = vrot.slane %v898, 7
          %v902 = vsel %vm561, %v901, %v897
          %v903 = vsel %vm563, %v902, 0
          %905 = vmatprep.subr.mxu0 %v469
          %906 = vmatpush1.msra.mxu0 %v468
          %907 = vmatprep.subr.mxu0 %v472
          %908 = vmatpush1.msra.mxu0 %v471
          %909 = vmatprep.subr.mxu0 0.0
          %910 = vmatpush1.msra.mxu0 0.0
          %911 = vmatprep.subr.mxu0 0.0
          %912 = vmatpush1.msra.mxu0 0.0
          %913 = vmatprep.subr.mxu0 0.0
          %914 = vmatpush1.msra.mxu0 0.0
          %915 = vmatprep.subr.mxu0 0.0
          %916 = vmatpush1.msra.mxu0 0.0
          %917 = vmatprep.subr.mxu0 0.0
          %918 = vmatpush1.msra.mxu0 0.0
          %919 = vmatprep.subr.mxu0 0.0
          %920 = vmatpush1.msra.mxu0 0.0
          %921 = vmatprep.subr.mxu0 0.0
          %922 = vmatpush1.msra.mxu0 0.0
          %923 = vmatprep.subr.mxu0 0.0
          %924 = vmatpush1.msra.mxu0 0.0
          %925 = vmatprep.subr.mxu0 0.0
          %926 = vmatpush1.msra.mxu0 0.0
          %927 = vmatprep.subr.mxu0 0.0
          %928 = vmatpush1.msra.mxu0 0.0
          %929 = vmatprep.subr.mxu0 0.0
          %930 = vmatpush1.msra.mxu0 0.0
          %931 = vmatprep.subr.mxu0 0.0
          %932 = vmatpush1.msra.mxu0 0.0
          %933 = vmatprep.subr.mxu0 0.0
          %934 = vmatpush1.msra.mxu0 0.0
          %935 = vmatprep.subr.mxu0 0.0
          %936 = vmatpush1.msra.mxu0 0.0
          %937 = vmatprep.subr.mxu0 0.0
          %938 = vmatpush1.msra.mxu0 0.0
          %939 = vmatprep.subr.mxu0 0.0
          %940 = vmatpush1.msra.mxu0 0.0
          %941 = vmatprep.subr.mxu0 0.0
          %942 = vmatpush1.msra.mxu0 0.0
          %943 = vmatprep.subr.mxu0 0.0
          %944 = vmatpush1.msra.mxu0 0.0
          %945 = vmatprep.subr.mxu0 0.0
          %946 = vmatpush1.msra.mxu0 0.0
          %947 = vmatprep.subr.mxu0 0.0
          %948 = vmatpush1.msra.mxu0 0.0
          %949 = vmatprep.subr.mxu0 0.0
          %950 = vmatpush1.msra.mxu0 0.0
          %951 = vmatprep.subr.mxu0 0.0
          %952 = vmatpush1.msra.mxu0 0.0
          %953 = vmatprep.subr.mxu0 0.0
          %954 = vmatpush1.msra.mxu0 0.0
          %955 = vmatprep.subr.mxu0 0.0
          %956 = vmatpush1.msra.mxu0 0.0
          %957 = vmatprep.subr.mxu0 0.0
          %958 = vmatpush1.msra.mxu0 0.0
          %959 = vmatprep.subr.mxu0 0.0
          %960 = vmatpush1.msra.mxu0 0.0
          %961 = vmatprep.subr.mxu0 0.0
          %962 = vmatpush1.msra.mxu0 0.0
          %963 = vmatprep.subr.mxu0 0.0
          %964 = vmatpush1.msra.mxu0 0.0
          %965 = vmatprep.subr.mxu0 0.0
          %966 = vmatpush1.msra.mxu0 0.0
          %967 = vmatprep.subr.mxu0 0.0
          %968 = vmatpush1.msra.mxu0 0.0
          %969 = vmatprep.mubr.f32.mxu0 0.0
          %970 = vmatmul.mubr.f32.gmra.mrb[0].mxu0 %v903
          %v971 = vpop.f32.mrb[0].mxu0
          %v972 = vadd.f32 %v527, %v971
          %v973 = vpop.f32.mrb[0].mxu0
          %v974 = vadd.f32 %v531, %v973
          %975 = vdwg.mxu0
          %976 = vmatprep.subr.mxu0 0.0
          %977 = vmatpush1.msra.mxu0 %v470
          %978 = vmatprep.subr.mxu0 0.0
          %979 = vmatpush1.msra.mxu0 %v473
          %980 = vmatprep.subr.mxu0 0.0
          %981 = vmatpush1.msra.mxu0 0.0
          %982 = vmatprep.subr.mxu0 0.0
          %983 = vmatpush1.msra.mxu0 0.0
          %984 = vmatprep.subr.mxu0 0.0
          %985 = vmatpush1.msra.mxu0 0.0
          %986 = vmatprep.subr.mxu0 0.0
          %987 = vmatpush1.msra.mxu0 0.0
          %988 = vmatprep.subr.mxu0 0.0
          %989 = vmatpush1.msra.mxu0 0.0
          %990 = vmatprep.subr.mxu0 0.0
          %991 = vmatpush1.msra.mxu0 0.0
          %992 = vmatprep.subr.mxu0 0.0
          %993 = vmatpush1.msra.mxu0 0.0
          %994 = vmatprep.subr.mxu0 0.0
          %995 = vmatpush1.msra.mxu0 0.0
          %996 = vmatprep.subr.mxu0 0.0
          %997 = vmatpush1.msra.mxu0 0.0
          %998 = vmatprep.subr.mxu0 0.0
          %999 = vmatpush1.msra.mxu0 0.0
          %1000 = vmatprep.subr.mxu0 0.0
          %1001 = vmatpush1.msra.mxu0 0.0
          %1002 = vmatprep.subr.mxu0 0.0
          %1003 = vmatpush1.msra.mxu0 0.0
          %1004 = vmatprep.subr.mxu0 0.0
          %1005 = vmatpush1.msra.mxu0 0.0
          %1006 = vmatprep.subr.mxu0 0.0
          %1007 = vmatpush1.msra.mxu0 0.0
          %1008 = vmatprep.subr.mxu0 0.0
          %1009 = vmatpush1.msra.mxu0 0.0
          %1010 = vmatprep.subr.mxu0 0.0
          %1011 = vmatpush1.msra.mxu0 0.0
          %1012 = vmatprep.subr.mxu0 0.0
          %1013 = vmatpush1.msra.mxu0 0.0
          %1014 = vmatprep.subr.mxu0 0.0
          %1015 = vmatpush1.msra.mxu0 0.0
          %1016 = vmatprep.subr.mxu0 0.0
          %1017 = vmatpush1.msra.mxu0 0.0
          %1018 = vmatprep.subr.mxu0 0.0
          %1019 = vmatpush1.msra.mxu0 0.0
          %1020 = vmatprep.subr.mxu0 0.0
          %1021 = vmatpush1.msra.mxu0 0.0
          %1022 = vmatprep.subr.mxu0 0.0
          %1023 = vmatpush1.msra.mxu0 0.0
          %1024 = vmatprep.subr.mxu0 0.0
          %1025 = vmatpush1.msra.mxu0 0.0
          %1026 = vmatprep.subr.mxu0 0.0
          %1027 = vmatpush1.msra.mxu0 0.0
          %1028 = vmatprep.subr.mxu0 0.0
          %1029 = vmatpush1.msra.mxu0 0.0
          %1030 = vmatprep.subr.mxu0 0.0
          %1031 = vmatpush1.msra.mxu0 0.0
          %1032 = vmatprep.subr.mxu0 0.0
          %1033 = vmatpush1.msra.mxu0 0.0
          %1034 = vmatprep.subr.mxu0 0.0
          %1035 = vmatpush1.msra.mxu0 0.0
          %1036 = vmatprep.subr.mxu0 0.0
          %1037 = vmatpush1.msra.mxu0 0.0
          %1038 = vmatprep.subr.mxu0 0.0
          %1039 = vmatpush1.msra.mxu0 0.0
          %1040 = vmatprep.mubr.f32.mxu0 0.0
          %1041 = vmatmul.mubr.f32.gmra.mrb[0].mxu0 %v903
          %v1042 = vpop.f32.mrb[0].mxu0
          %v1043 = vadd.f32 %v535, %v1042
          %v1044 = vpop.f32.mrb[0].mxu0
          %1045 = vdwg.mxu0
          %1046 = vmatprep.subr.mxu0 %v475
          %1047 = vmatpush1.msra.mxu0 %v474
          %1048 = vmatprep.subr.mxu0 %v478
          %1049 = vmatpush1.msra.mxu0 %v477
          %1050 = vmatprep.subr.mxu0 %v481
          %1051 = vmatpush1.msra.mxu0 %v480
          %1052 = vmatprep.subr.mxu0 %v484
          %1053 = vmatpush1.msra.mxu0 %v483
          %1054 = vmatprep.subr.mxu0 %v487
          %1055 = vmatpush1.msra.mxu0 %v486
          %1056 = vmatprep.subr.mxu0 %v490
          %1057 = vmatpush1.msra.mxu0 %v489
          %1058 = vmatprep.subr.mxu0 %v493
          %1059 = vmatpush1.msra.mxu0 %v492
          %1060 = vmatprep.subr.mxu0 %v496
          %1061 = vmatpush1.msra.mxu0 %v495
          %1062 = vmatprep.subr.mxu0 %v499
          %1063 = vmatpush1.msra.mxu0 %v498
          %1064 = vmatprep.subr.mxu0 %v502
          %1065 = vmatpush1.msra.mxu0 %v501
          %1066 = vmatprep.subr.mxu0 %v505
          %1067 = vmatpush1.msra.mxu0 %v504
          %1068 = vmatprep.subr.mxu0 %v508
          %1069 = vmatpush1.msra.mxu0 %v507
          %1070 = vmatprep.subr.mxu0 %v511
          %1071 = vmatpush1.msra.mxu0 %v510
          %1072 = vmatprep.subr.mxu0 %v514
          %1073 = vmatpush1.msra.mxu0 %v513
          %1074 = vmatprep.subr.mxu0 %v517
          %1075 = vmatpush1.msra.mxu0 %v516
          %1076 = vmatprep.subr.mxu0 %v520
          %1077 = vmatpush1.msra.mxu0 %v519
          %1078 = vmatprep.subr.mxu0 0.0
          %1079 = vmatpush1.msra.mxu0 0.0
          %1080 = vmatprep.subr.mxu0 0.0
          %1081 = vmatpush1.msra.mxu0 0.0
          %1082 = vmatprep.subr.mxu0 0.0
          %1083 = vmatpush1.msra.mxu0 0.0
          %1084 = vmatprep.subr.mxu0 0.0
          %1085 = vmatpush1.msra.mxu0 0.0
          %1086 = vmatprep.subr.mxu0 0.0
          %1087 = vmatpush1.msra.mxu0 0.0
          %1088 = vmatprep.subr.mxu0 0.0
          %1089 = vmatpush1.msra.mxu0 0.0
          %1090 = vmatprep.subr.mxu0 0.0
          %1091 = vmatpush1.msra.mxu0 0.0
          %1092 = vmatprep.subr.mxu0 0.0
          %1093 = vmatpush1.msra.mxu0 0.0
          %1094 = vmatprep.subr.mxu0 0.0
          %1095 = vmatpush1.msra.mxu0 0.0
          %1096 = vmatprep.subr.mxu0 0.0
          %1097 = vmatpush1.msra.mxu0 0.0
          %1098 = vmatprep.subr.mxu0 0.0
          %1099 = vmatpush1.msra.mxu0 0.0
          %1100 = vmatprep.subr.mxu0 0.0
          %1101 = vmatpush1.msra.mxu0 0.0
          %1102 = vmatprep.subr.mxu0 0.0
          %1103 = vmatpush1.msra.mxu0 0.0
          %1104 = vmatprep.subr.mxu0 0.0
          %1105 = vmatpush1.msra.mxu0 0.0
          %1106 = vmatprep.subr.mxu0 0.0
          %1107 = vmatpush1.msra.mxu0 0.0
          %1108 = vmatprep.subr.mxu0 0.0
          %1109 = vmatpush1.msra.mxu0 0.0
          %1110 = vmatprep.mubr.f32.mxu0 0.0
          %1111 = vmatmul.mubr.f32.gmra.mrb[0].mxu0 %v868
          %v1112 = vpop.f32.mrb[0].mxu0
          %v1113 = vadd.f32 %v544, %v1112
          %v1114 = vpop.f32.mrb[0].mxu0
          %v1115 = vadd.f32 %v548, %v1114
          %1116 = vdwg.mxu0
          %1117 = vmatprep.subr.mxu0 0.0
          %1118 = vmatpush1.msra.mxu0 %v476
          %1119 = vmatprep.subr.mxu0 0.0
          %1120 = vmatpush1.msra.mxu0 %v479
          %1121 = vmatprep.subr.mxu0 0.0
          %1122 = vmatpush1.msra.mxu0 %v482
          %1123 = vmatprep.subr.mxu0 0.0
          %1124 = vmatpush1.msra.mxu0 %v485
          %1125 = vmatprep.subr.mxu0 0.0
          %1126 = vmatpush1.msra.mxu0 %v488
          %1127 = vmatprep.subr.mxu0 0.0
          %1128 = vmatpush1.msra.mxu0 %v491
          %1129 = vmatprep.subr.mxu0 0.0
          %1130 = vmatpush1.msra.mxu0 %v494
          %1131 = vmatprep.subr.mxu0 0.0
          %1132 = vmatpush1.msra.mxu0 %v497
          %1133 = vmatprep.subr.mxu0 0.0
          %1134 = vmatpush1.msra.mxu0 %v500
          %1135 = vmatprep.subr.mxu0 0.0
          %1136 = vmatpush1.msra.mxu0 %v503
          %1137 = vmatprep.subr.mxu0 0.0
          %1138 = vmatpush1.msra.mxu0 %v506
          %1139 = vmatprep.subr.mxu0 0.0
          %1140 = vmatpush1.msra.mxu0 %v509
          %1141 = vmatprep.subr.mxu0 0.0
          %1142 = vmatpush1.msra.mxu0 %v512
          %1143 = vmatprep.subr.mxu0 0.0
          %1144 = vmatpush1.msra.mxu0 %v515
          %1145 = vmatprep.subr.mxu0 0.0
          %1146 = vmatpush1.msra.mxu0 %v518
          %1147 = vmatprep.subr.mxu0 0.0
          %1148 = vmatpush1.msra.mxu0 %v521
          %1149 = vmatprep.subr.mxu0 0.0
          %1150 = vmatpush1.msra.mxu0 0.0
          %1151 = vmatprep.subr.mxu0 0.0
          %1152 = vmatpush1.msra.mxu0 0.0
          %1153 = vmatprep.subr.mxu0 0.0
          %1154 = vmatpush1.msra.mxu0 0.0
          %1155 = vmatprep.subr.mxu0 0.0
          %1156 = vmatpush1.msra.mxu0 0.0
          %1157 = vmatprep.subr.mxu0 0.0
          %1158 = vmatpush1.msra.mxu0 0.0
          %1159 = vmatprep.subr.mxu0 0.0
          %1160 = vmatpush1.msra.mxu0 0.0
          %1161 = vmatprep.subr.mxu0 0.0
          %1162 = vmatpush1.msra.mxu0 0.0
          %1163 = vmatprep.subr.mxu0 0.0
          %1164 = vmatpush1.msra.mxu0 0.0
          %1165 = vmatprep.subr.mxu0 0.0
          %1166 = vmatpush1.msra.mxu0 0.0
          %1167 = vmatprep.subr.mxu0 0.0
          %1168 = vmatpush1.msra.mxu0 0.0
          %1169 = vmatprep.subr.mxu0 0.0
          %1170 = vmatpush1.msra.mxu0 0.0
          %1171 = vmatprep.subr.mxu0 0.0
          %1172 = vmatpush1.msra.mxu0 0.0
          %1173 = vmatprep.subr.mxu0 0.0
          %1174 = vmatpush1.msra.mxu0 0.0
          %1175 = vmatprep.subr.mxu0 0.0
          %1176 = vmatpush1.msra.mxu0 0.0
          %1177 = vmatprep.subr.mxu0 0.0
          %1178 = vmatpush1.msra.mxu0 0.0
          %1179 = vmatprep.subr.mxu0 0.0
          %1180 = vmatpush1.msra.mxu0 0.0
          %1181 = vmatprep.mubr.f32.mxu0 0.0
          %1182 = vmatmul.mubr.f32.gmra.mrb[0].mxu0 %v868
          %v1183 = vpop.f32.mrb[0].mxu0
          %v1184 = vadd.f32 %v552, %v1183
          %v1185 = vpop.f32.mrb[0].mxu0
          %1186 = vdwg.mxu0
          %v1187 = vadd.f32 %v972, %v1113
          %v1188 = vxor.u32 %v1187, 2147483648
          %v1189 = vmul.f32 %v1188, 1.442695
          %v1190 = vpow.pop %v1189
          %v1191 = vadd.f32 %v1190, 1.0
          %v1192 = vrcp.pop %v1191
          %v1193 = vmul.f32 1.0, %v1192
          %v1194 = vadd.f32 %v974, %v1115
          %v1195 = vxor.u32 %v1194, 2147483648
          %v1196 = vmul.f32 %v1195, 1.442695
          %v1197 = vpow.pop %v1196
          %v1198 = vadd.f32 %v1197, 1.0
          %v1199 = vrcp.pop %v1198
          %v1200 = vmul.f32 1.0, %v1199
          %v1201 = vmul.f32 %v1193, %v1184
          %v1202 = vadd.f32 %v1043, %v1201
          %v1203 = vtanh.pop %v1202
          %v1204 = vsub.f32 1.0, %v1200
          %v1205 = vmul.f32 %v1204, %v1203
          %v1206 = vmul.f32 %v1200, %v868
          %v1207 = vadd.f32 %v1205, %v1206
          %v1210 = vunpack.c.l.s4 1966171168
          %v1211 = vunpack.c.0.s8 %v1210
          %v1212 = vlaneseq
          %v1213 = vshrl.u32 %v1212, 7
          %v1214 = vsub.s32 %v1211, %v1213
          %v1215 = vrot.slane %v1207, %v1214
          %v1216 = vcombine.high %v1215, %v1215
          %v1218 = vunpack.c.l.s4 1966171168
          %v1219 = vunpack.c.0.s8 %v1218
          %v1220 = vlaneseq
          %v1221 = vshrl.u32 %v1220, 7
          %v1222 = vsub.s32 %v1219, %v1221
          %v1223 = vrot.slane %v1215, %v1222
          %v1225 = vunpack.c.l.s4 1966171168
          %v1226 = vunpack.c.0.s8 %v1225
          %v1227 = vlaneseq
          %v1228 = vshrl.u32 %v1227, 7
          %v1229 = vsub.s32 %v1226, %v1228
          %v1230 = vrot.slane %v1216, %v1229
          %1233 = vst.msk [vmem:[%s458 + $0x1] sm:$0x1] %vm894, %v1223
          %1234 = vst.msk [vmem:[%s458 + $0x9] sm:$0x1] %vm894, %v1230
          %v1235 = vld [vmem:[%s0 + $0x2] sm:$0x1]
          %v1236 = vld [vmem:[%s0 + $0xa] sm:$0x1]
          %v1239 = vrot.slane %v1236, 7
          %v1240 = vsel %vm561, %v1239, %v1235
          %v1241 = vsel %vm563, %v1240, 0
          %1243 = vmatprep.subr.mxu0 %v469
          %1244 = vmatpush1.msra.mxu0 %v468
          %1245 = vmatprep.subr.mxu0 %v472
          %1246 = vmatpush1.msra.mxu0 %v471
          %1247 = vmatprep.subr.mxu0 0.0
          %1248 = vmatpush1.msra.mxu0 0.0
          %1249 = vmatprep.subr.mxu0 0.0
          %1250 = vmatpush1.msra.mxu0 0.0
          %1251 = vmatprep.subr.mxu0 0.0
          %1252 = vmatpush1.msra.mxu0 0.0
          %1253 = vmatprep.subr.mxu0 0.0
          %1254 = vmatpush1.msra.mxu0 0.0
          %1255 = vmatprep.subr.mxu0 0.0
          %1256 = vmatpush1.msra.mxu0 0.0
          %1257 = vmatprep.subr.mxu0 0.0
          %1258 = vmatpush1.msra.mxu0 0.0
          %1259 = vmatprep.subr.mxu0 0.0
          %1260 = vmatpush1.msra.mxu0 0.0
          %1261 = vmatprep.subr.mxu0 0.0
          %1262 = vmatpush1.msra.mxu0 0.0
          %1263 = vmatprep.subr.mxu0 0.0
          %1264 = vmatpush1.msra.mxu0 0.0
          %1265 = vmatprep.subr.mxu0 0.0
          %1266 = vmatpush1.msra.mxu0 0.0
          %1267 = vmatprep.subr.mxu0 0.0
          %1268 = vmatpush1.msra.mxu0 0.0
          %1269 = vmatprep.subr.mxu0 0.0
          %1270 = vmatpush1.msra.mxu0 0.0
          %1271 = vmatprep.subr.mxu0 0.0
          %1272 = vmatpush1.msra.mxu0 0.0
          %1273 = vmatprep.subr.mxu0 0.0
          %1274 = vmatpush1.msra.mxu0 0.0
          %1275 = vmatprep.subr.mxu0 0.0
          %1276 = vmatpush1.msra.mxu0 0.0
          %1277 = vmatprep.subr.mxu0 0.0
          %1278 = vmatpush1.msra.mxu0 0.0
          %1279 = vmatprep.subr.mxu0 0.0
          %1280 = vmatpush1.msra.mxu0 0.0
          %1281 = vmatprep.subr.mxu0 0.0
          %1282 = vmatpush1.msra.mxu0 0.0
          %1283 = vmatprep.subr.mxu0 0.0
          %1284 = vmatpush1.msra.mxu0 0.0
          %1285 = vmatprep.subr.mxu0 0.0
          %1286 = vmatpush1.msra.mxu0 0.0
          %1287 = vmatprep.subr.mxu0 0.0
          %1288 = vmatpush1.msra.mxu0 0.0
          %1289 = vmatprep.subr.mxu0 0.0
          %1290 = vmatpush1.msra.mxu0 0.0
          %1291 = vmatprep.subr.mxu0 0.0
          %1292 = vmatpush1.msra.mxu0 0.0
          %1293 = vmatprep.subr.mxu0 0.0
          %1294 = vmatpush1.msra.mxu0 0.0
          %1295 = vmatprep.subr.mxu0 0.0
          %1296 = vmatpush1.msra.mxu0 0.0
          %1297 = vmatprep.subr.mxu0 0.0
          %1298 = vmatpush1.msra.mxu0 0.0
          %1299 = vmatprep.subr.mxu0 0.0
          %1300 = vmatpush1.msra.mxu0 0.0
          %1301 = vmatprep.subr.mxu0 0.0
          %1302 = vmatpush1.msra.mxu0 0.0
          %1303 = vmatprep.subr.mxu0 0.0
          %1304 = vmatpush1.msra.mxu0 0.0
          %1305 = vmatprep.subr.mxu0 0.0
          %1306 = vmatpush1.msra.mxu0 0.0
          %1307 = vmatprep.mubr.f32.mxu0 0.0
          %1308 = vmatmul.mubr.f32.gmra.mrb[0].mxu0 %v1241
          %v1309 = vpop.f32.mrb[0].mxu0
          %v1310 = vadd.f32 %v527, %v1309
          %v1311 = vpop.f32.mrb[0].mxu0
          %v1312 = vadd.f32 %v531, %v1311
          %1313 = vdwg.mxu0
          %1314 = vmatprep.subr.mxu0 0.0
          %1315 = vmatpush1.msra.mxu0 %v470
          %1316 = vmatprep.subr.mxu0 0.0
          %1317 = vmatpush1.msra.mxu0 %v473
          %1318 = vmatprep.subr.mxu0 0.0
          %1319 = vmatpush1.msra.mxu0 0.0
          %1320 = vmatprep.subr.mxu0 0.0
          %1321 = vmatpush1.msra.mxu0 0.0
          %1322 = vmatprep.subr.mxu0 0.0
          %1323 = vmatpush1.msra.mxu0 0.0
          %1324 = vmatprep.subr.mxu0 0.0
          %1325 = vmatpush1.msra.mxu0 0.0
          %1326 = vmatprep.subr.mxu0 0.0
          %1327 = vmatpush1.msra.mxu0 0.0
          %1328 = vmatprep.subr.mxu0 0.0
          %1329 = vmatpush1.msra.mxu0 0.0
          %1330 = vmatprep.subr.mxu0 0.0
          %1331 = vmatpush1.msra.mxu0 0.0
          %1332 = vmatprep.subr.mxu0 0.0
          %1333 = vmatpush1.msra.mxu0 0.0
          %1334 = vmatprep.subr.mxu0 0.0
          %1335 = vmatpush1.msra.mxu0 0.0
          %1336 = vmatprep.subr.mxu0 0.0
          %1337 = vmatpush1.msra.mxu0 0.0
          %1338 = vmatprep.subr.mxu0 0.0
          %1339 = vmatpush1.msra.mxu0 0.0
          %1340 = vmatprep.subr.mxu0 0.0
          %1341 = vmatpush1.msra.mxu0 0.0
          %1342 = vmatprep.subr.mxu0 0.0
          %1343 = vmatpush1.msra.mxu0 0.0
          %1344 = vmatprep.subr.mxu0 0.0
          %1345 = vmatpush1.msra.mxu0 0.0
          %1346 = vmatprep.subr.mxu0 0.0
          %1347 = vmatpush1.msra.mxu0 0.0
          %1348 = vmatprep.subr.mxu0 0.0
          %1349 = vmatpush1.msra.mxu0 0.0
          %1350 = vmatprep.subr.mxu0 0.0
          %1351 = vmatpush1.msra.mxu0 0.0
          %1352 = vmatprep.subr.mxu0 0.0
          %1353 = vmatpush1.msra.mxu0 0.0
          %1354 = vmatprep.subr.mxu0 0.0
          %1355 = vmatpush1.msra.mxu0 0.0
          %1356 = vmatprep.subr.mxu0 0.0
          %1357 = vmatpush1.msra.mxu0 0.0
          %1358 = vmatprep.subr.mxu0 0.0
          %1359 = vmatpush1.msra.mxu0 0.0
          %1360 = vmatprep.subr.mxu0 0.0
          %1361 = vmatpush1.msra.mxu0 0.0
          %1362 = vmatprep.subr.mxu0 0.0
          %1363 = vmatpush1.msra.mxu0 0.0
          %1364 = vmatprep.subr.mxu0 0.0
          %1365 = vmatpush1.msra.mxu0 0.0
          %1366 = vmatprep.subr.mxu0 0.0
          %1367 = vmatpush1.msra.mxu0 0.0
          %1368 = vmatprep.subr.mxu0 0.0
          %1369 = vmatpush1.msra.mxu0 0.0
          %1370 = vmatprep.subr.mxu0 0.0
          %1371 = vmatpush1.msra.mxu0 0.0
          %1372 = vmatprep.subr.mxu0 0.0
          %1373 = vmatpush1.msra.mxu0 0.0
          %1374 = vmatprep.subr.mxu0 0.0
          %1375 = vmatpush1.msra.mxu0 0.0
          %1376 = vmatprep.subr.mxu0 0.0
          %1377 = vmatpush1.msra.mxu0 0.0
          %1378 = vmatprep.mubr.f32.mxu0 0.0
          %1379 = vmatmul.mubr.f32.gmra.mrb[0].mxu0 %v1241
          %v1380 = vpop.f32.mrb[0].mxu0
          %v1381 = vadd.f32 %v535, %v1380
          %v1382 = vpop.f32.mrb[0].mxu0
          %1383 = vdwg.mxu0
          %1384 = vmatprep.subr.mxu0 %v475
          %1385 = vmatpush1.msra.mxu0 %v474
          %1386 = vmatprep.subr.mxu0 %v478
          %1387 = vmatpush1.msra.mxu0 %v477
          %1388 = vmatprep.subr.mxu0 %v481
          %1389 = vmatpush1.msra.mxu0 %v480
          %1390 = vmatprep.subr.mxu0 %v484
          %1391 = vmatpush1.msra.mxu0 %v483
          %1392 = vmatprep.subr.mxu0 %v487
          %1393 = vmatpush1.msra.mxu0 %v486
          %1394 = vmatprep.subr.mxu0 %v490
          %1395 = vmatpush1.msra.mxu0 %v489
          %1396 = vmatprep.subr.mxu0 %v493
          %1397 = vmatpush1.msra.mxu0 %v492
          %1398 = vmatprep.subr.mxu0 %v496
          %1399 = vmatpush1.msra.mxu0 %v495
          %1400 = vmatprep.subr.mxu0 %v499
          %1401 = vmatpush1.msra.mxu0 %v498
          %1402 = vmatprep.subr.mxu0 %v502
          %1403 = vmatpush1.msra.mxu0 %v501
          %1404 = vmatprep.subr.mxu0 %v505
          %1405 = vmatpush1.msra.mxu0 %v504
          %1406 = vmatprep.subr.mxu0 %v508
          %1407 = vmatpush1.msra.mxu0 %v507
          %1408 = vmatprep.subr.mxu0 %v511
          %1409 = vmatpush1.msra.mxu0 %v510
          %1410 = vmatprep.subr.mxu0 %v514
          %1411 = vmatpush1.msra.mxu0 %v513
          %1412 = vmatprep.subr.mxu0 %v517
          %1413 = vmatpush1.msra.mxu0 %v516
          %1414 = vmatprep.subr.mxu0 %v520
          %1415 = vmatpush1.msra.mxu0 %v519
          %1416 = vmatprep.subr.mxu0 0.0
          %1417 = vmatpush1.msra.mxu0 0.0
          %1418 = vmatprep.subr.mxu0 0.0
          %1419 = vmatpush1.msra.mxu0 0.0
          %1420 = vmatprep.subr.mxu0 0.0
          %1421 = vmatpush1.msra.mxu0 0.0
          %1422 = vmatprep.subr.mxu0 0.0
          %1423 = vmatpush1.msra.mxu0 0.0
          %1424 = vmatprep.subr.mxu0 0.0
          %1425 = vmatpush1.msra.mxu0 0.0
          %1426 = vmatprep.subr.mxu0 0.0
          %1427 = vmatpush1.msra.mxu0 0.0
          %1428 = vmatprep.subr.mxu0 0.0
          %1429 = vmatpush1.msra.mxu0 0.0
          %1430 = vmatprep.subr.mxu0 0.0
          %1431 = vmatpush1.msra.mxu0 0.0
          %1432 = vmatprep.subr.mxu0 0.0
          %1433 = vmatpush1.msra.mxu0 0.0
          %1434 = vmatprep.subr.mxu0 0.0
          %1435 = vmatpush1.msra.mxu0 0.0
          %1436 = vmatprep.subr.mxu0 0.0
          %1437 = vmatpush1.msra.mxu0 0.0
          %1438 = vmatprep.subr.mxu0 0.0
          %1439 = vmatpush1.msra.mxu0 0.0
          %1440 = vmatprep.subr.mxu0 0.0
          %1441 = vmatpush1.msra.mxu0 0.0
          %1442 = vmatprep.subr.mxu0 0.0
          %1443 = vmatpush1.msra.mxu0 0.0
          %1444 = vmatprep.subr.mxu0 0.0
          %1445 = vmatpush1.msra.mxu0 0.0
          %1446 = vmatprep.subr.mxu0 0.0
          %1447 = vmatpush1.msra.mxu0 0.0
          %1448 = vmatprep.mubr.f32.mxu0 0.0
          %1449 = vmatmul.mubr.f32.gmra.mrb[0].mxu0 %v1207
          %v1450 = vpop.f32.mrb[0].mxu0
          %v1451 = vadd.f32 %v544, %v1450
          %v1452 = vpop.f32.mrb[0].mxu0
          %v1453 = vadd.f32 %v548, %v1452
          %1454 = vdwg.mxu0
          %1455 = vmatprep.subr.mxu0 0.0
          %1456 = vmatpush1.msra.mxu0 %v476
          %1457 = vmatprep.subr.mxu0 0.0
          %1458 = vmatpush1.msra.mxu0 %v479
          %1459 = vmatprep.subr.mxu0 0.0
          %1460 = vmatpush1.msra.mxu0 %v482
          %1461 = vmatprep.subr.mxu0 0.0
          %1462 = vmatpush1.msra.mxu0 %v485
          %1463 = vmatprep.subr.mxu0 0.0
          %1464 = vmatpush1.msra.mxu0 %v488
          %1465 = vmatprep.subr.mxu0 0.0
          %1466 = vmatpush1.msra.mxu0 %v491
          %1467 = vmatprep.subr.mxu0 0.0
          %1468 = vmatpush1.msra.mxu0 %v494
          %1469 = vmatprep.subr.mxu0 0.0
          %1470 = vmatpush1.msra.mxu0 %v497
          %1471 = vmatprep.subr.mxu0 0.0
          %1472 = vmatpush1.msra.mxu0 %v500
          %1473 = vmatprep.subr.mxu0 0.0
          %1474 = vmatpush1.msra.mxu0 %v503
          %1475 = vmatprep.subr.mxu0 0.0
          %1476 = vmatpush1.msra.mxu0 %v506
          %1477 = vmatprep.subr.mxu0 0.0
          %1478 = vmatpush1.msra.mxu0 %v509
          %1479 = vmatprep.subr.mxu0 0.0
          %1480 = vmatpush1.msra.mxu0 %v512
          %1481 = vmatprep.subr.mxu0 0.0
          %1482 = vmatpush1.msra.mxu0 %v515
          %1483 = vmatprep.subr.mxu0 0.0
          %1484 = vmatpush1.msra.mxu0 %v518
          %1485 = vmatprep.subr.mxu0 0.0
          %1486 = vmatpush1.msra.mxu0 %v521
          %1487 = vmatprep.subr.mxu0 0.0
          %1488 = vmatpush1.msra.mxu0 0.0
          %1489 = vmatprep.subr.mxu0 0.0
          %1490 = vmatpush1.msra.mxu0 0.0
          %1491 = vmatprep.subr.mxu0 0.0
          %1492 = vmatpush1.msra.mxu0 0.0
          %1493 = vmatprep.subr.mxu0 0.0
          %1494 = vmatpush1.msra.mxu0 0.0
          %1495 = vmatprep.subr.mxu0 0.0
          %1496 = vmatpush1.msra.mxu0 0.0
          %1497 = vmatprep.subr.mxu0 0.0
          %1498 = vmatpush1.msra.mxu0 0.0
          %1499 = vmatprep.subr.mxu0 0.0
          %1500 = vmatpush1.msra.mxu0 0.0
          %1501 = vmatprep.subr.mxu0 0.0
          %1502 = vmatpush1.msra.mxu0 0.0
          %1503 = vmatprep.subr.mxu0 0.0
          %1504 = vmatpush1.msra.mxu0 0.0
          %1505 = vmatprep.subr.mxu0 0.0
          %1506 = vmatpush1.msra.mxu0 0.0
          %1507 = vmatprep.subr.mxu0 0.0
          %1508 = vmatpush1.msra.mxu0 0.0
          %1509 = vmatprep.subr.mxu0 0.0
          %1510 = vmatpush1.msra.mxu0 0.0
          %1511 = vmatprep.subr.mxu0 0.0
          %1512 = vmatpush1.msra.mxu0 0.0
          %1513 = vmatprep.subr.mxu0 0.0
          %1514 = vmatpush1.msra.mxu0 0.0
          %1515 = vmatprep.subr.mxu0 0.0
          %1516 = vmatpush1.msra.mxu0 0.0
          %1517 = vmatprep.subr.mxu0 0.0
          %1518 = vmatpush1.msra.mxu0 0.0
          %1519 = vmatprep.mubr.f32.mxu0 0.0
          %1520 = vmatmul.mubr.f32.gmra.mrb[0].mxu0 %v1207
          %v1521 = vpop.f32.mrb[0].mxu0
          %v1522 = vadd.f32 %v552, %v1521
          %v1523 = vpop.f32.mrb[0].mxu0
          %1524 = vdwg.mxu0
          %v1525 = vadd.f32 %v1310, %v1451
          %v1526 = vxor.u32 %v1525, 2147483648
          %v1527 = vmul.f32 %v1526, 1.442695
          %v1528 = vpow.pop %v1527
          %v1529 = vadd.f32 %v1528, 1.0
          %v1530 = vrcp.pop %v1529
          %v1531 = vmul.f32 1.0, %v1530
          %v1532 = vadd.f32 %v1312, %v1453
          %v1533 = vxor.u32 %v1532, 2147483648
          %v1534 = vmul.f32 %v1533, 1.442695
          %v1535 = vpow.pop %v1534
          %v1536 = vadd.f32 %v1535, 1.0
          %v1537 = vrcp.pop %v1536
          %v1538 = vmul.f32 1.0, %v1537
          %v1539 = vmul.f32 %v1531, %v1522
          %v1540 = vadd.f32 %v1381, %v1539
          %v1541 = vtanh.pop %v1540
          %v1542 = vsub.f32 1.0, %v1538
          %v1543 = vmul.f32 %v1542, %v1541
          %v1544 = vmul.f32 %v1538, %v1207
          %v1545 = vadd.f32 %v1543, %v1544
          %v1548 = vunpack.c.l.s4 1966171168
          %v1549 = vunpack.c.0.s8 %v1548
          %v1550 = vlaneseq
          %v1551 = vshrl.u32 %v1550, 7
          %v1552 = vsub.s32 %v1549, %v1551
          %v1553 = vrot.slane %v1545, %v1552
          %v1554 = vcombine.high %v1553, %v1553
          %v1556 = vunpack.c.l.s4 1966171168
          %v1557 = vunpack.c.0.s8 %v1556
          %v1558 = vlaneseq
          %v1559 = vshrl.u32 %v1558, 7
          %v1560 = vsub.s32 %v1557, %v1559
          %v1561 = vrot.slane %v1553, %v1560
          %v1563 = vunpack.c.l.s4 1966171168
          %v1564 = vunpack.c.0.s8 %v1563
          %v1565 = vlaneseq
          %v1566 = vshrl.u32 %v1565, 7
          %v1567 = vsub.s32 %v1564, %v1566
          %v1568 = vrot.slane %v1554, %v1567
          %1571 = vst.msk [vmem:[%s458 + $0x2] sm:$0x1] %vm894, %v1561
          %1572 = vst.msk [vmem:[%s458 + $0xa] sm:$0x1] %vm894, %v1568
          %v1573 = vld [vmem:[%s0 + $0x3] sm:$0x1]
          %v1574 = vld [vmem:[%s0 + $0xb] sm:$0x1]
          %v1577 = vrot.slane %v1574, 7
          %v1578 = vsel %vm561, %v1577, %v1573
          %v1579 = vsel %vm563, %v1578, 0
          %1581 = vmatprep.subr.mxu0 %v469
          %1582 = vmatpush1.msra.mxu0 %v468
          %1583 = vmatprep.subr.mxu0 %v472
          %1584 = vmatpush1.msra.mxu0 %v471
          %1585 = vmatprep.subr.mxu0 0.0
          %1586 = vmatpush1.msra.mxu0 0.0
          %1587 = vmatprep.subr.mxu0 0.0
          %1588 = vmatpush1.msra.mxu0 0.0
          %1589 = vmatprep.subr.mxu0 0.0
          %1590 = vmatpush1.msra.mxu0 0.0
          %1591 = vmatprep.subr.mxu0 0.0
          %1592 = vmatpush1.msra.mxu0 0.0
          %1593 = vmatprep.subr.mxu0 0.0
          %1594 = vmatpush1.msra.mxu0 0.0
          %1595 = vmatprep.subr.mxu0 0.0
          %1596 = vmatpush1.msra.mxu0 0.0
          %1597 = vmatprep.subr.mxu0 0.0
          %1598 = vmatpush1.msra.mxu0 0.0
          %1599 = vmatprep.subr.mxu0 0.0
          %1600 = vmatpush1.msra.mxu0 0.0
          %1601 = vmatprep.subr.mxu0 0.0
          %1602 = vmatpush1.msra.mxu0 0.0
          %1603 = vmatprep.subr.mxu0 0.0
          %1604 = vmatpush1.msra.mxu0 0.0
          %1605 = vmatprep.subr.mxu0 0.0
          %1606 = vmatpush1.msra.mxu0 0.0
          %1607 = vmatprep.subr.mxu0 0.0
          %1608 = vmatpush1.msra.mxu0 0.0
          %1609 = vmatprep.subr.mxu0 0.0
          %1610 = vmatpush1.msra.mxu0 0.0
          %1611 = vmatprep.subr.mxu0 0.0
          %1612 = vmatpush1.msra.mxu0 0.0
          %1613 = vmatprep.subr.mxu0 0.0
          %1614 = vmatpush1.msra.mxu0 0.0
          %1615 = vmatprep.subr.mxu0 0.0
          %1616 = vmatpush1.msra.mxu0 0.0
          %1617 = vmatprep.subr.mxu0 0.0
          %1618 = vmatpush1.msra.mxu0 0.0
          %1619 = vmatprep.subr.mxu0 0.0
          %1620 = vmatpush1.msra.mxu0 0.0
          %1621 = vmatprep.subr.mxu0 0.0
          %1622 = vmatpush1.msra.mxu0 0.0
          %1623 = vmatprep.subr.mxu0 0.0
          %1624 = vmatpush1.msra.mxu0 0.0
          %1625 = vmatprep.subr.mxu0 0.0
          %1626 = vmatpush1.msra.mxu0 0.0
          %1627 = vmatprep.subr.mxu0 0.0
          %1628 = vmatpush1.msra.mxu0 0.0
          %1629 = vmatprep.subr.mxu0 0.0
          %1630 = vmatpush1.msra.mxu0 0.0
          %1631 = vmatprep.subr.mxu0 0.0
          %1632 = vmatpush1.msra.mxu0 0.0
          %1633 = vmatprep.subr.mxu0 0.0
          %1634 = vmatpush1.msra.mxu0 0.0
          %1635 = vmatprep.subr.mxu0 0.0
          %1636 = vmatpush1.msra.mxu0 0.0
          %1637 = vmatprep.subr.mxu0 0.0
          %1638 = vmatpush1.msra.mxu0 0.0
          %1639 = vmatprep.subr.mxu0 0.0
          %1640 = vmatpush1.msra.mxu0 0.0
          %1641 = vmatprep.subr.mxu0 0.0
          %1642 = vmatpush1.msra.mxu0 0.0
          %1643 = vmatprep.subr.mxu0 0.0
          %1644 = vmatpush1.msra.mxu0 0.0
          %1645 = vmatprep.mubr.f32.mxu0 0.0
          %1646 = vmatmul.mubr.f32.gmra.mrb[0].mxu0 %v1579
          %v1647 = vpop.f32.mrb[0].mxu0
          %v1648 = vadd.f32 %v527, %v1647
          %v1649 = vpop.f32.mrb[0].mxu0
          %v1650 = vadd.f32 %v531, %v1649
          %1651 = vdwg.mxu0
          %1652 = vmatprep.subr.mxu0 0.0
          %1653 = vmatpush1.msra.mxu0 %v470
          %1654 = vmatprep.subr.mxu0 0.0
          %1655 = vmatpush1.msra.mxu0 %v473
          %1656 = vmatprep.subr.mxu0 0.0
          %1657 = vmatpush1.msra.mxu0 0.0
          %1658 = vmatprep.subr.mxu0 0.0
          %1659 = vmatpush1.msra.mxu0 0.0
          %1660 = vmatprep.subr.mxu0 0.0
          %1661 = vmatpush1.msra.mxu0 0.0
          %1662 = vmatprep.subr.mxu0 0.0
          %1663 = vmatpush1.msra.mxu0 0.0
          %1664 = vmatprep.subr.mxu0 0.0
          %1665 = vmatpush1.msra.mxu0 0.0
          %1666 = vmatprep.subr.mxu0 0.0
          %1667 = vmatpush1.msra.mxu0 0.0
          %1668 = vmatprep.subr.mxu0 0.0
          %1669 = vmatpush1.msra.mxu0 0.0
          %1670 = vmatprep.subr.mxu0 0.0
          %1671 = vmatpush1.msra.mxu0 0.0
          %1672 = vmatprep.subr.mxu0 0.0
          %1673 = vmatpush1.msra.mxu0 0.0
          %1674 = vmatprep.subr.mxu0 0.0
          %1675 = vmatpush1.msra.mxu0 0.0
          %1676 = vmatprep.subr.mxu0 0.0
          %1677 = vmatpush1.msra.mxu0 0.0
          %1678 = vmatprep.subr.mxu0 0.0
          %1679 = vmatpush1.msra.mxu0 0.0
          %1680 = vmatprep.subr.mxu0 0.0
          %1681 = vmatpush1.msra.mxu0 0.0
          %1682 = vmatprep.subr.mxu0 0.0
          %1683 = vmatpush1.msra.mxu0 0.0
          %1684 = vmatprep.subr.mxu0 0.0
          %1685 = vmatpush1.msra.mxu0 0.0
          %1686 = vmatprep.subr.mxu0 0.0
          %1687 = vmatpush1.msra.mxu0 0.0
          %1688 = vmatprep.subr.mxu0 0.0
          %1689 = vmatpush1.msra.mxu0 0.0
          %1690 = vmatprep.subr.mxu0 0.0
          %1691 = vmatpush1.msra.mxu0 0.0
          %1692 = vmatprep.subr.mxu0 0.0
          %1693 = vmatpush1.msra.mxu0 0.0
          %1694 = vmatprep.subr.mxu0 0.0
          %1695 = vmatpush1.msra.mxu0 0.0
          %1696 = vmatprep.subr.mxu0 0.0
          %1697 = vmatpush1.msra.mxu0 0.0
          %1698 = vmatprep.subr.mxu0 0.0
          %1699 = vmatpush1.msra.mxu0 0.0
          %1700 = vmatprep.subr.mxu0 0.0
          %1701 = vmatpush1.msra.mxu0 0.0
          %1702 = vmatprep.subr.mxu0 0.0
          %1703 = vmatpush1.msra.mxu0 0.0
          %1704 = vmatprep.subr.mxu0 0.0
          %1705 = vmatpush1.msra.mxu0 0.0
          %1706 = vmatprep.subr.mxu0 0.0
          %1707 = vmatpush1.msra.mxu0 0.0
          %1708 = vmatprep.subr.mxu0 0.0
          %1709 = vmatpush1.msra.mxu0 0.0
          %1710 = vmatprep.subr.mxu0 0.0
          %1711 = vmatpush1.msra.mxu0 0.0
          %1712 = vmatprep.subr.mxu0 0.0
          %1713 = vmatpush1.msra.mxu0 0.0
          %1714 = vmatprep.subr.mxu0 0.0
          %1715 = vmatpush1.msra.mxu0 0.0
          %1716 = vmatprep.mubr.f32.mxu0 0.0
          %1717 = vmatmul.mubr.f32.gmra.mrb[0].mxu0 %v1579
          %v1718 = vpop.f32.mrb[0].mxu0
          %v1719 = vadd.f32 %v535, %v1718
          %v1720 = vpop.f32.mrb[0].mxu0
          %1721 = vdwg.mxu0
          %1722 = vmatprep.subr.mxu0 %v475
          %1723 = vmatpush1.msra.mxu0 %v474
          %1724 = vmatprep.subr.mxu0 %v478
          %1725 = vmatpush1.msra.mxu0 %v477
          %1726 = vmatprep.subr.mxu0 %v481
          %1727 = vmatpush1.msra.mxu0 %v480
          %1728 = vmatprep.subr.mxu0 %v484
          %1729 = vmatpush1.msra.mxu0 %v483
          %1730 = vmatprep.subr.mxu0 %v487
          %1731 = vmatpush1.msra.mxu0 %v486
          %1732 = vmatprep.subr.mxu0 %v490
          %1733 = vmatpush1.msra.mxu0 %v489
          %1734 = vmatprep.subr.mxu0 %v493
          %1735 = vmatpush1.msra.mxu0 %v492
          %1736 = vmatprep.subr.mxu0 %v496
          %1737 = vmatpush1.msra.mxu0 %v495
          %1738 = vmatprep.subr.mxu0 %v499
          %1739 = vmatpush1.msra.mxu0 %v498
          %1740 = vmatprep.subr.mxu0 %v502
          %1741 = vmatpush1.msra.mxu0 %v501
          %1742 = vmatprep.subr.mxu0 %v505
          %1743 = vmatpush1.msra.mxu0 %v504
          %1744 = vmatprep.subr.mxu0 %v508
          %1745 = vmatpush1.msra.mxu0 %v507
          %1746 = vmatprep.subr.mxu0 %v511
          %1747 = vmatpush1.msra.mxu0 %v510
          %1748 = vmatprep.subr.mxu0 %v514
          %1749 = vmatpush1.msra.mxu0 %v513
          %1750 = vmatprep.subr.mxu0 %v517
          %1751 = vmatpush1.msra.mxu0 %v516
          %1752 = vmatprep.subr.mxu0 %v520
          %1753 = vmatpush1.msra.mxu0 %v519
          %1754 = vmatprep.subr.mxu0 0.0
          %1755 = vmatpush1.msra.mxu0 0.0
          %1756 = vmatprep.subr.mxu0 0.0
          %1757 = vmatpush1.msra.mxu0 0.0
          %1758 = vmatprep.subr.mxu0 0.0
          %1759 = vmatpush1.msra.mxu0 0.0
          %1760 = vmatprep.subr.mxu0 0.0
          %1761 = vmatpush1.msra.mxu0 0.0
          %1762 = vmatprep.subr.mxu0 0.0
          %1763 = vmatpush1.msra.mxu0 0.0
          %1764 = vmatprep.subr.mxu0 0.0
          %1765 = vmatpush1.msra.mxu0 0.0
          %1766 = vmatprep.subr.mxu0 0.0
          %1767 = vmatpush1.msra.mxu0 0.0
          %1768 = vmatprep.subr.mxu0 0.0
          %1769 = vmatpush1.msra.mxu0 0.0
          %1770 = vmatprep.subr.mxu0 0.0
          %1771 = vmatpush1.msra.mxu0 0.0
          %1772 = vmatprep.subr.mxu0 0.0
          %1773 = vmatpush1.msra.mxu0 0.0
          %1774 = vmatprep.subr.mxu0 0.0
          %1775 = vmatpush1.msra.mxu0 0.0
          %1776 = vmatprep.subr.mxu0 0.0
          %1777 = vmatpush1.msra.mxu0 0.0
          %1778 = vmatprep.subr.mxu0 0.0
          %1779 = vmatpush1.msra.mxu0 0.0
          %1780 = vmatprep.subr.mxu0 0.0
          %1781 = vmatpush1.msra.mxu0 0.0
          %1782 = vmatprep.subr.mxu0 0.0
          %1783 = vmatpush1.msra.mxu0 0.0
          %1784 = vmatprep.subr.mxu0 0.0
          %1785 = vmatpush1.msra.mxu0 0.0
          %1786 = vmatprep.mubr.f32.mxu0 0.0
          %1787 = vmatmul.mubr.f32.gmra.mrb[0].mxu0 %v1545
          %v1788 = vpop.f32.mrb[0].mxu0
          %v1789 = vadd.f32 %v544, %v1788
          %v1790 = vpop.f32.mrb[0].mxu0
          %v1791 = vadd.f32 %v548, %v1790
          %1792 = vdwg.mxu0
          %1793 = vmatprep.subr.mxu0 0.0
          %1794 = vmatpush1.msra.mxu0 %v476
          %1795 = vmatprep.subr.mxu0 0.0
          %1796 = vmatpush1.msra.mxu0 %v479
          %1797 = vmatprep.subr.mxu0 0.0
          %1798 = vmatpush1.msra.mxu0 %v482
          %1799 = vmatprep.subr.mxu0 0.0
          %1800 = vmatpush1.msra.mxu0 %v485
          %1801 = vmatprep.subr.mxu0 0.0
          %1802 = vmatpush1.msra.mxu0 %v488
          %1803 = vmatprep.subr.mxu0 0.0
          %1804 = vmatpush1.msra.mxu0 %v491
          %1805 = vmatprep.subr.mxu0 0.0
          %1806 = vmatpush1.msra.mxu0 %v494
          %1807 = vmatprep.subr.mxu0 0.0
          %1808 = vmatpush1.msra.mxu0 %v497
          %1809 = vmatprep.subr.mxu0 0.0
          %1810 = vmatpush1.msra.mxu0 %v500
          %1811 = vmatprep.subr.mxu0 0.0
          %1812 = vmatpush1.msra.mxu0 %v503
          %1813 = vmatprep.subr.mxu0 0.0
          %1814 = vmatpush1.msra.mxu0 %v506
          %1815 = vmatprep.subr.mxu0 0.0
          %1816 = vmatpush1.msra.mxu0 %v509
          %1817 = vmatprep.subr.mxu0 0.0
          %1818 = vmatpush1.msra.mxu0 %v512
          %1819 = vmatprep.subr.mxu0 0.0
          %1820 = vmatpush1.msra.mxu0 %v515
          %1821 = vmatprep.subr.mxu0 0.0
          %1822 = vmatpush1.msra.mxu0 %v518
          %1823 = vmatprep.subr.mxu0 0.0
          %1824 = vmatpush1.msra.mxu0 %v521
          %1825 = vmatprep.subr.mxu0 0.0
          %1826 = vmatpush1.msra.mxu0 0.0
          %1827 = vmatprep.subr.mxu0 0.0
          %1828 = vmatpush1.msra.mxu0 0.0
          %1829 = vmatprep.subr.mxu0 0.0
          %1830 = vmatpush1.msra.mxu0 0.0
          %1831 = vmatprep.subr.mxu0 0.0
          %1832 = vmatpush1.msra.mxu0 0.0
          %1833 = vmatprep.subr.mxu0 0.0
          %1834 = vmatpush1.msra.mxu0 0.0
          %1835 = vmatprep.subr.mxu0 0.0
          %1836 = vmatpush1.msra.mxu0 0.0
          %1837 = vmatprep.subr.mxu0 0.0
          %1838 = vmatpush1.msra.mxu0 0.0
          %1839 = vmatprep.subr.mxu0 0.0
          %1840 = vmatpush1.msra.mxu0 0.0
          %1841 = vmatprep.subr.mxu0 0.0
          %1842 = vmatpush1.msra.mxu0 0.0
          %1843 = vmatprep.subr.mxu0 0.0
          %1844 = vmatpush1.msra.mxu0 0.0
          %1845 = vmatprep.subr.mxu0 0.0
          %1846 = vmatpush1.msra.mxu0 0.0
          %1847 = vmatprep.subr.mxu0 0.0
          %1848 = vmatpush1.msra.mxu0 0.0
          %1849 = vmatprep.subr.mxu0 0.0
          %1850 = vmatpush1.msra.mxu0 0.0
          %1851 = vmatprep.subr.mxu0 0.0
          %1852 = vmatpush1.msra.mxu0 0.0
          %1853 = vmatprep.subr.mxu0 0.0
          %1854 = vmatpush1.msra.mxu0 0.0
          %1855 = vmatprep.subr.mxu0 0.0
          %1856 = vmatpush1.msra.mxu0 0.0
          %1857 = vmatprep.mubr.f32.mxu0 0.0
          %1858 = vmatmul.mubr.f32.gmra.mrb[0].mxu0 %v1545
          %v1859 = vpop.f32.mrb[0].mxu0
          %v1860 = vadd.f32 %v552, %v1859
          %v1861 = vpop.f32.mrb[0].mxu0
          %1862 = vdwg.mxu0
          %v1863 = vadd.f32 %v1648, %v1789
          %v1864 = vxor.u32 %v1863, 2147483648
          %v1865 = vmul.f32 %v1864, 1.442695
          %v1866 = vpow.pop %v1865
          %v1867 = vadd.f32 %v1866, 1.0
          %v1868 = vrcp.pop %v1867
          %v1869 = vmul.f32 1.0, %v1868
          %v1870 = vadd.f32 %v1650, %v1791
          %v1871 = vxor.u32 %v1870, 2147483648
          %v1872 = vmul.f32 %v1871, 1.442695
          %v1873 = vpow.pop %v1872
          %v1874 = vadd.f32 %v1873, 1.0
          %v1875 = vrcp.pop %v1874
          %v1876 = vmul.f32 1.0, %v1875
          %v1877 = vmul.f32 %v1869, %v1860
          %v1878 = vadd.f32 %v1719, %v1877
          %v1879 = vtanh.pop %v1878
          %v1880 = vsub.f32 1.0, %v1876
          %v1881 = vmul.f32 %v1880, %v1879
          %v1882 = vmul.f32 %v1876, %v1545
          %v1883 = vadd.f32 %v1881, %v1882
          %v1886 = vunpack.c.l.s4 1966171168
          %v1887 = vunpack.c.0.s8 %v1886
          %v1888 = vlaneseq
          %v1889 = vshrl.u32 %v1888, 7
          %v1890 = vsub.s32 %v1887, %v1889
          %v1891 = vrot.slane %v1883, %v1890
          %v1892 = vcombine.high %v1891, %v1891
          %v1894 = vunpack.c.l.s4 1966171168
          %v1895 = vunpack.c.0.s8 %v1894
          %v1896 = vlaneseq
          %v1897 = vshrl.u32 %v1896, 7
          %v1898 = vsub.s32 %v1895, %v1897
          %v1899 = vrot.slane %v1891, %v1898
          %v1901 = vunpack.c.l.s4 1966171168
          %v1902 = vunpack.c.0.s8 %v1901
          %v1903 = vlaneseq
          %v1904 = vshrl.u32 %v1903, 7
          %v1905 = vsub.s32 %v1902, %v1904
          %v1906 = vrot.slane %v1892, %v1905
          %1909 = vst.msk [vmem:[%s458 + $0x3] sm:$0x1] %vm894, %v1899
          %1910 = vst.msk [vmem:[%s458 + $0xb] sm:$0x1] %vm894, %v1906
          %v1911 = vld [vmem:[%s0 + $0x4] sm:$0x1]
          %v1912 = vld [vmem:[%s0 + $0xc] sm:$0x1]
          %v1915 = vrot.slane %v1912, 7
          %v1916 = vsel %vm561, %v1915, %v1911
          %v1917 = vsel %vm563, %v1916, 0
          %1919 = vmatprep.subr.mxu0 %v469
          %1920 = vmatpush1.msra.mxu0 %v468
          %1921 = vmatprep.subr.mxu0 %v472
          %1922 = vmatpush1.msra.mxu0 %v471
          %1923 = vmatprep.subr.mxu0 0.0
          %1924 = vmatpush1.msra.mxu0 0.0
          %1925 = vmatprep.subr.mxu0 0.0
          %1926 = vmatpush1.msra.mxu0 0.0
          %1927 = vmatprep.subr.mxu0 0.0
          %1928 = vmatpush1.msra.mxu0 0.0
          %1929 = vmatprep.subr.mxu0 0.0
          %1930 = vmatpush1.msra.mxu0 0.0
          %1931 = vmatprep.subr.mxu0 0.0
          %1932 = vmatpush1.msra.mxu0 0.0
          %1933 = vmatprep.subr.mxu0 0.0
          %1934 = vmatpush1.msra.mxu0 0.0
          %1935 = vmatprep.subr.mxu0 0.0
          %1936 = vmatpush1.msra.mxu0 0.0
          %1937 = vmatprep.subr.mxu0 0.0
          %1938 = vmatpush1.msra.mxu0 0.0
          %1939 = vmatprep.subr.mxu0 0.0
          %1940 = vmatpush1.msra.mxu0 0.0
          %1941 = vmatprep.subr.mxu0 0.0
          %1942 = vmatpush1.msra.mxu0 0.0
          %1943 = vmatprep.subr.mxu0 0.0
          %1944 = vmatpush1.msra.mxu0 0.0
          %1945 = vmatprep.subr.mxu0 0.0
          %1946 = vmatpush1.msra.mxu0 0.0
          %1947 = vmatprep.subr.mxu0 0.0
          %1948 = vmatpush1.msra.mxu0 0.0
          %1949 = vmatprep.subr.mxu0 0.0
          %1950 = vmatpush1.msra.mxu0 0.0
          %1951 = vmatprep.subr.mxu0 0.0
          %1952 = vmatpush1.msra.mxu0 0.0
          %1953 = vmatprep.subr.mxu0 0.0
          %1954 = vmatpush1.msra.mxu0 0.0
          %1955 = vmatprep.subr.mxu0 0.0
          %1956 = vmatpush1.msra.mxu0 0.0
          %1957 = vmatprep.subr.mxu0 0.0
          %1958 = vmatpush1.msra.mxu0 0.0
          %1959 = vmatprep.subr.mxu0 0.0
          %1960 = vmatpush1.msra.mxu0 0.0
          %1961 = vmatprep.subr.mxu0 0.0
          %1962 = vmatpush1.msra.mxu0 0.0
          %1963 = vmatprep.subr.mxu0 0.0
          %1964 = vmatpush1.msra.mxu0 0.0
          %1965 = vmatprep.subr.mxu0 0.0
          %1966 = vmatpush1.msra.mxu0 0.0
          %1967 = vmatprep.subr.mxu0 0.0
          %1968 = vmatpush1.msra.mxu0 0.0
          %1969 = vmatprep.subr.mxu0 0.0
          %1970 = vmatpush1.msra.mxu0 0.0
          %1971 = vmatprep.subr.mxu0 0.0
          %1972 = vmatpush1.msra.mxu0 0.0
          %1973 = vmatprep.subr.mxu0 0.0
          %1974 = vmatpush1.msra.mxu0 0.0
          %1975 = vmatprep.subr.mxu0 0.0
          %1976 = vmatpush1.msra.mxu0 0.0
          %1977 = vmatprep.subr.mxu0 0.0
          %1978 = vmatpush1.msra.mxu0 0.0
          %1979 = vmatprep.subr.mxu0 0.0
          %1980 = vmatpush1.msra.mxu0 0.0
          %1981 = vmatprep.subr.mxu0 0.0
          %1982 = vmatpush1.msra.mxu0 0.0
          %1983 = vmatprep.mubr.f32.mxu0 0.0
          %1984 = vmatmul.mubr.f32.gmra.mrb[0].mxu0 %v1917
          %v1985 = vpop.f32.mrb[0].mxu0
          %v1986 = vadd.f32 %v527, %v1985
          %v1987 = vpop.f32.mrb[0].mxu0
          %v1988 = vadd.f32 %v531, %v1987
          %1989 = vdwg.mxu0
          %1990 = vmatprep.subr.mxu0 0.0
          %1991 = vmatpush1.msra.mxu0 %v470
          %1992 = vmatprep.subr.mxu0 0.0
          %1993 = vmatpush1.msra.mxu0 %v473
          %1994 = vmatprep.subr.mxu0 0.0
          %1995 = vmatpush1.msra.mxu0 0.0
          %1996 = vmatprep.subr.mxu0 0.0
          %1997 = vmatpush1.msra.mxu0 0.0
          %1998 = vmatprep.subr.mxu0 0.0
          %1999 = vmatpush1.msra.mxu0 0.0
          %2000 = vmatprep.subr.mxu0 0.0
          %2001 = vmatpush1.msra.mxu0 0.0
          %2002 = vmatprep.subr.mxu0 0.0
          %2003 = vmatpush1.msra.mxu0 0.0
          %2004 = vmatprep.subr.mxu0 0.0
          %2005 = vmatpush1.msra.mxu0 0.0
          %2006 = vmatprep.subr.mxu0 0.0
          %2007 = vmatpush1.msra.mxu0 0.0
          %2008 = vmatprep.subr.mxu0 0.0
          %2009 = vmatpush1.msra.mxu0 0.0
          %2010 = vmatprep.subr.mxu0 0.0
          %2011 = vmatpush1.msra.mxu0 0.0
          %2012 = vmatprep.subr.mxu0 0.0
          %2013 = vmatpush1.msra.mxu0 0.0
          %2014 = vmatprep.subr.mxu0 0.0
          %2015 = vmatpush1.msra.mxu0 0.0
          %2016 = vmatprep.subr.mxu0 0.0
          %2017 = vmatpush1.msra.mxu0 0.0
          %2018 = vmatprep.subr.mxu0 0.0
          %2019 = vmatpush1.msra.mxu0 0.0
          %2020 = vmatprep.subr.mxu0 0.0
          %2021 = vmatpush1.msra.mxu0 0.0
          %2022 = vmatprep.subr.mxu0 0.0
          %2023 = vmatpush1.msra.mxu0 0.0
          %2024 = vmatprep.subr.mxu0 0.0
          %2025 = vmatpush1.msra.mxu0 0.0
          %2026 = vmatprep.subr.mxu0 0.0
          %2027 = vmatpush1.msra.mxu0 0.0
          %2028 = vmatprep.subr.mxu0 0.0
          %2029 = vmatpush1.msra.mxu0 0.0
          %2030 = vmatprep.subr.mxu0 0.0
          %2031 = vmatpush1.msra.mxu0 0.0
          %2032 = vmatprep.subr.mxu0 0.0
          %2033 = vmatpush1.msra.mxu0 0.0
          %2034 = vmatprep.subr.mxu0 0.0
          %2035 = vmatpush1.msra.mxu0 0.0
          %2036 = vmatprep.subr.mxu0 0.0
          %2037 = vmatpush1.msra.mxu0 0.0
          %2038 = vmatprep.subr.mxu0 0.0
          %2039 = vmatpush1.msra.mxu0 0.0
          %2040 = vmatprep.subr.mxu0 0.0
          %2041 = vmatpush1.msra.mxu0 0.0
          %2042 = vmatprep.subr.mxu0 0.0
          %2043 = vmatpush1.msra.mxu0 0.0
          %2044 = vmatprep.subr.mxu0 0.0
          %2045 = vmatpush1.msra.mxu0 0.0
          %2046 = vmatprep.subr.mxu0 0.0
          %2047 = vmatpush1.msra.mxu0 0.0
          %2048 = vmatprep.subr.mxu0 0.0
          %2049 = vmatpush1.msra.mxu0 0.0
          %2050 = vmatprep.subr.mxu0 0.0
          %2051 = vmatpush1.msra.mxu0 0.0
          %2052 = vmatprep.subr.mxu0 0.0
          %2053 = vmatpush1.msra.mxu0 0.0
          %2054 = vmatprep.mubr.f32.mxu0 0.0
          %2055 = vmatmul.mubr.f32.gmra.mrb[0].mxu0 %v1917
          %v2056 = vpop.f32.mrb[0].mxu0
          %v2057 = vadd.f32 %v535, %v2056
          %v2058 = vpop.f32.mrb[0].mxu0
          %2059 = vdwg.mxu0
          %2060 = vmatprep.subr.mxu0 %v475
          %2061 = vmatpush1.msra.mxu0 %v474
          %2062 = vmatprep.subr.mxu0 %v478
          %2063 = vmatpush1.msra.mxu0 %v477
          %2064 = vmatprep.subr.mxu0 %v481
          %2065 = vmatpush1.msra.mxu0 %v480
          %2066 = vmatprep.subr.mxu0 %v484
          %2067 = vmatpush1.msra.mxu0 %v483
          %2068 = vmatprep.subr.mxu0 %v487
          %2069 = vmatpush1.msra.mxu0 %v486
          %2070 = vmatprep.subr.mxu0 %v490
          %2071 = vmatpush1.msra.mxu0 %v489
          %2072 = vmatprep.subr.mxu0 %v493
          %2073 = vmatpush1.msra.mxu0 %v492
          %2074 = vmatprep.subr.mxu0 %v496
          %2075 = vmatpush1.msra.mxu0 %v495
          %2076 = vmatprep.subr.mxu0 %v499
          %2077 = vmatpush1.msra.mxu0 %v498
          %2078 = vmatprep.subr.mxu0 %v502
          %2079 = vmatpush1.msra.mxu0 %v501
          %2080 = vmatprep.subr.mxu0 %v505
          %2081 = vmatpush1.msra.mxu0 %v504
          %2082 = vmatprep.subr.mxu0 %v508
          %2083 = vmatpush1.msra.mxu0 %v507
          %2084 = vmatprep.subr.mxu0 %v511
          %2085 = vmatpush1.msra.mxu0 %v510
          %2086 = vmatprep.subr.mxu0 %v514
          %2087 = vmatpush1.msra.mxu0 %v513
          %2088 = vmatprep.subr.mxu0 %v517
          %2089 = vmatpush1.msra.mxu0 %v516
          %2090 = vmatprep.subr.mxu0 %v520
          %2091 = vmatpush1.msra.mxu0 %v519
          %2092 = vmatprep.subr.mxu0 0.0
          %2093 = vmatpush1.msra.mxu0 0.0
          %2094 = vmatprep.subr.mxu0 0.0
          %2095 = vmatpush1.msra.mxu0 0.0
          %2096 = vmatprep.subr.mxu0 0.0
          %2097 = vmatpush1.msra.mxu0 0.0
          %2098 = vmatprep.subr.mxu0 0.0
          %2099 = vmatpush1.msra.mxu0 0.0
          %2100 = vmatprep.subr.mxu0 0.0
          %2101 = vmatpush1.msra.mxu0 0.0
          %2102 = vmatprep.subr.mxu0 0.0
          %2103 = vmatpush1.msra.mxu0 0.0
          %2104 = vmatprep.subr.mxu0 0.0
          %2105 = vmatpush1.msra.mxu0 0.0
          %2106 = vmatprep.subr.mxu0 0.0
          %2107 = vmatpush1.msra.mxu0 0.0
          %2108 = vmatprep.subr.mxu0 0.0
          %2109 = vmatpush1.msra.mxu0 0.0
          %2110 = vmatprep.subr.mxu0 0.0
          %2111 = vmatpush1.msra.mxu0 0.0
          %2112 = vmatprep.subr.mxu0 0.0
          %2113 = vmatpush1.msra.mxu0 0.0
          %2114 = vmatprep.subr.mxu0 0.0
          %2115 = vmatpush1.msra.mxu0 0.0
          %2116 = vmatprep.subr.mxu0 0.0
          %2117 = vmatpush1.msra.mxu0 0.0
          %2118 = vmatprep.subr.mxu0 0.0
          %2119 = vmatpush1.msra.mxu0 0.0
          %2120 = vmatprep.subr.mxu0 0.0
          %2121 = vmatpush1.msra.mxu0 0.0
          %2122 = vmatprep.subr.mxu0 0.0
          %2123 = vmatpush1.msra.mxu0 0.0
          %2124 = vmatprep.mubr.f32.mxu0 0.0
          %2125 = vmatmul.mubr.f32.gmra.mrb[0].mxu0 %v1883
          %v2126 = vpop.f32.mrb[0].mxu0
          %v2127 = vadd.f32 %v544, %v2126
          %v2128 = vpop.f32.mrb[0].mxu0
          %v2129 = vadd.f32 %v548, %v2128
          %2130 = vdwg.mxu0
          %2131 = vmatprep.subr.mxu0 0.0
          %2132 = vmatpush1.msra.mxu0 %v476
          %2133 = vmatprep.subr.mxu0 0.0
          %2134 = vmatpush1.msra.mxu0 %v479
          %2135 = vmatprep.subr.mxu0 0.0
          %2136 = vmatpush1.msra.mxu0 %v482
          %2137 = vmatprep.subr.mxu0 0.0
          %2138 = vmatpush1.msra.mxu0 %v485
          %2139 = vmatprep.subr.mxu0 0.0
          %2140 = vmatpush1.msra.mxu0 %v488
          %2141 = vmatprep.subr.mxu0 0.0
          %2142 = vmatpush1.msra.mxu0 %v491
          %2143 = vmatprep.subr.mxu0 0.0
          %2144 = vmatpush1.msra.mxu0 %v494
          %2145 = vmatprep.subr.mxu0 0.0
          %2146 = vmatpush1.msra.mxu0 %v497
          %2147 = vmatprep.subr.mxu0 0.0
          %2148 = vmatpush1.msra.mxu0 %v500
          %2149 = vmatprep.subr.mxu0 0.0
          %2150 = vmatpush1.msra.mxu0 %v503
          %2151 = vmatprep.subr.mxu0 0.0
          %2152 = vmatpush1.msra.mxu0 %v506
          %2153 = vmatprep.subr.mxu0 0.0
          %2154 = vmatpush1.msra.mxu0 %v509
          %2155 = vmatprep.subr.mxu0 0.0
          %2156 = vmatpush1.msra.mxu0 %v512
          %2157 = vmatprep.subr.mxu0 0.0
          %2158 = vmatpush1.msra.mxu0 %v515
          %2159 = vmatprep.subr.mxu0 0.0
          %2160 = vmatpush1.msra.mxu0 %v518
          %2161 = vmatprep.subr.mxu0 0.0
          %2162 = vmatpush1.msra.mxu0 %v521
          %2163 = vmatprep.subr.mxu0 0.0
          %2164 = vmatpush1.msra.mxu0 0.0
          %2165 = vmatprep.subr.mxu0 0.0
          %2166 = vmatpush1.msra.mxu0 0.0
          %2167 = vmatprep.subr.mxu0 0.0
          %2168 = vmatpush1.msra.mxu0 0.0
          %2169 = vmatprep.subr.mxu0 0.0
          %2170 = vmatpush1.msra.mxu0 0.0
          %2171 = vmatprep.subr.mxu0 0.0
          %2172 = vmatpush1.msra.mxu0 0.0
          %2173 = vmatprep.subr.mxu0 0.0
          %2174 = vmatpush1.msra.mxu0 0.0
          %2175 = vmatprep.subr.mxu0 0.0
          %2176 = vmatpush1.msra.mxu0 0.0
          %2177 = vmatprep.subr.mxu0 0.0
          %2178 = vmatpush1.msra.mxu0 0.0
          %2179 = vmatprep.subr.mxu0 0.0
          %2180 = vmatpush1.msra.mxu0 0.0
          %2181 = vmatprep.subr.mxu0 0.0
          %2182 = vmatpush1.msra.mxu0 0.0
          %2183 = vmatprep.subr.mxu0 0.0
          %2184 = vmatpush1.msra.mxu0 0.0
          %2185 = vmatprep.subr.mxu0 0.0
          %2186 = vmatpush1.msra.mxu0 0.0
          %2187 = vmatprep.subr.mxu0 0.0
          %2188 = vmatpush1.msra.mxu0 0.0
          %2189 = vmatprep.subr.mxu0 0.0
          %2190 = vmatpush1.msra.mxu0 0.0
          %2191 = vmatprep.subr.mxu0 0.0
          %2192 = vmatpush1.msra.mxu0 0.0
          %2193 = vmatprep.subr.mxu0 0.0
          %2194 = vmatpush1.msra.mxu0 0.0
          %2195 = vmatprep.mubr.f32.mxu0 0.0
          %2196 = vmatmul.mubr.f32.gmra.mrb[0].mxu0 %v1883
          %v2197 = vpop.f32.mrb[0].mxu0
          %v2198 = vadd.f32 %v552, %v2197
          %v2199 = vpop.f32.mrb[0].mxu0
          %2200 = vdwg.mxu0
          %v2201 = vadd.f32 %v1986, %v2127
          %v2202 = vxor.u32 %v2201, 2147483648
          %v2203 = vmul.f32 %v2202, 1.442695
          %v2204 = vpow.pop %v2203
          %v2205 = vadd.f32 %v2204, 1.0
          %v2206 = vrcp.pop %v2205
          %v2207 = vmul.f32 1.0, %v2206
          %v2208 = vadd.f32 %v1988, %v2129
          %v2209 = vxor.u32 %v2208, 2147483648
          %v2210 = vmul.f32 %v2209, 1.442695
          %v2211 = vpow.pop %v2210
          %v2212 = vadd.f32 %v2211, 1.0
          %v2213 = vrcp.pop %v2212
          %v2214 = vmul.f32 1.0, %v2213
          %v2215 = vmul.f32 %v2207, %v2198
          %v2216 = vadd.f32 %v2057, %v2215
          %v2217 = vtanh.pop %v2216
          %v2218 = vsub.f32 1.0, %v2214
          %v2219 = vmul.f32 %v2218, %v2217
          %v2220 = vmul.f32 %v2214, %v1883
          %v2221 = vadd.f32 %v2219, %v2220
          %v2224 = vunpack.c.l.s4 1966171168
          %v2225 = vunpack.c.0.s8 %v2224
          %v2226 = vlaneseq
          %v2227 = vshrl.u32 %v2226, 7
          %v2228 = vsub.s32 %v2225, %v2227
          %v2229 = vrot.slane %v2221, %v2228
          %v2230 = vcombine.high %v2229, %v2229
          %v2232 = vunpack.c.l.s4 1966171168
          %v2233 = vunpack.c.0.s8 %v2232
          %v2234 = vlaneseq
          %v2235 = vshrl.u32 %v2234, 7
          %v2236 = vsub.s32 %v2233, %v2235
          %v2237 = vrot.slane %v2229, %v2236
          %v2239 = vunpack.c.l.s4 1966171168
          %v2240 = vunpack.c.0.s8 %v2239
          %v2241 = vlaneseq
          %v2242 = vshrl.u32 %v2241, 7
          %v2243 = vsub.s32 %v2240, %v2242
          %v2244 = vrot.slane %v2230, %v2243
          %2247 = vst.msk [vmem:[%s458 + $0x4] sm:$0x1] %vm894, %v2237
          %2248 = vst.msk [vmem:[%s458 + $0xc] sm:$0x1] %vm894, %v2244
          %v2249 = vld [vmem:[%s0 + $0x5] sm:$0x1]
          %v2250 = vld [vmem:[%s0 + $0xd] sm:$0x1]
          %v2253 = vrot.slane %v2250, 7
          %v2254 = vsel %vm561, %v2253, %v2249
          %v2255 = vsel %vm563, %v2254, 0
          %2257 = vmatprep.subr.mxu0 %v469
          %2258 = vmatpush1.msra.mxu0 %v468
          %2259 = vmatprep.subr.mxu0 %v472
          %2260 = vmatpush1.msra.mxu0 %v471
          %2261 = vmatprep.subr.mxu0 0.0
          %2262 = vmatpush1.msra.mxu0 0.0
          %2263 = vmatprep.subr.mxu0 0.0
          %2264 = vmatpush1.msra.mxu0 0.0
          %2265 = vmatprep.subr.mxu0 0.0
          %2266 = vmatpush1.msra.mxu0 0.0
          %2267 = vmatprep.subr.mxu0 0.0
          %2268 = vmatpush1.msra.mxu0 0.0
          %2269 = vmatprep.subr.mxu0 0.0
          %2270 = vmatpush1.msra.mxu0 0.0
          %2271 = vmatprep.subr.mxu0 0.0
          %2272 = vmatpush1.msra.mxu0 0.0
          %2273 = vmatprep.subr.mxu0 0.0
          %2274 = vmatpush1.msra.mxu0 0.0
          %2275 = vmatprep.subr.mxu0 0.0
          %2276 = vmatpush1.msra.mxu0 0.0
          %2277 = vmatprep.subr.mxu0 0.0
          %2278 = vmatpush1.msra.mxu0 0.0
          %2279 = vmatprep.subr.mxu0 0.0
          %2280 = vmatpush1.msra.mxu0 0.0
          %2281 = vmatprep.subr.mxu0 0.0
          %2282 = vmatpush1.msra.mxu0 0.0
          %2283 = vmatprep.subr.mxu0 0.0
          %2284 = vmatpush1.msra.mxu0 0.0
          %2285 = vmatprep.subr.mxu0 0.0
          %2286 = vmatpush1.msra.mxu0 0.0
          %2287 = vmatprep.subr.mxu0 0.0
          %2288 = vmatpush1.msra.mxu0 0.0
          %2289 = vmatprep.subr.mxu0 0.0
          %2290 = vmatpush1.msra.mxu0 0.0
          %2291 = vmatprep.subr.mxu0 0.0
          %2292 = vmatpush1.msra.mxu0 0.0
          %2293 = vmatprep.subr.mxu0 0.0
          %2294 = vmatpush1.msra.mxu0 0.0
          %2295 = vmatprep.subr.mxu0 0.0
          %2296 = vmatpush1.msra.mxu0 0.0
          %2297 = vmatprep.subr.mxu0 0.0
          %2298 = vmatpush1.msra.mxu0 0.0
          %2299 = vmatprep.subr.mxu0 0.0
          %2300 = vmatpush1.msra.mxu0 0.0
          %2301 = vmatprep.subr.mxu0 0.0
          %2302 = vmatpush1.msra.mxu0 0.0
          %2303 = vmatprep.subr.mxu0 0.0
          %2304 = vmatpush1.msra.mxu0 0.0
          %2305 = vmatprep.subr.mxu0 0.0
          %2306 = vmatpush1.msra.mxu0 0.0
          %2307 = vmatprep.subr.mxu0 0.0
          %2308 = vmatpush1.msra.mxu0 0.0
          %2309 = vmatprep.subr.mxu0 0.0
          %2310 = vmatpush1.msra.mxu0 0.0
          %2311 = vmatprep.subr.mxu0 0.0
          %2312 = vmatpush1.msra.mxu0 0.0
          %2313 = vmatprep.subr.mxu0 0.0
          %2314 = vmatpush1.msra.mxu0 0.0
          %2315 = vmatprep.subr.mxu0 0.0
          %2316 = vmatpush1.msra.mxu0 0.0
          %2317 = vmatprep.subr.mxu0 0.0
          %2318 = vmatpush1.msra.mxu0 0.0
          %2319 = vmatprep.subr.mxu0 0.0
          %2320 = vmatpush1.msra.mxu0 0.0
          %2321 = vmatprep.mubr.f32.mxu0 0.0
          %2322 = vmatmul.mubr.f32.gmra.mrb[0].mxu0 %v2255
          %v2323 = vpop.f32.mrb[0].mxu0
          %v2324 = vadd.f32 %v527, %v2323
          %v2325 = vpop.f32.mrb[0].mxu0
          %v2326 = vadd.f32 %v531, %v2325
          %2327 = vdwg.mxu0
          %2328 = vmatprep.subr.mxu0 0.0
          %2329 = vmatpush1.msra.mxu0 %v470
          %2330 = vmatprep.subr.mxu0 0.0
          %2331 = vmatpush1.msra.mxu0 %v473
          %2332 = vmatprep.subr.mxu0 0.0
          %2333 = vmatpush1.msra.mxu0 0.0
          %2334 = vmatprep.subr.mxu0 0.0
          %2335 = vmatpush1.msra.mxu0 0.0
          %2336 = vmatprep.subr.mxu0 0.0
          %2337 = vmatpush1.msra.mxu0 0.0
          %2338 = vmatprep.subr.mxu0 0.0
          %2339 = vmatpush1.msra.mxu0 0.0
          %2340 = vmatprep.subr.mxu0 0.0
          %2341 = vmatpush1.msra.mxu0 0.0
          %2342 = vmatprep.subr.mxu0 0.0
          %2343 = vmatpush1.msra.mxu0 0.0
          %2344 = vmatprep.subr.mxu0 0.0
          %2345 = vmatpush1.msra.mxu0 0.0
          %2346 = vmatprep.subr.mxu0 0.0
          %2347 = vmatpush1.msra.mxu0 0.0
          %2348 = vmatprep.subr.mxu0 0.0
          %2349 = vmatpush1.msra.mxu0 0.0
          %2350 = vmatprep.subr.mxu0 0.0
          %2351 = vmatpush1.msra.mxu0 0.0
          %2352 = vmatprep.subr.mxu0 0.0
          %2353 = vmatpush1.msra.mxu0 0.0
          %2354 = vmatprep.subr.mxu0 0.0
          %2355 = vmatpush1.msra.mxu0 0.0
          %2356 = vmatprep.subr.mxu0 0.0
          %2357 = vmatpush1.msra.mxu0 0.0
          %2358 = vmatprep.subr.mxu0 0.0
          %2359 = vmatpush1.msra.mxu0 0.0
          %2360 = vmatprep.subr.mxu0 0.0
          %2361 = vmatpush1.msra.mxu0 0.0
          %2362 = vmatprep.subr.mxu0 0.0
          %2363 = vmatpush1.msra.mxu0 0.0
          %2364 = vmatprep.subr.mxu0 0.0
          %2365 = vmatpush1.msra.mxu0 0.0
          %2366 = vmatprep.subr.mxu0 0.0
          %2367 = vmatpush1.msra.mxu0 0.0
          %2368 = vmatprep.subr.mxu0 0.0
          %2369 = vmatpush1.msra.mxu0 0.0
          %2370 = vmatprep.subr.mxu0 0.0
          %2371 = vmatpush1.msra.mxu0 0.0
          %2372 = vmatprep.subr.mxu0 0.0
          %2373 = vmatpush1.msra.mxu0 0.0
          %2374 = vmatprep.subr.mxu0 0.0
          %2375 = vmatpush1.msra.mxu0 0.0
          %2376 = vmatprep.subr.mxu0 0.0
          %2377 = vmatpush1.msra.mxu0 0.0
          %2378 = vmatprep.subr.mxu0 0.0
          %2379 = vmatpush1.msra.mxu0 0.0
          %2380 = vmatprep.subr.mxu0 0.0
          %2381 = vmatpush1.msra.mxu0 0.0
          %2382 = vmatprep.subr.mxu0 0.0
          %2383 = vmatpush1.msra.mxu0 0.0
          %2384 = vmatprep.subr.mxu0 0.0
          %2385 = vmatpush1.msra.mxu0 0.0
          %2386 = vmatprep.subr.mxu0 0.0
          %2387 = vmatpush1.msra.mxu0 0.0
          %2388 = vmatprep.subr.mxu0 0.0
          %2389 = vmatpush1.msra.mxu0 0.0
          %2390 = vmatprep.subr.mxu0 0.0
          %2391 = vmatpush1.msra.mxu0 0.0
          %2392 = vmatprep.mubr.f32.mxu0 0.0
          %2393 = vmatmul.mubr.f32.gmra.mrb[0].mxu0 %v2255
          %v2394 = vpop.f32.mrb[0].mxu0
          %v2395 = vadd.f32 %v535, %v2394
          %v2396 = vpop.f32.mrb[0].mxu0
          %2397 = vdwg.mxu0
          %2398 = vmatprep.subr.mxu0 %v475
          %2399 = vmatpush1.msra.mxu0 %v474
          %2400 = vmatprep.subr.mxu0 %v478
          %2401 = vmatpush1.msra.mxu0 %v477
          %2402 = vmatprep.subr.mxu0 %v481
          %2403 = vmatpush1.msra.mxu0 %v480
          %2404 = vmatprep.subr.mxu0 %v484
          %2405 = vmatpush1.msra.mxu0 %v483
          %2406 = vmatprep.subr.mxu0 %v487
          %2407 = vmatpush1.msra.mxu0 %v486
          %2408 = vmatprep.subr.mxu0 %v490
          %2409 = vmatpush1.msra.mxu0 %v489
          %2410 = vmatprep.subr.mxu0 %v493
          %2411 = vmatpush1.msra.mxu0 %v492
          %2412 = vmatprep.subr.mxu0 %v496
          %2413 = vmatpush1.msra.mxu0 %v495
          %2414 = vmatprep.subr.mxu0 %v499
          %2415 = vmatpush1.msra.mxu0 %v498
          %2416 = vmatprep.subr.mxu0 %v502
          %2417 = vmatpush1.msra.mxu0 %v501
          %2418 = vmatprep.subr.mxu0 %v505
          %2419 = vmatpush1.msra.mxu0 %v504
          %2420 = vmatprep.subr.mxu0 %v508
          %2421 = vmatpush1.msra.mxu0 %v507
          %2422 = vmatprep.subr.mxu0 %v511
          %2423 = vmatpush1.msra.mxu0 %v510
          %2424 = vmatprep.subr.mxu0 %v514
          %2425 = vmatpush1.msra.mxu0 %v513
          %2426 = vmatprep.subr.mxu0 %v517
          %2427 = vmatpush1.msra.mxu0 %v516
          %2428 = vmatprep.subr.mxu0 %v520
          %2429 = vmatpush1.msra.mxu0 %v519
          %2430 = vmatprep.subr.mxu0 0.0
          %2431 = vmatpush1.msra.mxu0 0.0
          %2432 = vmatprep.subr.mxu0 0.0
          %2433 = vmatpush1.msra.mxu0 0.0
          %2434 = vmatprep.subr.mxu0 0.0
          %2435 = vmatpush1.msra.mxu0 0.0
          %2436 = vmatprep.subr.mxu0 0.0
          %2437 = vmatpush1.msra.mxu0 0.0
          %2438 = vmatprep.subr.mxu0 0.0
          %2439 = vmatpush1.msra.mxu0 0.0
          %2440 = vmatprep.subr.mxu0 0.0
          %2441 = vmatpush1.msra.mxu0 0.0
          %2442 = vmatprep.subr.mxu0 0.0
          %2443 = vmatpush1.msra.mxu0 0.0
          %2444 = vmatprep.subr.mxu0 0.0
          %2445 = vmatpush1.msra.mxu0 0.0
          %2446 = vmatprep.subr.mxu0 0.0
          %2447 = vmatpush1.msra.mxu0 0.0
          %2448 = vmatprep.subr.mxu0 0.0
          %2449 = vmatpush1.msra.mxu0 0.0
          %2450 = vmatprep.subr.mxu0 0.0
          %2451 = vmatpush1.msra.mxu0 0.0
          %2452 = vmatprep.subr.mxu0 0.0
          %2453 = vmatpush1.msra.mxu0 0.0
          %2454 = vmatprep.subr.mxu0 0.0
          %2455 = vmatpush1.msra.mxu0 0.0
          %2456 = vmatprep.subr.mxu0 0.0
          %2457 = vmatpush1.msra.mxu0 0.0
          %2458 = vmatprep.subr.mxu0 0.0
          %2459 = vmatpush1.msra.mxu0 0.0
          %2460 = vmatprep.subr.mxu0 0.0
          %2461 = vmatpush1.msra.mxu0 0.0
          %2462 = vmatprep.mubr.f32.mxu0 0.0
          %2463 = vmatmul.mubr.f32.gmra.mrb[0].mxu0 %v2221
          %v2464 = vpop.f32.mrb[0].mxu0
          %v2465 = vadd.f32 %v544, %v2464
          %v2466 = vpop.f32.mrb[0].mxu0
          %v2467 = vadd.f32 %v548, %v2466
          %2468 = vdwg.mxu0
          %2469 = vmatprep.subr.mxu0 0.0
          %2470 = vmatpush1.msra.mxu0 %v476
          %2471 = vmatprep.subr.mxu0 0.0
          %2472 = vmatpush1.msra.mxu0 %v479
          %2473 = vmatprep.subr.mxu0 0.0
          %2474 = vmatpush1.msra.mxu0 %v482
          %2475 = vmatprep.subr.mxu0 0.0
          %2476 = vmatpush1.msra.mxu0 %v485
          %2477 = vmatprep.subr.mxu0 0.0
          %2478 = vmatpush1.msra.mxu0 %v488
          %2479 = vmatprep.subr.mxu0 0.0
          %2480 = vmatpush1.msra.mxu0 %v491
          %2481 = vmatprep.subr.mxu0 0.0
          %2482 = vmatpush1.msra.mxu0 %v494
          %2483 = vmatprep.subr.mxu0 0.0
          %2484 = vmatpush1.msra.mxu0 %v497
          %2485 = vmatprep.subr.mxu0 0.0
          %2486 = vmatpush1.msra.mxu0 %v500
          %2487 = vmatprep.subr.mxu0 0.0
          %2488 = vmatpush1.msra.mxu0 %v503
          %2489 = vmatprep.subr.mxu0 0.0
          %2490 = vmatpush1.msra.mxu0 %v506
          %2491 = vmatprep.subr.mxu0 0.0
          %2492 = vmatpush1.msra.mxu0 %v509
          %2493 = vmatprep.subr.mxu0 0.0
          %2494 = vmatpush1.msra.mxu0 %v512
          %2495 = vmatprep.subr.mxu0 0.0
          %2496 = vmatpush1.msra.mxu0 %v515
          %2497 = vmatprep.subr.mxu0 0.0
          %2498 = vmatpush1.msra.mxu0 %v518
          %2499 = vmatprep.subr.mxu0 0.0
          %2500 = vmatpush1.msra.mxu0 %v521
          %2501 = vmatprep.subr.mxu0 0.0
          %2502 = vmatpush1.msra.mxu0 0.0
          %2503 = vmatprep.subr.mxu0 0.0
          %2504 = vmatpush1.msra.mxu0 0.0
          %2505 = vmatprep.subr.mxu0 0.0
          %2506 = vmatpush1.msra.mxu0 0.0
          %2507 = vmatprep.subr.mxu0 0.0
          %2508 = vmatpush1.msra.mxu0 0.0
          %2509 = vmatprep.subr.mxu0 0.0
          %2510 = vmatpush1.msra.mxu0 0.0
          %2511 = vmatprep.subr.mxu0 0.0
          %2512 = vmatpush1.msra.mxu0 0.0
          %2513 = vmatprep.subr.mxu0 0.0
          %2514 = vmatpush1.msra.mxu0 0.0
          %2515 = vmatprep.subr.mxu0 0.0
          %2516 = vmatpush1.msra.mxu0 0.0
          %2517 = vmatprep.subr.mxu0 0.0
          %2518 = vmatpush1.msra.mxu0 0.0
          %2519 = vmatprep.subr.mxu0 0.0
          %2520 = vmatpush1.msra.mxu0 0.0
          %2521 = vmatprep.subr.mxu0 0.0
          %2522 = vmatpush1.msra.mxu0 0.0
          %2523 = vmatprep.subr.mxu0 0.0
          %2524 = vmatpush1.msra.mxu0 0.0
          %2525 = vmatprep.subr.mxu0 0.0
          %2526 = vmatpush1.msra.mxu0 0.0
          %2527 = vmatprep.subr.mxu0 0.0
          %2528 = vmatpush1.msra.mxu0 0.0
          %2529 = vmatprep.subr.mxu0 0.0
          %2530 = vmatpush1.msra.mxu0 0.0
          %2531 = vmatprep.subr.mxu0 0.0
          %2532 = vmatpush1.msra.mxu0 0.0
          %2533 = vmatprep.mubr.f32.mxu0 0.0
          %2534 = vmatmul.mubr.f32.gmra.mrb[0].mxu0 %v2221
          %v2535 = vpop.f32.mrb[0].mxu0
          %v2536 = vadd.f32 %v552, %v2535
          %v2537 = vpop.f32.mrb[0].mxu0
          %2538 = vdwg.mxu0
          %v2539 = vadd.f32 %v2324, %v2465
          %v2540 = vxor.u32 %v2539, 2147483648
          %v2541 = vmul.f32 %v2540, 1.442695
          %v2542 = vpow.pop %v2541
          %v2543 = vadd.f32 %v2542, 1.0
          %v2544 = vrcp.pop %v2543
          %v2545 = vmul.f32 1.0, %v2544
          %v2546 = vadd.f32 %v2326, %v2467
          %v2547 = vxor.u32 %v2546, 2147483648
          %v2548 = vmul.f32 %v2547, 1.442695
          %v2549 = vpow.pop %v2548
          %v2550 = vadd.f32 %v2549, 1.0
          %v2551 = vrcp.pop %v2550
          %v2552 = vmul.f32 1.0, %v2551
          %v2553 = vmul.f32 %v2545, %v2536
          %v2554 = vadd.f32 %v2395, %v2553
          %v2555 = vtanh.pop %v2554
          %v2556 = vsub.f32 1.0, %v2552
          %v2557 = vmul.f32 %v2556, %v2555
          %v2558 = vmul.f32 %v2552, %v2221
          %v2559 = vadd.f32 %v2557, %v2558
          %v2562 = vunpack.c.l.s4 1966171168
          %v2563 = vunpack.c.0.s8 %v2562
          %v2564 = vlaneseq
          %v2565 = vshrl.u32 %v2564, 7
          %v2566 = vsub.s32 %v2563, %v2565
          %v2567 = vrot.slane %v2559, %v2566
          %v2568 = vcombine.high %v2567, %v2567
          %v2570 = vunpack.c.l.s4 1966171168
          %v2571 = vunpack.c.0.s8 %v2570
          %v2572 = vlaneseq
          %v2573 = vshrl.u32 %v2572, 7
          %v2574 = vsub.s32 %v2571, %v2573
          %v2575 = vrot.slane %v2567, %v2574
          %v2577 = vunpack.c.l.s4 1966171168
          %v2578 = vunpack.c.0.s8 %v2577
          %v2579 = vlaneseq
          %v2580 = vshrl.u32 %v2579, 7
          %v2581 = vsub.s32 %v2578, %v2580
          %v2582 = vrot.slane %v2568, %v2581
          %2585 = vst.msk [vmem:[%s458 + $0x5] sm:$0x1] %vm894, %v2575
          %2586 = vst.msk [vmem:[%s458 + $0xd] sm:$0x1] %vm894, %v2582
          %v2587 = vld [vmem:[%s0 + $0x6] sm:$0x1]
          %v2588 = vld [vmem:[%s0 + $0xe] sm:$0x1]
          %v2591 = vrot.slane %v2588, 7
          %v2592 = vsel %vm561, %v2591, %v2587
          %v2593 = vsel %vm563, %v2592, 0
          %2595 = vmatprep.subr.mxu0 %v469
          %2596 = vmatpush1.msra.mxu0 %v468
          %2597 = vmatprep.subr.mxu0 %v472
          %2598 = vmatpush1.msra.mxu0 %v471
          %2599 = vmatprep.subr.mxu0 0.0
          %2600 = vmatpush1.msra.mxu0 0.0
          %2601 = vmatprep.subr.mxu0 0.0
          %2602 = vmatpush1.msra.mxu0 0.0
          %2603 = vmatprep.subr.mxu0 0.0
          %2604 = vmatpush1.msra.mxu0 0.0
          %2605 = vmatprep.subr.mxu0 0.0
          %2606 = vmatpush1.msra.mxu0 0.0
          %2607 = vmatprep.subr.mxu0 0.0
          %2608 = vmatpush1.msra.mxu0 0.0
          %2609 = vmatprep.subr.mxu0 0.0
          %2610 = vmatpush1.msra.mxu0 0.0
          %2611 = vmatprep.subr.mxu0 0.0
          %2612 = vmatpush1.msra.mxu0 0.0
          %2613 = vmatprep.subr.mxu0 0.0
          %2614 = vmatpush1.msra.mxu0 0.0
          %2615 = vmatprep.subr.mxu0 0.0
          %2616 = vmatpush1.msra.mxu0 0.0
          %2617 = vmatprep.subr.mxu0 0.0
          %2618 = vmatpush1.msra.mxu0 0.0
          %2619 = vmatprep.subr.mxu0 0.0
          %2620 = vmatpush1.msra.mxu0 0.0
          %2621 = vmatprep.subr.mxu0 0.0
          %2622 = vmatpush1.msra.mxu0 0.0
          %2623 = vmatprep.subr.mxu0 0.0
          %2624 = vmatpush1.msra.mxu0 0.0
          %2625 = vmatprep.subr.mxu0 0.0
          %2626 = vmatpush1.msra.mxu0 0.0
          %2627 = vmatprep.subr.mxu0 0.0
          %2628 = vmatpush1.msra.mxu0 0.0
          %2629 = vmatprep.subr.mxu0 0.0
          %2630 = vmatpush1.msra.mxu0 0.0
          %2631 = vmatprep.subr.mxu0 0.0
          %2632 = vmatpush1.msra.mxu0 0.0
          %2633 = vmatprep.subr.mxu0 0.0
          %2634 = vmatpush1.msra.mxu0 0.0
          %2635 = vmatprep.subr.mxu0 0.0
          %2636 = vmatpush1.msra.mxu0 0.0
          %2637 = vmatprep.subr.mxu0 0.0
          %2638 = vmatpush1.msra.mxu0 0.0
          %2639 = vmatprep.subr.mxu0 0.0
          %2640 = vmatpush1.msra.mxu0 0.0
          %2641 = vmatprep.subr.mxu0 0.0
          %2642 = vmatpush1.msra.mxu0 0.0
          %2643 = vmatprep.subr.mxu0 0.0
          %2644 = vmatpush1.msra.mxu0 0.0
          %2645 = vmatprep.subr.mxu0 0.0
          %2646 = vmatpush1.msra.mxu0 0.0
          %2647 = vmatprep.subr.mxu0 0.0
          %2648 = vmatpush1.msra.mxu0 0.0
          %2649 = vmatprep.subr.mxu0 0.0
          %2650 = vmatpush1.msra.mxu0 0.0
          %2651 = vmatprep.subr.mxu0 0.0
          %2652 = vmatpush1.msra.mxu0 0.0
          %2653 = vmatprep.subr.mxu0 0.0
          %2654 = vmatpush1.msra.mxu0 0.0
          %2655 = vmatprep.subr.mxu0 0.0
          %2656 = vmatpush1.msra.mxu0 0.0
          %2657 = vmatprep.subr.mxu0 0.0
          %2658 = vmatpush1.msra.mxu0 0.0
          %2659 = vmatprep.mubr.f32.mxu0 0.0
          %2660 = vmatmul.mubr.f32.gmra.mrb[0].mxu0 %v2593
          %v2661 = vpop.f32.mrb[0].mxu0
          %v2662 = vadd.f32 %v527, %v2661
          %v2663 = vpop.f32.mrb[0].mxu0
          %v2664 = vadd.f32 %v531, %v2663
          %2665 = vdwg.mxu0
          %2666 = vmatprep.subr.mxu0 0.0
          %2667 = vmatpush1.msra.mxu0 %v470
          %2668 = vmatprep.subr.mxu0 0.0
          %2669 = vmatpush1.msra.mxu0 %v473
          %2670 = vmatprep.subr.mxu0 0.0
          %2671 = vmatpush1.msra.mxu0 0.0
          %2672 = vmatprep.subr.mxu0 0.0
          %2673 = vmatpush1.msra.mxu0 0.0
          %2674 = vmatprep.subr.mxu0 0.0
          %2675 = vmatpush1.msra.mxu0 0.0
          %2676 = vmatprep.subr.mxu0 0.0
          %2677 = vmatpush1.msra.mxu0 0.0
          %2678 = vmatprep.subr.mxu0 0.0
          %2679 = vmatpush1.msra.mxu0 0.0
          %2680 = vmatprep.subr.mxu0 0.0
          %2681 = vmatpush1.msra.mxu0 0.0
          %2682 = vmatprep.subr.mxu0 0.0
          %2683 = vmatpush1.msra.mxu0 0.0
          %2684 = vmatprep.subr.mxu0 0.0
          %2685 = vmatpush1.msra.mxu0 0.0
          %2686 = vmatprep.subr.mxu0 0.0
          %2687 = vmatpush1.msra.mxu0 0.0
          %2688 = vmatprep.subr.mxu0 0.0
          %2689 = vmatpush1.msra.mxu0 0.0
          %2690 = vmatprep.subr.mxu0 0.0
          %2691 = vmatpush1.msra.mxu0 0.0
          %2692 = vmatprep.subr.mxu0 0.0
          %2693 = vmatpush1.msra.mxu0 0.0
          %2694 = vmatprep.subr.mxu0 0.0
          %2695 = vmatpush1.msra.mxu0 0.0
          %2696 = vmatprep.subr.mxu0 0.0
          %2697 = vmatpush1.msra.mxu0 0.0
          %2698 = vmatprep.subr.mxu0 0.0
          %2699 = vmatpush1.msra.mxu0 0.0
          %2700 = vmatprep.subr.mxu0 0.0
          %2701 = vmatpush1.msra.mxu0 0.0
          %2702 = vmatprep.subr.mxu0 0.0
          %2703 = vmatpush1.msra.mxu0 0.0
          %2704 = vmatprep.subr.mxu0 0.0
          %2705 = vmatpush1.msra.mxu0 0.0
          %2706 = vmatprep.subr.mxu0 0.0
          %2707 = vmatpush1.msra.mxu0 0.0
          %2708 = vmatprep.subr.mxu0 0.0
          %2709 = vmatpush1.msra.mxu0 0.0
          %2710 = vmatprep.subr.mxu0 0.0
          %2711 = vmatpush1.msra.mxu0 0.0
          %2712 = vmatprep.subr.mxu0 0.0
          %2713 = vmatpush1.msra.mxu0 0.0
          %2714 = vmatprep.subr.mxu0 0.0
          %2715 = vmatpush1.msra.mxu0 0.0
          %2716 = vmatprep.subr.mxu0 0.0
          %2717 = vmatpush1.msra.mxu0 0.0
          %2718 = vmatprep.subr.mxu0 0.0
          %2719 = vmatpush1.msra.mxu0 0.0
          %2720 = vmatprep.subr.mxu0 0.0
          %2721 = vmatpush1.msra.mxu0 0.0
          %2722 = vmatprep.subr.mxu0 0.0
          %2723 = vmatpush1.msra.mxu0 0.0
          %2724 = vmatprep.subr.mxu0 0.0
          %2725 = vmatpush1.msra.mxu0 0.0
          %2726 = vmatprep.subr.mxu0 0.0
          %2727 = vmatpush1.msra.mxu0 0.0
          %2728 = vmatprep.subr.mxu0 0.0
          %2729 = vmatpush1.msra.mxu0 0.0
          %2730 = vmatprep.mubr.f32.mxu0 0.0
          %2731 = vmatmul.mubr.f32.gmra.mrb[0].mxu0 %v2593
          %v2732 = vpop.f32.mrb[0].mxu0
          %v2733 = vadd.f32 %v535, %v2732
          %v2734 = vpop.f32.mrb[0].mxu0
          %2735 = vdwg.mxu0
          %2736 = vmatprep.subr.mxu0 %v475
          %2737 = vmatpush1.msra.mxu0 %v474
          %2738 = vmatprep.subr.mxu0 %v478
          %2739 = vmatpush1.msra.mxu0 %v477
          %2740 = vmatprep.subr.mxu0 %v481
          %2741 = vmatpush1.msra.mxu0 %v480
          %2742 = vmatprep.subr.mxu0 %v484
          %2743 = vmatpush1.msra.mxu0 %v483
          %2744 = vmatprep.subr.mxu0 %v487
          %2745 = vmatpush1.msra.mxu0 %v486
          %2746 = vmatprep.subr.mxu0 %v490
          %2747 = vmatpush1.msra.mxu0 %v489
          %2748 = vmatprep.subr.mxu0 %v493
          %2749 = vmatpush1.msra.mxu0 %v492
          %2750 = vmatprep.subr.mxu0 %v496
          %2751 = vmatpush1.msra.mxu0 %v495
          %2752 = vmatprep.subr.mxu0 %v499
          %2753 = vmatpush1.msra.mxu0 %v498
          %2754 = vmatprep.subr.mxu0 %v502
          %2755 = vmatpush1.msra.mxu0 %v501
          %2756 = vmatprep.subr.mxu0 %v505
          %2757 = vmatpush1.msra.mxu0 %v504
          %2758 = vmatprep.subr.mxu0 %v508
          %2759 = vmatpush1.msra.mxu0 %v507
          %2760 = vmatprep.subr.mxu0 %v511
          %2761 = vmatpush1.msra.mxu0 %v510
          %2762 = vmatprep.subr.mxu0 %v514
          %2763 = vmatpush1.msra.mxu0 %v513
          %2764 = vmatprep.subr.mxu0 %v517
          %2765 = vmatpush1.msra.mxu0 %v516
          %2766 = vmatprep.subr.mxu0 %v520
          %2767 = vmatpush1.msra.mxu0 %v519
          %2768 = vmatprep.subr.mxu0 0.0
          %2769 = vmatpush1.msra.mxu0 0.0
          %2770 = vmatprep.subr.mxu0 0.0
          %2771 = vmatpush1.msra.mxu0 0.0
          %2772 = vmatprep.subr.mxu0 0.0
          %2773 = vmatpush1.msra.mxu0 0.0
          %2774 = vmatprep.subr.mxu0 0.0
          %2775 = vmatpush1.msra.mxu0 0.0
          %2776 = vmatprep.subr.mxu0 0.0
          %2777 = vmatpush1.msra.mxu0 0.0
          %2778 = vmatprep.subr.mxu0 0.0
          %2779 = vmatpush1.msra.mxu0 0.0
          %2780 = vmatprep.subr.mxu0 0.0
          %2781 = vmatpush1.msra.mxu0 0.0
          %2782 = vmatprep.subr.mxu0 0.0
          %2783 = vmatpush1.msra.mxu0 0.0
          %2784 = vmatprep.subr.mxu0 0.0
          %2785 = vmatpush1.msra.mxu0 0.0
          %2786 = vmatprep.subr.mxu0 0.0
          %2787 = vmatpush1.msra.mxu0 0.0
          %2788 = vmatprep.subr.mxu0 0.0
          %2789 = vmatpush1.msra.mxu0 0.0
          %2790 = vmatprep.subr.mxu0 0.0
          %2791 = vmatpush1.msra.mxu0 0.0
          %2792 = vmatprep.subr.mxu0 0.0
          %2793 = vmatpush1.msra.mxu0 0.0
          %2794 = vmatprep.subr.mxu0 0.0
          %2795 = vmatpush1.msra.mxu0 0.0
          %2796 = vmatprep.subr.mxu0 0.0
          %2797 = vmatpush1.msra.mxu0 0.0
          %2798 = vmatprep.subr.mxu0 0.0
          %2799 = vmatpush1.msra.mxu0 0.0
          %2800 = vmatprep.mubr.f32.mxu0 0.0
          %2801 = vmatmul.mubr.f32.gmra.mrb[0].mxu0 %v2559
          %v2802 = vpop.f32.mrb[0].mxu0
          %v2803 = vadd.f32 %v544, %v2802
          %v2804 = vpop.f32.mrb[0].mxu0
          %v2805 = vadd.f32 %v548, %v2804
          %2806 = vdwg.mxu0
          %2807 = vmatprep.subr.mxu0 0.0
          %2808 = vmatpush1.msra.mxu0 %v476
          %2809 = vmatprep.subr.mxu0 0.0
          %2810 = vmatpush1.msra.mxu0 %v479
          %2811 = vmatprep.subr.mxu0 0.0
          %2812 = vmatpush1.msra.mxu0 %v482
          %2813 = vmatprep.subr.mxu0 0.0
          %2814 = vmatpush1.msra.mxu0 %v485
          %2815 = vmatprep.subr.mxu0 0.0
          %2816 = vmatpush1.msra.mxu0 %v488
          %2817 = vmatprep.subr.mxu0 0.0
          %2818 = vmatpush1.msra.mxu0 %v491
          %2819 = vmatprep.subr.mxu0 0.0
          %2820 = vmatpush1.msra.mxu0 %v494
          %2821 = vmatprep.subr.mxu0 0.0
          %2822 = vmatpush1.msra.mxu0 %v497
          %2823 = vmatprep.subr.mxu0 0.0
          %2824 = vmatpush1.msra.mxu0 %v500
          %2825 = vmatprep.subr.mxu0 0.0
          %2826 = vmatpush1.msra.mxu0 %v503
          %2827 = vmatprep.subr.mxu0 0.0
          %2828 = vmatpush1.msra.mxu0 %v506
          %2829 = vmatprep.subr.mxu0 0.0
          %2830 = vmatpush1.msra.mxu0 %v509
          %2831 = vmatprep.subr.mxu0 0.0
          %2832 = vmatpush1.msra.mxu0 %v512
          %2833 = vmatprep.subr.mxu0 0.0
          %2834 = vmatpush1.msra.mxu0 %v515
          %2835 = vmatprep.subr.mxu0 0.0
          %2836 = vmatpush1.msra.mxu0 %v518
          %2837 = vmatprep.subr.mxu0 0.0
          %2838 = vmatpush1.msra.mxu0 %v521
          %2839 = vmatprep.subr.mxu0 0.0
          %2840 = vmatpush1.msra.mxu0 0.0
          %2841 = vmatprep.subr.mxu0 0.0
          %2842 = vmatpush1.msra.mxu0 0.0
          %2843 = vmatprep.subr.mxu0 0.0
          %2844 = vmatpush1.msra.mxu0 0.0
          %2845 = vmatprep.subr.mxu0 0.0
          %2846 = vmatpush1.msra.mxu0 0.0
          %2847 = vmatprep.subr.mxu0 0.0
          %2848 = vmatpush1.msra.mxu0 0.0
          %2849 = vmatprep.subr.mxu0 0.0
          %2850 = vmatpush1.msra.mxu0 0.0
          %2851 = vmatprep.subr.mxu0 0.0
          %2852 = vmatpush1.msra.mxu0 0.0
          %2853 = vmatprep.subr.mxu0 0.0
          %2854 = vmatpush1.msra.mxu0 0.0
          %2855 = vmatprep.subr.mxu0 0.0
          %2856 = vmatpush1.msra.mxu0 0.0
          %2857 = vmatprep.subr.mxu0 0.0
          %2858 = vmatpush1.msra.mxu0 0.0
          %2859 = vmatprep.subr.mxu0 0.0
          %2860 = vmatpush1.msra.mxu0 0.0
          %2861 = vmatprep.subr.mxu0 0.0
          %2862 = vmatpush1.msra.mxu0 0.0
          %2863 = vmatprep.subr.mxu0 0.0
          %2864 = vmatpush1.msra.mxu0 0.0
          %2865 = vmatprep.subr.mxu0 0.0
          %2866 = vmatpush1.msra.mxu0 0.0
          %2867 = vmatprep.subr.mxu0 0.0
          %2868 = vmatpush1.msra.mxu0 0.0
          %2869 = vmatprep.subr.mxu0 0.0
          %2870 = vmatpush1.msra.mxu0 0.0
          %2871 = vmatprep.mubr.f32.mxu0 0.0
          %2872 = vmatmul.mubr.f32.gmra.mrb[0].mxu0 %v2559
          %v2873 = vpop.f32.mrb[0].mxu0
          %v2874 = vadd.f32 %v552, %v2873
          %v2875 = vpop.f32.mrb[0].mxu0
          %2876 = vdwg.mxu0
          %v2877 = vadd.f32 %v2662, %v2803
          %v2878 = vxor.u32 %v2877, 2147483648
          %v2879 = vmul.f32 %v2878, 1.442695
          %v2880 = vpow.pop %v2879
          %v2881 = vadd.f32 %v2880, 1.0
          %v2882 = vrcp.pop %v2881
          %v2883 = vmul.f32 1.0, %v2882
          %v2884 = vadd.f32 %v2664, %v2805
          %v2885 = vxor.u32 %v2884, 2147483648
          %v2886 = vmul.f32 %v2885, 1.442695
          %v2887 = vpow.pop %v2886
          %v2888 = vadd.f32 %v2887, 1.0
          %v2889 = vrcp.pop %v2888
          %v2890 = vmul.f32 1.0, %v2889
          %v2891 = vmul.f32 %v2883, %v2874
          %v2892 = vadd.f32 %v2733, %v2891
          %v2893 = vtanh.pop %v2892
          %v2894 = vsub.f32 1.0, %v2890
          %v2895 = vmul.f32 %v2894, %v2893
          %v2896 = vmul.f32 %v2890, %v2559
          %v2897 = vadd.f32 %v2895, %v2896
          %v2900 = vunpack.c.l.s4 1966171168
          %v2901 = vunpack.c.0.s8 %v2900
          %v2902 = vlaneseq
          %v2903 = vshrl.u32 %v2902, 7
          %v2904 = vsub.s32 %v2901, %v2903
          %v2905 = vrot.slane %v2897, %v2904
          %v2906 = vcombine.high %v2905, %v2905
          %v2908 = vunpack.c.l.s4 1966171168
          %v2909 = vunpack.c.0.s8 %v2908
          %v2910 = vlaneseq
          %v2911 = vshrl.u32 %v2910, 7
          %v2912 = vsub.s32 %v2909, %v2911
          %v2913 = vrot.slane %v2905, %v2912
          %v2915 = vunpack.c.l.s4 1966171168
          %v2916 = vunpack.c.0.s8 %v2915
          %v2917 = vlaneseq
          %v2918 = vshrl.u32 %v2917, 7
          %v2919 = vsub.s32 %v2916, %v2918
          %v2920 = vrot.slane %v2906, %v2919
          %2923 = vst.msk [vmem:[%s458 + $0x6] sm:$0x1] %vm894, %v2913
          %2924 = vst.msk [vmem:[%s458 + $0xe] sm:$0x1] %vm894, %v2920
          %v2925 = vld [vmem:[%s0 + $0x7] sm:$0x1]
          %v2926 = vld [vmem:[%s0 + $0xf] sm:$0x1]
          %v2929 = vrot.slane %v2926, 7
          %v2930 = vsel %vm561, %v2929, %v2925
          %v2931 = vsel %vm563, %v2930, 0
          %2933 = vmatprep.subr.mxu0 %v469
          %2934 = vmatpush1.msra.mxu0 %v468
          %2935 = vmatprep.subr.mxu0 %v472
          %2936 = vmatpush1.msra.mxu0 %v471
          %2937 = vmatprep.subr.mxu0 0.0
          %2938 = vmatpush1.msra.mxu0 0.0
          %2939 = vmatprep.subr.mxu0 0.0
          %2940 = vmatpush1.msra.mxu0 0.0
          %2941 = vmatprep.subr.mxu0 0.0
          %2942 = vmatpush1.msra.mxu0 0.0
          %2943 = vmatprep.subr.mxu0 0.0
          %2944 = vmatpush1.msra.mxu0 0.0
          %2945 = vmatprep.subr.mxu0 0.0
          %2946 = vmatpush1.msra.mxu0 0.0
          %2947 = vmatprep.subr.mxu0 0.0
          %2948 = vmatpush1.msra.mxu0 0.0
          %2949 = vmatprep.subr.mxu0 0.0
          %2950 = vmatpush1.msra.mxu0 0.0
          %2951 = vmatprep.subr.mxu0 0.0
          %2952 = vmatpush1.msra.mxu0 0.0
          %2953 = vmatprep.subr.mxu0 0.0
          %2954 = vmatpush1.msra.mxu0 0.0
          %2955 = vmatprep.subr.mxu0 0.0
          %2956 = vmatpush1.msra.mxu0 0.0
          %2957 = vmatprep.subr.mxu0 0.0
          %2958 = vmatpush1.msra.mxu0 0.0
          %2959 = vmatprep.subr.mxu0 0.0
          %2960 = vmatpush1.msra.mxu0 0.0
          %2961 = vmatprep.subr.mxu0 0.0
          %2962 = vmatpush1.msra.mxu0 0.0
          %2963 = vmatprep.subr.mxu0 0.0
          %2964 = vmatpush1.msra.mxu0 0.0
          %2965 = vmatprep.subr.mxu0 0.0
          %2966 = vmatpush1.msra.mxu0 0.0
          %2967 = vmatprep.subr.mxu0 0.0
          %2968 = vmatpush1.msra.mxu0 0.0
          %2969 = vmatprep.subr.mxu0 0.0
          %2970 = vmatpush1.msra.mxu0 0.0
          %2971 = vmatprep.subr.mxu0 0.0
          %2972 = vmatpush1.msra.mxu0 0.0
          %2973 = vmatprep.subr.mxu0 0.0
          %2974 = vmatpush1.msra.mxu0 0.0
          %2975 = vmatprep.subr.mxu0 0.0
          %2976 = vmatpush1.msra.mxu0 0.0
          %2977 = vmatprep.subr.mxu0 0.0
          %2978 = vmatpush1.msra.mxu0 0.0
          %2979 = vmatprep.subr.mxu0 0.0
          %2980 = vmatpush1.msra.mxu0 0.0
          %2981 = vmatprep.subr.mxu0 0.0
          %2982 = vmatpush1.msra.mxu0 0.0
          %2983 = vmatprep.subr.mxu0 0.0
          %2984 = vmatpush1.msra.mxu0 0.0
          %2985 = vmatprep.subr.mxu0 0.0
          %2986 = vmatpush1.msra.mxu0 0.0
          %2987 = vmatprep.subr.mxu0 0.0
          %2988 = vmatpush1.msra.mxu0 0.0
          %2989 = vmatprep.subr.mxu0 0.0
          %2990 = vmatpush1.msra.mxu0 0.0
          %2991 = vmatprep.subr.mxu0 0.0
          %2992 = vmatpush1.msra.mxu0 0.0
          %2993 = vmatprep.subr.mxu0 0.0
          %2994 = vmatpush1.msra.mxu0 0.0
          %2995 = vmatprep.subr.mxu0 0.0
          %2996 = vmatpush1.msra.mxu0 0.0
          %2997 = vmatprep.mubr.f32.mxu0 0.0
          %2998 = vmatmul.mubr.f32.gmra.mrb[0].mxu0 %v2931
          %v2999 = vpop.f32.mrb[0].mxu0
          %v3000 = vadd.f32 %v527, %v2999
          %v3001 = vpop.f32.mrb[0].mxu0
          %v3002 = vadd.f32 %v531, %v3001
          %3003 = vdwg.mxu0
          %3004 = vmatprep.subr.mxu0 0.0
          %3005 = vmatpush1.msra.mxu0 %v470
          %3006 = vmatprep.subr.mxu0 0.0
          %3007 = vmatpush1.msra.mxu0 %v473
          %3008 = vmatprep.subr.mxu0 0.0
          %3009 = vmatpush1.msra.mxu0 0.0
          %3010 = vmatprep.subr.mxu0 0.0
          %3011 = vmatpush1.msra.mxu0 0.0
          %3012 = vmatprep.subr.mxu0 0.0
          %3013 = vmatpush1.msra.mxu0 0.0
          %3014 = vmatprep.subr.mxu0 0.0
          %3015 = vmatpush1.msra.mxu0 0.0
          %3016 = vmatprep.subr.mxu0 0.0
          %3017 = vmatpush1.msra.mxu0 0.0
          %3018 = vmatprep.subr.mxu0 0.0
          %3019 = vmatpush1.msra.mxu0 0.0
          %3020 = vmatprep.subr.mxu0 0.0
          %3021 = vmatpush1.msra.mxu0 0.0
          %3022 = vmatprep.subr.mxu0 0.0
          %3023 = vmatpush1.msra.mxu0 0.0
          %3024 = vmatprep.subr.mxu0 0.0
          %3025 = vmatpush1.msra.mxu0 0.0
          %3026 = vmatprep.subr.mxu0 0.0
          %3027 = vmatpush1.msra.mxu0 0.0
          %3028 = vmatprep.subr.mxu0 0.0
          %3029 = vmatpush1.msra.mxu0 0.0
          %3030 = vmatprep.subr.mxu0 0.0
          %3031 = vmatpush1.msra.mxu0 0.0
          %3032 = vmatprep.subr.mxu0 0.0
          %3033 = vmatpush1.msra.mxu0 0.0
          %3034 = vmatprep.subr.mxu0 0.0
          %3035 = vmatpush1.msra.mxu0 0.0
          %3036 = vmatprep.subr.mxu0 0.0
          %3037 = vmatpush1.msra.mxu0 0.0
          %3038 = vmatprep.subr.mxu0 0.0
          %3039 = vmatpush1.msra.mxu0 0.0
          %3040 = vmatprep.subr.mxu0 0.0
          %3041 = vmatpush1.msra.mxu0 0.0
          %3042 = vmatprep.subr.mxu0 0.0
          %3043 = vmatpush1.msra.mxu0 0.0
          %3044 = vmatprep.subr.mxu0 0.0
          %3045 = vmatpush1.msra.mxu0 0.0
          %3046 = vmatprep.subr.mxu0 0.0
          %3047 = vmatpush1.msra.mxu0 0.0
          %3048 = vmatprep.subr.mxu0 0.0
          %3049 = vmatpush1.msra.mxu0 0.0
          %3050 = vmatprep.subr.mxu0 0.0
          %3051 = vmatpush1.msra.mxu0 0.0
          %3052 = vmatprep.subr.mxu0 0.0
          %3053 = vmatpush1.msra.mxu0 0.0
          %3054 = vmatprep.subr.mxu0 0.0
          %3055 = vmatpush1.msra.mxu0 0.0
          %3056 = vmatprep.subr.mxu0 0.0
          %3057 = vmatpush1.msra.mxu0 0.0
          %3058 = vmatprep.subr.mxu0 0.0
          %3059 = vmatpush1.msra.mxu0 0.0
          %3060 = vmatprep.subr.mxu0 0.0
          %3061 = vmatpush1.msra.mxu0 0.0
          %3062 = vmatprep.subr.mxu0 0.0
          %3063 = vmatpush1.msra.mxu0 0.0
          %3064 = vmatprep.subr.mxu0 0.0
          %3065 = vmatpush1.msra.mxu0 0.0
          %3066 = vmatprep.subr.mxu0 0.0
          %3067 = vmatpush1.msra.mxu0 0.0
          %3068 = vmatprep.mubr.f32.mxu0 0.0
          %3069 = vmatmul.mubr.f32.gmra.mrb[0].mxu0 %v2931
          %v3070 = vpop.f32.mrb[0].mxu0
          %v3071 = vadd.f32 %v535, %v3070
          %v3072 = vpop.f32.mrb[0].mxu0
          %3073 = vdwg.mxu0
          %3074 = vmatprep.subr.mxu0 %v475
          %3075 = vmatpush1.msra.mxu0 %v474
          %3076 = vmatprep.subr.mxu0 %v478
          %3077 = vmatpush1.msra.mxu0 %v477
          %3078 = vmatprep.subr.mxu0 %v481
          %3079 = vmatpush1.msra.mxu0 %v480
          %3080 = vmatprep.subr.mxu0 %v484
          %3081 = vmatpush1.msra.mxu0 %v483
          %3082 = vmatprep.subr.mxu0 %v487
          %3083 = vmatpush1.msra.mxu0 %v486
          %3084 = vmatprep.subr.mxu0 %v490
          %3085 = vmatpush1.msra.mxu0 %v489
          %3086 = vmatprep.subr.mxu0 %v493
          %3087 = vmatpush1.msra.mxu0 %v492
          %3088 = vmatprep.subr.mxu0 %v496
          %3089 = vmatpush1.msra.mxu0 %v495
          %3090 = vmatprep.subr.mxu0 %v499
          %3091 = vmatpush1.msra.mxu0 %v498
          %3092 = vmatprep.subr.mxu0 %v502
          %3093 = vmatpush1.msra.mxu0 %v501
          %3094 = vmatprep.subr.mxu0 %v505
          %3095 = vmatpush1.msra.mxu0 %v504
          %3096 = vmatprep.subr.mxu0 %v508
          %3097 = vmatpush1.msra.mxu0 %v507
          %3098 = vmatprep.subr.mxu0 %v511
          %3099 = vmatpush1.msra.mxu0 %v510
          %3100 = vmatprep.subr.mxu0 %v514
          %3101 = vmatpush1.msra.mxu0 %v513
          %3102 = vmatprep.subr.mxu0 %v517
          %3103 = vmatpush1.msra.mxu0 %v516
          %3104 = vmatprep.subr.mxu0 %v520
          %3105 = vmatpush1.msra.mxu0 %v519
          %3106 = vmatprep.subr.mxu0 0.0
          %3107 = vmatpush1.msra.mxu0 0.0
          %3108 = vmatprep.subr.mxu0 0.0
          %3109 = vmatpush1.msra.mxu0 0.0
          %3110 = vmatprep.subr.mxu0 0.0
          %3111 = vmatpush1.msra.mxu0 0.0
          %3112 = vmatprep.subr.mxu0 0.0
          %3113 = vmatpush1.msra.mxu0 0.0
          %3114 = vmatprep.subr.mxu0 0.0
          %3115 = vmatpush1.msra.mxu0 0.0
          %3116 = vmatprep.subr.mxu0 0.0
          %3117 = vmatpush1.msra.mxu0 0.0
          %3118 = vmatprep.subr.mxu0 0.0
          %3119 = vmatpush1.msra.mxu0 0.0
          %3120 = vmatprep.subr.mxu0 0.0
          %3121 = vmatpush1.msra.mxu0 0.0
          %3122 = vmatprep.subr.mxu0 0.0
          %3123 = vmatpush1.msra.mxu0 0.0
          %3124 = vmatprep.subr.mxu0 0.0
          %3125 = vmatpush1.msra.mxu0 0.0
          %3126 = vmatprep.subr.mxu0 0.0
          %3127 = vmatpush1.msra.mxu0 0.0
          %3128 = vmatprep.subr.mxu0 0.0
          %3129 = vmatpush1.msra.mxu0 0.0
          %3130 = vmatprep.subr.mxu0 0.0
          %3131 = vmatpush1.msra.mxu0 0.0
          %3132 = vmatprep.subr.mxu0 0.0
          %3133 = vmatpush1.msra.mxu0 0.0
          %3134 = vmatprep.subr.mxu0 0.0
          %3135 = vmatpush1.msra.mxu0 0.0
          %3136 = vmatprep.subr.mxu0 0.0
          %3137 = vmatpush1.msra.mxu0 0.0
          %3138 = vmatprep.mubr.f32.mxu0 0.0
          %3139 = vmatmul.mubr.f32.gmra.mrb[0].mxu0 %v2897
          %v3140 = vpop.f32.mrb[0].mxu0
          %v3141 = vadd.f32 %v544, %v3140
          %v3142 = vpop.f32.mrb[0].mxu0
          %v3143 = vadd.f32 %v548, %v3142
          %3144 = vdwg.mxu0
          %3145 = vmatprep.subr.mxu0 0.0
          %3146 = vmatpush1.msra.mxu0 %v476
          %3147 = vmatprep.subr.mxu0 0.0
          %3148 = vmatpush1.msra.mxu0 %v479
          %3149 = vmatprep.subr.mxu0 0.0
          %3150 = vmatpush1.msra.mxu0 %v482
          %3151 = vmatprep.subr.mxu0 0.0
          %3152 = vmatpush1.msra.mxu0 %v485
          %3153 = vmatprep.subr.mxu0 0.0
          %3154 = vmatpush1.msra.mxu0 %v488
          %3155 = vmatprep.subr.mxu0 0.0
          %3156 = vmatpush1.msra.mxu0 %v491
          %3157 = vmatprep.subr.mxu0 0.0
          %3158 = vmatpush1.msra.mxu0 %v494
          %3159 = vmatprep.subr.mxu0 0.0
          %3160 = vmatpush1.msra.mxu0 %v497
          %3161 = vmatprep.subr.mxu0 0.0
          %3162 = vmatpush1.msra.mxu0 %v500
          %3163 = vmatprep.subr.mxu0 0.0
          %3164 = vmatpush1.msra.mxu0 %v503
          %3165 = vmatprep.subr.mxu0 0.0
          %3166 = vmatpush1.msra.mxu0 %v506
          %3167 = vmatprep.subr.mxu0 0.0
          %3168 = vmatpush1.msra.mxu0 %v509
          %3169 = vmatprep.subr.mxu0 0.0
          %3170 = vmatpush1.msra.mxu0 %v512
          %3171 = vmatprep.subr.mxu0 0.0
          %3172 = vmatpush1.msra.mxu0 %v515
          %3173 = vmatprep.subr.mxu0 0.0
          %3174 = vmatpush1.msra.mxu0 %v518
          %3175 = vmatprep.subr.mxu0 0.0
          %3176 = vmatpush1.msra.mxu0 %v521
          %3177 = vmatprep.subr.mxu0 0.0
          %3178 = vmatpush1.msra.mxu0 0.0
          %3179 = vmatprep.subr.mxu0 0.0
          %3180 = vmatpush1.msra.mxu0 0.0
          %3181 = vmatprep.subr.mxu0 0.0
          %3182 = vmatpush1.msra.mxu0 0.0
          %3183 = vmatprep.subr.mxu0 0.0
          %3184 = vmatpush1.msra.mxu0 0.0
          %3185 = vmatprep.subr.mxu0 0.0
          %3186 = vmatpush1.msra.mxu0 0.0
          %3187 = vmatprep.subr.mxu0 0.0
          %3188 = vmatpush1.msra.mxu0 0.0
          %3189 = vmatprep.subr.mxu0 0.0
          %3190 = vmatpush1.msra.mxu0 0.0
          %3191 = vmatprep.subr.mxu0 0.0
          %3192 = vmatpush1.msra.mxu0 0.0
          %3193 = vmatprep.subr.mxu0 0.0
          %3194 = vmatpush1.msra.mxu0 0.0
          %3195 = vmatprep.subr.mxu0 0.0
          %3196 = vmatpush1.msra.mxu0 0.0
          %3197 = vmatprep.subr.mxu0 0.0
          %3198 = vmatpush1.msra.mxu0 0.0
          %3199 = vmatprep.subr.mxu0 0.0
          %3200 = vmatpush1.msra.mxu0 0.0
          %3201 = vmatprep.subr.mxu0 0.0
          %3202 = vmatpush1.msra.mxu0 0.0
          %3203 = vmatprep.subr.mxu0 0.0
          %3204 = vmatpush1.msra.mxu0 0.0
          %3205 = vmatprep.subr.mxu0 0.0
          %3206 = vmatpush1.msra.mxu0 0.0
          %3207 = vmatprep.subr.mxu0 0.0
          %3208 = vmatpush1.msra.mxu0 0.0
          %3209 = vmatprep.mubr.f32.mxu0 0.0
          %3210 = vmatmul.mubr.f32.gmra.mrb[0].mxu0 %v2897
          %v3211 = vpop.f32.mrb[0].mxu0
          %v3212 = vadd.f32 %v552, %v3211
          %v3213 = vpop.f32.mrb[0].mxu0
          %3214 = vdwg.mxu0
          %v3215 = vadd.f32 %v3000, %v3141
          %v3216 = vxor.u32 %v3215, 2147483648
          %v3217 = vmul.f32 %v3216, 1.442695
          %v3218 = vpow.pop %v3217
          %v3219 = vadd.f32 %v3218, 1.0
          %v3220 = vrcp.pop %v3219
          %v3221 = vmul.f32 1.0, %v3220
          %v3222 = vadd.f32 %v3002, %v3143
          %v3223 = vxor.u32 %v3222, 2147483648
          %v3224 = vmul.f32 %v3223, 1.442695
          %v3225 = vpow.pop %v3224
          %v3226 = vadd.f32 %v3225, 1.0
          %v3227 = vrcp.pop %v3226
          %v3228 = vmul.f32 1.0, %v3227
          %v3229 = vmul.f32 %v3221, %v3212
          %v3230 = vadd.f32 %v3071, %v3229
          %v3231 = vtanh.pop %v3230
          %v3232 = vsub.f32 1.0, %v3228
          %v3233 = vmul.f32 %v3232, %v3231
          %v3234 = vmul.f32 %v3228, %v2897
          %v3235 = vadd.f32 %v3233, %v3234
          %v3238 = vunpack.c.l.s4 1966171168
          %v3239 = vunpack.c.0.s8 %v3238
          %v3240 = vlaneseq
          %v3241 = vshrl.u32 %v3240, 7
          %v3242 = vsub.s32 %v3239, %v3241
          %v3243 = vrot.slane %v3235, %v3242
          %v3244 = vcombine.high %v3243, %v3243
          %v3246 = vunpack.c.l.s4 1966171168
          %v3247 = vunpack.c.0.s8 %v3246
          %v3248 = vlaneseq
          %v3249 = vshrl.u32 %v3248, 7
          %v3250 = vsub.s32 %v3247, %v3249
          %v3251 = vrot.slane %v3243, %v3250
          %v3253 = vunpack.c.l.s4 1966171168
          %v3254 = vunpack.c.0.s8 %v3253
          %v3255 = vlaneseq
          %v3256 = vshrl.u32 %v3255, 7
          %v3257 = vsub.s32 %v3254, %v3256
          %v3258 = vrot.slane %v3244, %v3257
          %3261 = vst.msk [vmem:[%s458 + $0x7] sm:$0x1] %vm894, %v3251
          %3262 = vst.msk [vmem:[%s458 + $0xf] sm:$0x1] %vm894, %v3258
        $region80: #{seq2seq_conditioned9_forward.1} parent=67 // pred_fallthru
          _
        %p3263 = scmp.eq.s32.totalorder %s27, 1
        // Predicated region
        $region81: #{seq2seq_conditioned9_forward.1} parent=67 // pred_check
          %p3264 = pneg %p3263
        $region82: #{seq2seq_conditioned9_forward.1} parent=67 // pred_check_branch
          %3266 = sbr.rel (%p3264) target = $region84
        $region83: #{seq2seq_conditioned9_forward.1} parent=67 // pred_region
          %v3267 = vld [vmem:[%s6] sm:$0xff]
          %v3268 = vld [vmem:[%s6 + $0x8] sm:$0xff]
          %v3269 = vld [vmem:[%s6 + $0x10] sm:$0xff]
          %v3270 = vld [vmem:[%s6 + $0x18] sm:$0xff]
          %v3271 = vld [vmem:[%s6 + $0x20] sm:$0xff]
          %v3272 = vld [vmem:[%s6 + $0x28] sm:$0xff]
          %v3273 = vld [vmem:[#allocation4] sm:$0xff]
          %v3274 = vld [vmem:[#allocation4 + $0x8] sm:$0xff]
          %v3275 = vld [vmem:[#allocation4 + $0x10] sm:$0xff]
          %v3276 = vld [vmem:[#allocation4 + $0x18] sm:$0xff]
          %v3277 = vld [vmem:[#allocation4 + $0x20] sm:$0xff]
          %v3278 = vld [vmem:[#allocation4 + $0x28] sm:$0xff]
          %v3279 = vld [vmem:[#allocation4 + $0x30] sm:$0xff]
          %v3280 = vld [vmem:[#allocation4 + $0x38] sm:$0xff]
          %v3281 = vld [vmem:[#allocation4 + $0x40] sm:$0xff]
          %v3282 = vld [vmem:[#allocation4 + $0x48] sm:$0xff]
          %v3283 = vld [vmem:[#allocation4 + $0x50] sm:$0xff]
          %v3284 = vld [vmem:[#allocation4 + $0x58] sm:$0xff]
          %v3285 = vld [vmem:[#allocation4 + $0x60] sm:$0xff]
          %v3286 = vld [vmem:[#allocation4 + $0x68] sm:$0xff]
          %v3287 = vld [vmem:[#allocation4 + $0x70] sm:$0xff]
          %v3288 = vld [vmem:[#allocation4 + $0x78] sm:$0xff]
          %v3289 = vld [vmem:[#allocation4 + $0x80] sm:$0xff]
          %v3290 = vld [vmem:[#allocation4 + $0x88] sm:$0xff]
          %v3291 = vld [vmem:[#allocation4 + $0x90] sm:$0xff]
          %v3292 = vld [vmem:[#allocation4 + $0x98] sm:$0xff]
          %v3293 = vld [vmem:[#allocation4 + $0xa0] sm:$0xff]
          %v3294 = vld [vmem:[#allocation4 + $0xa8] sm:$0xff]
          %v3295 = vld [vmem:[#allocation4 + $0xb0] sm:$0xff]
          %v3296 = vld [vmem:[#allocation4 + $0xb8] sm:$0xff]
          %v3297 = vld [vmem:[#allocation4 + $0xc0] sm:$0xff]
          %v3298 = vld [vmem:[#allocation4 + $0xc8] sm:$0xff]
          %v3299 = vld [vmem:[#allocation4 + $0xd0] sm:$0xff]
          %v3300 = vld [vmem:[#allocation4 + $0xd8] sm:$0xff]
          %v3301 = vld [vmem:[#allocation4 + $0xe0] sm:$0xff]
          %v3302 = vld [vmem:[#allocation4 + $0xe8] sm:$0xff]
          %v3303 = vld [vmem:[#allocation4 + $0xf0] sm:$0xff]
          %v3304 = vld [vmem:[#allocation4 + $0xf8] sm:$0xff]
          %v3305 = vld [vmem:[#allocation4 + $0x100] sm:$0xff]
          %v3306 = vld [vmem:[#allocation4 + $0x108] sm:$0xff]
          %v3307 = vld [vmem:[#allocation4 + $0x110] sm:$0xff]
          %v3308 = vld [vmem:[#allocation4 + $0x118] sm:$0xff]
          %v3309 = vld [vmem:[#allocation4 + $0x120] sm:$0xff]
          %v3310 = vld [vmem:[#allocation4 + $0x128] sm:$0xff]
          %v3311 = vld [vmem:[#allocation4 + $0x130] sm:$0xff]
          %v3312 = vld [vmem:[#allocation4 + $0x138] sm:$0xff]
          %v3313 = vld [vmem:[#allocation4 + $0x140] sm:$0xff]
          %v3314 = vld [vmem:[#allocation4 + $0x148] sm:$0xff]
          %v3315 = vld [vmem:[#allocation4 + $0x150] sm:$0xff]
          %v3316 = vld [vmem:[#allocation4 + $0x158] sm:$0xff]
          %v3317 = vld [vmem:[#allocation4 + $0x160] sm:$0xff]
          %v3318 = vld [vmem:[#allocation4 + $0x168] sm:$0xff]
          %v3319 = vld [vmem:[#allocation4 + $0x170] sm:$0xff]
          %v3320 = vld [vmem:[#allocation4 + $0x178] sm:$0xff]
          %v3321 = vld [vmem:[%s10] sm:$0xff]
          %v3322 = vld [vmem:[%s10 + $0x8] sm:$0xff]
          %v3323 = vld [vmem:[%s10 + $0x10] sm:$0xff]
          %v3324 = vld [vmem:[%s10 + $0x18] sm:$0xff]
          %v3325 = vld [vmem:[%s10 + $0x20] sm:$0xff]
          %v3326 = vld [vmem:[%s10 + $0x28] sm:$0xff]
          %v3327 = vld [vmem:[%s10 + $0x30] sm:$0xff]
          %v3328 = vld [vmem:[%s10 + $0x38] sm:$0xff]
          %v3329 = vld [vmem:[%s10 + $0x40] sm:$0xff]
          %v3330 = vld [vmem:[%s10 + $0x48] sm:$0xff]
          %v3331 = vld [vmem:[%s10 + $0x50] sm:$0xff]
          %v3332 = vld [vmem:[%s10 + $0x58] sm:$0xff]
          %v3333 = vld [vmem:[%s10 + $0x60] sm:$0xff]
          %v3334 = vld [vmem:[%s10 + $0x68] sm:$0xff]
          %v3335 = vld [vmem:[%s10 + $0x70] sm:$0xff]
          %v3336 = vld [vmem:[%s10 + $0x78] sm:$0xff]
          %v3337 = vld [vmem:[%s8] sm:$0x7]
          %v3339 = vlaneseq
          %v3340 = vshrl.u32 %v3339, 7
          %v3341 = vsub.s32 0, %v3340
          %v3342 = vrot.slane %v3337, %v3341
          %v3343 = vlaneseq
          %v3344 = vshrl.u32 %v3343, 7
          %v3345 = vsub.s32 1, %v3344
          %v3346 = vrot.slane %v3337, %v3345
          %v3347 = vlaneseq
          %v3348 = vshrl.u32 %v3347, 7
          %v3349 = vsub.s32 2, %v3348
          %v3350 = vrot.slane %v3337, %v3349
          %v3354 = vld [vmem:[%s9] sm:$0x7]
          %v3356 = vlaneseq
          %v3357 = vshrl.u32 %v3356, 7
          %v3358 = vsub.s32 0, %v3357
          %v3359 = vrot.slane %v3354, %v3358
          %v3360 = vlaneseq
          %v3361 = vshrl.u32 %v3360, 7
          %v3362 = vsub.s32 1, %v3361
          %v3363 = vrot.slane %v3354, %v3362
          %v3364 = vlaneseq
          %v3365 = vshrl.u32 %v3364, 7
          %v3366 = vsub.s32 2, %v3365
          %v3367 = vrot.slane %v3354, %v3366
          %v3371 = vld [vmem:[%s11] sm:$0x1]
          %v3373 = vlaneseq
          %v3374 = vshrl.u32 %v3373, 7
          %v3375 = vsub.s32 0, %v3374
          %v3376 = vrot.slane %v3371, %v3375
          %v3378 = vld [vmem:[%s1] sm:$0x3]
          %vm3379 = vcmask 261120
          %v3380 = vsel %vm3379, %v3378, 0.0
          %v3381 = vld [vmem:[%s0] sm:$0x1]
          %v3382 = vld [vmem:[%s0 + $0x8] sm:$0x1]
          %v3385 = vrot.slane %v3382, 7
          %vm3386 = vcmask 1041409
          %v3387 = vsel %vm3386, %v3385, %v3381
          %vm3388 = vcmask 130048
          %v3389 = vsel %vm3388, %v3387, 0
          %3391 = vmatprep.subr.mxu0 %v3268
          %3392 = vmatpush1.msra.mxu0 %v3267
          %3393 = vmatprep.subr.mxu0 %v3271
          %3394 = vmatpush1.msra.mxu0 %v3270
          %3395 = vmatprep.subr.mxu0 0.0
          %3396 = vmatpush1.msra.mxu0 0.0
          %3397 = vmatprep.subr.mxu0 0.0
          %3398 = vmatpush1.msra.mxu0 0.0
          %3399 = vmatprep.subr.mxu0 0.0
          %3400 = vmatpush1.msra.mxu0 0.0
          %3401 = vmatprep.subr.mxu0 0.0
          %3402 = vmatpush1.msra.mxu0 0.0
          %3403 = vmatprep.subr.mxu0 0.0
          %3404 = vmatpush1.msra.mxu0 0.0
          %3405 = vmatprep.subr.mxu0 0.0
          %3406 = vmatpush1.msra.mxu0 0.0
          %3407 = vmatprep.subr.mxu0 0.0
          %3408 = vmatpush1.msra.mxu0 0.0
          %3409 = vmatprep.subr.mxu0 0.0
          %3410 = vmatpush1.msra.mxu0 0.0
          %3411 = vmatprep.subr.mxu0 0.0
          %3412 = vmatpush1.msra.mxu0 0.0
          %3413 = vmatprep.subr.mxu0 0.0
          %3414 = vmatpush1.msra.mxu0 0.0
          %3415 = vmatprep.subr.mxu0 0.0
          %3416 = vmatpush1.msra.mxu0 0.0
          %3417 = vmatprep.subr.mxu0 0.0
          %3418 = vmatpush1.msra.mxu0 0.0
          %3419 = vmatprep.subr.mxu0 0.0
          %3420 = vmatpush1.msra.mxu0 0.0
          %3421 = vmatprep.subr.mxu0 0.0
          %3422 = vmatpush1.msra.mxu0 0.0
          %3423 = vmatprep.subr.mxu0 0.0
          %3424 = vmatpush1.msra.mxu0 0.0
          %3425 = vmatprep.subr.mxu0 0.0
          %3426 = vmatpush1.msra.mxu0 0.0
          %3427 = vmatprep.subr.mxu0 0.0
          %3428 = vmatpush1.msra.mxu0 0.0
          %3429 = vmatprep.subr.mxu0 0.0
          %3430 = vmatpush1.msra.mxu0 0.0
          %3431 = vmatprep.subr.mxu0 0.0
          %3432 = vmatpush1.msra.mxu0 0.0
          %3433 = vmatprep.subr.mxu0 0.0
          %3434 = vmatpush1.msra.mxu0 0.0
          %3435 = vmatprep.subr.mxu0 0.0
          %3436 = vmatpush1.msra.mxu0 0.0
          %3437 = vmatprep.subr.mxu0 0.0
          %3438 = vmatpush1.msra.mxu0 0.0
          %3439 = vmatprep.subr.mxu0 0.0
          %3440 = vmatpush1.msra.mxu0 0.0
          %3441 = vmatprep.subr.mxu0 0.0
          %3442 = vmatpush1.msra.mxu0 0.0
          %3443 = vmatprep.subr.mxu0 0.0
          %3444 = vmatpush1.msra.mxu0 0.0
          %3445 = vmatprep.subr.mxu0 0.0
          %3446 = vmatpush1.msra.mxu0 0.0
          %3447 = vmatprep.subr.mxu0 0.0
          %3448 = vmatpush1.msra.mxu0 0.0
          %3449 = vmatprep.subr.mxu0 0.0
          %3450 = vmatpush1.msra.mxu0 0.0
          %3451 = vmatprep.subr.mxu0 0.0
          %3452 = vmatpush1.msra.mxu0 0.0
          %3453 = vmatprep.subr.mxu0 0.0
          %3454 = vmatpush1.msra.mxu0 0.0
          %3455 = vmatprep.mubr.f32.mxu0 0.0
          %3456 = vmatmul.mubr.f32.gmra.mrb[0].mxu0 %v3389
          %v3457 = vpop.f32.mrb[0].mxu0
          %v3458 = vadd.f32 %v3342, %v3457
          %v3459 = vpop.f32.mrb[0].mxu0
          %v3460 = vadd.f32 %v3346, %v3459
          %3461 = vdwg.mxu0
          %3462 = vmatprep.subr.mxu0 0.0
          %3463 = vmatpush1.msra.mxu0 %v3269
          %3464 = vmatprep.subr.mxu0 0.0
          %3465 = vmatpush1.msra.mxu0 %v3272
          %3466 = vmatprep.subr.mxu0 0.0
          %3467 = vmatpush1.msra.mxu0 0.0
          %3468 = vmatprep.subr.mxu0 0.0
          %3469 = vmatpush1.msra.mxu0 0.0
          %3470 = vmatprep.subr.mxu0 0.0
          %3471 = vmatpush1.msra.mxu0 0.0
          %3472 = vmatprep.subr.mxu0 0.0
          %3473 = vmatpush1.msra.mxu0 0.0
          %3474 = vmatprep.subr.mxu0 0.0
          %3475 = vmatpush1.msra.mxu0 0.0
          %3476 = vmatprep.subr.mxu0 0.0
          %3477 = vmatpush1.msra.mxu0 0.0
          %3478 = vmatprep.subr.mxu0 0.0
          %3479 = vmatpush1.msra.mxu0 0.0
          %3480 = vmatprep.subr.mxu0 0.0
          %3481 = vmatpush1.msra.mxu0 0.0
          %3482 = vmatprep.subr.mxu0 0.0
          %3483 = vmatpush1.msra.mxu0 0.0
          %3484 = vmatprep.subr.mxu0 0.0
          %3485 = vmatpush1.msra.mxu0 0.0
          %3486 = vmatprep.subr.mxu0 0.0
          %3487 = vmatpush1.msra.mxu0 0.0
          %3488 = vmatprep.subr.mxu0 0.0
          %3489 = vmatpush1.msra.mxu0 0.0
          %3490 = vmatprep.subr.mxu0 0.0
          %3491 = vmatpush1.msra.mxu0 0.0
          %3492 = vmatprep.subr.mxu0 0.0
          %3493 = vmatpush1.msra.mxu0 0.0
          %3494 = vmatprep.subr.mxu0 0.0
          %3495 = vmatpush1.msra.mxu0 0.0
          %3496 = vmatprep.subr.mxu0 0.0
          %3497 = vmatpush1.msra.mxu0 0.0
          %3498 = vmatprep.subr.mxu0 0.0
          %3499 = vmatpush1.msra.mxu0 0.0
          %3500 = vmatprep.subr.mxu0 0.0
          %3501 = vmatpush1.msra.mxu0 0.0
          %3502 = vmatprep.subr.mxu0 0.0
          %3503 = vmatpush1.msra.mxu0 0.0
          %3504 = vmatprep.subr.mxu0 0.0
          %3505 = vmatpush1.msra.mxu0 0.0
          %3506 = vmatprep.subr.mxu0 0.0
          %3507 = vmatpush1.msra.mxu0 0.0
          %3508 = vmatprep.subr.mxu0 0.0
          %3509 = vmatpush1.msra.mxu0 0.0
          %3510 = vmatprep.subr.mxu0 0.0
          %3511 = vmatpush1.msra.mxu0 0.0
          %3512 = vmatprep.subr.mxu0 0.0
          %3513 = vmatpush1.msra.mxu0 0.0
          %3514 = vmatprep.subr.mxu0 0.0
          %3515 = vmatpush1.msra.mxu0 0.0
          %3516 = vmatprep.subr.mxu0 0.0
          %3517 = vmatpush1.msra.mxu0 0.0
          %3518 = vmatprep.subr.mxu0 0.0
          %3519 = vmatpush1.msra.mxu0 0.0
          %3520 = vmatprep.subr.mxu0 0.0
          %3521 = vmatpush1.msra.mxu0 0.0
          %3522 = vmatprep.subr.mxu0 0.0
          %3523 = vmatpush1.msra.mxu0 0.0
          %3524 = vmatprep.subr.mxu0 0.0
          %3525 = vmatpush1.msra.mxu0 0.0
          %3526 = vmatprep.mubr.f32.mxu0 0.0
          %3527 = vmatmul.mubr.f32.gmra.mrb[0].mxu0 %v3389
          %v3528 = vpop.f32.mrb[0].mxu0
          %v3529 = vadd.f32 %v3350, %v3528
          %v3530 = vpop.f32.mrb[0].mxu0
          %3531 = vdwg.mxu0
          %3532 = vmatprep.subr.mxu0 %v3274
          %3533 = vmatpush1.msra.mxu0 %v3273
          %3534 = vmatprep.subr.mxu0 %v3277
          %3535 = vmatpush1.msra.mxu0 %v3276
          %3536 = vmatprep.subr.mxu0 %v3280
          %3537 = vmatpush1.msra.mxu0 %v3279
          %3538 = vmatprep.subr.mxu0 %v3283
          %3539 = vmatpush1.msra.mxu0 %v3282
          %3540 = vmatprep.subr.mxu0 %v3286
          %3541 = vmatpush1.msra.mxu0 %v3285
          %3542 = vmatprep.subr.mxu0 %v3289
          %3543 = vmatpush1.msra.mxu0 %v3288
          %3544 = vmatprep.subr.mxu0 %v3292
          %3545 = vmatpush1.msra.mxu0 %v3291
          %3546 = vmatprep.subr.mxu0 %v3295
          %3547 = vmatpush1.msra.mxu0 %v3294
          %3548 = vmatprep.subr.mxu0 %v3298
          %3549 = vmatpush1.msra.mxu0 %v3297
          %3550 = vmatprep.subr.mxu0 %v3301
          %3551 = vmatpush1.msra.mxu0 %v3300
          %3552 = vmatprep.subr.mxu0 %v3304
          %3553 = vmatpush1.msra.mxu0 %v3303
          %3554 = vmatprep.subr.mxu0 %v3307
          %3555 = vmatpush1.msra.mxu0 %v3306
          %3556 = vmatprep.subr.mxu0 %v3310
          %3557 = vmatpush1.msra.mxu0 %v3309
          %3558 = vmatprep.subr.mxu0 %v3313
          %3559 = vmatpush1.msra.mxu0 %v3312
          %3560 = vmatprep.subr.mxu0 %v3316
          %3561 = vmatpush1.msra.mxu0 %v3315
          %3562 = vmatprep.subr.mxu0 %v3319
          %3563 = vmatpush1.msra.mxu0 %v3318
          %3564 = vmatprep.subr.mxu0 0.0
          %3565 = vmatpush1.msra.mxu0 0.0
          %3566 = vmatprep.subr.mxu0 0.0
          %3567 = vmatpush1.msra.mxu0 0.0
          %3568 = vmatprep.subr.mxu0 0.0
          %3569 = vmatpush1.msra.mxu0 0.0
          %3570 = vmatprep.subr.mxu0 0.0
          %3571 = vmatpush1.msra.mxu0 0.0
          %3572 = vmatprep.subr.mxu0 0.0
          %3573 = vmatpush1.msra.mxu0 0.0
          %3574 = vmatprep.subr.mxu0 0.0
          %3575 = vmatpush1.msra.mxu0 0.0
          %3576 = vmatprep.subr.mxu0 0.0
          %3577 = vmatpush1.msra.mxu0 0.0
          %3578 = vmatprep.subr.mxu0 0.0
          %3579 = vmatpush1.msra.mxu0 0.0
          %3580 = vmatprep.subr.mxu0 0.0
          %3581 = vmatpush1.msra.mxu0 0.0
          %3582 = vmatprep.subr.mxu0 0.0
          %3583 = vmatpush1.msra.mxu0 0.0
          %3584 = vmatprep.subr.mxu0 0.0
          %3585 = vmatpush1.msra.mxu0 0.0
          %3586 = vmatprep.subr.mxu0 0.0
          %3587 = vmatpush1.msra.mxu0 0.0
          %3588 = vmatprep.subr.mxu0 0.0
          %3589 = vmatpush1.msra.mxu0 0.0
          %3590 = vmatprep.subr.mxu0 0.0
          %3591 = vmatpush1.msra.mxu0 0.0
          %3592 = vmatprep.subr.mxu0 0.0
          %3593 = vmatpush1.msra.mxu0 0.0
          %3594 = vmatprep.subr.mxu0 0.0
          %3595 = vmatpush1.msra.mxu0 0.0
          %3596 = vmatprep.mubr.f32.mxu0 0.0
          %3597 = vmatmul.mubr.f32.gmra.mrb[0].mxu0 %v3380
          %v3598 = vpop.f32.mrb[0].mxu0
          %v3599 = vadd.f32 %v3359, %v3598
          %v3600 = vpop.f32.mrb[0].mxu0
          %v3601 = vadd.f32 %v3363, %v3600
          %3602 = vdwg.mxu0
          %3603 = vmatprep.subr.mxu0 0.0
          %3604 = vmatpush1.msra.mxu0 %v3275
          %3605 = vmatprep.subr.mxu0 0.0
          %3606 = vmatpush1.msra.mxu0 %v3278
          %3607 = vmatprep.subr.mxu0 0.0
          %3608 = vmatpush1.msra.mxu0 %v3281
          %3609 = vmatprep.subr.mxu0 0.0
          %3610 = vmatpush1.msra.mxu0 %v3284
          %3611 = vmatprep.subr.mxu0 0.0
          %3612 = vmatpush1.msra.mxu0 %v3287
          %3613 = vmatprep.subr.mxu0 0.0
          %3614 = vmatpush1.msra.mxu0 %v3290
          %3615 = vmatprep.subr.mxu0 0.0
          %3616 = vmatpush1.msra.mxu0 %v3293
          %3617 = vmatprep.subr.mxu0 0.0
          %3618 = vmatpush1.msra.mxu0 %v3296
          %3619 = vmatprep.subr.mxu0 0.0
          %3620 = vmatpush1.msra.mxu0 %v3299
          %3621 = vmatprep.subr.mxu0 0.0
          %3622 = vmatpush1.msra.mxu0 %v3302
          %3623 = vmatprep.subr.mxu0 0.0
          %3624 = vmatpush1.msra.mxu0 %v3305
          %3625 = vmatprep.subr.mxu0 0.0
          %3626 = vmatpush1.msra.mxu0 %v3308
          %3627 = vmatprep.subr.mxu0 0.0
          %3628 = vmatpush1.msra.mxu0 %v3311
          %3629 = vmatprep.subr.mxu0 0.0
          %3630 = vmatpush1.msra.mxu0 %v3314
          %3631 = vmatprep.subr.mxu0 0.0
          %3632 = vmatpush1.msra.mxu0 %v3317
          %3633 = vmatprep.subr.mxu0 0.0
          %3634 = vmatpush1.msra.mxu0 %v3320
          %3635 = vmatprep.subr.mxu0 0.0
          %3636 = vmatpush1.msra.mxu0 0.0
          %3637 = vmatprep.subr.mxu0 0.0
          %3638 = vmatpush1.msra.mxu0 0.0
          %3639 = vmatprep.subr.mxu0 0.0
          %3640 = vmatpush1.msra.mxu0 0.0
          %3641 = vmatprep.subr.mxu0 0.0
          %3642 = vmatpush1.msra.mxu0 0.0
          %3643 = vmatprep.subr.mxu0 0.0
          %3644 = vmatpush1.msra.mxu0 0.0
          %3645 = vmatprep.subr.mxu0 0.0
          %3646 = vmatpush1.msra.mxu0 0.0
          %3647 = vmatprep.subr.mxu0 0.0
          %3648 = vmatpush1.msra.mxu0 0.0
          %3649 = vmatprep.subr.mxu0 0.0
          %3650 = vmatpush1.msra.mxu0 0.0
          %3651 = vmatprep.subr.mxu0 0.0
          %3652 = vmatpush1.msra.mxu0 0.0
          %3653 = vmatprep.subr.mxu0 0.0
          %3654 = vmatpush1.msra.mxu0 0.0
          %3655 = vmatprep.subr.mxu0 0.0
          %3656 = vmatpush1.msra.mxu0 0.0
          %3657 = vmatprep.subr.mxu0 0.0
          %3658 = vmatpush1.msra.mxu0 0.0
          %3659 = vmatprep.subr.mxu0 0.0
          %3660 = vmatpush1.msra.mxu0 0.0
          %3661 = vmatprep.subr.mxu0 0.0
          %3662 = vmatpush1.msra.mxu0 0.0
          %3663 = vmatprep.subr.mxu0 0.0
          %3664 = vmatpush1.msra.mxu0 0.0
          %3665 = vmatprep.subr.mxu0 0.0
          %3666 = vmatpush1.msra.mxu0 0.0
          %3667 = vmatprep.mubr.f32.mxu0 0.0
          %3668 = vmatmul.mubr.f32.gmra.mrb[0].mxu0 %v3380
          %v3669 = vpop.f32.mrb[0].mxu0
          %v3670 = vadd.f32 %v3367, %v3669
          %v3671 = vpop.f32.mrb[0].mxu0
          %3672 = vdwg.mxu0
          %v3673 = vadd.f32 %v3458, %v3599
          %v3674 = vxor.u32 %v3673, 2147483648
          %v3675 = vmul.f32 %v3674, 1.442695
          %v3676 = vpow.pop %v3675
          %v3677 = vadd.f32 %v3676, 1.0
          %v3678 = vrcp.pop %v3677
          %v3679 = vmul.f32 1.0, %v3678
          %v3680 = vadd.f32 %v3460, %v3601
          %v3681 = vxor.u32 %v3680, 2147483648
          %v3682 = vmul.f32 %v3681, 1.442695
          %v3683 = vpow.pop %v3682
          %v3684 = vadd.f32 %v3683, 1.0
          %v3685 = vrcp.pop %v3684
          %v3686 = vmul.f32 1.0, %v3685
          %v3687 = vmul.f32 %v3679, %v3670
          %v3688 = vadd.f32 %v3529, %v3687
          %v3689 = vtanh.pop %v3688
          %v3690 = vsub.f32 1.0, %v3686
          %v3691 = vmul.f32 %v3690, %v3689
          %v3692 = vmul.f32 %v3686, %v3380
          %v3693 = vadd.f32 %v3691, %v3692
          %3694 = vmatprep.subr.mxu0 0.0
          %3695 = vmatpush1.msra.mxu0 %v3321
          %3696 = vmatprep.subr.mxu0 0.0
          %3697 = vmatpush1.msra.mxu0 %v3322
          %3698 = vmatprep.subr.mxu0 0.0
          %3699 = vmatpush1.msra.mxu0 %v3323
          %3700 = vmatprep.subr.mxu0 0.0
          %3701 = vmatpush1.msra.mxu0 %v3324
          %3702 = vmatprep.subr.mxu0 0.0
          %3703 = vmatpush1.msra.mxu0 %v3325
          %3704 = vmatprep.subr.mxu0 0.0
          %3705 = vmatpush1.msra.mxu0 %v3326
          %3706 = vmatprep.subr.mxu0 0.0
          %3707 = vmatpush1.msra.mxu0 %v3327
          %3708 = vmatprep.subr.mxu0 0.0
          %3709 = vmatpush1.msra.mxu0 %v3328
          %3710 = vmatprep.subr.mxu0 0.0
          %3711 = vmatpush1.msra.mxu0 %v3329
          %3712 = vmatprep.subr.mxu0 0.0
          %3713 = vmatpush1.msra.mxu0 %v3330
          %3714 = vmatprep.subr.mxu0 0.0
          %3715 = vmatpush1.msra.mxu0 %v3331
          %3716 = vmatprep.subr.mxu0 0.0
          %3717 = vmatpush1.msra.mxu0 %v3332
          %3718 = vmatprep.subr.mxu0 0.0
          %3719 = vmatpush1.msra.mxu0 %v3333
          %3720 = vmatprep.subr.mxu0 0.0
          %3721 = vmatpush1.msra.mxu0 %v3334
          %3722 = vmatprep.subr.mxu0 0.0
          %3723 = vmatpush1.msra.mxu0 %v3335
          %3724 = vmatprep.subr.mxu0 0.0
          %3725 = vmatpush1.msra.mxu0 %v3336
          %3726 = vmatprep.subr.mxu0 0.0
          %3727 = vmatpush1.msra.mxu0 0.0
          %3728 = vmatprep.subr.mxu0 0.0
          %3729 = vmatpush1.msra.mxu0 0.0
          %3730 = vmatprep.subr.mxu0 0.0
          %3731 = vmatpush1.msra.mxu0 0.0
          %3732 = vmatprep.subr.mxu0 0.0
          %3733 = vmatpush1.msra.mxu0 0.0
          %3734 = vmatprep.subr.mxu0 0.0
          %3735 = vmatpush1.msra.mxu0 0.0
          %3736 = vmatprep.subr.mxu0 0.0
          %3737 = vmatpush1.msra.mxu0 0.0
          %3738 = vmatprep.subr.mxu0 0.0
          %3739 = vmatpush1.msra.mxu0 0.0
          %3740 = vmatprep.subr.mxu0 0.0
          %3741 = vmatpush1.msra.mxu0 0.0
          %3742 = vmatprep.subr.mxu0 0.0
          %3743 = vmatpush1.msra.mxu0 0.0
          %3744 = vmatprep.subr.mxu0 0.0
          %3745 = vmatpush1.msra.mxu0 0.0
          %3746 = vmatprep.subr.mxu0 0.0
          %3747 = vmatpush1.msra.mxu0 0.0
          %3748 = vmatprep.subr.mxu0 0.0
          %3749 = vmatpush1.msra.mxu0 0.0
          %3750 = vmatprep.subr.mxu0 0.0
          %3751 = vmatpush1.msra.mxu0 0.0
          %3752 = vmatprep.subr.mxu0 0.0
          %3753 = vmatpush1.msra.mxu0 0.0
          %3754 = vmatprep.subr.mxu0 0.0
          %3755 = vmatpush1.msra.mxu0 0.0
          %3756 = vmatprep.subr.mxu0 0.0
          %3757 = vmatpush1.msra.mxu0 0.0
          %3758 = vmatprep.mubr.f32.mxu0 0.0
          %3759 = vmatmul.mubr.f32.gmra.mrb[0].mxu0 %v3693
          %v3760 = vpop.f32.mrb[0].mxu0
          %v3761 = vadd.f32 0.0, %v3760
          %v3762 = vpop.f32.mrb[0].mxu0
          %3763 = vdwg.mxu0
          %v3765 = vrot.slane %v3761, 1
          %v3768 = vadd.f32 %v3381, %v3761
          %v3769 = vadd.f32 %v3382, %v3765
          %v3770 = vadd.f32 %v3768, %v3376
          %v3771 = vadd.f32 %v3769, %v3376
          %vm3772 = vcmask 122880
          %3773 = vst.msk [vmem:[%s463] sm:$0x1] %vm3772, %v3770
          %3774 = vst.msk [vmem:[%s463 + $0x8] sm:$0x1] %vm3772, %v3771
          %v3777 = vrot.slane %v3771, 7
          %v3778 = vsel %vm3386, %v3777, %v3770
          %v3779 = vsel %vm3388, %v3778, 0
          %3781 = vmatprep.subr.mxu0 %v3268
          %3782 = vmatpush1.msra.mxu0 %v3267
          %3783 = vmatprep.subr.mxu0 %v3271
          %3784 = vmatpush1.msra.mxu0 %v3270
          %3785 = vmatprep.subr.mxu0 0.0
          %3786 = vmatpush1.msra.mxu0 0.0
          %3787 = vmatprep.subr.mxu0 0.0
          %3788 = vmatpush1.msra.mxu0 0.0
          %3789 = vmatprep.subr.mxu0 0.0
          %3790 = vmatpush1.msra.mxu0 0.0
          %3791 = vmatprep.subr.mxu0 0.0
          %3792 = vmatpush1.msra.mxu0 0.0
          %3793 = vmatprep.subr.mxu0 0.0
          %3794 = vmatpush1.msra.mxu0 0.0
          %3795 = vmatprep.subr.mxu0 0.0
          %3796 = vmatpush1.msra.mxu0 0.0
          %3797 = vmatprep.subr.mxu0 0.0
          %3798 = vmatpush1.msra.mxu0 0.0
          %3799 = vmatprep.subr.mxu0 0.0
          %3800 = vmatpush1.msra.mxu0 0.0
          %3801 = vmatprep.subr.mxu0 0.0
          %3802 = vmatpush1.msra.mxu0 0.0
          %3803 = vmatprep.subr.mxu0 0.0
          %3804 = vmatpush1.msra.mxu0 0.0
          %3805 = vmatprep.subr.mxu0 0.0
          %3806 = vmatpush1.msra.mxu0 0.0
          %3807 = vmatprep.subr.mxu0 0.0
          %3808 = vmatpush1.msra.mxu0 0.0
          %3809 = vmatprep.subr.mxu0 0.0
          %3810 = vmatpush1.msra.mxu0 0.0
          %3811 = vmatprep.subr.mxu0 0.0
          %3812 = vmatpush1.msra.mxu0 0.0
          %3813 = vmatprep.subr.mxu0 0.0
          %3814 = vmatpush1.msra.mxu0 0.0
          %3815 = vmatprep.subr.mxu0 0.0
          %3816 = vmatpush1.msra.mxu0 0.0
          %3817 = vmatprep.subr.mxu0 0.0
          %3818 = vmatpush1.msra.mxu0 0.0
          %3819 = vmatprep.subr.mxu0 0.0
          %3820 = vmatpush1.msra.mxu0 0.0
          %3821 = vmatprep.subr.mxu0 0.0
          %3822 = vmatpush1.msra.mxu0 0.0
          %3823 = vmatprep.subr.mxu0 0.0
          %3824 = vmatpush1.msra.mxu0 0.0
          %3825 = vmatprep.subr.mxu0 0.0
          %3826 = vmatpush1.msra.mxu0 0.0
          %3827 = vmatprep.subr.mxu0 0.0
          %3828 = vmatpush1.msra.mxu0 0.0
          %3829 = vmatprep.subr.mxu0 0.0
          %3830 = vmatpush1.msra.mxu0 0.0
          %3831 = vmatprep.subr.mxu0 0.0
          %3832 = vmatpush1.msra.mxu0 0.0
          %3833 = vmatprep.subr.mxu0 0.0
          %3834 = vmatpush1.msra.mxu0 0.0
          %3835 = vmatprep.subr.mxu0 0.0
          %3836 = vmatpush1.msra.mxu0 0.0
          %3837 = vmatprep.subr.mxu0 0.0
          %3838 = vmatpush1.msra.mxu0 0.0
          %3839 = vmatprep.subr.mxu0 0.0
          %3840 = vmatpush1.msra.mxu0 0.0
          %3841 = vmatprep.subr.mxu0 0.0
          %3842 = vmatpush1.msra.mxu0 0.0
          %3843 = vmatprep.subr.mxu0 0.0
          %3844 = vmatpush1.msra.mxu0 0.0
          %3845 = vmatprep.mubr.f32.mxu0 0.0
          %3846 = vmatmul.mubr.f32.gmra.mrb[0].mxu0 %v3779
          %v3847 = vpop.f32.mrb[0].mxu0
          %v3848 = vadd.f32 %v3342, %v3847
          %v3849 = vpop.f32.mrb[0].mxu0
          %v3850 = vadd.f32 %v3346, %v3849
          %3851 = vdwg.mxu0
          %3852 = vmatprep.subr.mxu0 0.0
          %3853 = vmatpush1.msra.mxu0 %v3269
          %3854 = vmatprep.subr.mxu0 0.0
          %3855 = vmatpush1.msra.mxu0 %v3272
          %3856 = vmatprep.subr.mxu0 0.0
          %3857 = vmatpush1.msra.mxu0 0.0
          %3858 = vmatprep.subr.mxu0 0.0
          %3859 = vmatpush1.msra.mxu0 0.0
          %3860 = vmatprep.subr.mxu0 0.0
          %3861 = vmatpush1.msra.mxu0 0.0
          %3862 = vmatprep.subr.mxu0 0.0
          %3863 = vmatpush1.msra.mxu0 0.0
          %3864 = vmatprep.subr.mxu0 0.0
          %3865 = vmatpush1.msra.mxu0 0.0
          %3866 = vmatprep.subr.mxu0 0.0
          %3867 = vmatpush1.msra.mxu0 0.0
          %3868 = vmatprep.subr.mxu0 0.0
          %3869 = vmatpush1.msra.mxu0 0.0
          %3870 = vmatprep.subr.mxu0 0.0
          %3871 = vmatpush1.msra.mxu0 0.0
          %3872 = vmatprep.subr.mxu0 0.0
          %3873 = vmatpush1.msra.mxu0 0.0
          %3874 = vmatprep.subr.mxu0 0.0
          %3875 = vmatpush1.msra.mxu0 0.0
          %3876 = vmatprep.subr.mxu0 0.0
          %3877 = vmatpush1.msra.mxu0 0.0
          %3878 = vmatprep.subr.mxu0 0.0
          %3879 = vmatpush1.msra.mxu0 0.0
          %3880 = vmatprep.subr.mxu0 0.0
          %3881 = vmatpush1.msra.mxu0 0.0
          %3882 = vmatprep.subr.mxu0 0.0
          %3883 = vmatpush1.msra.mxu0 0.0
          %3884 = vmatprep.subr.mxu0 0.0
          %3885 = vmatpush1.msra.mxu0 0.0
          %3886 = vmatprep.subr.mxu0 0.0
          %3887 = vmatpush1.msra.mxu0 0.0
          %3888 = vmatprep.subr.mxu0 0.0
          %3889 = vmatpush1.msra.mxu0 0.0
          %3890 = vmatprep.subr.mxu0 0.0
          %3891 = vmatpush1.msra.mxu0 0.0
          %3892 = vmatprep.subr.mxu0 0.0
          %3893 = vmatpush1.msra.mxu0 0.0
          %3894 = vmatprep.subr.mxu0 0.0
          %3895 = vmatpush1.msra.mxu0 0.0
          %3896 = vmatprep.subr.mxu0 0.0
          %3897 = vmatpush1.msra.mxu0 0.0
          %3898 = vmatprep.subr.mxu0 0.0
          %3899 = vmatpush1.msra.mxu0 0.0
          %3900 = vmatprep.subr.mxu0 0.0
          %3901 = vmatpush1.msra.mxu0 0.0
          %3902 = vmatprep.subr.mxu0 0.0
          %3903 = vmatpush1.msra.mxu0 0.0
          %3904 = vmatprep.subr.mxu0 0.0
          %3905 = vmatpush1.msra.mxu0 0.0
          %3906 = vmatprep.subr.mxu0 0.0
          %3907 = vmatpush1.msra.mxu0 0.0
          %3908 = vmatprep.subr.mxu0 0.0
          %3909 = vmatpush1.msra.mxu0 0.0
          %3910 = vmatprep.subr.mxu0 0.0
          %3911 = vmatpush1.msra.mxu0 0.0
          %3912 = vmatprep.subr.mxu0 0.0
          %3913 = vmatpush1.msra.mxu0 0.0
          %3914 = vmatprep.subr.mxu0 0.0
          %3915 = vmatpush1.msra.mxu0 0.0
          %3916 = vmatprep.mubr.f32.mxu0 0.0
          %3917 = vmatmul.mubr.f32.gmra.mrb[0].mxu0 %v3779
          %v3918 = vpop.f32.mrb[0].mxu0
          %v3919 = vadd.f32 %v3350, %v3918
          %v3920 = vpop.f32.mrb[0].mxu0
          %3921 = vdwg.mxu0
          %3922 = vmatprep.subr.mxu0 %v3274
          %3923 = vmatpush1.msra.mxu0 %v3273
          %3924 = vmatprep.subr.mxu0 %v3277
          %3925 = vmatpush1.msra.mxu0 %v3276
          %3926 = vmatprep.subr.mxu0 %v3280
          %3927 = vmatpush1.msra.mxu0 %v3279
          %3928 = vmatprep.subr.mxu0 %v3283
          %3929 = vmatpush1.msra.mxu0 %v3282
          %3930 = vmatprep.subr.mxu0 %v3286
          %3931 = vmatpush1.msra.mxu0 %v3285
          %3932 = vmatprep.subr.mxu0 %v3289
          %3933 = vmatpush1.msra.mxu0 %v3288
          %3934 = vmatprep.subr.mxu0 %v3292
          %3935 = vmatpush1.msra.mxu0 %v3291
          %3936 = vmatprep.subr.mxu0 %v3295
          %3937 = vmatpush1.msra.mxu0 %v3294
          %3938 = vmatprep.subr.mxu0 %v3298
          %3939 = vmatpush1.msra.mxu0 %v3297
          %3940 = vmatprep.subr.mxu0 %v3301
          %3941 = vmatpush1.msra.mxu0 %v3300
          %3942 = vmatprep.subr.mxu0 %v3304
          %3943 = vmatpush1.msra.mxu0 %v3303
          %3944 = vmatprep.subr.mxu0 %v3307
          %3945 = vmatpush1.msra.mxu0 %v3306
          %3946 = vmatprep.subr.mxu0 %v3310
          %3947 = vmatpush1.msra.mxu0 %v3309
          %3948 = vmatprep.subr.mxu0 %v3313
          %3949 = vmatpush1.msra.mxu0 %v3312
          %3950 = vmatprep.subr.mxu0 %v3316
          %3951 = vmatpush1.msra.mxu0 %v3315
          %3952 = vmatprep.subr.mxu0 %v3319
          %3953 = vmatpush1.msra.mxu0 %v3318
          %3954 = vmatprep.subr.mxu0 0.0
          %3955 = vmatpush1.msra.mxu0 0.0
          %3956 = vmatprep.subr.mxu0 0.0
          %3957 = vmatpush1.msra.mxu0 0.0
          %3958 = vmatprep.subr.mxu0 0.0
          %3959 = vmatpush1.msra.mxu0 0.0
          %3960 = vmatprep.subr.mxu0 0.0
          %3961 = vmatpush1.msra.mxu0 0.0
          %3962 = vmatprep.subr.mxu0 0.0
          %3963 = vmatpush1.msra.mxu0 0.0
          %3964 = vmatprep.subr.mxu0 0.0
          %3965 = vmatpush1.msra.mxu0 0.0
          %3966 = vmatprep.subr.mxu0 0.0
          %3967 = vmatpush1.msra.mxu0 0.0
          %3968 = vmatprep.subr.mxu0 0.0
          %3969 = vmatpush1.msra.mxu0 0.0
          %3970 = vmatprep.subr.mxu0 0.0
          %3971 = vmatpush1.msra.mxu0 0.0
          %3972 = vmatprep.subr.mxu0 0.0
          %3973 = vmatpush1.msra.mxu0 0.0
          %3974 = vmatprep.subr.mxu0 0.0
          %3975 = vmatpush1.msra.mxu0 0.0
          %3976 = vmatprep.subr.mxu0 0.0
          %3977 = vmatpush1.msra.mxu0 0.0
          %3978 = vmatprep.subr.mxu0 0.0
          %3979 = vmatpush1.msra.mxu0 0.0
          %3980 = vmatprep.subr.mxu0 0.0
          %3981 = vmatpush1.msra.mxu0 0.0
          %3982 = vmatprep.subr.mxu0 0.0
          %3983 = vmatpush1.msra.mxu0 0.0
          %3984 = vmatprep.subr.mxu0 0.0
          %3985 = vmatpush1.msra.mxu0 0.0
          %3986 = vmatprep.mubr.f32.mxu0 0.0
          %3987 = vmatmul.mubr.f32.gmra.mrb[0].mxu0 %v3693
          %v3988 = vpop.f32.mrb[0].mxu0
          %v3989 = vadd.f32 %v3359, %v3988
          %v3990 = vpop.f32.mrb[0].mxu0
          %v3991 = vadd.f32 %v3363, %v3990
          %3992 = vdwg.mxu0
          %3993 = vmatprep.subr.mxu0 0.0
          %3994 = vmatpush1.msra.mxu0 %v3275
          %3995 = vmatprep.subr.mxu0 0.0
          %3996 = vmatpush1.msra.mxu0 %v3278
          %3997 = vmatprep.subr.mxu0 0.0
          %3998 = vmatpush1.msra.mxu0 %v3281
          %3999 = vmatprep.subr.mxu0 0.0
          %4000 = vmatpush1.msra.mxu0 %v3284
          %4001 = vmatprep.subr.mxu0 0.0
          %4002 = vmatpush1.msra.mxu0 %v3287
          %4003 = vmatprep.subr.mxu0 0.0
          %4004 = vmatpush1.msra.mxu0 %v3290
          %4005 = vmatprep.subr.mxu0 0.0
          %4006 = vmatpush1.msra.mxu0 %v3293
          %4007 = vmatprep.subr.mxu0 0.0
          %4008 = vmatpush1.msra.mxu0 %v3296
          %4009 = vmatprep.subr.mxu0 0.0
          %4010 = vmatpush1.msra.mxu0 %v3299
          %4011 = vmatprep.subr.mxu0 0.0
          %4012 = vmatpush1.msra.mxu0 %v3302
          %4013 = vmatprep.subr.mxu0 0.0
          %4014 = vmatpush1.msra.mxu0 %v3305
          %4015 = vmatprep.subr.mxu0 0.0
          %4016 = vmatpush1.msra.mxu0 %v3308
          %4017 = vmatprep.subr.mxu0 0.0
          %4018 = vmatpush1.msra.mxu0 %v3311
          %4019 = vmatprep.subr.mxu0 0.0
          %4020 = vmatpush1.msra.mxu0 %v3314
          %4021 = vmatprep.subr.mxu0 0.0
          %4022 = vmatpush1.msra.mxu0 %v3317
          %4023 = vmatprep.subr.mxu0 0.0
          %4024 = vmatpush1.msra.mxu0 %v3320
          %4025 = vmatprep.subr.mxu0 0.0
          %4026 = vmatpush1.msra.mxu0 0.0
          %4027 = vmatprep.subr.mxu0 0.0
          %4028 = vmatpush1.msra.mxu0 0.0
          %4029 = vmatprep.subr.mxu0 0.0
          %4030 = vmatpush1.msra.mxu0 0.0
          %4031 = vmatprep.subr.mxu0 0.0
          %4032 = vmatpush1.msra.mxu0 0.0
          %4033 = vmatprep.subr.mxu0 0.0
          %4034 = vmatpush1.msra.mxu0 0.0
          %4035 = vmatprep.subr.mxu0 0.0
          %4036 = vmatpush1.msra.mxu0 0.0
          %4037 = vmatprep.subr.mxu0 0.0
          %4038 = vmatpush1.msra.mxu0 0.0
          %4039 = vmatprep.subr.mxu0 0.0
          %4040 = vmatpush1.msra.mxu0 0.0
          %4041 = vmatprep.subr.mxu0 0.0
          %4042 = vmatpush1.msra.mxu0 0.0
          %4043 = vmatprep.subr.mxu0 0.0
          %4044 = vmatpush1.msra.mxu0 0.0
          %4045 = vmatprep.subr.mxu0 0.0
          %4046 = vmatpush1.msra.mxu0 0.0
          %4047 = vmatprep.subr.mxu0 0.0
          %4048 = vmatpush1.msra.mxu0 0.0
          %4049 = vmatprep.subr.mxu0 0.0
          %4050 = vmatpush1.msra.mxu0 0.0
          %4051 = vmatprep.subr.mxu0 0.0
          %4052 = vmatpush1.msra.mxu0 0.0
          %4053 = vmatprep.subr.mxu0 0.0
          %4054 = vmatpush1.msra.mxu0 0.0
          %4055 = vmatprep.subr.mxu0 0.0
          %4056 = vmatpush1.msra.mxu0 0.0
          %4057 = vmatprep.mubr.f32.mxu0 0.0
          %4058 = vmatmul.mubr.f32.gmra.mrb[0].mxu0 %v3693
          %v4059 = vpop.f32.mrb[0].mxu0
          %v4060 = vadd.f32 %v3367, %v4059
          %v4061 = vpop.f32.mrb[0].mxu0
          %4062 = vdwg.mxu0
          %v4063 = vadd.f32 %v3848, %v3989
          %v4064 = vxor.u32 %v4063, 2147483648
          %v4065 = vmul.f32 %v4064, 1.442695
          %v4066 = vpow.pop %v4065
          %v4067 = vadd.f32 %v4066, 1.0
          %v4068 = vrcp.pop %v4067
          %v4069 = vmul.f32 1.0, %v4068
          %v4070 = vadd.f32 %v3850, %v3991
          %v4071 = vxor.u32 %v4070, 2147483648
          %v4072 = vmul.f32 %v4071, 1.442695
          %v4073 = vpow.pop %v4072
          %v4074 = vadd.f32 %v4073, 1.0
          %v4075 = vrcp.pop %v4074
          %v4076 = vmul.f32 1.0, %v4075
          %v4077 = vmul.f32 %v4069, %v4060
          %v4078 = vadd.f32 %v3919, %v4077
          %v4079 = vtanh.pop %v4078
          %v4080 = vsub.f32 1.0, %v4076
          %v4081 = vmul.f32 %v4080, %v4079
          %v4082 = vmul.f32 %v4076, %v3693
          %v4083 = vadd.f32 %v4081, %v4082
          %4084 = vmatprep.subr.mxu0 0.0
          %4085 = vmatpush1.msra.mxu0 %v3321
          %4086 = vmatprep.subr.mxu0 0.0
          %4087 = vmatpush1.msra.mxu0 %v3322
          %4088 = vmatprep.subr.mxu0 0.0
          %4089 = vmatpush1.msra.mxu0 %v3323
          %4090 = vmatprep.subr.mxu0 0.0
          %4091 = vmatpush1.msra.mxu0 %v3324
          %4092 = vmatprep.subr.mxu0 0.0
          %4093 = vmatpush1.msra.mxu0 %v3325
          %4094 = vmatprep.subr.mxu0 0.0
          %4095 = vmatpush1.msra.mxu0 %v3326
          %4096 = vmatprep.subr.mxu0 0.0
          %4097 = vmatpush1.msra.mxu0 %v3327
          %4098 = vmatprep.subr.mxu0 0.0
          %4099 = vmatpush1.msra.mxu0 %v3328
          %4100 = vmatprep.subr.mxu0 0.0
          %4101 = vmatpush1.msra.mxu0 %v3329
          %4102 = vmatprep.subr.mxu0 0.0
          %4103 = vmatpush1.msra.mxu0 %v3330
          %4104 = vmatprep.subr.mxu0 0.0
          %4105 = vmatpush1.msra.mxu0 %v3331
          %4106 = vmatprep.subr.mxu0 0.0
          %4107 = vmatpush1.msra.mxu0 %v3332
          %4108 = vmatprep.subr.mxu0 0.0
          %4109 = vmatpush1.msra.mxu0 %v3333
          %4110 = vmatprep.subr.mxu0 0.0
          %4111 = vmatpush1.msra.mxu0 %v3334
          %4112 = vmatprep.subr.mxu0 0.0
          %4113 = vmatpush1.msra.mxu0 %v3335
          %4114 = vmatprep.subr.mxu0 0.0
          %4115 = vmatpush1.msra.mxu0 %v3336
          %4116 = vmatprep.subr.mxu0 0.0
          %4117 = vmatpush1.msra.mxu0 0.0
          %4118 = vmatprep.subr.mxu0 0.0
          %4119 = vmatpush1.msra.mxu0 0.0
          %4120 = vmatprep.subr.mxu0 0.0
          %4121 = vmatpush1.msra.mxu0 0.0
          %4122 = vmatprep.subr.mxu0 0.0
          %4123 = vmatpush1.msra.mxu0 0.0
          %4124 = vmatprep.subr.mxu0 0.0
          %4125 = vmatpush1.msra.mxu0 0.0
          %4126 = vmatprep.subr.mxu0 0.0
          %4127 = vmatpush1.msra.mxu0 0.0
          %4128 = vmatprep.subr.mxu0 0.0
          %4129 = vmatpush1.msra.mxu0 0.0
          %4130 = vmatprep.subr.mxu0 0.0
          %4131 = vmatpush1.msra.mxu0 0.0
          %4132 = vmatprep.subr.mxu0 0.0
          %4133 = vmatpush1.msra.mxu0 0.0
          %4134 = vmatprep.subr.mxu0 0.0
          %4135 = vmatpush1.msra.mxu0 0.0
          %4136 = vmatprep.subr.mxu0 0.0
          %4137 = vmatpush1.msra.mxu0 0.0
          %4138 = vmatprep.subr.mxu0 0.0
          %4139 = vmatpush1.msra.mxu0 0.0
          %4140 = vmatprep.subr.mxu0 0.0
          %4141 = vmatpush1.msra.mxu0 0.0
          %4142 = vmatprep.subr.mxu0 0.0
          %4143 = vmatpush1.msra.mxu0 0.0
          %4144 = vmatprep.subr.mxu0 0.0
          %4145 = vmatpush1.msra.mxu0 0.0
          %4146 = vmatprep.subr.mxu0 0.0
          %4147 = vmatpush1.msra.mxu0 0.0
          %4148 = vmatprep.mubr.f32.mxu0 0.0
          %4149 = vmatmul.mubr.f32.gmra.mrb[0].mxu0 %v4083
          %v4150 = vpop.f32.mrb[0].mxu0
          %v4151 = vadd.f32 0.0, %v4150
          %v4152 = vpop.f32.mrb[0].mxu0
          %4153 = vdwg.mxu0
          %v4155 = vrot.slane %v4151, 1
          %v4158 = vadd.f32 %v3770, %v4151
          %v4159 = vadd.f32 %v3771, %v4155
          %v4160 = vadd.f32 %v4158, %v3376
          %v4161 = vadd.f32 %v4159, %v3376
          %4162 = vst.msk [vmem:[%s463 + $0x1] sm:$0x1] %vm3772, %v4160
          %4163 = vst.msk [vmem:[%s463 + $0x9] sm:$0x1] %vm3772, %v4161
          %v4166 = vrot.slane %v4161, 7
          %v4167 = vsel %vm3386, %v4166, %v4160
          %v4168 = vsel %vm3388, %v4167, 0
          %4170 = vmatprep.subr.mxu0 %v3268
          %4171 = vmatpush1.msra.mxu0 %v3267
          %4172 = vmatprep.subr.mxu0 %v3271
          %4173 = vmatpush1.msra.mxu0 %v3270
          %4174 = vmatprep.subr.mxu0 0.0
          %4175 = vmatpush1.msra.mxu0 0.0
          %4176 = vmatprep.subr.mxu0 0.0
          %4177 = vmatpush1.msra.mxu0 0.0
          %4178 = vmatprep.subr.mxu0 0.0
          %4179 = vmatpush1.msra.mxu0 0.0
          %4180 = vmatprep.subr.mxu0 0.0
          %4181 = vmatpush1.msra.mxu0 0.0
          %4182 = vmatprep.subr.mxu0 0.0
          %4183 = vmatpush1.msra.mxu0 0.0
          %4184 = vmatprep.subr.mxu0 0.0
          %4185 = vmatpush1.msra.mxu0 0.0
          %4186 = vmatprep.subr.mxu0 0.0
          %4187 = vmatpush1.msra.mxu0 0.0
          %4188 = vmatprep.subr.mxu0 0.0
          %4189 = vmatpush1.msra.mxu0 0.0
          %4190 = vmatprep.subr.mxu0 0.0
          %4191 = vmatpush1.msra.mxu0 0.0
          %4192 = vmatprep.subr.mxu0 0.0
          %4193 = vmatpush1.msra.mxu0 0.0
          %4194 = vmatprep.subr.mxu0 0.0
          %4195 = vmatpush1.msra.mxu0 0.0
          %4196 = vmatprep.subr.mxu0 0.0
          %4197 = vmatpush1.msra.mxu0 0.0
          %4198 = vmatprep.subr.mxu0 0.0
          %4199 = vmatpush1.msra.mxu0 0.0
          %4200 = vmatprep.subr.mxu0 0.0
          %4201 = vmatpush1.msra.mxu0 0.0
          %4202 = vmatprep.subr.mxu0 0.0
          %4203 = vmatpush1.msra.mxu0 0.0
          %4204 = vmatprep.subr.mxu0 0.0
          %4205 = vmatpush1.msra.mxu0 0.0
          %4206 = vmatprep.subr.mxu0 0.0
          %4207 = vmatpush1.msra.mxu0 0.0
          %4208 = vmatprep.subr.mxu0 0.0
          %4209 = vmatpush1.msra.mxu0 0.0
          %4210 = vmatprep.subr.mxu0 0.0
          %4211 = vmatpush1.msra.mxu0 0.0
          %4212 = vmatprep.subr.mxu0 0.0
          %4213 = vmatpush1.msra.mxu0 0.0
          %4214 = vmatprep.subr.mxu0 0.0
          %4215 = vmatpush1.msra.mxu0 0.0
          %4216 = vmatprep.subr.mxu0 0.0
          %4217 = vmatpush1.msra.mxu0 0.0
          %4218 = vmatprep.subr.mxu0 0.0
          %4219 = vmatpush1.msra.mxu0 0.0
          %4220 = vmatprep.subr.mxu0 0.0
          %4221 = vmatpush1.msra.mxu0 0.0
          %4222 = vmatprep.subr.mxu0 0.0
          %4223 = vmatpush1.msra.mxu0 0.0
          %4224 = vmatprep.subr.mxu0 0.0
          %4225 = vmatpush1.msra.mxu0 0.0
          %4226 = vmatprep.subr.mxu0 0.0
          %4227 = vmatpush1.msra.mxu0 0.0
          %4228 = vmatprep.subr.mxu0 0.0
          %4229 = vmatpush1.msra.mxu0 0.0
          %4230 = vmatprep.subr.mxu0 0.0
          %4231 = vmatpush1.msra.mxu0 0.0
          %4232 = vmatprep.subr.mxu0 0.0
          %4233 = vmatpush1.msra.mxu0 0.0
          %4234 = vmatprep.mubr.f32.mxu0 0.0
          %4235 = vmatmul.mubr.f32.gmra.mrb[0].mxu0 %v4168
          %v4236 = vpop.f32.mrb[0].mxu0
          %v4237 = vadd.f32 %v3342, %v4236
          %v4238 = vpop.f32.mrb[0].mxu0
          %v4239 = vadd.f32 %v3346, %v4238
          %4240 = vdwg.mxu0
          %4241 = vmatprep.subr.mxu0 0.0
          %4242 = vmatpush1.msra.mxu0 %v3269
          %4243 = vmatprep.subr.mxu0 0.0
          %4244 = vmatpush1.msra.mxu0 %v3272
          %4245 = vmatprep.subr.mxu0 0.0
          %4246 = vmatpush1.msra.mxu0 0.0
          %4247 = vmatprep.subr.mxu0 0.0
          %4248 = vmatpush1.msra.mxu0 0.0
          %4249 = vmatprep.subr.mxu0 0.0
          %4250 = vmatpush1.msra.mxu0 0.0
          %4251 = vmatprep.subr.mxu0 0.0
          %4252 = vmatpush1.msra.mxu0 0.0
          %4253 = vmatprep.subr.mxu0 0.0
          %4254 = vmatpush1.msra.mxu0 0.0
          %4255 = vmatprep.subr.mxu0 0.0
          %4256 = vmatpush1.msra.mxu0 0.0
          %4257 = vmatprep.subr.mxu0 0.0
          %4258 = vmatpush1.msra.mxu0 0.0
          %4259 = vmatprep.subr.mxu0 0.0
          %4260 = vmatpush1.msra.mxu0 0.0
          %4261 = vmatprep.subr.mxu0 0.0
          %4262 = vmatpush1.msra.mxu0 0.0
          %4263 = vmatprep.subr.mxu0 0.0
          %4264 = vmatpush1.msra.mxu0 0.0
          %4265 = vmatprep.subr.mxu0 0.0
          %4266 = vmatpush1.msra.mxu0 0.0
          %4267 = vmatprep.subr.mxu0 0.0
          %4268 = vmatpush1.msra.mxu0 0.0
          %4269 = vmatprep.subr.mxu0 0.0
          %4270 = vmatpush1.msra.mxu0 0.0
          %4271 = vmatprep.subr.mxu0 0.0
          %4272 = vmatpush1.msra.mxu0 0.0
          %4273 = vmatprep.subr.mxu0 0.0
          %4274 = vmatpush1.msra.mxu0 0.0
          %4275 = vmatprep.subr.mxu0 0.0
          %4276 = vmatpush1.msra.mxu0 0.0
          %4277 = vmatprep.subr.mxu0 0.0
          %4278 = vmatpush1.msra.mxu0 0.0
          %4279 = vmatprep.subr.mxu0 0.0
          %4280 = vmatpush1.msra.mxu0 0.0
          %4281 = vmatprep.subr.mxu0 0.0
          %4282 = vmatpush1.msra.mxu0 0.0
          %4283 = vmatprep.subr.mxu0 0.0
          %4284 = vmatpush1.msra.mxu0 0.0
          %4285 = vmatprep.subr.mxu0 0.0
          %4286 = vmatpush1.msra.mxu0 0.0
          %4287 = vmatprep.subr.mxu0 0.0
          %4288 = vmatpush1.msra.mxu0 0.0
          %4289 = vmatprep.subr.mxu0 0.0
          %4290 = vmatpush1.msra.mxu0 0.0
          %4291 = vmatprep.subr.mxu0 0.0
          %4292 = vmatpush1.msra.mxu0 0.0
          %4293 = vmatprep.subr.mxu0 0.0
          %4294 = vmatpush1.msra.mxu0 0.0
          %4295 = vmatprep.subr.mxu0 0.0
          %4296 = vmatpush1.msra.mxu0 0.0
          %4297 = vmatprep.subr.mxu0 0.0
          %4298 = vmatpush1.msra.mxu0 0.0
          %4299 = vmatprep.subr.mxu0 0.0
          %4300 = vmatpush1.msra.mxu0 0.0
          %4301 = vmatprep.subr.mxu0 0.0
          %4302 = vmatpush1.msra.mxu0 0.0
          %4303 = vmatprep.subr.mxu0 0.0
          %4304 = vmatpush1.msra.mxu0 0.0
          %4305 = vmatprep.mubr.f32.mxu0 0.0
          %4306 = vmatmul.mubr.f32.gmra.mrb[0].mxu0 %v4168
          %v4307 = vpop.f32.mrb[0].mxu0
          %v4308 = vadd.f32 %v3350, %v4307
          %v4309 = vpop.f32.mrb[0].mxu0
          %4310 = vdwg.mxu0
          %4311 = vmatprep.subr.mxu0 %v3274
          %4312 = vmatpush1.msra.mxu0 %v3273
          %4313 = vmatprep.subr.mxu0 %v3277
          %4314 = vmatpush1.msra.mxu0 %v3276
          %4315 = vmatprep.subr.mxu0 %v3280
          %4316 = vmatpush1.msra.mxu0 %v3279
          %4317 = vmatprep.subr.mxu0 %v3283
          %4318 = vmatpush1.msra.mxu0 %v3282
          %4319 = vmatprep.subr.mxu0 %v3286
          %4320 = vmatpush1.msra.mxu0 %v3285
          %4321 = vmatprep.subr.mxu0 %v3289
          %4322 = vmatpush1.msra.mxu0 %v3288
          %4323 = vmatprep.subr.mxu0 %v3292
          %4324 = vmatpush1.msra.mxu0 %v3291
          %4325 = vmatprep.subr.mxu0 %v3295
          %4326 = vmatpush1.msra.mxu0 %v3294
          %4327 = vmatprep.subr.mxu0 %v3298
          %4328 = vmatpush1.msra.mxu0 %v3297
          %4329 = vmatprep.subr.mxu0 %v3301
          %4330 = vmatpush1.msra.mxu0 %v3300
          %4331 = vmatprep.subr.mxu0 %v3304
          %4332 = vmatpush1.msra.mxu0 %v3303
          %4333 = vmatprep.subr.mxu0 %v3307
          %4334 = vmatpush1.msra.mxu0 %v3306
          %4335 = vmatprep.subr.mxu0 %v3310
          %4336 = vmatpush1.msra.mxu0 %v3309
          %4337 = vmatprep.subr.mxu0 %v3313
          %4338 = vmatpush1.msra.mxu0 %v3312
          %4339 = vmatprep.subr.mxu0 %v3316
          %4340 = vmatpush1.msra.mxu0 %v3315
          %4341 = vmatprep.subr.mxu0 %v3319
          %4342 = vmatpush1.msra.mxu0 %v3318
          %4343 = vmatprep.subr.mxu0 0.0
          %4344 = vmatpush1.msra.mxu0 0.0
          %4345 = vmatprep.subr.mxu0 0.0
          %4346 = vmatpush1.msra.mxu0 0.0
          %4347 = vmatprep.subr.mxu0 0.0
          %4348 = vmatpush1.msra.mxu0 0.0
          %4349 = vmatprep.subr.mxu0 0.0
          %4350 = vmatpush1.msra.mxu0 0.0
          %4351 = vmatprep.subr.mxu0 0.0
          %4352 = vmatpush1.msra.mxu0 0.0
          %4353 = vmatprep.subr.mxu0 0.0
          %4354 = vmatpush1.msra.mxu0 0.0
          %4355 = vmatprep.subr.mxu0 0.0
          %4356 = vmatpush1.msra.mxu0 0.0
          %4357 = vmatprep.subr.mxu0 0.0
          %4358 = vmatpush1.msra.mxu0 0.0
          %4359 = vmatprep.subr.mxu0 0.0
          %4360 = vmatpush1.msra.mxu0 0.0
          %4361 = vmatprep.subr.mxu0 0.0
          %4362 = vmatpush1.msra.mxu0 0.0
          %4363 = vmatprep.subr.mxu0 0.0
          %4364 = vmatpush1.msra.mxu0 0.0
          %4365 = vmatprep.subr.mxu0 0.0
          %4366 = vmatpush1.msra.mxu0 0.0
          %4367 = vmatprep.subr.mxu0 0.0
          %4368 = vmatpush1.msra.mxu0 0.0
          %4369 = vmatprep.subr.mxu0 0.0
          %4370 = vmatpush1.msra.mxu0 0.0
          %4371 = vmatprep.subr.mxu0 0.0
          %4372 = vmatpush1.msra.mxu0 0.0
          %4373 = vmatprep.subr.mxu0 0.0
          %4374 = vmatpush1.msra.mxu0 0.0
          %4375 = vmatprep.mubr.f32.mxu0 0.0
          %4376 = vmatmul.mubr.f32.gmra.mrb[0].mxu0 %v4083
          %v4377 = vpop.f32.mrb[0].mxu0
          %v4378 = vadd.f32 %v3359, %v4377
          %v4379 = vpop.f32.mrb[0].mxu0
          %v4380 = vadd.f32 %v3363, %v4379
          %4381 = vdwg.mxu0
          %4382 = vmatprep.subr.mxu0 0.0
          %4383 = vmatpush1.msra.mxu0 %v3275
          %4384 = vmatprep.subr.mxu0 0.0
          %4385 = vmatpush1.msra.mxu0 %v3278
          %4386 = vmatprep.subr.mxu0 0.0
          %4387 = vmatpush1.msra.mxu0 %v3281
          %4388 = vmatprep.subr.mxu0 0.0
          %4389 = vmatpush1.msra.mxu0 %v3284
          %4390 = vmatprep.subr.mxu0 0.0
          %4391 = vmatpush1.msra.mxu0 %v3287
          %4392 = vmatprep.subr.mxu0 0.0
          %4393 = vmatpush1.msra.mxu0 %v3290
          %4394 = vmatprep.subr.mxu0 0.0
          %4395 = vmatpush1.msra.mxu0 %v3293
          %4396 = vmatprep.subr.mxu0 0.0
          %4397 = vmatpush1.msra.mxu0 %v3296
          %4398 = vmatprep.subr.mxu0 0.0
          %4399 = vmatpush1.msra.mxu0 %v3299
          %4400 = vmatprep.subr.mxu0 0.0
          %4401 = vmatpush1.msra.mxu0 %v3302
          %4402 = vmatprep.subr.mxu0 0.0
          %4403 = vmatpush1.msra.mxu0 %v3305
          %4404 = vmatprep.subr.mxu0 0.0
          %4405 = vmatpush1.msra.mxu0 %v3308
          %4406 = vmatprep.subr.mxu0 0.0
          %4407 = vmatpush1.msra.mxu0 %v3311
          %4408 = vmatprep.subr.mxu0 0.0
          %4409 = vmatpush1.msra.mxu0 %v3314
          %4410 = vmatprep.subr.mxu0 0.0
          %4411 = vmatpush1.msra.mxu0 %v3317
          %4412 = vmatprep.subr.mxu0 0.0
          %4413 = vmatpush1.msra.mxu0 %v3320
          %4414 = vmatprep.subr.mxu0 0.0
          %4415 = vmatpush1.msra.mxu0 0.0
          %4416 = vmatprep.subr.mxu0 0.0
          %4417 = vmatpush1.msra.mxu0 0.0
          %4418 = vmatprep.subr.mxu0 0.0
          %4419 = vmatpush1.msra.mxu0 0.0
          %4420 = vmatprep.subr.mxu0 0.0
          %4421 = vmatpush1.msra.mxu0 0.0
          %4422 = vmatprep.subr.mxu0 0.0
          %4423 = vmatpush1.msra.mxu0 0.0
          %4424 = vmatprep.subr.mxu0 0.0
          %4425 = vmatpush1.msra.mxu0 0.0
          %4426 = vmatprep.subr.mxu0 0.0
          %4427 = vmatpush1.msra.mxu0 0.0
          %4428 = vmatprep.subr.mxu0 0.0
          %4429 = vmatpush1.msra.mxu0 0.0
          %4430 = vmatprep.subr.mxu0 0.0
          %4431 = vmatpush1.msra.mxu0 0.0
          %4432 = vmatprep.subr.mxu0 0.0
          %4433 = vmatpush1.msra.mxu0 0.0
          %4434 = vmatprep.subr.mxu0 0.0
          %4435 = vmatpush1.msra.mxu0 0.0
          %4436 = vmatprep.subr.mxu0 0.0
          %4437 = vmatpush1.msra.mxu0 0.0
          %4438 = vmatprep.subr.mxu0 0.0
          %4439 = vmatpush1.msra.mxu0 0.0
          %4440 = vmatprep.subr.mxu0 0.0
          %4441 = vmatpush1.msra.mxu0 0.0
          %4442 = vmatprep.subr.mxu0 0.0
          %4443 = vmatpush1.msra.mxu0 0.0
          %4444 = vmatprep.subr.mxu0 0.0
          %4445 = vmatpush1.msra.mxu0 0.0
          %4446 = vmatprep.mubr.f32.mxu0 0.0
          %4447 = vmatmul.mubr.f32.gmra.mrb[0].mxu0 %v4083
          %v4448 = vpop.f32.mrb[0].mxu0
          %v4449 = vadd.f32 %v3367, %v4448
          %v4450 = vpop.f32.mrb[0].mxu0
          %4451 = vdwg.mxu0
          %v4452 = vadd.f32 %v4237, %v4378
          %v4453 = vxor.u32 %v4452, 2147483648
          %v4454 = vmul.f32 %v4453, 1.442695
          %v4455 = vpow.pop %v4454
          %v4456 = vadd.f32 %v4455, 1.0
          %v4457 = vrcp.pop %v4456
          %v4458 = vmul.f32 1.0, %v4457
          %v4459 = vadd.f32 %v4239, %v4380
          %v4460 = vxor.u32 %v4459, 2147483648
          %v4461 = vmul.f32 %v4460, 1.442695
          %v4462 = vpow.pop %v4461
          %v4463 = vadd.f32 %v4462, 1.0
          %v4464 = vrcp.pop %v4463
          %v4465 = vmul.f32 1.0, %v4464
          %v4466 = vmul.f32 %v4458, %v4449
          %v4467 = vadd.f32 %v4308, %v4466
          %v4468 = vtanh.pop %v4467
          %v4469 = vsub.f32 1.0, %v4465
          %v4470 = vmul.f32 %v4469, %v4468
          %v4471 = vmul.f32 %v4465, %v4083
          %v4472 = vadd.f32 %v4470, %v4471
          %4473 = vmatprep.subr.mxu0 0.0
          %4474 = vmatpush1.msra.mxu0 %v3321
          %4475 = vmatprep.subr.mxu0 0.0
          %4476 = vmatpush1.msra.mxu0 %v3322
          %4477 = vmatprep.subr.mxu0 0.0
          %4478 = vmatpush1.msra.mxu0 %v3323
          %4479 = vmatprep.subr.mxu0 0.0
          %4480 = vmatpush1.msra.mxu0 %v3324
          %4481 = vmatprep.subr.mxu0 0.0
          %4482 = vmatpush1.msra.mxu0 %v3325
          %4483 = vmatprep.subr.mxu0 0.0
          %4484 = vmatpush1.msra.mxu0 %v3326
          %4485 = vmatprep.subr.mxu0 0.0
          %4486 = vmatpush1.msra.mxu0 %v3327
          %4487 = vmatprep.subr.mxu0 0.0
          %4488 = vmatpush1.msra.mxu0 %v3328
          %4489 = vmatprep.subr.mxu0 0.0
          %4490 = vmatpush1.msra.mxu0 %v3329
          %4491 = vmatprep.subr.mxu0 0.0
          %4492 = vmatpush1.msra.mxu0 %v3330
          %4493 = vmatprep.subr.mxu0 0.0
          %4494 = vmatpush1.msra.mxu0 %v3331
          %4495 = vmatprep.subr.mxu0 0.0
          %4496 = vmatpush1.msra.mxu0 %v3332
          %4497 = vmatprep.subr.mxu0 0.0
          %4498 = vmatpush1.msra.mxu0 %v3333
          %4499 = vmatprep.subr.mxu0 0.0
          %4500 = vmatpush1.msra.mxu0 %v3334
          %4501 = vmatprep.subr.mxu0 0.0
          %4502 = vmatpush1.msra.mxu0 %v3335
          %4503 = vmatprep.subr.mxu0 0.0
          %4504 = vmatpush1.msra.mxu0 %v3336
          %4505 = vmatprep.subr.mxu0 0.0
          %4506 = vmatpush1.msra.mxu0 0.0
          %4507 = vmatprep.subr.mxu0 0.0
          %4508 = vmatpush1.msra.mxu0 0.0
          %4509 = vmatprep.subr.mxu0 0.0
          %4510 = vmatpush1.msra.mxu0 0.0
          %4511 = vmatprep.subr.mxu0 0.0
          %4512 = vmatpush1.msra.mxu0 0.0
          %4513 = vmatprep.subr.mxu0 0.0
          %4514 = vmatpush1.msra.mxu0 0.0
          %4515 = vmatprep.subr.mxu0 0.0
          %4516 = vmatpush1.msra.mxu0 0.0
          %4517 = vmatprep.subr.mxu0 0.0
          %4518 = vmatpush1.msra.mxu0 0.0
          %4519 = vmatprep.subr.mxu0 0.0
          %4520 = vmatpush1.msra.mxu0 0.0
          %4521 = vmatprep.subr.mxu0 0.0
          %4522 = vmatpush1.msra.mxu0 0.0
          %4523 = vmatprep.subr.mxu0 0.0
          %4524 = vmatpush1.msra.mxu0 0.0
          %4525 = vmatprep.subr.mxu0 0.0
          %4526 = vmatpush1.msra.mxu0 0.0
          %4527 = vmatprep.subr.mxu0 0.0
          %4528 = vmatpush1.msra.mxu0 0.0
          %4529 = vmatprep.subr.mxu0 0.0
          %4530 = vmatpush1.msra.mxu0 0.0
          %4531 = vmatprep.subr.mxu0 0.0
          %4532 = vmatpush1.msra.mxu0 0.0
          %4533 = vmatprep.subr.mxu0 0.0
          %4534 = vmatpush1.msra.mxu0 0.0
          %4535 = vmatprep.subr.mxu0 0.0
          %4536 = vmatpush1.msra.mxu0 0.0
          %4537 = vmatprep.mubr.f32.mxu0 0.0
          %4538 = vmatmul.mubr.f32.gmra.mrb[0].mxu0 %v4472
          %v4539 = vpop.f32.mrb[0].mxu0
          %v4540 = vadd.f32 0.0, %v4539
          %v4541 = vpop.f32.mrb[0].mxu0
          %4542 = vdwg.mxu0
          %v4544 = vrot.slane %v4540, 1
          %v4547 = vadd.f32 %v4160, %v4540
          %v4548 = vadd.f32 %v4161, %v4544
          %v4549 = vadd.f32 %v4547, %v3376
          %v4550 = vadd.f32 %v4548, %v3376
          %4551 = vst.msk [vmem:[%s463 + $0x2] sm:$0x1] %vm3772, %v4549
          %4552 = vst.msk [vmem:[%s463 + $0xa] sm:$0x1] %vm3772, %v4550
          %v4555 = vrot.slane %v4550, 7
          %v4556 = vsel %vm3386, %v4555, %v4549
          %v4557 = vsel %vm3388, %v4556, 0
          %4559 = vmatprep.subr.mxu0 %v3268
          %4560 = vmatpush1.msra.mxu0 %v3267
          %4561 = vmatprep.subr.mxu0 %v3271
          %4562 = vmatpush1.msra.mxu0 %v3270
          %4563 = vmatprep.subr.mxu0 0.0
          %4564 = vmatpush1.msra.mxu0 0.0
          %4565 = vmatprep.subr.mxu0 0.0
          %4566 = vmatpush1.msra.mxu0 0.0
          %4567 = vmatprep.subr.mxu0 0.0
          %4568 = vmatpush1.msra.mxu0 0.0
          %4569 = vmatprep.subr.mxu0 0.0
          %4570 = vmatpush1.msra.mxu0 0.0
          %4571 = vmatprep.subr.mxu0 0.0
          %4572 = vmatpush1.msra.mxu0 0.0
          %4573 = vmatprep.subr.mxu0 0.0
          %4574 = vmatpush1.msra.mxu0 0.0
          %4575 = vmatprep.subr.mxu0 0.0
          %4576 = vmatpush1.msra.mxu0 0.0
          %4577 = vmatprep.subr.mxu0 0.0
          %4578 = vmatpush1.msra.mxu0 0.0
          %4579 = vmatprep.subr.mxu0 0.0
          %4580 = vmatpush1.msra.mxu0 0.0
          %4581 = vmatprep.subr.mxu0 0.0
          %4582 = vmatpush1.msra.mxu0 0.0
          %4583 = vmatprep.subr.mxu0 0.0
          %4584 = vmatpush1.msra.mxu0 0.0
          %4585 = vmatprep.subr.mxu0 0.0
          %4586 = vmatpush1.msra.mxu0 0.0
          %4587 = vmatprep.subr.mxu0 0.0
          %4588 = vmatpush1.msra.mxu0 0.0
          %4589 = vmatprep.subr.mxu0 0.0
          %4590 = vmatpush1.msra.mxu0 0.0
          %4591 = vmatprep.subr.mxu0 0.0
          %4592 = vmatpush1.msra.mxu0 0.0
          %4593 = vmatprep.subr.mxu0 0.0
          %4594 = vmatpush1.msra.mxu0 0.0
          %4595 = vmatprep.subr.mxu0 0.0
          %4596 = vmatpush1.msra.mxu0 0.0
          %4597 = vmatprep.subr.mxu0 0.0
          %4598 = vmatpush1.msra.mxu0 0.0
          %4599 = vmatprep.subr.mxu0 0.0
          %4600 = vmatpush1.msra.mxu0 0.0
          %4601 = vmatprep.subr.mxu0 0.0
          %4602 = vmatpush1.msra.mxu0 0.0
          %4603 = vmatprep.subr.mxu0 0.0
          %4604 = vmatpush1.msra.mxu0 0.0
          %4605 = vmatprep.subr.mxu0 0.0
          %4606 = vmatpush1.msra.mxu0 0.0
          %4607 = vmatprep.subr.mxu0 0.0
          %4608 = vmatpush1.msra.mxu0 0.0
          %4609 = vmatprep.subr.mxu0 0.0
          %4610 = vmatpush1.msra.mxu0 0.0
          %4611 = vmatprep.subr.mxu0 0.0
          %4612 = vmatpush1.msra.mxu0 0.0
          %4613 = vmatprep.subr.mxu0 0.0
          %4614 = vmatpush1.msra.mxu0 0.0
          %4615 = vmatprep.subr.mxu0 0.0
          %4616 = vmatpush1.msra.mxu0 0.0
          %4617 = vmatprep.subr.mxu0 0.0
          %4618 = vmatpush1.msra.mxu0 0.0
          %4619 = vmatprep.subr.mxu0 0.0
          %4620 = vmatpush1.msra.mxu0 0.0
          %4621 = vmatprep.subr.mxu0 0.0
          %4622 = vmatpush1.msra.mxu0 0.0
          %4623 = vmatprep.mubr.f32.mxu0 0.0
          %4624 = vmatmul.mubr.f32.gmra.mrb[0].mxu0 %v4557
          %v4625 = vpop.f32.mrb[0].mxu0
          %v4626 = vadd.f32 %v3342, %v4625
          %v4627 = vpop.f32.mrb[0].mxu0
          %v4628 = vadd.f32 %v3346, %v4627
          %4629 = vdwg.mxu0
          %4630 = vmatprep.subr.mxu0 0.0
          %4631 = vmatpush1.msra.mxu0 %v3269
          %4632 = vmatprep.subr.mxu0 0.0
          %4633 = vmatpush1.msra.mxu0 %v3272
          %4634 = vmatprep.subr.mxu0 0.0
          %4635 = vmatpush1.msra.mxu0 0.0
          %4636 = vmatprep.subr.mxu0 0.0
          %4637 = vmatpush1.msra.mxu0 0.0
          %4638 = vmatprep.subr.mxu0 0.0
          %4639 = vmatpush1.msra.mxu0 0.0
          %4640 = vmatprep.subr.mxu0 0.0
          %4641 = vmatpush1.msra.mxu0 0.0
          %4642 = vmatprep.subr.mxu0 0.0
          %4643 = vmatpush1.msra.mxu0 0.0
          %4644 = vmatprep.subr.mxu0 0.0
          %4645 = vmatpush1.msra.mxu0 0.0
          %4646 = vmatprep.subr.mxu0 0.0
          %4647 = vmatpush1.msra.mxu0 0.0
          %4648 = vmatprep.subr.mxu0 0.0
          %4649 = vmatpush1.msra.mxu0 0.0
          %4650 = vmatprep.subr.mxu0 0.0
          %4651 = vmatpush1.msra.mxu0 0.0
          %4652 = vmatprep.subr.mxu0 0.0
          %4653 = vmatpush1.msra.mxu0 0.0
          %4654 = vmatprep.subr.mxu0 0.0
          %4655 = vmatpush1.msra.mxu0 0.0
          %4656 = vmatprep.subr.mxu0 0.0
          %4657 = vmatpush1.msra.mxu0 0.0
          %4658 = vmatprep.subr.mxu0 0.0
          %4659 = vmatpush1.msra.mxu0 0.0
          %4660 = vmatprep.subr.mxu0 0.0
          %4661 = vmatpush1.msra.mxu0 0.0
          %4662 = vmatprep.subr.mxu0 0.0
          %4663 = vmatpush1.msra.mxu0 0.0
          %4664 = vmatprep.subr.mxu0 0.0
          %4665 = vmatpush1.msra.mxu0 0.0
          %4666 = vmatprep.subr.mxu0 0.0
          %4667 = vmatpush1.msra.mxu0 0.0
          %4668 = vmatprep.subr.mxu0 0.0
          %4669 = vmatpush1.msra.mxu0 0.0
          %4670 = vmatprep.subr.mxu0 0.0
          %4671 = vmatpush1.msra.mxu0 0.0
          %4672 = vmatprep.subr.mxu0 0.0
          %4673 = vmatpush1.msra.mxu0 0.0
          %4674 = vmatprep.subr.mxu0 0.0
          %4675 = vmatpush1.msra.mxu0 0.0
          %4676 = vmatprep.subr.mxu0 0.0
          %4677 = vmatpush1.msra.mxu0 0.0
          %4678 = vmatprep.subr.mxu0 0.0
          %4679 = vmatpush1.msra.mxu0 0.0
          %4680 = vmatprep.subr.mxu0 0.0
          %4681 = vmatpush1.msra.mxu0 0.0
          %4682 = vmatprep.subr.mxu0 0.0
          %4683 = vmatpush1.msra.mxu0 0.0
          %4684 = vmatprep.subr.mxu0 0.0
          %4685 = vmatpush1.msra.mxu0 0.0
          %4686 = vmatprep.subr.mxu0 0.0
          %4687 = vmatpush1.msra.mxu0 0.0
          %4688 = vmatprep.subr.mxu0 0.0
          %4689 = vmatpush1.msra.mxu0 0.0
          %4690 = vmatprep.subr.mxu0 0.0
          %4691 = vmatpush1.msra.mxu0 0.0
          %4692 = vmatprep.subr.mxu0 0.0
          %4693 = vmatpush1.msra.mxu0 0.0
          %4694 = vmatprep.mubr.f32.mxu0 0.0
          %4695 = vmatmul.mubr.f32.gmra.mrb[0].mxu0 %v4557
          %v4696 = vpop.f32.mrb[0].mxu0
          %v4697 = vadd.f32 %v3350, %v4696
          %v4698 = vpop.f32.mrb[0].mxu0
          %4699 = vdwg.mxu0
          %4700 = vmatprep.subr.mxu0 %v3274
          %4701 = vmatpush1.msra.mxu0 %v3273
          %4702 = vmatprep.subr.mxu0 %v3277
          %4703 = vmatpush1.msra.mxu0 %v3276
          %4704 = vmatprep.subr.mxu0 %v3280
          %4705 = vmatpush1.msra.mxu0 %v3279
          %4706 = vmatprep.subr.mxu0 %v3283
          %4707 = vmatpush1.msra.mxu0 %v3282
          %4708 = vmatprep.subr.mxu0 %v3286
          %4709 = vmatpush1.msra.mxu0 %v3285
          %4710 = vmatprep.subr.mxu0 %v3289
          %4711 = vmatpush1.msra.mxu0 %v3288
          %4712 = vmatprep.subr.mxu0 %v3292
          %4713 = vmatpush1.msra.mxu0 %v3291
          %4714 = vmatprep.subr.mxu0 %v3295
          %4715 = vmatpush1.msra.mxu0 %v3294
          %4716 = vmatprep.subr.mxu0 %v3298
          %4717 = vmatpush1.msra.mxu0 %v3297
          %4718 = vmatprep.subr.mxu0 %v3301
          %4719 = vmatpush1.msra.mxu0 %v3300
          %4720 = vmatprep.subr.mxu0 %v3304
          %4721 = vmatpush1.msra.mxu0 %v3303
          %4722 = vmatprep.subr.mxu0 %v3307
          %4723 = vmatpush1.msra.mxu0 %v3306
          %4724 = vmatprep.subr.mxu0 %v3310
          %4725 = vmatpush1.msra.mxu0 %v3309
          %4726 = vmatprep.subr.mxu0 %v3313
          %4727 = vmatpush1.msra.mxu0 %v3312
          %4728 = vmatprep.subr.mxu0 %v3316
          %4729 = vmatpush1.msra.mxu0 %v3315
          %4730 = vmatprep.subr.mxu0 %v3319
          %4731 = vmatpush1.msra.mxu0 %v3318
          %4732 = vmatprep.subr.mxu0 0.0
          %4733 = vmatpush1.msra.mxu0 0.0
          %4734 = vmatprep.subr.mxu0 0.0
          %4735 = vmatpush1.msra.mxu0 0.0
          %4736 = vmatprep.subr.mxu0 0.0
          %4737 = vmatpush1.msra.mxu0 0.0
          %4738 = vmatprep.subr.mxu0 0.0
          %4739 = vmatpush1.msra.mxu0 0.0
          %4740 = vmatprep.subr.mxu0 0.0
          %4741 = vmatpush1.msra.mxu0 0.0
          %4742 = vmatprep.subr.mxu0 0.0
          %4743 = vmatpush1.msra.mxu0 0.0
          %4744 = vmatprep.subr.mxu0 0.0
          %4745 = vmatpush1.msra.mxu0 0.0
          %4746 = vmatprep.subr.mxu0 0.0
          %4747 = vmatpush1.msra.mxu0 0.0
          %4748 = vmatprep.subr.mxu0 0.0
          %4749 = vmatpush1.msra.mxu0 0.0
          %4750 = vmatprep.subr.mxu0 0.0
          %4751 = vmatpush1.msra.mxu0 0.0
          %4752 = vmatprep.subr.mxu0 0.0
          %4753 = vmatpush1.msra.mxu0 0.0
          %4754 = vmatprep.subr.mxu0 0.0
          %4755 = vmatpush1.msra.mxu0 0.0
          %4756 = vmatprep.subr.mxu0 0.0
          %4757 = vmatpush1.msra.mxu0 0.0
          %4758 = vmatprep.subr.mxu0 0.0
          %4759 = vmatpush1.msra.mxu0 0.0
          %4760 = vmatprep.subr.mxu0 0.0
          %4761 = vmatpush1.msra.mxu0 0.0
          %4762 = vmatprep.subr.mxu0 0.0
          %4763 = vmatpush1.msra.mxu0 0.0
          %4764 = vmatprep.mubr.f32.mxu0 0.0
          %4765 = vmatmul.mubr.f32.gmra.mrb[0].mxu0 %v4472
          %v4766 = vpop.f32.mrb[0].mxu0
          %v4767 = vadd.f32 %v3359, %v4766
          %v4768 = vpop.f32.mrb[0].mxu0
          %v4769 = vadd.f32 %v3363, %v4768
          %4770 = vdwg.mxu0
          %4771 = vmatprep.subr.mxu0 0.0
          %4772 = vmatpush1.msra.mxu0 %v3275
          %4773 = vmatprep.subr.mxu0 0.0
          %4774 = vmatpush1.msra.mxu0 %v3278
          %4775 = vmatprep.subr.mxu0 0.0
          %4776 = vmatpush1.msra.mxu0 %v3281
          %4777 = vmatprep.subr.mxu0 0.0
          %4778 = vmatpush1.msra.mxu0 %v3284
          %4779 = vmatprep.subr.mxu0 0.0
          %4780 = vmatpush1.msra.mxu0 %v3287
          %4781 = vmatprep.subr.mxu0 0.0
          %4782 = vmatpush1.msra.mxu0 %v3290
          %4783 = vmatprep.subr.mxu0 0.0
          %4784 = vmatpush1.msra.mxu0 %v3293
          %4785 = vmatprep.subr.mxu0 0.0
          %4786 = vmatpush1.msra.mxu0 %v3296
          %4787 = vmatprep.subr.mxu0 0.0
          %4788 = vmatpush1.msra.mxu0 %v3299
          %4789 = vmatprep.subr.mxu0 0.0
          %4790 = vmatpush1.msra.mxu0 %v3302
          %4791 = vmatprep.subr.mxu0 0.0
          %4792 = vmatpush1.msra.mxu0 %v3305
          %4793 = vmatprep.subr.mxu0 0.0
          %4794 = vmatpush1.msra.mxu0 %v3308
          %4795 = vmatprep.subr.mxu0 0.0
          %4796 = vmatpush1.msra.mxu0 %v3311
          %4797 = vmatprep.subr.mxu0 0.0
          %4798 = vmatpush1.msra.mxu0 %v3314
          %4799 = vmatprep.subr.mxu0 0.0
          %4800 = vmatpush1.msra.mxu0 %v3317
          %4801 = vmatprep.subr.mxu0 0.0
          %4802 = vmatpush1.msra.mxu0 %v3320
          %4803 = vmatprep.subr.mxu0 0.0
          %4804 = vmatpush1.msra.mxu0 0.0
          %4805 = vmatprep.subr.mxu0 0.0
          %4806 = vmatpush1.msra.mxu0 0.0
          %4807 = vmatprep.subr.mxu0 0.0
          %4808 = vmatpush1.msra.mxu0 0.0
          %4809 = vmatprep.subr.mxu0 0.0
          %4810 = vmatpush1.msra.mxu0 0.0
          %4811 = vmatprep.subr.mxu0 0.0
          %4812 = vmatpush1.msra.mxu0 0.0
          %4813 = vmatprep.subr.mxu0 0.0
          %4814 = vmatpush1.msra.mxu0 0.0
          %4815 = vmatprep.subr.mxu0 0.0
          %4816 = vmatpush1.msra.mxu0 0.0
          %4817 = vmatprep.subr.mxu0 0.0
          %4818 = vmatpush1.msra.mxu0 0.0
          %4819 = vmatprep.subr.mxu0 0.0
          %4820 = vmatpush1.msra.mxu0 0.0
          %4821 = vmatprep.subr.mxu0 0.0
          %4822 = vmatpush1.msra.mxu0 0.0
          %4823 = vmatprep.subr.mxu0 0.0
          %4824 = vmatpush1.msra.mxu0 0.0
          %4825 = vmatprep.subr.mxu0 0.0
          %4826 = vmatpush1.msra.mxu0 0.0
          %4827 = vmatprep.subr.mxu0 0.0
          %4828 = vmatpush1.msra.mxu0 0.0
          %4829 = vmatprep.subr.mxu0 0.0
          %4830 = vmatpush1.msra.mxu0 0.0
          %4831 = vmatprep.subr.mxu0 0.0
          %4832 = vmatpush1.msra.mxu0 0.0
          %4833 = vmatprep.subr.mxu0 0.0
          %4834 = vmatpush1.msra.mxu0 0.0
          %4835 = vmatprep.mubr.f32.mxu0 0.0
          %4836 = vmatmul.mubr.f32.gmra.mrb[0].mxu0 %v4472
          %v4837 = vpop.f32.mrb[0].mxu0
          %v4838 = vadd.f32 %v3367, %v4837
          %v4839 = vpop.f32.mrb[0].mxu0
          %4840 = vdwg.mxu0
          %v4841 = vadd.f32 %v4626, %v4767
          %v4842 = vxor.u32 %v4841, 2147483648
          %v4843 = vmul.f32 %v4842, 1.442695
          %v4844 = vpow.pop %v4843
          %v4845 = vadd.f32 %v4844, 1.0
          %v4846 = vrcp.pop %v4845
          %v4847 = vmul.f32 1.0, %v4846
          %v4848 = vadd.f32 %v4628, %v4769
          %v4849 = vxor.u32 %v4848, 2147483648
          %v4850 = vmul.f32 %v4849, 1.442695
          %v4851 = vpow.pop %v4850
          %v4852 = vadd.f32 %v4851, 1.0
          %v4853 = vrcp.pop %v4852
          %v4854 = vmul.f32 1.0, %v4853
          %v4855 = vmul.f32 %v4847, %v4838
          %v4856 = vadd.f32 %v4697, %v4855
          %v4857 = vtanh.pop %v4856
          %v4858 = vsub.f32 1.0, %v4854
          %v4859 = vmul.f32 %v4858, %v4857
          %v4860 = vmul.f32 %v4854, %v4472
          %v4861 = vadd.f32 %v4859, %v4860
          %4862 = vmatprep.subr.mxu0 0.0
          %4863 = vmatpush1.msra.mxu0 %v3321
          %4864 = vmatprep.subr.mxu0 0.0
          %4865 = vmatpush1.msra.mxu0 %v3322
          %4866 = vmatprep.subr.mxu0 0.0
          %4867 = vmatpush1.msra.mxu0 %v3323
          %4868 = vmatprep.subr.mxu0 0.0
          %4869 = vmatpush1.msra.mxu0 %v3324
          %4870 = vmatprep.subr.mxu0 0.0
          %4871 = vmatpush1.msra.mxu0 %v3325
          %4872 = vmatprep.subr.mxu0 0.0
          %4873 = vmatpush1.msra.mxu0 %v3326
          %4874 = vmatprep.subr.mxu0 0.0
          %4875 = vmatpush1.msra.mxu0 %v3327
          %4876 = vmatprep.subr.mxu0 0.0
          %4877 = vmatpush1.msra.mxu0 %v3328
          %4878 = vmatprep.subr.mxu0 0.0
          %4879 = vmatpush1.msra.mxu0 %v3329
          %4880 = vmatprep.subr.mxu0 0.0
          %4881 = vmatpush1.msra.mxu0 %v3330
          %4882 = vmatprep.subr.mxu0 0.0
          %4883 = vmatpush1.msra.mxu0 %v3331
          %4884 = vmatprep.subr.mxu0 0.0
          %4885 = vmatpush1.msra.mxu0 %v3332
          %4886 = vmatprep.subr.mxu0 0.0
          %4887 = vmatpush1.msra.mxu0 %v3333
          %4888 = vmatprep.subr.mxu0 0.0
          %4889 = vmatpush1.msra.mxu0 %v3334
          %4890 = vmatprep.subr.mxu0 0.0
          %4891 = vmatpush1.msra.mxu0 %v3335
          %4892 = vmatprep.subr.mxu0 0.0
          %4893 = vmatpush1.msra.mxu0 %v3336
          %4894 = vmatprep.subr.mxu0 0.0
          %4895 = vmatpush1.msra.mxu0 0.0
          %4896 = vmatprep.subr.mxu0 0.0
          %4897 = vmatpush1.msra.mxu0 0.0
          %4898 = vmatprep.subr.mxu0 0.0
          %4899 = vmatpush1.msra.mxu0 0.0
          %4900 = vmatprep.subr.mxu0 0.0
          %4901 = vmatpush1.msra.mxu0 0.0
          %4902 = vmatprep.subr.mxu0 0.0
          %4903 = vmatpush1.msra.mxu0 0.0
          %4904 = vmatprep.subr.mxu0 0.0
          %4905 = vmatpush1.msra.mxu0 0.0
          %4906 = vmatprep.subr.mxu0 0.0
          %4907 = vmatpush1.msra.mxu0 0.0
          %4908 = vmatprep.subr.mxu0 0.0
          %4909 = vmatpush1.msra.mxu0 0.0
          %4910 = vmatprep.subr.mxu0 0.0
          %4911 = vmatpush1.msra.mxu0 0.0
          %4912 = vmatprep.subr.mxu0 0.0
          %4913 = vmatpush1.msra.mxu0 0.0
          %4914 = vmatprep.subr.mxu0 0.0
          %4915 = vmatpush1.msra.mxu0 0.0
          %4916 = vmatprep.subr.mxu0 0.0
          %4917 = vmatpush1.msra.mxu0 0.0
          %4918 = vmatprep.subr.mxu0 0.0
          %4919 = vmatpush1.msra.mxu0 0.0
          %4920 = vmatprep.subr.mxu0 0.0
          %4921 = vmatpush1.msra.mxu0 0.0
          %4922 = vmatprep.subr.mxu0 0.0
          %4923 = vmatpush1.msra.mxu0 0.0
          %4924 = vmatprep.subr.mxu0 0.0
          %4925 = vmatpush1.msra.mxu0 0.0
          %4926 = vmatprep.mubr.f32.mxu0 0.0
          %4927 = vmatmul.mubr.f32.gmra.mrb[0].mxu0 %v4861
          %v4928 = vpop.f32.mrb[0].mxu0
          %v4929 = vadd.f32 0.0, %v4928
          %v4930 = vpop.f32.mrb[0].mxu0
          %4931 = vdwg.mxu0
          %v4933 = vrot.slane %v4929, 1
          %v4936 = vadd.f32 %v4549, %v4929
          %v4937 = vadd.f32 %v4550, %v4933
          %v4938 = vadd.f32 %v4936, %v3376
          %v4939 = vadd.f32 %v4937, %v3376
          %4940 = vst.msk [vmem:[%s463 + $0x3] sm:$0x1] %vm3772, %v4938
          %4941 = vst.msk [vmem:[%s463 + $0xb] sm:$0x1] %vm3772, %v4939
          %v4944 = vrot.slane %v4939, 7
          %v4945 = vsel %vm3386, %v4944, %v4938
          %v4946 = vsel %vm3388, %v4945, 0
          %4948 = vmatprep.subr.mxu0 %v3268
          %4949 = vmatpush1.msra.mxu0 %v3267
          %4950 = vmatprep.subr.mxu0 %v3271
          %4951 = vmatpush1.msra.mxu0 %v3270
          %4952 = vmatprep.subr.mxu0 0.0
          %4953 = vmatpush1.msra.mxu0 0.0
          %4954 = vmatprep.subr.mxu0 0.0
          %4955 = vmatpush1.msra.mxu0 0.0
          %4956 = vmatprep.subr.mxu0 0.0
          %4957 = vmatpush1.msra.mxu0 0.0
          %4958 = vmatprep.subr.mxu0 0.0
          %4959 = vmatpush1.msra.mxu0 0.0
          %4960 = vmatprep.subr.mxu0 0.0
          %4961 = vmatpush1.msra.mxu0 0.0
          %4962 = vmatprep.subr.mxu0 0.0
          %4963 = vmatpush1.msra.mxu0 0.0
          %4964 = vmatprep.subr.mxu0 0.0
          %4965 = vmatpush1.msra.mxu0 0.0
          %4966 = vmatprep.subr.mxu0 0.0
          %4967 = vmatpush1.msra.mxu0 0.0
          %4968 = vmatprep.subr.mxu0 0.0
          %4969 = vmatpush1.msra.mxu0 0.0
          %4970 = vmatprep.subr.mxu0 0.0
          %4971 = vmatpush1.msra.mxu0 0.0
          %4972 = vmatprep.subr.mxu0 0.0
          %4973 = vmatpush1.msra.mxu0 0.0
          %4974 = vmatprep.subr.mxu0 0.0
          %4975 = vmatpush1.msra.mxu0 0.0
          %4976 = vmatprep.subr.mxu0 0.0
          %4977 = vmatpush1.msra.mxu0 0.0
          %4978 = vmatprep.subr.mxu0 0.0
          %4979 = vmatpush1.msra.mxu0 0.0
          %4980 = vmatprep.subr.mxu0 0.0
          %4981 = vmatpush1.msra.mxu0 0.0
          %4982 = vmatprep.subr.mxu0 0.0
          %4983 = vmatpush1.msra.mxu0 0.0
          %4984 = vmatprep.subr.mxu0 0.0
          %4985 = vmatpush1.msra.mxu0 0.0
          %4986 = vmatprep.subr.mxu0 0.0
          %4987 = vmatpush1.msra.mxu0 0.0
          %4988 = vmatprep.subr.mxu0 0.0
          %4989 = vmatpush1.msra.mxu0 0.0
          %4990 = vmatprep.subr.mxu0 0.0
          %4991 = vmatpush1.msra.mxu0 0.0
          %4992 = vmatprep.subr.mxu0 0.0
          %4993 = vmatpush1.msra.mxu0 0.0
          %4994 = vmatprep.subr.mxu0 0.0
          %4995 = vmatpush1.msra.mxu0 0.0
          %4996 = vmatprep.subr.mxu0 0.0
          %4997 = vmatpush1.msra.mxu0 0.0
          %4998 = vmatprep.subr.mxu0 0.0
          %4999 = vmatpush1.msra.mxu0 0.0
          %5000 = vmatprep.subr.mxu0 0.0
          %5001 = vmatpush1.msra.mxu0 0.0
          %5002 = vmatprep.subr.mxu0 0.0
          %5003 = vmatpush1.msra.mxu0 0.0
          %5004 = vmatprep.subr.mxu0 0.0
          %5005 = vmatpush1.msra.mxu0 0.0
          %5006 = vmatprep.subr.mxu0 0.0
          %5007 = vmatpush1.msra.mxu0 0.0
          %5008 = vmatprep.subr.mxu0 0.0
          %5009 = vmatpush1.msra.mxu0 0.0
          %5010 = vmatprep.subr.mxu0 0.0
          %5011 = vmatpush1.msra.mxu0 0.0
          %5012 = vmatprep.mubr.f32.mxu0 0.0
          %5013 = vmatmul.mubr.f32.gmra.mrb[0].mxu0 %v4946
          %v5014 = vpop.f32.mrb[0].mxu0
          %v5015 = vadd.f32 %v3342, %v5014
          %v5016 = vpop.f32.mrb[0].mxu0
          %v5017 = vadd.f32 %v3346, %v5016
          %5018 = vdwg.mxu0
          %5019 = vmatprep.subr.mxu0 0.0
          %5020 = vmatpush1.msra.mxu0 %v3269
          %5021 = vmatprep.subr.mxu0 0.0
          %5022 = vmatpush1.msra.mxu0 %v3272
          %5023 = vmatprep.subr.mxu0 0.0
          %5024 = vmatpush1.msra.mxu0 0.0
          %5025 = vmatprep.subr.mxu0 0.0
          %5026 = vmatpush1.msra.mxu0 0.0
          %5027 = vmatprep.subr.mxu0 0.0
          %5028 = vmatpush1.msra.mxu0 0.0
          %5029 = vmatprep.subr.mxu0 0.0
          %5030 = vmatpush1.msra.mxu0 0.0
          %5031 = vmatprep.subr.mxu0 0.0
          %5032 = vmatpush1.msra.mxu0 0.0
          %5033 = vmatprep.subr.mxu0 0.0
          %5034 = vmatpush1.msra.mxu0 0.0
          %5035 = vmatprep.subr.mxu0 0.0
          %5036 = vmatpush1.msra.mxu0 0.0
          %5037 = vmatprep.subr.mxu0 0.0
          %5038 = vmatpush1.msra.mxu0 0.0
          %5039 = vmatprep.subr.mxu0 0.0
          %5040 = vmatpush1.msra.mxu0 0.0
          %5041 = vmatprep.subr.mxu0 0.0
          %5042 = vmatpush1.msra.mxu0 0.0
          %5043 = vmatprep.subr.mxu0 0.0
          %5044 = vmatpush1.msra.mxu0 0.0
          %5045 = vmatprep.subr.mxu0 0.0
          %5046 = vmatpush1.msra.mxu0 0.0
          %5047 = vmatprep.subr.mxu0 0.0
          %5048 = vmatpush1.msra.mxu0 0.0
          %5049 = vmatprep.subr.mxu0 0.0
          %5050 = vmatpush1.msra.mxu0 0.0
          %5051 = vmatprep.subr.mxu0 0.0
          %5052 = vmatpush1.msra.mxu0 0.0
          %5053 = vmatprep.subr.mxu0 0.0
          %5054 = vmatpush1.msra.mxu0 0.0
          %5055 = vmatprep.subr.mxu0 0.0
          %5056 = vmatpush1.msra.mxu0 0.0
          %5057 = vmatprep.subr.mxu0 0.0
          %5058 = vmatpush1.msra.mxu0 0.0
          %5059 = vmatprep.subr.mxu0 0.0
          %5060 = vmatpush1.msra.mxu0 0.0
          %5061 = vmatprep.subr.mxu0 0.0
          %5062 = vmatpush1.msra.mxu0 0.0
          %5063 = vmatprep.subr.mxu0 0.0
          %5064 = vmatpush1.msra.mxu0 0.0
          %5065 = vmatprep.subr.mxu0 0.0
          %5066 = vmatpush1.msra.mxu0 0.0
          %5067 = vmatprep.subr.mxu0 0.0
          %5068 = vmatpush1.msra.mxu0 0.0
          %5069 = vmatprep.subr.mxu0 0.0
          %5070 = vmatpush1.msra.mxu0 0.0
          %5071 = vmatprep.subr.mxu0 0.0
          %5072 = vmatpush1.msra.mxu0 0.0
          %5073 = vmatprep.subr.mxu0 0.0
          %5074 = vmatpush1.msra.mxu0 0.0
          %5075 = vmatprep.subr.mxu0 0.0
          %5076 = vmatpush1.msra.mxu0 0.0
          %5077 = vmatprep.subr.mxu0 0.0
          %5078 = vmatpush1.msra.mxu0 0.0
          %5079 = vmatprep.subr.mxu0 0.0
          %5080 = vmatpush1.msra.mxu0 0.0
          %5081 = vmatprep.subr.mxu0 0.0
          %5082 = vmatpush1.msra.mxu0 0.0
          %5083 = vmatprep.mubr.f32.mxu0 0.0
          %5084 = vmatmul.mubr.f32.gmra.mrb[0].mxu0 %v4946
          %v5085 = vpop.f32.mrb[0].mxu0
          %v5086 = vadd.f32 %v3350, %v5085
          %v5087 = vpop.f32.mrb[0].mxu0
          %5088 = vdwg.mxu0
          %5089 = vmatprep.subr.mxu0 %v3274
          %5090 = vmatpush1.msra.mxu0 %v3273
          %5091 = vmatprep.subr.mxu0 %v3277
          %5092 = vmatpush1.msra.mxu0 %v3276
          %5093 = vmatprep.subr.mxu0 %v3280
          %5094 = vmatpush1.msra.mxu0 %v3279
          %5095 = vmatprep.subr.mxu0 %v3283
          %5096 = vmatpush1.msra.mxu0 %v3282
          %5097 = vmatprep.subr.mxu0 %v3286
          %5098 = vmatpush1.msra.mxu0 %v3285
          %5099 = vmatprep.subr.mxu0 %v3289
          %5100 = vmatpush1.msra.mxu0 %v3288
          %5101 = vmatprep.subr.mxu0 %v3292
          %5102 = vmatpush1.msra.mxu0 %v3291
          %5103 = vmatprep.subr.mxu0 %v3295
          %5104 = vmatpush1.msra.mxu0 %v3294
          %5105 = vmatprep.subr.mxu0 %v3298
          %5106 = vmatpush1.msra.mxu0 %v3297
          %5107 = vmatprep.subr.mxu0 %v3301
          %5108 = vmatpush1.msra.mxu0 %v3300
          %5109 = vmatprep.subr.mxu0 %v3304
          %5110 = vmatpush1.msra.mxu0 %v3303
          %5111 = vmatprep.subr.mxu0 %v3307
          %5112 = vmatpush1.msra.mxu0 %v3306
          %5113 = vmatprep.subr.mxu0 %v3310
          %5114 = vmatpush1.msra.mxu0 %v3309
          %5115 = vmatprep.subr.mxu0 %v3313
          %5116 = vmatpush1.msra.mxu0 %v3312
          %5117 = vmatprep.subr.mxu0 %v3316
          %5118 = vmatpush1.msra.mxu0 %v3315
          %5119 = vmatprep.subr.mxu0 %v3319
          %5120 = vmatpush1.msra.mxu0 %v3318
          %5121 = vmatprep.subr.mxu0 0.0
          %5122 = vmatpush1.msra.mxu0 0.0
          %5123 = vmatprep.subr.mxu0 0.0
          %5124 = vmatpush1.msra.mxu0 0.0
          %5125 = vmatprep.subr.mxu0 0.0
          %5126 = vmatpush1.msra.mxu0 0.0
          %5127 = vmatprep.subr.mxu0 0.0
          %5128 = vmatpush1.msra.mxu0 0.0
          %5129 = vmatprep.subr.mxu0 0.0
          %5130 = vmatpush1.msra.mxu0 0.0
          %5131 = vmatprep.subr.mxu0 0.0
          %5132 = vmatpush1.msra.mxu0 0.0
          %5133 = vmatprep.subr.mxu0 0.0
          %5134 = vmatpush1.msra.mxu0 0.0
          %5135 = vmatprep.subr.mxu0 0.0
          %5136 = vmatpush1.msra.mxu0 0.0
          %5137 = vmatprep.subr.mxu0 0.0
          %5138 = vmatpush1.msra.mxu0 0.0
          %5139 = vmatprep.subr.mxu0 0.0
          %5140 = vmatpush1.msra.mxu0 0.0
          %5141 = vmatprep.subr.mxu0 0.0
          %5142 = vmatpush1.msra.mxu0 0.0
          %5143 = vmatprep.subr.mxu0 0.0
          %5144 = vmatpush1.msra.mxu0 0.0
          %5145 = vmatprep.subr.mxu0 0.0
          %5146 = vmatpush1.msra.mxu0 0.0
          %5147 = vmatprep.subr.mxu0 0.0
          %5148 = vmatpush1.msra.mxu0 0.0
          %5149 = vmatprep.subr.mxu0 0.0
          %5150 = vmatpush1.msra.mxu0 0.0
          %5151 = vmatprep.subr.mxu0 0.0
          %5152 = vmatpush1.msra.mxu0 0.0
          %5153 = vmatprep.mubr.f32.mxu0 0.0
          %5154 = vmatmul.mubr.f32.gmra.mrb[0].mxu0 %v4861
          %v5155 = vpop.f32.mrb[0].mxu0
          %v5156 = vadd.f32 %v3359, %v5155
          %v5157 = vpop.f32.mrb[0].mxu0
          %v5158 = vadd.f32 %v3363, %v5157
          %5159 = vdwg.mxu0
          %5160 = vmatprep.subr.mxu0 0.0
          %5161 = vmatpush1.msra.mxu0 %v3275
          %5162 = vmatprep.subr.mxu0 0.0
          %5163 = vmatpush1.msra.mxu0 %v3278
          %5164 = vmatprep.subr.mxu0 0.0
          %5165 = vmatpush1.msra.mxu0 %v3281
          %5166 = vmatprep.subr.mxu0 0.0
          %5167 = vmatpush1.msra.mxu0 %v3284
          %5168 = vmatprep.subr.mxu0 0.0
          %5169 = vmatpush1.msra.mxu0 %v3287
          %5170 = vmatprep.subr.mxu0 0.0
          %5171 = vmatpush1.msra.mxu0 %v3290
          %5172 = vmatprep.subr.mxu0 0.0
          %5173 = vmatpush1.msra.mxu0 %v3293
          %5174 = vmatprep.subr.mxu0 0.0
          %5175 = vmatpush1.msra.mxu0 %v3296
          %5176 = vmatprep.subr.mxu0 0.0
          %5177 = vmatpush1.msra.mxu0 %v3299
          %5178 = vmatprep.subr.mxu0 0.0
          %5179 = vmatpush1.msra.mxu0 %v3302
          %5180 = vmatprep.subr.mxu0 0.0
          %5181 = vmatpush1.msra.mxu0 %v3305
          %5182 = vmatprep.subr.mxu0 0.0
          %5183 = vmatpush1.msra.mxu0 %v3308
          %5184 = vmatprep.subr.mxu0 0.0
          %5185 = vmatpush1.msra.mxu0 %v3311
          %5186 = vmatprep.subr.mxu0 0.0
          %5187 = vmatpush1.msra.mxu0 %v3314
          %5188 = vmatprep.subr.mxu0 0.0
          %5189 = vmatpush1.msra.mxu0 %v3317
          %5190 = vmatprep.subr.mxu0 0.0
          %5191 = vmatpush1.msra.mxu0 %v3320
          %5192 = vmatprep.subr.mxu0 0.0
          %5193 = vmatpush1.msra.mxu0 0.0
          %5194 = vmatprep.subr.mxu0 0.0
          %5195 = vmatpush1.msra.mxu0 0.0
          %5196 = vmatprep.subr.mxu0 0.0
          %5197 = vmatpush1.msra.mxu0 0.0
          %5198 = vmatprep.subr.mxu0 0.0
          %5199 = vmatpush1.msra.mxu0 0.0
          %5200 = vmatprep.subr.mxu0 0.0
          %5201 = vmatpush1.msra.mxu0 0.0
          %5202 = vmatprep.subr.mxu0 0.0
          %5203 = vmatpush1.msra.mxu0 0.0
          %5204 = vmatprep.subr.mxu0 0.0
          %5205 = vmatpush1.msra.mxu0 0.0
          %5206 = vmatprep.subr.mxu0 0.0
          %5207 = vmatpush1.msra.mxu0 0.0
          %5208 = vmatprep.subr.mxu0 0.0
          %5209 = vmatpush1.msra.mxu0 0.0
          %5210 = vmatprep.subr.mxu0 0.0
          %5211 = vmatpush1.msra.mxu0 0.0
          %5212 = vmatprep.subr.mxu0 0.0
          %5213 = vmatpush1.msra.mxu0 0.0
          %5214 = vmatprep.subr.mxu0 0.0
          %5215 = vmatpush1.msra.mxu0 0.0
          %5216 = vmatprep.subr.mxu0 0.0
          %5217 = vmatpush1.msra.mxu0 0.0
          %5218 = vmatprep.subr.mxu0 0.0
          %5219 = vmatpush1.msra.mxu0 0.0
          %5220 = vmatprep.subr.mxu0 0.0
          %5221 = vmatpush1.msra.mxu0 0.0
          %5222 = vmatprep.subr.mxu0 0.0
          %5223 = vmatpush1.msra.mxu0 0.0
          %5224 = vmatprep.mubr.f32.mxu0 0.0
          %5225 = vmatmul.mubr.f32.gmra.mrb[0].mxu0 %v4861
          %v5226 = vpop.f32.mrb[0].mxu0
          %v5227 = vadd.f32 %v3367, %v5226
          %v5228 = vpop.f32.mrb[0].mxu0
          %5229 = vdwg.mxu0
          %v5230 = vadd.f32 %v5015, %v5156
          %v5231 = vxor.u32 %v5230, 2147483648
          %v5232 = vmul.f32 %v5231, 1.442695
          %v5233 = vpow.pop %v5232
          %v5234 = vadd.f32 %v5233, 1.0
          %v5235 = vrcp.pop %v5234
          %v5236 = vmul.f32 1.0, %v5235
          %v5237 = vadd.f32 %v5017, %v5158
          %v5238 = vxor.u32 %v5237, 2147483648
          %v5239 = vmul.f32 %v5238, 1.442695
          %v5240 = vpow.pop %v5239
          %v5241 = vadd.f32 %v5240, 1.0
          %v5242 = vrcp.pop %v5241
          %v5243 = vmul.f32 1.0, %v5242
          %v5244 = vmul.f32 %v5236, %v5227
          %v5245 = vadd.f32 %v5086, %v5244
          %v5246 = vtanh.pop %v5245
          %v5247 = vsub.f32 1.0, %v5243
          %v5248 = vmul.f32 %v5247, %v5246
          %v5249 = vmul.f32 %v5243, %v4861
          %v5250 = vadd.f32 %v5248, %v5249
          %5251 = vmatprep.subr.mxu0 0.0
          %5252 = vmatpush1.msra.mxu0 %v3321
          %5253 = vmatprep.subr.mxu0 0.0
          %5254 = vmatpush1.msra.mxu0 %v3322
          %5255 = vmatprep.subr.mxu0 0.0
          %5256 = vmatpush1.msra.mxu0 %v3323
          %5257 = vmatprep.subr.mxu0 0.0
          %5258 = vmatpush1.msra.mxu0 %v3324
          %5259 = vmatprep.subr.mxu0 0.0
          %5260 = vmatpush1.msra.mxu0 %v3325
          %5261 = vmatprep.subr.mxu0 0.0
          %5262 = vmatpush1.msra.mxu0 %v3326
          %5263 = vmatprep.subr.mxu0 0.0
          %5264 = vmatpush1.msra.mxu0 %v3327
          %5265 = vmatprep.subr.mxu0 0.0
          %5266 = vmatpush1.msra.mxu0 %v3328
          %5267 = vmatprep.subr.mxu0 0.0
          %5268 = vmatpush1.msra.mxu0 %v3329
          %5269 = vmatprep.subr.mxu0 0.0
          %5270 = vmatpush1.msra.mxu0 %v3330
          %5271 = vmatprep.subr.mxu0 0.0
          %5272 = vmatpush1.msra.mxu0 %v3331
          %5273 = vmatprep.subr.mxu0 0.0
          %5274 = vmatpush1.msra.mxu0 %v3332
          %5275 = vmatprep.subr.mxu0 0.0
          %5276 = vmatpush1.msra.mxu0 %v3333
          %5277 = vmatprep.subr.mxu0 0.0
          %5278 = vmatpush1.msra.mxu0 %v3334
          %5279 = vmatprep.subr.mxu0 0.0
          %5280 = vmatpush1.msra.mxu0 %v3335
          %5281 = vmatprep.subr.mxu0 0.0
          %5282 = vmatpush1.msra.mxu0 %v3336
          %5283 = vmatprep.subr.mxu0 0.0
          %5284 = vmatpush1.msra.mxu0 0.0
          %5285 = vmatprep.subr.mxu0 0.0
          %5286 = vmatpush1.msra.mxu0 0.0
          %5287 = vmatprep.subr.mxu0 0.0
          %5288 = vmatpush1.msra.mxu0 0.0
          %5289 = vmatprep.subr.mxu0 0.0
          %5290 = vmatpush1.msra.mxu0 0.0
          %5291 = vmatprep.subr.mxu0 0.0
          %5292 = vmatpush1.msra.mxu0 0.0
          %5293 = vmatprep.subr.mxu0 0.0
          %5294 = vmatpush1.msra.mxu0 0.0
          %5295 = vmatprep.subr.mxu0 0.0
          %5296 = vmatpush1.msra.mxu0 0.0
          %5297 = vmatprep.subr.mxu0 0.0
          %5298 = vmatpush1.msra.mxu0 0.0
          %5299 = vmatprep.subr.mxu0 0.0
          %5300 = vmatpush1.msra.mxu0 0.0
          %5301 = vmatprep.subr.mxu0 0.0
          %5302 = vmatpush1.msra.mxu0 0.0
          %5303 = vmatprep.subr.mxu0 0.0
          %5304 = vmatpush1.msra.mxu0 0.0
          %5305 = vmatprep.subr.mxu0 0.0
          %5306 = vmatpush1.msra.mxu0 0.0
          %5307 = vmatprep.subr.mxu0 0.0
          %5308 = vmatpush1.msra.mxu0 0.0
          %5309 = vmatprep.subr.mxu0 0.0
          %5310 = vmatpush1.msra.mxu0 0.0
          %5311 = vmatprep.subr.mxu0 0.0
          %5312 = vmatpush1.msra.mxu0 0.0
          %5313 = vmatprep.subr.mxu0 0.0
          %5314 = vmatpush1.msra.mxu0 0.0
          %5315 = vmatprep.mubr.f32.mxu0 0.0
          %5316 = vmatmul.mubr.f32.gmra.mrb[0].mxu0 %v5250
          %v5317 = vpop.f32.mrb[0].mxu0
          %v5318 = vadd.f32 0.0, %v5317
          %v5319 = vpop.f32.mrb[0].mxu0
          %5320 = vdwg.mxu0
          %v5322 = vrot.slane %v5318, 1
          %v5325 = vadd.f32 %v4938, %v5318
          %v5326 = vadd.f32 %v4939, %v5322
          %v5327 = vadd.f32 %v5325, %v3376
          %v5328 = vadd.f32 %v5326, %v3376
          %5329 = vst.msk [vmem:[%s463 + $0x4] sm:$0x1] %vm3772, %v5327
          %5330 = vst.msk [vmem:[%s463 + $0xc] sm:$0x1] %vm3772, %v5328
          %v5333 = vrot.slane %v5328, 7
          %v5334 = vsel %vm3386, %v5333, %v5327
          %v5335 = vsel %vm3388, %v5334, 0
          %5337 = vmatprep.subr.mxu0 %v3268
          %5338 = vmatpush1.msra.mxu0 %v3267
          %5339 = vmatprep.subr.mxu0 %v3271
          %5340 = vmatpush1.msra.mxu0 %v3270
          %5341 = vmatprep.subr.mxu0 0.0
          %5342 = vmatpush1.msra.mxu0 0.0
          %5343 = vmatprep.subr.mxu0 0.0
          %5344 = vmatpush1.msra.mxu0 0.0
          %5345 = vmatprep.subr.mxu0 0.0
          %5346 = vmatpush1.msra.mxu0 0.0
          %5347 = vmatprep.subr.mxu0 0.0
          %5348 = vmatpush1.msra.mxu0 0.0
          %5349 = vmatprep.subr.mxu0 0.0
          %5350 = vmatpush1.msra.mxu0 0.0
          %5351 = vmatprep.subr.mxu0 0.0
          %5352 = vmatpush1.msra.mxu0 0.0
          %5353 = vmatprep.subr.mxu0 0.0
          %5354 = vmatpush1.msra.mxu0 0.0
          %5355 = vmatprep.subr.mxu0 0.0
          %5356 = vmatpush1.msra.mxu0 0.0
          %5357 = vmatprep.subr.mxu0 0.0
          %5358 = vmatpush1.msra.mxu0 0.0
          %5359 = vmatprep.subr.mxu0 0.0
          %5360 = vmatpush1.msra.mxu0 0.0
          %5361 = vmatprep.subr.mxu0 0.0
          %5362 = vmatpush1.msra.mxu0 0.0
          %5363 = vmatprep.subr.mxu0 0.0
          %5364 = vmatpush1.msra.mxu0 0.0
          %5365 = vmatprep.subr.mxu0 0.0
          %5366 = vmatpush1.msra.mxu0 0.0
          %5367 = vmatprep.subr.mxu0 0.0
          %5368 = vmatpush1.msra.mxu0 0.0
          %5369 = vmatprep.subr.mxu0 0.0
          %5370 = vmatpush1.msra.mxu0 0.0
          %5371 = vmatprep.subr.mxu0 0.0
          %5372 = vmatpush1.msra.mxu0 0.0
          %5373 = vmatprep.subr.mxu0 0.0
          %5374 = vmatpush1.msra.mxu0 0.0
          %5375 = vmatprep.subr.mxu0 0.0
          %5376 = vmatpush1.msra.mxu0 0.0
          %5377 = vmatprep.subr.mxu0 0.0
          %5378 = vmatpush1.msra.mxu0 0.0
          %5379 = vmatprep.subr.mxu0 0.0
          %5380 = vmatpush1.msra.mxu0 0.0
          %5381 = vmatprep.subr.mxu0 0.0
          %5382 = vmatpush1.msra.mxu0 0.0
          %5383 = vmatprep.subr.mxu0 0.0
          %5384 = vmatpush1.msra.mxu0 0.0
          %5385 = vmatprep.subr.mxu0 0.0
          %5386 = vmatpush1.msra.mxu0 0.0
          %5387 = vmatprep.subr.mxu0 0.0
          %5388 = vmatpush1.msra.mxu0 0.0
          %5389 = vmatprep.subr.mxu0 0.0
          %5390 = vmatpush1.msra.mxu0 0.0
          %5391 = vmatprep.subr.mxu0 0.0
          %5392 = vmatpush1.msra.mxu0 0.0
          %5393 = vmatprep.subr.mxu0 0.0
          %5394 = vmatpush1.msra.mxu0 0.0
          %5395 = vmatprep.subr.mxu0 0.0
          %5396 = vmatpush1.msra.mxu0 0.0
          %5397 = vmatprep.subr.mxu0 0.0
          %5398 = vmatpush1.msra.mxu0 0.0
          %5399 = vmatprep.subr.mxu0 0.0
          %5400 = vmatpush1.msra.mxu0 0.0
          %5401 = vmatprep.mubr.f32.mxu0 0.0
          %5402 = vmatmul.mubr.f32.gmra.mrb[0].mxu0 %v5335
          %v5403 = vpop.f32.mrb[0].mxu0
          %v5404 = vadd.f32 %v3342, %v5403
          %v5405 = vpop.f32.mrb[0].mxu0
          %v5406 = vadd.f32 %v3346, %v5405
          %5407 = vdwg.mxu0
          %5408 = vmatprep.subr.mxu0 0.0
          %5409 = vmatpush1.msra.mxu0 %v3269
          %5410 = vmatprep.subr.mxu0 0.0
          %5411 = vmatpush1.msra.mxu0 %v3272
          %5412 = vmatprep.subr.mxu0 0.0
          %5413 = vmatpush1.msra.mxu0 0.0
          %5414 = vmatprep.subr.mxu0 0.0
          %5415 = vmatpush1.msra.mxu0 0.0
          %5416 = vmatprep.subr.mxu0 0.0
          %5417 = vmatpush1.msra.mxu0 0.0
          %5418 = vmatprep.subr.mxu0 0.0
          %5419 = vmatpush1.msra.mxu0 0.0
          %5420 = vmatprep.subr.mxu0 0.0
          %5421 = vmatpush1.msra.mxu0 0.0
          %5422 = vmatprep.subr.mxu0 0.0
          %5423 = vmatpush1.msra.mxu0 0.0
          %5424 = vmatprep.subr.mxu0 0.0
          %5425 = vmatpush1.msra.mxu0 0.0
          %5426 = vmatprep.subr.mxu0 0.0
          %5427 = vmatpush1.msra.mxu0 0.0
          %5428 = vmatprep.subr.mxu0 0.0
          %5429 = vmatpush1.msra.mxu0 0.0
          %5430 = vmatprep.subr.mxu0 0.0
          %5431 = vmatpush1.msra.mxu0 0.0
          %5432 = vmatprep.subr.mxu0 0.0
          %5433 = vmatpush1.msra.mxu0 0.0
          %5434 = vmatprep.subr.mxu0 0.0
          %5435 = vmatpush1.msra.mxu0 0.0
          %5436 = vmatprep.subr.mxu0 0.0
          %5437 = vmatpush1.msra.mxu0 0.0
          %5438 = vmatprep.subr.mxu0 0.0
          %5439 = vmatpush1.msra.mxu0 0.0
          %5440 = vmatprep.subr.mxu0 0.0
          %5441 = vmatpush1.msra.mxu0 0.0
          %5442 = vmatprep.subr.mxu0 0.0
          %5443 = vmatpush1.msra.mxu0 0.0
          %5444 = vmatprep.subr.mxu0 0.0
          %5445 = vmatpush1.msra.mxu0 0.0
          %5446 = vmatprep.subr.mxu0 0.0
          %5447 = vmatpush1.msra.mxu0 0.0
          %5448 = vmatprep.subr.mxu0 0.0
          %5449 = vmatpush1.msra.mxu0 0.0
          %5450 = vmatprep.subr.mxu0 0.0
          %5451 = vmatpush1.msra.mxu0 0.0
          %5452 = vmatprep.subr.mxu0 0.0
          %5453 = vmatpush1.msra.mxu0 0.0
          %5454 = vmatprep.subr.mxu0 0.0
          %5455 = vmatpush1.msra.mxu0 0.0
          %5456 = vmatprep.subr.mxu0 0.0
          %5457 = vmatpush1.msra.mxu0 0.0
          %5458 = vmatprep.subr.mxu0 0.0
          %5459 = vmatpush1.msra.mxu0 0.0
          %5460 = vmatprep.subr.mxu0 0.0
          %5461 = vmatpush1.msra.mxu0 0.0
          %5462 = vmatprep.subr.mxu0 0.0
          %5463 = vmatpush1.msra.mxu0 0.0
          %5464 = vmatprep.subr.mxu0 0.0
          %5465 = vmatpush1.msra.mxu0 0.0
          %5466 = vmatprep.subr.mxu0 0.0
          %5467 = vmatpush1.msra.mxu0 0.0
          %5468 = vmatprep.subr.mxu0 0.0
          %5469 = vmatpush1.msra.mxu0 0.0
          %5470 = vmatprep.subr.mxu0 0.0
          %5471 = vmatpush1.msra.mxu0 0.0
          %5472 = vmatprep.mubr.f32.mxu0 0.0
          %5473 = vmatmul.mubr.f32.gmra.mrb[0].mxu0 %v5335
          %v5474 = vpop.f32.mrb[0].mxu0
          %v5475 = vadd.f32 %v3350, %v5474
          %v5476 = vpop.f32.mrb[0].mxu0
          %5477 = vdwg.mxu0
          %5478 = vmatprep.subr.mxu0 %v3274
          %5479 = vmatpush1.msra.mxu0 %v3273
          %5480 = vmatprep.subr.mxu0 %v3277
          %5481 = vmatpush1.msra.mxu0 %v3276
          %5482 = vmatprep.subr.mxu0 %v3280
          %5483 = vmatpush1.msra.mxu0 %v3279
          %5484 = vmatprep.subr.mxu0 %v3283
          %5485 = vmatpush1.msra.mxu0 %v3282
          %5486 = vmatprep.subr.mxu0 %v3286
          %5487 = vmatpush1.msra.mxu0 %v3285
          %5488 = vmatprep.subr.mxu0 %v3289
          %5489 = vmatpush1.msra.mxu0 %v3288
          %5490 = vmatprep.subr.mxu0 %v3292
          %5491 = vmatpush1.msra.mxu0 %v3291
          %5492 = vmatprep.subr.mxu0 %v3295
          %5493 = vmatpush1.msra.mxu0 %v3294
          %5494 = vmatprep.subr.mxu0 %v3298
          %5495 = vmatpush1.msra.mxu0 %v3297
          %5496 = vmatprep.subr.mxu0 %v3301
          %5497 = vmatpush1.msra.mxu0 %v3300
          %5498 = vmatprep.subr.mxu0 %v3304
          %5499 = vmatpush1.msra.mxu0 %v3303
          %5500 = vmatprep.subr.mxu0 %v3307
          %5501 = vmatpush1.msra.mxu0 %v3306
          %5502 = vmatprep.subr.mxu0 %v3310
          %5503 = vmatpush1.msra.mxu0 %v3309
          %5504 = vmatprep.subr.mxu0 %v3313
          %5505 = vmatpush1.msra.mxu0 %v3312
          %5506 = vmatprep.subr.mxu0 %v3316
          %5507 = vmatpush1.msra.mxu0 %v3315
          %5508 = vmatprep.subr.mxu0 %v3319
          %5509 = vmatpush1.msra.mxu0 %v3318
          %5510 = vmatprep.subr.mxu0 0.0
          %5511 = vmatpush1.msra.mxu0 0.0
          %5512 = vmatprep.subr.mxu0 0.0
          %5513 = vmatpush1.msra.mxu0 0.0
          %5514 = vmatprep.subr.mxu0 0.0
          %5515 = vmatpush1.msra.mxu0 0.0
          %5516 = vmatprep.subr.mxu0 0.0
          %5517 = vmatpush1.msra.mxu0 0.0
          %5518 = vmatprep.subr.mxu0 0.0
          %5519 = vmatpush1.msra.mxu0 0.0
          %5520 = vmatprep.subr.mxu0 0.0
          %5521 = vmatpush1.msra.mxu0 0.0
          %5522 = vmatprep.subr.mxu0 0.0
          %5523 = vmatpush1.msra.mxu0 0.0
          %5524 = vmatprep.subr.mxu0 0.0
          %5525 = vmatpush1.msra.mxu0 0.0
          %5526 = vmatprep.subr.mxu0 0.0
          %5527 = vmatpush1.msra.mxu0 0.0
          %5528 = vmatprep.subr.mxu0 0.0
          %5529 = vmatpush1.msra.mxu0 0.0
          %5530 = vmatprep.subr.mxu0 0.0
          %5531 = vmatpush1.msra.mxu0 0.0
          %5532 = vmatprep.subr.mxu0 0.0
          %5533 = vmatpush1.msra.mxu0 0.0
          %5534 = vmatprep.subr.mxu0 0.0
          %5535 = vmatpush1.msra.mxu0 0.0
          %5536 = vmatprep.subr.mxu0 0.0
          %5537 = vmatpush1.msra.mxu0 0.0
          %5538 = vmatprep.subr.mxu0 0.0
          %5539 = vmatpush1.msra.mxu0 0.0
          %5540 = vmatprep.subr.mxu0 0.0
          %5541 = vmatpush1.msra.mxu0 0.0
          %5542 = vmatprep.mubr.f32.mxu0 0.0
          %5543 = vmatmul.mubr.f32.gmra.mrb[0].mxu0 %v5250
          %v5544 = vpop.f32.mrb[0].mxu0
          %v5545 = vadd.f32 %v3359, %v5544
          %v5546 = vpop.f32.mrb[0].mxu0
          %v5547 = vadd.f32 %v3363, %v5546
          %5548 = vdwg.mxu0
          %5549 = vmatprep.subr.mxu0 0.0
          %5550 = vmatpush1.msra.mxu0 %v3275
          %5551 = vmatprep.subr.mxu0 0.0
          %5552 = vmatpush1.msra.mxu0 %v3278
          %5553 = vmatprep.subr.mxu0 0.0
          %5554 = vmatpush1.msra.mxu0 %v3281
          %5555 = vmatprep.subr.mxu0 0.0
          %5556 = vmatpush1.msra.mxu0 %v3284
          %5557 = vmatprep.subr.mxu0 0.0
          %5558 = vmatpush1.msra.mxu0 %v3287
          %5559 = vmatprep.subr.mxu0 0.0
          %5560 = vmatpush1.msra.mxu0 %v3290
          %5561 = vmatprep.subr.mxu0 0.0
          %5562 = vmatpush1.msra.mxu0 %v3293
          %5563 = vmatprep.subr.mxu0 0.0
          %5564 = vmatpush1.msra.mxu0 %v3296
          %5565 = vmatprep.subr.mxu0 0.0
          %5566 = vmatpush1.msra.mxu0 %v3299
          %5567 = vmatprep.subr.mxu0 0.0
          %5568 = vmatpush1.msra.mxu0 %v3302
          %5569 = vmatprep.subr.mxu0 0.0
          %5570 = vmatpush1.msra.mxu0 %v3305
          %5571 = vmatprep.subr.mxu0 0.0
          %5572 = vmatpush1.msra.mxu0 %v3308
          %5573 = vmatprep.subr.mxu0 0.0
          %5574 = vmatpush1.msra.mxu0 %v3311
          %5575 = vmatprep.subr.mxu0 0.0
          %5576 = vmatpush1.msra.mxu0 %v3314
          %5577 = vmatprep.subr.mxu0 0.0
          %5578 = vmatpush1.msra.mxu0 %v3317
          %5579 = vmatprep.subr.mxu0 0.0
          %5580 = vmatpush1.msra.mxu0 %v3320
          %5581 = vmatprep.subr.mxu0 0.0
          %5582 = vmatpush1.msra.mxu0 0.0
          %5583 = vmatprep.subr.mxu0 0.0
          %5584 = vmatpush1.msra.mxu0 0.0
          %5585 = vmatprep.subr.mxu0 0.0
          %5586 = vmatpush1.msra.mxu0 0.0
          %5587 = vmatprep.subr.mxu0 0.0
          %5588 = vmatpush1.msra.mxu0 0.0
          %5589 = vmatprep.subr.mxu0 0.0
          %5590 = vmatpush1.msra.mxu0 0.0
          %5591 = vmatprep.subr.mxu0 0.0
          %5592 = vmatpush1.msra.mxu0 0.0
          %5593 = vmatprep.subr.mxu0 0.0
          %5594 = vmatpush1.msra.mxu0 0.0
          %5595 = vmatprep.subr.mxu0 0.0
          %5596 = vmatpush1.msra.mxu0 0.0
          %5597 = vmatprep.subr.mxu0 0.0
          %5598 = vmatpush1.msra.mxu0 0.0
          %5599 = vmatprep.subr.mxu0 0.0
          %5600 = vmatpush1.msra.mxu0 0.0
          %5601 = vmatprep.subr.mxu0 0.0
          %5602 = vmatpush1.msra.mxu0 0.0
          %5603 = vmatprep.subr.mxu0 0.0
          %5604 = vmatpush1.msra.mxu0 0.0
          %5605 = vmatprep.subr.mxu0 0.0
          %5606 = vmatpush1.msra.mxu0 0.0
          %5607 = vmatprep.subr.mxu0 0.0
          %5608 = vmatpush1.msra.mxu0 0.0
          %5609 = vmatprep.subr.mxu0 0.0
          %5610 = vmatpush1.msra.mxu0 0.0
          %5611 = vmatprep.subr.mxu0 0.0
          %5612 = vmatpush1.msra.mxu0 0.0
          %5613 = vmatprep.mubr.f32.mxu0 0.0
          %5614 = vmatmul.mubr.f32.gmra.mrb[0].mxu0 %v5250
          %v5615 = vpop.f32.mrb[0].mxu0
          %v5616 = vadd.f32 %v3367, %v5615
          %v5617 = vpop.f32.mrb[0].mxu0
          %5618 = vdwg.mxu0
          %v5619 = vadd.f32 %v5404, %v5545
          %v5620 = vxor.u32 %v5619, 2147483648
          %v5621 = vmul.f32 %v5620, 1.442695
          %v5622 = vpow.pop %v5621
          %v5623 = vadd.f32 %v5622, 1.0
          %v5624 = vrcp.pop %v5623
          %v5625 = vmul.f32 1.0, %v5624
          %v5626 = vadd.f32 %v5406, %v5547
          %v5627 = vxor.u32 %v5626, 2147483648
          %v5628 = vmul.f32 %v5627, 1.442695
          %v5629 = vpow.pop %v5628
          %v5630 = vadd.f32 %v5629, 1.0
          %v5631 = vrcp.pop %v5630
          %v5632 = vmul.f32 1.0, %v5631
          %v5633 = vmul.f32 %v5625, %v5616
          %v5634 = vadd.f32 %v5475, %v5633
          %v5635 = vtanh.pop %v5634
          %v5636 = vsub.f32 1.0, %v5632
          %v5637 = vmul.f32 %v5636, %v5635
          %v5638 = vmul.f32 %v5632, %v5250
          %v5639 = vadd.f32 %v5637, %v5638
          %5640 = vmatprep.subr.mxu0 0.0
          %5641 = vmatpush1.msra.mxu0 %v3321
          %5642 = vmatprep.subr.mxu0 0.0
          %5643 = vmatpush1.msra.mxu0 %v3322
          %5644 = vmatprep.subr.mxu0 0.0
          %5645 = vmatpush1.msra.mxu0 %v3323
          %5646 = vmatprep.subr.mxu0 0.0
          %5647 = vmatpush1.msra.mxu0 %v3324
          %5648 = vmatprep.subr.mxu0 0.0
          %5649 = vmatpush1.msra.mxu0 %v3325
          %5650 = vmatprep.subr.mxu0 0.0
          %5651 = vmatpush1.msra.mxu0 %v3326
          %5652 = vmatprep.subr.mxu0 0.0
          %5653 = vmatpush1.msra.mxu0 %v3327
          %5654 = vmatprep.subr.mxu0 0.0
          %5655 = vmatpush1.msra.mxu0 %v3328
          %5656 = vmatprep.subr.mxu0 0.0
          %5657 = vmatpush1.msra.mxu0 %v3329
          %5658 = vmatprep.subr.mxu0 0.0
          %5659 = vmatpush1.msra.mxu0 %v3330
          %5660 = vmatprep.subr.mxu0 0.0
          %5661 = vmatpush1.msra.mxu0 %v3331
          %5662 = vmatprep.subr.mxu0 0.0
          %5663 = vmatpush1.msra.mxu0 %v3332
          %5664 = vmatprep.subr.mxu0 0.0
          %5665 = vmatpush1.msra.mxu0 %v3333
          %5666 = vmatprep.subr.mxu0 0.0
          %5667 = vmatpush1.msra.mxu0 %v3334
          %5668 = vmatprep.subr.mxu0 0.0
          %5669 = vmatpush1.msra.mxu0 %v3335
          %5670 = vmatprep.subr.mxu0 0.0
          %5671 = vmatpush1.msra.mxu0 %v3336
          %5672 = vmatprep.subr.mxu0 0.0
          %5673 = vmatpush1.msra.mxu0 0.0
          %5674 = vmatprep.subr.mxu0 0.0
          %5675 = vmatpush1.msra.mxu0 0.0
          %5676 = vmatprep.subr.mxu0 0.0
          %5677 = vmatpush1.msra.mxu0 0.0
          %5678 = vmatprep.subr.mxu0 0.0
          %5679 = vmatpush1.msra.mxu0 0.0
          %5680 = vmatprep.subr.mxu0 0.0
          %5681 = vmatpush1.msra.mxu0 0.0
          %5682 = vmatprep.subr.mxu0 0.0
          %5683 = vmatpush1.msra.mxu0 0.0
          %5684 = vmatprep.subr.mxu0 0.0
          %5685 = vmatpush1.msra.mxu0 0.0
          %5686 = vmatprep.subr.mxu0 0.0
          %5687 = vmatpush1.msra.mxu0 0.0
          %5688 = vmatprep.subr.mxu0 0.0
          %5689 = vmatpush1.msra.mxu0 0.0
          %5690 = vmatprep.subr.mxu0 0.0
          %5691 = vmatpush1.msra.mxu0 0.0
          %5692 = vmatprep.subr.mxu0 0.0
          %5693 = vmatpush1.msra.mxu0 0.0
          %5694 = vmatprep.subr.mxu0 0.0
          %5695 = vmatpush1.msra.mxu0 0.0
          %5696 = vmatprep.subr.mxu0 0.0
          %5697 = vmatpush1.msra.mxu0 0.0
          %5698 = vmatprep.subr.mxu0 0.0
          %5699 = vmatpush1.msra.mxu0 0.0
          %5700 = vmatprep.subr.mxu0 0.0
          %5701 = vmatpush1.msra.mxu0 0.0
          %5702 = vmatprep.subr.mxu0 0.0
          %5703 = vmatpush1.msra.mxu0 0.0
          %5704 = vmatprep.mubr.f32.mxu0 0.0
          %5705 = vmatmul.mubr.f32.gmra.mrb[0].mxu0 %v5639
          %v5706 = vpop.f32.mrb[0].mxu0
          %v5707 = vadd.f32 0.0, %v5706
          %v5708 = vpop.f32.mrb[0].mxu0
          %5709 = vdwg.mxu0
          %v5711 = vrot.slane %v5707, 1
          %v5714 = vadd.f32 %v5327, %v5707
          %v5715 = vadd.f32 %v5328, %v5711
          %v5716 = vadd.f32 %v5714, %v3376
          %v5717 = vadd.f32 %v5715, %v3376
          %5718 = vst.msk [vmem:[%s463 + $0x5] sm:$0x1] %vm3772, %v5716
          %5719 = vst.msk [vmem:[%s463 + $0xd] sm:$0x1] %vm3772, %v5717
          %v5722 = vrot.slane %v5717, 7
          %v5723 = vsel %vm3386, %v5722, %v5716
          %v5724 = vsel %vm3388, %v5723, 0
          %5726 = vmatprep.subr.mxu0 %v3268
          %5727 = vmatpush1.msra.mxu0 %v3267
          %5728 = vmatprep.subr.mxu0 %v3271
          %5729 = vmatpush1.msra.mxu0 %v3270
          %5730 = vmatprep.subr.mxu0 0.0
          %5731 = vmatpush1.msra.mxu0 0.0
          %5732 = vmatprep.subr.mxu0 0.0
          %5733 = vmatpush1.msra.mxu0 0.0
          %5734 = vmatprep.subr.mxu0 0.0
          %5735 = vmatpush1.msra.mxu0 0.0
          %5736 = vmatprep.subr.mxu0 0.0
          %5737 = vmatpush1.msra.mxu0 0.0
          %5738 = vmatprep.subr.mxu0 0.0
          %5739 = vmatpush1.msra.mxu0 0.0
          %5740 = vmatprep.subr.mxu0 0.0
          %5741 = vmatpush1.msra.mxu0 0.0
          %5742 = vmatprep.subr.mxu0 0.0
          %5743 = vmatpush1.msra.mxu0 0.0
          %5744 = vmatprep.subr.mxu0 0.0
          %5745 = vmatpush1.msra.mxu0 0.0
          %5746 = vmatprep.subr.mxu0 0.0
          %5747 = vmatpush1.msra.mxu0 0.0
          %5748 = vmatprep.subr.mxu0 0.0
          %5749 = vmatpush1.msra.mxu0 0.0
          %5750 = vmatprep.subr.mxu0 0.0
          %5751 = vmatpush1.msra.mxu0 0.0
          %5752 = vmatprep.subr.mxu0 0.0
          %5753 = vmatpush1.msra.mxu0 0.0
          %5754 = vmatprep.subr.mxu0 0.0
          %5755 = vmatpush1.msra.mxu0 0.0
          %5756 = vmatprep.subr.mxu0 0.0
          %5757 = vmatpush1.msra.mxu0 0.0
          %5758 = vmatprep.subr.mxu0 0.0
          %5759 = vmatpush1.msra.mxu0 0.0
          %5760 = vmatprep.subr.mxu0 0.0
          %5761 = vmatpush1.msra.mxu0 0.0
          %5762 = vmatprep.subr.mxu0 0.0
          %5763 = vmatpush1.msra.mxu0 0.0
          %5764 = vmatprep.subr.mxu0 0.0
          %5765 = vmatpush1.msra.mxu0 0.0
          %5766 = vmatprep.subr.mxu0 0.0
          %5767 = vmatpush1.msra.mxu0 0.0
          %5768 = vmatprep.subr.mxu0 0.0
          %5769 = vmatpush1.msra.mxu0 0.0
          %5770 = vmatprep.subr.mxu0 0.0
          %5771 = vmatpush1.msra.mxu0 0.0
          %5772 = vmatprep.subr.mxu0 0.0
          %5773 = vmatpush1.msra.mxu0 0.0
          %5774 = vmatprep.subr.mxu0 0.0
          %5775 = vmatpush1.msra.mxu0 0.0
          %5776 = vmatprep.subr.mxu0 0.0
          %5777 = vmatpush1.msra.mxu0 0.0
          %5778 = vmatprep.subr.mxu0 0.0
          %5779 = vmatpush1.msra.mxu0 0.0
          %5780 = vmatprep.subr.mxu0 0.0
          %5781 = vmatpush1.msra.mxu0 0.0
          %5782 = vmatprep.subr.mxu0 0.0
          %5783 = vmatpush1.msra.mxu0 0.0
          %5784 = vmatprep.subr.mxu0 0.0
          %5785 = vmatpush1.msra.mxu0 0.0
          %5786 = vmatprep.subr.mxu0 0.0
          %5787 = vmatpush1.msra.mxu0 0.0
          %5788 = vmatprep.subr.mxu0 0.0
          %5789 = vmatpush1.msra.mxu0 0.0
          %5790 = vmatprep.mubr.f32.mxu0 0.0
          %5791 = vmatmul.mubr.f32.gmra.mrb[0].mxu0 %v5724
          %v5792 = vpop.f32.mrb[0].mxu0
          %v5793 = vadd.f32 %v3342, %v5792
          %v5794 = vpop.f32.mrb[0].mxu0
          %v5795 = vadd.f32 %v3346, %v5794
          %5796 = vdwg.mxu0
          %5797 = vmatprep.subr.mxu0 0.0
          %5798 = vmatpush1.msra.mxu0 %v3269
          %5799 = vmatprep.subr.mxu0 0.0
          %5800 = vmatpush1.msra.mxu0 %v3272
          %5801 = vmatprep.subr.mxu0 0.0
          %5802 = vmatpush1.msra.mxu0 0.0
          %5803 = vmatprep.subr.mxu0 0.0
          %5804 = vmatpush1.msra.mxu0 0.0
          %5805 = vmatprep.subr.mxu0 0.0
          %5806 = vmatpush1.msra.mxu0 0.0
          %5807 = vmatprep.subr.mxu0 0.0
          %5808 = vmatpush1.msra.mxu0 0.0
          %5809 = vmatprep.subr.mxu0 0.0
          %5810 = vmatpush1.msra.mxu0 0.0
          %5811 = vmatprep.subr.mxu0 0.0
          %5812 = vmatpush1.msra.mxu0 0.0
          %5813 = vmatprep.subr.mxu0 0.0
          %5814 = vmatpush1.msra.mxu0 0.0
          %5815 = vmatprep.subr.mxu0 0.0
          %5816 = vmatpush1.msra.mxu0 0.0
          %5817 = vmatprep.subr.mxu0 0.0
          %5818 = vmatpush1.msra.mxu0 0.0
          %5819 = vmatprep.subr.mxu0 0.0
          %5820 = vmatpush1.msra.mxu0 0.0
          %5821 = vmatprep.subr.mxu0 0.0
          %5822 = vmatpush1.msra.mxu0 0.0
          %5823 = vmatprep.subr.mxu0 0.0
          %5824 = vmatpush1.msra.mxu0 0.0
          %5825 = vmatprep.subr.mxu0 0.0
          %5826 = vmatpush1.msra.mxu0 0.0
          %5827 = vmatprep.subr.mxu0 0.0
          %5828 = vmatpush1.msra.mxu0 0.0
          %5829 = vmatprep.subr.mxu0 0.0
          %5830 = vmatpush1.msra.mxu0 0.0
          %5831 = vmatprep.subr.mxu0 0.0
          %5832 = vmatpush1.msra.mxu0 0.0
          %5833 = vmatprep.subr.mxu0 0.0
          %5834 = vmatpush1.msra.mxu0 0.0
          %5835 = vmatprep.subr.mxu0 0.0
          %5836 = vmatpush1.msra.mxu0 0.0
          %5837 = vmatprep.subr.mxu0 0.0
          %5838 = vmatpush1.msra.mxu0 0.0
          %5839 = vmatprep.subr.mxu0 0.0
          %5840 = vmatpush1.msra.mxu0 0.0
          %5841 = vmatprep.subr.mxu0 0.0
          %5842 = vmatpush1.msra.mxu0 0.0
          %5843 = vmatprep.subr.mxu0 0.0
          %5844 = vmatpush1.msra.mxu0 0.0
          %5845 = vmatprep.subr.mxu0 0.0
          %5846 = vmatpush1.msra.mxu0 0.0
          %5847 = vmatprep.subr.mxu0 0.0
          %5848 = vmatpush1.msra.mxu0 0.0
          %5849 = vmatprep.subr.mxu0 0.0
          %5850 = vmatpush1.msra.mxu0 0.0
          %5851 = vmatprep.subr.mxu0 0.0
          %5852 = vmatpush1.msra.mxu0 0.0
          %5853 = vmatprep.subr.mxu0 0.0
          %5854 = vmatpush1.msra.mxu0 0.0
          %5855 = vmatprep.subr.mxu0 0.0
          %5856 = vmatpush1.msra.mxu0 0.0
          %5857 = vmatprep.subr.mxu0 0.0
          %5858 = vmatpush1.msra.mxu0 0.0
          %5859 = vmatprep.subr.mxu0 0.0
          %5860 = vmatpush1.msra.mxu0 0.0
          %5861 = vmatprep.mubr.f32.mxu0 0.0
          %5862 = vmatmul.mubr.f32.gmra.mrb[0].mxu0 %v5724
          %v5863 = vpop.f32.mrb[0].mxu0
          %v5864 = vadd.f32 %v3350, %v5863
          %v5865 = vpop.f32.mrb[0].mxu0
          %5866 = vdwg.mxu0
          %5867 = vmatprep.subr.mxu0 %v3274
          %5868 = vmatpush1.msra.mxu0 %v3273
          %5869 = vmatprep.subr.mxu0 %v3277
          %5870 = vmatpush1.msra.mxu0 %v3276
          %5871 = vmatprep.subr.mxu0 %v3280
          %5872 = vmatpush1.msra.mxu0 %v3279
          %5873 = vmatprep.subr.mxu0 %v3283
          %5874 = vmatpush1.msra.mxu0 %v3282
          %5875 = vmatprep.subr.mxu0 %v3286
          %5876 = vmatpush1.msra.mxu0 %v3285
          %5877 = vmatprep.subr.mxu0 %v3289
          %5878 = vmatpush1.msra.mxu0 %v3288
          %5879 = vmatprep.subr.mxu0 %v3292
          %5880 = vmatpush1.msra.mxu0 %v3291
          %5881 = vmatprep.subr.mxu0 %v3295
          %5882 = vmatpush1.msra.mxu0 %v3294
          %5883 = vmatprep.subr.mxu0 %v3298
          %5884 = vmatpush1.msra.mxu0 %v3297
          %5885 = vmatprep.subr.mxu0 %v3301
          %5886 = vmatpush1.msra.mxu0 %v3300
          %5887 = vmatprep.subr.mxu0 %v3304
          %5888 = vmatpush1.msra.mxu0 %v3303
          %5889 = vmatprep.subr.mxu0 %v3307
          %5890 = vmatpush1.msra.mxu0 %v3306
          %5891 = vmatprep.subr.mxu0 %v3310
          %5892 = vmatpush1.msra.mxu0 %v3309
          %5893 = vmatprep.subr.mxu0 %v3313
          %5894 = vmatpush1.msra.mxu0 %v3312
          %5895 = vmatprep.subr.mxu0 %v3316
          %5896 = vmatpush1.msra.mxu0 %v3315
          %5897 = vmatprep.subr.mxu0 %v3319
          %5898 = vmatpush1.msra.mxu0 %v3318
          %5899 = vmatprep.subr.mxu0 0.0
          %5900 = vmatpush1.msra.mxu0 0.0
          %5901 = vmatprep.subr.mxu0 0.0
          %5902 = vmatpush1.msra.mxu0 0.0
          %5903 = vmatprep.subr.mxu0 0.0
          %5904 = vmatpush1.msra.mxu0 0.0
          %5905 = vmatprep.subr.mxu0 0.0
          %5906 = vmatpush1.msra.mxu0 0.0
          %5907 = vmatprep.subr.mxu0 0.0
          %5908 = vmatpush1.msra.mxu0 0.0
          %5909 = vmatprep.subr.mxu0 0.0
          %5910 = vmatpush1.msra.mxu0 0.0
          %5911 = vmatprep.subr.mxu0 0.0
          %5912 = vmatpush1.msra.mxu0 0.0
          %5913 = vmatprep.subr.mxu0 0.0
          %5914 = vmatpush1.msra.mxu0 0.0
          %5915 = vmatprep.subr.mxu0 0.0
          %5916 = vmatpush1.msra.mxu0 0.0
          %5917 = vmatprep.subr.mxu0 0.0
          %5918 = vmatpush1.msra.mxu0 0.0
          %5919 = vmatprep.subr.mxu0 0.0
          %5920 = vmatpush1.msra.mxu0 0.0
          %5921 = vmatprep.subr.mxu0 0.0
          %5922 = vmatpush1.msra.mxu0 0.0
          %5923 = vmatprep.subr.mxu0 0.0
          %5924 = vmatpush1.msra.mxu0 0.0
          %5925 = vmatprep.subr.mxu0 0.0
          %5926 = vmatpush1.msra.mxu0 0.0
          %5927 = vmatprep.subr.mxu0 0.0
          %5928 = vmatpush1.msra.mxu0 0.0
          %5929 = vmatprep.subr.mxu0 0.0
          %5930 = vmatpush1.msra.mxu0 0.0
          %5931 = vmatprep.mubr.f32.mxu0 0.0
          %5932 = vmatmul.mubr.f32.gmra.mrb[0].mxu0 %v5639
          %v5933 = vpop.f32.mrb[0].mxu0
          %v5934 = vadd.f32 %v3359, %v5933
          %v5935 = vpop.f32.mrb[0].mxu0
          %v5936 = vadd.f32 %v3363, %v5935
          %5937 = vdwg.mxu0
          %5938 = vmatprep.subr.mxu0 0.0
          %5939 = vmatpush1.msra.mxu0 %v3275
          %5940 = vmatprep.subr.mxu0 0.0
          %5941 = vmatpush1.msra.mxu0 %v3278
          %5942 = vmatprep.subr.mxu0 0.0
          %5943 = vmatpush1.msra.mxu0 %v3281
          %5944 = vmatprep.subr.mxu0 0.0
          %5945 = vmatpush1.msra.mxu0 %v3284
          %5946 = vmatprep.subr.mxu0 0.0
          %5947 = vmatpush1.msra.mxu0 %v3287
          %5948 = vmatprep.subr.mxu0 0.0
          %5949 = vmatpush1.msra.mxu0 %v3290
          %5950 = vmatprep.subr.mxu0 0.0
          %5951 = vmatpush1.msra.mxu0 %v3293
          %5952 = vmatprep.subr.mxu0 0.0
          %5953 = vmatpush1.msra.mxu0 %v3296
          %5954 = vmatprep.subr.mxu0 0.0
          %5955 = vmatpush1.msra.mxu0 %v3299
          %5956 = vmatprep.subr.mxu0 0.0
          %5957 = vmatpush1.msra.mxu0 %v3302
          %5958 = vmatprep.subr.mxu0 0.0
          %5959 = vmatpush1.msra.mxu0 %v3305
          %5960 = vmatprep.subr.mxu0 0.0
          %5961 = vmatpush1.msra.mxu0 %v3308
          %5962 = vmatprep.subr.mxu0 0.0
          %5963 = vmatpush1.msra.mxu0 %v3311
          %5964 = vmatprep.subr.mxu0 0.0
          %5965 = vmatpush1.msra.mxu0 %v3314
          %5966 = vmatprep.subr.mxu0 0.0
          %5967 = vmatpush1.msra.mxu0 %v3317
          %5968 = vmatprep.subr.mxu0 0.0
          %5969 = vmatpush1.msra.mxu0 %v3320
          %5970 = vmatprep.subr.mxu0 0.0
          %5971 = vmatpush1.msra.mxu0 0.0
          %5972 = vmatprep.subr.mxu0 0.0
          %5973 = vmatpush1.msra.mxu0 0.0
          %5974 = vmatprep.subr.mxu0 0.0
          %5975 = vmatpush1.msra.mxu0 0.0
          %5976 = vmatprep.subr.mxu0 0.0
          %5977 = vmatpush1.msra.mxu0 0.0
          %5978 = vmatprep.subr.mxu0 0.0
          %5979 = vmatpush1.msra.mxu0 0.0
          %5980 = vmatprep.subr.mxu0 0.0
          %5981 = vmatpush1.msra.mxu0 0.0
          %5982 = vmatprep.subr.mxu0 0.0
          %5983 = vmatpush1.msra.mxu0 0.0
          %5984 = vmatprep.subr.mxu0 0.0
          %5985 = vmatpush1.msra.mxu0 0.0
          %5986 = vmatprep.subr.mxu0 0.0
          %5987 = vmatpush1.msra.mxu0 0.0
          %5988 = vmatprep.subr.mxu0 0.0
          %5989 = vmatpush1.msra.mxu0 0.0
          %5990 = vmatprep.subr.mxu0 0.0
          %5991 = vmatpush1.msra.mxu0 0.0
          %5992 = vmatprep.subr.mxu0 0.0
          %5993 = vmatpush1.msra.mxu0 0.0
          %5994 = vmatprep.subr.mxu0 0.0
          %5995 = vmatpush1.msra.mxu0 0.0
          %5996 = vmatprep.subr.mxu0 0.0
          %5997 = vmatpush1.msra.mxu0 0.0
          %5998 = vmatprep.subr.mxu0 0.0
          %5999 = vmatpush1.msra.mxu0 0.0
          %6000 = vmatprep.subr.mxu0 0.0
          %6001 = vmatpush1.msra.mxu0 0.0
          %6002 = vmatprep.mubr.f32.mxu0 0.0
          %6003 = vmatmul.mubr.f32.gmra.mrb[0].mxu0 %v5639
          %v6004 = vpop.f32.mrb[0].mxu0
          %v6005 = vadd.f32 %v3367, %v6004
          %v6006 = vpop.f32.mrb[0].mxu0
          %6007 = vdwg.mxu0
          %v6008 = vadd.f32 %v5793, %v5934
          %v6009 = vxor.u32 %v6008, 2147483648
          %v6010 = vmul.f32 %v6009, 1.442695
          %v6011 = vpow.pop %v6010
          %v6012 = vadd.f32 %v6011, 1.0
          %v6013 = vrcp.pop %v6012
          %v6014 = vmul.f32 1.0, %v6013
          %v6015 = vadd.f32 %v5795, %v5936
          %v6016 = vxor.u32 %v6015, 2147483648
          %v6017 = vmul.f32 %v6016, 1.442695
          %v6018 = vpow.pop %v6017
          %v6019 = vadd.f32 %v6018, 1.0
          %v6020 = vrcp.pop %v6019
          %v6021 = vmul.f32 1.0, %v6020
          %v6022 = vmul.f32 %v6014, %v6005
          %v6023 = vadd.f32 %v5864, %v6022
          %v6024 = vtanh.pop %v6023
          %v6025 = vsub.f32 1.0, %v6021
          %v6026 = vmul.f32 %v6025, %v6024
          %v6027 = vmul.f32 %v6021, %v5639
          %v6028 = vadd.f32 %v6026, %v6027
          %6029 = vmatprep.subr.mxu0 0.0
          %6030 = vmatpush1.msra.mxu0 %v3321
          %6031 = vmatprep.subr.mxu0 0.0
          %6032 = vmatpush1.msra.mxu0 %v3322
          %6033 = vmatprep.subr.mxu0 0.0
          %6034 = vmatpush1.msra.mxu0 %v3323
          %6035 = vmatprep.subr.mxu0 0.0
          %6036 = vmatpush1.msra.mxu0 %v3324
          %6037 = vmatprep.subr.mxu0 0.0
          %6038 = vmatpush1.msra.mxu0 %v3325
          %6039 = vmatprep.subr.mxu0 0.0
          %6040 = vmatpush1.msra.mxu0 %v3326
          %6041 = vmatprep.subr.mxu0 0.0
          %6042 = vmatpush1.msra.mxu0 %v3327
          %6043 = vmatprep.subr.mxu0 0.0
          %6044 = vmatpush1.msra.mxu0 %v3328
          %6045 = vmatprep.subr.mxu0 0.0
          %6046 = vmatpush1.msra.mxu0 %v3329
          %6047 = vmatprep.subr.mxu0 0.0
          %6048 = vmatpush1.msra.mxu0 %v3330
          %6049 = vmatprep.subr.mxu0 0.0
          %6050 = vmatpush1.msra.mxu0 %v3331
          %6051 = vmatprep.subr.mxu0 0.0
          %6052 = vmatpush1.msra.mxu0 %v3332
          %6053 = vmatprep.subr.mxu0 0.0
          %6054 = vmatpush1.msra.mxu0 %v3333
          %6055 = vmatprep.subr.mxu0 0.0
          %6056 = vmatpush1.msra.mxu0 %v3334
          %6057 = vmatprep.subr.mxu0 0.0
          %6058 = vmatpush1.msra.mxu0 %v3335
          %6059 = vmatprep.subr.mxu0 0.0
          %6060 = vmatpush1.msra.mxu0 %v3336
          %6061 = vmatprep.subr.mxu0 0.0
          %6062 = vmatpush1.msra.mxu0 0.0
          %6063 = vmatprep.subr.mxu0 0.0
          %6064 = vmatpush1.msra.mxu0 0.0
          %6065 = vmatprep.subr.mxu0 0.0
          %6066 = vmatpush1.msra.mxu0 0.0
          %6067 = vmatprep.subr.mxu0 0.0
          %6068 = vmatpush1.msra.mxu0 0.0
          %6069 = vmatprep.subr.mxu0 0.0
          %6070 = vmatpush1.msra.mxu0 0.0
          %6071 = vmatprep.subr.mxu0 0.0
          %6072 = vmatpush1.msra.mxu0 0.0
          %6073 = vmatprep.subr.mxu0 0.0
          %6074 = vmatpush1.msra.mxu0 0.0
          %6075 = vmatprep.subr.mxu0 0.0
          %6076 = vmatpush1.msra.mxu0 0.0
          %6077 = vmatprep.subr.mxu0 0.0
          %6078 = vmatpush1.msra.mxu0 0.0
          %6079 = vmatprep.subr.mxu0 0.0
          %6080 = vmatpush1.msra.mxu0 0.0
          %6081 = vmatprep.subr.mxu0 0.0
          %6082 = vmatpush1.msra.mxu0 0.0
          %6083 = vmatprep.subr.mxu0 0.0
          %6084 = vmatpush1.msra.mxu0 0.0
          %6085 = vmatprep.subr.mxu0 0.0
          %6086 = vmatpush1.msra.mxu0 0.0
          %6087 = vmatprep.subr.mxu0 0.0
          %6088 = vmatpush1.msra.mxu0 0.0
          %6089 = vmatprep.subr.mxu0 0.0
          %6090 = vmatpush1.msra.mxu0 0.0
          %6091 = vmatprep.subr.mxu0 0.0
          %6092 = vmatpush1.msra.mxu0 0.0
          %6093 = vmatprep.mubr.f32.mxu0 0.0
          %6094 = vmatmul.mubr.f32.gmra.mrb[0].mxu0 %v6028
          %v6095 = vpop.f32.mrb[0].mxu0
          %v6096 = vadd.f32 0.0, %v6095
          %v6097 = vpop.f32.mrb[0].mxu0
          %6098 = vdwg.mxu0
          %v6100 = vrot.slane %v6096, 1
          %v6103 = vadd.f32 %v5716, %v6096
          %v6104 = vadd.f32 %v5717, %v6100
          %v6105 = vadd.f32 %v6103, %v3376
          %v6106 = vadd.f32 %v6104, %v3376
          %6107 = vst.msk [vmem:[%s463 + $0x6] sm:$0x1] %vm3772, %v6105
          %6108 = vst.msk [vmem:[%s463 + $0xe] sm:$0x1] %vm3772, %v6106
          %v6111 = vrot.slane %v6106, 7
          %v6112 = vsel %vm3386, %v6111, %v6105
          %v6113 = vsel %vm3388, %v6112, 0
          %6115 = vmatprep.subr.mxu0 %v3268
          %6116 = vmatpush1.msra.mxu0 %v3267
          %6117 = vmatprep.subr.mxu0 %v3271
          %6118 = vmatpush1.msra.mxu0 %v3270
          %6119 = vmatprep.subr.mxu0 0.0
          %6120 = vmatpush1.msra.mxu0 0.0
          %6121 = vmatprep.subr.mxu0 0.0
          %6122 = vmatpush1.msra.mxu0 0.0
          %6123 = vmatprep.subr.mxu0 0.0
          %6124 = vmatpush1.msra.mxu0 0.0
          %6125 = vmatprep.subr.mxu0 0.0
          %6126 = vmatpush1.msra.mxu0 0.0
          %6127 = vmatprep.subr.mxu0 0.0
          %6128 = vmatpush1.msra.mxu0 0.0
          %6129 = vmatprep.subr.mxu0 0.0
          %6130 = vmatpush1.msra.mxu0 0.0
          %6131 = vmatprep.subr.mxu0 0.0
          %6132 = vmatpush1.msra.mxu0 0.0
          %6133 = vmatprep.subr.mxu0 0.0
          %6134 = vmatpush1.msra.mxu0 0.0
          %6135 = vmatprep.subr.mxu0 0.0
          %6136 = vmatpush1.msra.mxu0 0.0
          %6137 = vmatprep.subr.mxu0 0.0
          %6138 = vmatpush1.msra.mxu0 0.0
          %6139 = vmatprep.subr.mxu0 0.0
          %6140 = vmatpush1.msra.mxu0 0.0
          %6141 = vmatprep.subr.mxu0 0.0
          %6142 = vmatpush1.msra.mxu0 0.0
          %6143 = vmatprep.subr.mxu0 0.0
          %6144 = vmatpush1.msra.mxu0 0.0
          %6145 = vmatprep.subr.mxu0 0.0
          %6146 = vmatpush1.msra.mxu0 0.0
          %6147 = vmatprep.subr.mxu0 0.0
          %6148 = vmatpush1.msra.mxu0 0.0
          %6149 = vmatprep.subr.mxu0 0.0
          %6150 = vmatpush1.msra.mxu0 0.0
          %6151 = vmatprep.subr.mxu0 0.0
          %6152 = vmatpush1.msra.mxu0 0.0
          %6153 = vmatprep.subr.mxu0 0.0
          %6154 = vmatpush1.msra.mxu0 0.0
          %6155 = vmatprep.subr.mxu0 0.0
          %6156 = vmatpush1.msra.mxu0 0.0
          %6157 = vmatprep.subr.mxu0 0.0
          %6158 = vmatpush1.msra.mxu0 0.0
          %6159 = vmatprep.subr.mxu0 0.0
          %6160 = vmatpush1.msra.mxu0 0.0
          %6161 = vmatprep.subr.mxu0 0.0
          %6162 = vmatpush1.msra.mxu0 0.0
          %6163 = vmatprep.subr.mxu0 0.0
          %6164 = vmatpush1.msra.mxu0 0.0
          %6165 = vmatprep.subr.mxu0 0.0
          %6166 = vmatpush1.msra.mxu0 0.0
          %6167 = vmatprep.subr.mxu0 0.0
          %6168 = vmatpush1.msra.mxu0 0.0
          %6169 = vmatprep.subr.mxu0 0.0
          %6170 = vmatpush1.msra.mxu0 0.0
          %6171 = vmatprep.subr.mxu0 0.0
          %6172 = vmatpush1.msra.mxu0 0.0
          %6173 = vmatprep.subr.mxu0 0.0
          %6174 = vmatpush1.msra.mxu0 0.0
          %6175 = vmatprep.subr.mxu0 0.0
          %6176 = vmatpush1.msra.mxu0 0.0
          %6177 = vmatprep.subr.mxu0 0.0
          %6178 = vmatpush1.msra.mxu0 0.0
          %6179 = vmatprep.mubr.f32.mxu0 0.0
          %6180 = vmatmul.mubr.f32.gmra.mrb[0].mxu0 %v6113
          %v6181 = vpop.f32.mrb[0].mxu0
          %v6182 = vadd.f32 %v3342, %v6181
          %v6183 = vpop.f32.mrb[0].mxu0
          %v6184 = vadd.f32 %v3346, %v6183
          %6185 = vdwg.mxu0
          %6186 = vmatprep.subr.mxu0 0.0
          %6187 = vmatpush1.msra.mxu0 %v3269
          %6188 = vmatprep.subr.mxu0 0.0
          %6189 = vmatpush1.msra.mxu0 %v3272
          %6190 = vmatprep.subr.mxu0 0.0
          %6191 = vmatpush1.msra.mxu0 0.0
          %6192 = vmatprep.subr.mxu0 0.0
          %6193 = vmatpush1.msra.mxu0 0.0
          %6194 = vmatprep.subr.mxu0 0.0
          %6195 = vmatpush1.msra.mxu0 0.0
          %6196 = vmatprep.subr.mxu0 0.0
          %6197 = vmatpush1.msra.mxu0 0.0
          %6198 = vmatprep.subr.mxu0 0.0
          %6199 = vmatpush1.msra.mxu0 0.0
          %6200 = vmatprep.subr.mxu0 0.0
          %6201 = vmatpush1.msra.mxu0 0.0
          %6202 = vmatprep.subr.mxu0 0.0
          %6203 = vmatpush1.msra.mxu0 0.0
          %6204 = vmatprep.subr.mxu0 0.0
          %6205 = vmatpush1.msra.mxu0 0.0
          %6206 = vmatprep.subr.mxu0 0.0
          %6207 = vmatpush1.msra.mxu0 0.0
          %6208 = vmatprep.subr.mxu0 0.0
          %6209 = vmatpush1.msra.mxu0 0.0
          %6210 = vmatprep.subr.mxu0 0.0
          %6211 = vmatpush1.msra.mxu0 0.0
          %6212 = vmatprep.subr.mxu0 0.0
          %6213 = vmatpush1.msra.mxu0 0.0
          %6214 = vmatprep.subr.mxu0 0.0
          %6215 = vmatpush1.msra.mxu0 0.0
          %6216 = vmatprep.subr.mxu0 0.0
          %6217 = vmatpush1.msra.mxu0 0.0
          %6218 = vmatprep.subr.mxu0 0.0
          %6219 = vmatpush1.msra.mxu0 0.0
          %6220 = vmatprep.subr.mxu0 0.0
          %6221 = vmatpush1.msra.mxu0 0.0
          %6222 = vmatprep.subr.mxu0 0.0
          %6223 = vmatpush1.msra.mxu0 0.0
          %6224 = vmatprep.subr.mxu0 0.0
          %6225 = vmatpush1.msra.mxu0 0.0
          %6226 = vmatprep.subr.mxu0 0.0
          %6227 = vmatpush1.msra.mxu0 0.0
          %6228 = vmatprep.subr.mxu0 0.0
          %6229 = vmatpush1.msra.mxu0 0.0
          %6230 = vmatprep.subr.mxu0 0.0
          %6231 = vmatpush1.msra.mxu0 0.0
          %6232 = vmatprep.subr.mxu0 0.0
          %6233 = vmatpush1.msra.mxu0 0.0
          %6234 = vmatprep.subr.mxu0 0.0
          %6235 = vmatpush1.msra.mxu0 0.0
          %6236 = vmatprep.subr.mxu0 0.0
          %6237 = vmatpush1.msra.mxu0 0.0
          %6238 = vmatprep.subr.mxu0 0.0
          %6239 = vmatpush1.msra.mxu0 0.0
          %6240 = vmatprep.subr.mxu0 0.0
          %6241 = vmatpush1.msra.mxu0 0.0
          %6242 = vmatprep.subr.mxu0 0.0
          %6243 = vmatpush1.msra.mxu0 0.0
          %6244 = vmatprep.subr.mxu0 0.0
          %6245 = vmatpush1.msra.mxu0 0.0
          %6246 = vmatprep.subr.mxu0 0.0
          %6247 = vmatpush1.msra.mxu0 0.0
          %6248 = vmatprep.subr.mxu0 0.0
          %6249 = vmatpush1.msra.mxu0 0.0
          %6250 = vmatprep.mubr.f32.mxu0 0.0
          %6251 = vmatmul.mubr.f32.gmra.mrb[0].mxu0 %v6113
          %v6252 = vpop.f32.mrb[0].mxu0
          %v6253 = vadd.f32 %v3350, %v6252
          %v6254 = vpop.f32.mrb[0].mxu0
          %6255 = vdwg.mxu0
          %6256 = vmatprep.subr.mxu0 %v3274
          %6257 = vmatpush1.msra.mxu0 %v3273
          %6258 = vmatprep.subr.mxu0 %v3277
          %6259 = vmatpush1.msra.mxu0 %v3276
          %6260 = vmatprep.subr.mxu0 %v3280
          %6261 = vmatpush1.msra.mxu0 %v3279
          %6262 = vmatprep.subr.mxu0 %v3283
          %6263 = vmatpush1.msra.mxu0 %v3282
          %6264 = vmatprep.subr.mxu0 %v3286
          %6265 = vmatpush1.msra.mxu0 %v3285
          %6266 = vmatprep.subr.mxu0 %v3289
          %6267 = vmatpush1.msra.mxu0 %v3288
          %6268 = vmatprep.subr.mxu0 %v3292
          %6269 = vmatpush1.msra.mxu0 %v3291
          %6270 = vmatprep.subr.mxu0 %v3295
          %6271 = vmatpush1.msra.mxu0 %v3294
          %6272 = vmatprep.subr.mxu0 %v3298
          %6273 = vmatpush1.msra.mxu0 %v3297
          %6274 = vmatprep.subr.mxu0 %v3301
          %6275 = vmatpush1.msra.mxu0 %v3300
          %6276 = vmatprep.subr.mxu0 %v3304
          %6277 = vmatpush1.msra.mxu0 %v3303
          %6278 = vmatprep.subr.mxu0 %v3307
          %6279 = vmatpush1.msra.mxu0 %v3306
          %6280 = vmatprep.subr.mxu0 %v3310
          %6281 = vmatpush1.msra.mxu0 %v3309
          %6282 = vmatprep.subr.mxu0 %v3313
          %6283 = vmatpush1.msra.mxu0 %v3312
          %6284 = vmatprep.subr.mxu0 %v3316
          %6285 = vmatpush1.msra.mxu0 %v3315
          %6286 = vmatprep.subr.mxu0 %v3319
          %6287 = vmatpush1.msra.mxu0 %v3318
          %6288 = vmatprep.subr.mxu0 0.0
          %6289 = vmatpush1.msra.mxu0 0.0
          %6290 = vmatprep.subr.mxu0 0.0
          %6291 = vmatpush1.msra.mxu0 0.0
          %6292 = vmatprep.subr.mxu0 0.0
          %6293 = vmatpush1.msra.mxu0 0.0
          %6294 = vmatprep.subr.mxu0 0.0
          %6295 = vmatpush1.msra.mxu0 0.0
          %6296 = vmatprep.subr.mxu0 0.0
          %6297 = vmatpush1.msra.mxu0 0.0
          %6298 = vmatprep.subr.mxu0 0.0
          %6299 = vmatpush1.msra.mxu0 0.0
          %6300 = vmatprep.subr.mxu0 0.0
          %6301 = vmatpush1.msra.mxu0 0.0
          %6302 = vmatprep.subr.mxu0 0.0
          %6303 = vmatpush1.msra.mxu0 0.0
          %6304 = vmatprep.subr.mxu0 0.0
          %6305 = vmatpush1.msra.mxu0 0.0
          %6306 = vmatprep.subr.mxu0 0.0
          %6307 = vmatpush1.msra.mxu0 0.0
          %6308 = vmatprep.subr.mxu0 0.0
          %6309 = vmatpush1.msra.mxu0 0.0
          %6310 = vmatprep.subr.mxu0 0.0
          %6311 = vmatpush1.msra.mxu0 0.0
          %6312 = vmatprep.subr.mxu0 0.0
          %6313 = vmatpush1.msra.mxu0 0.0
          %6314 = vmatprep.subr.mxu0 0.0
          %6315 = vmatpush1.msra.mxu0 0.0
          %6316 = vmatprep.subr.mxu0 0.0
          %6317 = vmatpush1.msra.mxu0 0.0
          %6318 = vmatprep.subr.mxu0 0.0
          %6319 = vmatpush1.msra.mxu0 0.0
          %6320 = vmatprep.mubr.f32.mxu0 0.0
          %6321 = vmatmul.mubr.f32.gmra.mrb[0].mxu0 %v6028
          %v6322 = vpop.f32.mrb[0].mxu0
          %v6323 = vadd.f32 %v3359, %v6322
          %v6324 = vpop.f32.mrb[0].mxu0
          %v6325 = vadd.f32 %v3363, %v6324
          %6326 = vdwg.mxu0
          %6327 = vmatprep.subr.mxu0 0.0
          %6328 = vmatpush1.msra.mxu0 %v3275
          %6329 = vmatprep.subr.mxu0 0.0
          %6330 = vmatpush1.msra.mxu0 %v3278
          %6331 = vmatprep.subr.mxu0 0.0
          %6332 = vmatpush1.msra.mxu0 %v3281
          %6333 = vmatprep.subr.mxu0 0.0
          %6334 = vmatpush1.msra.mxu0 %v3284
          %6335 = vmatprep.subr.mxu0 0.0
          %6336 = vmatpush1.msra.mxu0 %v3287
          %6337 = vmatprep.subr.mxu0 0.0
          %6338 = vmatpush1.msra.mxu0 %v3290
          %6339 = vmatprep.subr.mxu0 0.0
          %6340 = vmatpush1.msra.mxu0 %v3293
          %6341 = vmatprep.subr.mxu0 0.0
          %6342 = vmatpush1.msra.mxu0 %v3296
          %6343 = vmatprep.subr.mxu0 0.0
          %6344 = vmatpush1.msra.mxu0 %v3299
          %6345 = vmatprep.subr.mxu0 0.0
          %6346 = vmatpush1.msra.mxu0 %v3302
          %6347 = vmatprep.subr.mxu0 0.0
          %6348 = vmatpush1.msra.mxu0 %v3305
          %6349 = vmatprep.subr.mxu0 0.0
          %6350 = vmatpush1.msra.mxu0 %v3308
          %6351 = vmatprep.subr.mxu0 0.0
          %6352 = vmatpush1.msra.mxu0 %v3311
          %6353 = vmatprep.subr.mxu0 0.0
          %6354 = vmatpush1.msra.mxu0 %v3314
          %6355 = vmatprep.subr.mxu0 0.0
          %6356 = vmatpush1.msra.mxu0 %v3317
          %6357 = vmatprep.subr.mxu0 0.0
          %6358 = vmatpush1.msra.mxu0 %v3320
          %6359 = vmatprep.subr.mxu0 0.0
          %6360 = vmatpush1.msra.mxu0 0.0
          %6361 = vmatprep.subr.mxu0 0.0
          %6362 = vmatpush1.msra.mxu0 0.0
          %6363 = vmatprep.subr.mxu0 0.0
          %6364 = vmatpush1.msra.mxu0 0.0
          %6365 = vmatprep.subr.mxu0 0.0
          %6366 = vmatpush1.msra.mxu0 0.0
          %6367 = vmatprep.subr.mxu0 0.0
          %6368 = vmatpush1.msra.mxu0 0.0
          %6369 = vmatprep.subr.mxu0 0.0
          %6370 = vmatpush1.msra.mxu0 0.0
          %6371 = vmatprep.subr.mxu0 0.0
          %6372 = vmatpush1.msra.mxu0 0.0
          %6373 = vmatprep.subr.mxu0 0.0
          %6374 = vmatpush1.msra.mxu0 0.0
          %6375 = vmatprep.subr.mxu0 0.0
          %6376 = vmatpush1.msra.mxu0 0.0
          %6377 = vmatprep.subr.mxu0 0.0
          %6378 = vmatpush1.msra.mxu0 0.0
          %6379 = vmatprep.subr.mxu0 0.0
          %6380 = vmatpush1.msra.mxu0 0.0
          %6381 = vmatprep.subr.mxu0 0.0
          %6382 = vmatpush1.msra.mxu0 0.0
          %6383 = vmatprep.subr.mxu0 0.0
          %6384 = vmatpush1.msra.mxu0 0.0
          %6385 = vmatprep.subr.mxu0 0.0
          %6386 = vmatpush1.msra.mxu0 0.0
          %6387 = vmatprep.subr.mxu0 0.0
          %6388 = vmatpush1.msra.mxu0 0.0
          %6389 = vmatprep.subr.mxu0 0.0
          %6390 = vmatpush1.msra.mxu0 0.0
          %6391 = vmatprep.mubr.f32.mxu0 0.0
          %6392 = vmatmul.mubr.f32.gmra.mrb[0].mxu0 %v6028
          %v6393 = vpop.f32.mrb[0].mxu0
          %v6394 = vadd.f32 %v3367, %v6393
          %v6395 = vpop.f32.mrb[0].mxu0
          %6396 = vdwg.mxu0
          %v6397 = vadd.f32 %v6182, %v6323
          %v6398 = vxor.u32 %v6397, 2147483648
          %v6399 = vmul.f32 %v6398, 1.442695
          %v6400 = vpow.pop %v6399
          %v6401 = vadd.f32 %v6400, 1.0
          %v6402 = vrcp.pop %v6401
          %v6403 = vmul.f32 1.0, %v6402
          %v6404 = vadd.f32 %v6184, %v6325
          %v6405 = vxor.u32 %v6404, 2147483648
          %v6406 = vmul.f32 %v6405, 1.442695
          %v6407 = vpow.pop %v6406
          %v6408 = vadd.f32 %v6407, 1.0
          %v6409 = vrcp.pop %v6408
          %v6410 = vmul.f32 1.0, %v6409
          %v6411 = vmul.f32 %v6403, %v6394
          %v6412 = vadd.f32 %v6253, %v6411
          %v6413 = vtanh.pop %v6412
          %v6414 = vsub.f32 1.0, %v6410
          %v6415 = vmul.f32 %v6414, %v6413
          %v6416 = vmul.f32 %v6410, %v6028
          %v6417 = vadd.f32 %v6415, %v6416
          %6418 = vmatprep.subr.mxu0 0.0
          %6419 = vmatpush1.msra.mxu0 %v3321
          %6420 = vmatprep.subr.mxu0 0.0
          %6421 = vmatpush1.msra.mxu0 %v3322
          %6422 = vmatprep.subr.mxu0 0.0
          %6423 = vmatpush1.msra.mxu0 %v3323
          %6424 = vmatprep.subr.mxu0 0.0
          %6425 = vmatpush1.msra.mxu0 %v3324
          %6426 = vmatprep.subr.mxu0 0.0
          %6427 = vmatpush1.msra.mxu0 %v3325
          %6428 = vmatprep.subr.mxu0 0.0
          %6429 = vmatpush1.msra.mxu0 %v3326
          %6430 = vmatprep.subr.mxu0 0.0
          %6431 = vmatpush1.msra.mxu0 %v3327
          %6432 = vmatprep.subr.mxu0 0.0
          %6433 = vmatpush1.msra.mxu0 %v3328
          %6434 = vmatprep.subr.mxu0 0.0
          %6435 = vmatpush1.msra.mxu0 %v3329
          %6436 = vmatprep.subr.mxu0 0.0
          %6437 = vmatpush1.msra.mxu0 %v3330
          %6438 = vmatprep.subr.mxu0 0.0
          %6439 = vmatpush1.msra.mxu0 %v3331
          %6440 = vmatprep.subr.mxu0 0.0
          %6441 = vmatpush1.msra.mxu0 %v3332
          %6442 = vmatprep.subr.mxu0 0.0
          %6443 = vmatpush1.msra.mxu0 %v3333
          %6444 = vmatprep.subr.mxu0 0.0
          %6445 = vmatpush1.msra.mxu0 %v3334
          %6446 = vmatprep.subr.mxu0 0.0
          %6447 = vmatpush1.msra.mxu0 %v3335
          %6448 = vmatprep.subr.mxu0 0.0
          %6449 = vmatpush1.msra.mxu0 %v3336
          %6450 = vmatprep.subr.mxu0 0.0
          %6451 = vmatpush1.msra.mxu0 0.0
          %6452 = vmatprep.subr.mxu0 0.0
          %6453 = vmatpush1.msra.mxu0 0.0
          %6454 = vmatprep.subr.mxu0 0.0
          %6455 = vmatpush1.msra.mxu0 0.0
          %6456 = vmatprep.subr.mxu0 0.0
          %6457 = vmatpush1.msra.mxu0 0.0
          %6458 = vmatprep.subr.mxu0 0.0
          %6459 = vmatpush1.msra.mxu0 0.0
          %6460 = vmatprep.subr.mxu0 0.0
          %6461 = vmatpush1.msra.mxu0 0.0
          %6462 = vmatprep.subr.mxu0 0.0
          %6463 = vmatpush1.msra.mxu0 0.0
          %6464 = vmatprep.subr.mxu0 0.0
          %6465 = vmatpush1.msra.mxu0 0.0
          %6466 = vmatprep.subr.mxu0 0.0
          %6467 = vmatpush1.msra.mxu0 0.0
          %6468 = vmatprep.subr.mxu0 0.0
          %6469 = vmatpush1.msra.mxu0 0.0
          %6470 = vmatprep.subr.mxu0 0.0
          %6471 = vmatpush1.msra.mxu0 0.0
          %6472 = vmatprep.subr.mxu0 0.0
          %6473 = vmatpush1.msra.mxu0 0.0
          %6474 = vmatprep.subr.mxu0 0.0
          %6475 = vmatpush1.msra.mxu0 0.0
          %6476 = vmatprep.subr.mxu0 0.0
          %6477 = vmatpush1.msra.mxu0 0.0
          %6478 = vmatprep.subr.mxu0 0.0
          %6479 = vmatpush1.msra.mxu0 0.0
          %6480 = vmatprep.subr.mxu0 0.0
          %6481 = vmatpush1.msra.mxu0 0.0
          %6482 = vmatprep.mubr.f32.mxu0 0.0
          %6483 = vmatmul.mubr.f32.gmra.mrb[0].mxu0 %v6417
          %v6484 = vpop.f32.mrb[0].mxu0
          %v6485 = vadd.f32 0.0, %v6484
          %v6486 = vpop.f32.mrb[0].mxu0
          %6487 = vdwg.mxu0
          %v6489 = vrot.slane %v6485, 1
          %v6492 = vadd.f32 %v6105, %v6485
          %v6493 = vadd.f32 %v6106, %v6489
          %v6494 = vadd.f32 %v6492, %v3376
          %v6495 = vadd.f32 %v6493, %v3376
          %6496 = vst.msk [vmem:[%s463 + $0x7] sm:$0x1] %vm3772, %v6494
          %6497 = vst.msk [vmem:[%s463 + $0xf] sm:$0x1] %vm3772, %v6495
        $region84: #{seq2seq_conditioned9_forward.1} parent=67 // pred_fallthru
          _
        %p6498 = scmp.lt.s32.totalorder %s27, 1
        %s6499 = scalar_select %p6498, %s27, 1
        %s6500 = smul.addr %s6499, 2
        %s6501 = smul.addr %s6500, 8
        %s6502 = scalar_lea.vmem %s12, %s6501
        %p6503 = scmp.lt.s32.totalorder %s27, 1
        %s6504 = scalar_select %p6503, %s27, 1
        %s6505 = smul.addr %s6504, 2
        %s6506 = smul.addr %s6505, 8
        %s6507 = scalar_lea.vmem %s13, %s6506
        // Predicated region
        $region85: #{seq2seq_conditioned9_forward.1} parent=67 // pred_check
          %p6508 = pneg %p297
        $region86: #{seq2seq_conditioned9_forward.1} parent=67 // pred_check_branch
          %6510 = sbr.rel (%p6508) target = $region88
        $region87: #{seq2seq_conditioned9_forward.1} parent=67 // pred_region
          _
        $region88: #{seq2seq_conditioned9_forward.1} parent=67 // pred_fallthru
          _
        // Predicated region
        $region89: #{seq2seq_conditioned9_forward.1} parent=67 // pred_check
          %p6511 = pneg %p323
        $region90: #{seq2seq_conditioned9_forward.1} parent=67 // pred_check_branch
          %6513 = sbr.rel (%p6511) target = $region92
        $region91: #{seq2seq_conditioned9_forward.1} parent=67 // pred_region
          _
        $region92: #{seq2seq_conditioned9_forward.1} parent=67 // pred_fallthru
          _
      $region68: #{seq2seq_conditioned9_forward.1} parent=5 // pred_fallthru
        _
      %p6514 = scmp.le.s32.totalorder 2, %s22
      // Predicated region
      $region93: #{seq2seq_conditioned9_forward.1} parent=5 // pred_check
        %p6515 = pneg %p6514
      $region94: #{seq2seq_conditioned9_forward.1} parent=5 // pred_check_branch
        %6517 = sbr.rel (%p6515) target = $region96
      $region95: #{seq2seq_conditioned9_forward.1} parent=5 // pred_region
        %s6518 = ssub.s32 %s22, 2
        // Predicated region
        $region97: #{seq2seq_conditioned9_forward.1} parent=95 // pred_check
          %p6519 = pneg %p303
        $region98: #{seq2seq_conditioned9_forward.1} parent=95 // pred_check_branch
          %6521 = sbr.rel (%p6519) target = $region100
        $region99: #{seq2seq_conditioned9_forward.1} parent=95 // pred_region
          %p6522 = scmp.lt.s32.totalorder %s28, 1
          %s6523 = scalar_select %p6522, %s28, 1
          %s6524 = smul.addr %s6523, 2
          %s6525 = smul.addr %s6524, 8
          %s6526 = scalar_lea.vmem %s12, %s6525
        $region100: #{seq2seq_conditioned9_forward.1} parent=95 // pred_fallthru
          _
        // Predicated region
        $region101: #{seq2seq_conditioned9_forward.1} parent=95 // pred_check
          %p6527 = pneg %p329
        $region102: #{seq2seq_conditioned9_forward.1} parent=95 // pred_check_branch
          %6529 = sbr.rel (%p6527) target = $region104
        $region103: #{seq2seq_conditioned9_forward.1} parent=95 // pred_region
          %p6530 = scmp.lt.s32.totalorder %s28, 1
          %s6531 = scalar_select %p6530, %s28, 1
          %s6532 = smul.addr %s6531, 2
          %s6533 = smul.addr %s6532, 8
          %s6534 = scalar_lea.vmem %s13, %s6533
        $region104: #{seq2seq_conditioned9_forward.1} parent=95 // pred_fallthru
          _
      $region96: #{seq2seq_conditioned9_forward.1} parent=5 // pred_fallthru
        _
    $region6: #{seq2seq_conditioned9_forward.1} parent=1 // loop_footer
      %s26 = sadd.s32 1, %s22
    $region7: #{seq2seq_conditioned9_forward.1} parent=1 // loop_footer_branch
      %21 = sbr.rel target = $region3
    $region8: #{seq2seq_conditioned9_forward.1} parent=1 // loop_exit
      _
    %6535 = vsyncpa [#allocation3], 1
    %s6536 = scalar_lea.sflag [#allocation3], 1
    %6537 = vsyncpa %s6536, 1
    %6538 = vsyncpa [#allocation5], 1

</llo_original>
